<compile_context>
chip_gen: v7x
topology: tpu7x:2x2x1
jax: 0.10.0
libtpu: 0.0.40
codegen_flags: <defaults>
</compile_context>

<pallas_src>
import functools

import jax
import jax.numpy as jnp
from jax.experimental import pallas as pl
from jax.experimental.pallas import tpu as pltpu
import numpy as np


def _round_up(x, m):
    return ((x + m - 1) // m) * m


def _siren_fused_kernel(*refs, apply_sine_flags):
    """Fused SIREN MLP over one tile of points.

    refs = (x_ref, w0, b0, w1, b1, ..., o_ref)
      x_ref : (tile_n, in_features)   point-major (HBM-native layout)
      wK    : (f_outK, f_inK)         PyTorch-native layout (omega folded in)
      bK    : (f_outK, 1)
      o_ref : (out_features, tile_n)  feature-major, points on lanes
    """
    x_ref = refs[0]
    o_ref = refs[-1]
    param_refs = refs[1:-1]

    # --- Layer 0: consume the point-major input directly. -----------------
    # Contracting the LAST dim of both operands (the attention q @ k.T
    # pattern) yields the feature-major activation (f_out, tile_n) without
    # any explicit transpose: the layout change rides on the MXU, which has
    # plenty of slack because the kernel is VALU-bound on the sine chain.
    w0 = param_refs[0][...]          # (f_out, in_features)
    b0 = param_refs[1][...]          # (f_out, 1)
    z = jax.lax.dot_general(
        w0, x_ref[...],
        dimension_numbers=(((1,), (1,)), ((), ())),
        preferred_element_type=jnp.float32,
    ) + b0
    h = jnp.sin(z) if apply_sine_flags[0] else z

    # --- Remaining layers: feature-major, points on the 128-lane axis. ----
    for li in range(1, len(apply_sine_flags)):
        w = param_refs[2 * li][...]        # (f_out, f_in)
        b = param_refs[2 * li + 1][...]    # (f_out, 1)
        z = jnp.dot(w, h, preferred_element_type=jnp.float32) + b
        # NOTE: jnp.sin (f32) is the binding VALU cost; everything else is
        # in its shadow.  Cheaper sine / bf16 chain is a follow-up only if
        # the ~1e-5 agreement with the f32 reference can be relaxed.
        h = jnp.sin(z) if apply_sine_flags[li] else z

    o_ref[...] = h


def init_siren_params(
    key,
    in_features,
    hidden_features,
    hidden_layers,
    out_features,
    outermost_linear=False,
    first_omega_0=30.0,
    hidden_omega_0=30.0,
):
    """SIREN init, PyTorch-native weight layout.

    Returns a list of (w (f_out, f_in), b (f_out, 1), omega, apply_sine).
    """
    params = []

    def uniform(key, shape, bound):
        return jax.random.uniform(
            key, shape, dtype=jnp.float32, minval=-bound, maxval=bound
        )

    # first layer
    key, kw, kb = jax.random.split(key, 3)
    w = uniform(kw, (hidden_features, in_features), 1.0 / in_features)
    b = uniform(kb, (hidden_features, 1), 1.0 / np.sqrt(in_features))
    params.append((w, b, first_omega_0, True))

    # hidden layers
    bound_w = np.sqrt(6.0 / hidden_features) / hidden_omega_0
    bound_b = 1.0 / np.sqrt(hidden_features)
    for _ in range(hidden_layers):
        key, kw, kb = jax.random.split(key, 3)
        w = uniform(kw, (hidden_features, hidden_features), bound_w)
        b = uniform(kb, (hidden_features, 1), bound_b)
        params.append((w, b, hidden_omega_0, True))

    # final layer
    key, kw, kb = jax.random.split(key, 3)
    w = uniform(kw, (out_features, hidden_features), bound_w)
    b = uniform(kb, (out_features, 1), bound_b)
    params.append((w, b, hidden_omega_0, not outermost_linear))

    return params


def siren_forward(coords, params, *, tile_n=2048):
    """Siren.forward: returns (output (N, out_features), coords)."""
    n, in_features = coords.shape
    out_features = params[-1][0].shape[0]

    # --- Tile selection ----------------------------------------------------
    #  * always a multiple of 128 (lane-dense stores, (8,128) rule),
    #  * large by default to amortize the ~0.35 us per-grid-step overhead,
    #  * capped so the grid has >= 2 steps whenever there is enough work, so
    #    the "parallel" axis can shard across both TensorCores on v7x.
    n128 = _round_up(max(n, 1), 128)
    tile = max(128, min(_round_up(tile_n, 128), n128))
    if n128 >= 256 and n128 // tile < 2:
        tile = _round_up((n128 + 1) // 2, 128)
    grid = (n128 + tile - 1) // tile
    n_pad = grid * tile

    # Pad the ragged tail (only when needed).  Padded points run the sine
    # chain on bias-only values; results are finite and sliced off below —
    # do NOT "fix" this with a mask, that would add work to the binding
    # VALU slot.
    x = coords.astype(jnp.float32)
    if n_pad != n:
        x = jnp.pad(x, ((0, n_pad - n), (0, 0)))

    # Fold omega into sine-layer parameters (init-time transform; changes
    # rounding order vs omega*(Wx+b) but stays well inside ~1e-5).
    flat_inputs = [x]
    apply_sine_flags = []
    flops = 0
    transcendentals = 0
    param_bytes = 0
    for (w, b, omega, apply_sine) in params:
        if apply_sine:
            w = jnp.float32(omega) * w
            b = jnp.float32(omega) * b
        w = w.astype(jnp.float32)
        b = b.astype(jnp.float32)
        flat_inputs.append(w)
        flat_inputs.append(b)
        apply_sine_flags.append(apply_sine)
        f_out, f_in = w.shape
        flops += 2 * n_pad * f_in * f_out
        if apply_sine:
            transcendentals += n_pad * f_out
        param_bytes += 4 * (w.size + b.size)

    kernel = functools.partial(
        _siren_fused_kernel, apply_sine_flags=tuple(apply_sine_flags)
    )

    # Input: point-major (HBM-native) blocks; the layout change to
    # feature-major happens inside the kernel (layer-0 dot_general).
    in_specs = [pl.BlockSpec((tile, in_features), lambda i: (i, 0))]
    # Weights/biases: full-block, constant index map -> VMEM resident across
    # the whole grid (never re-fetched).
    # TODO(synk): for very wide SIREN configs (hidden >= 1024), add
    # pipeline_mode=pl.Buffered(1) on these specs so the default double
    # buffering does not keep two copies of every weight in VMEM.
    in_specs += [
        pl.BlockSpec(t.shape, lambda i: (0, 0)) for t in flat_inputs[1:]
    ]

    cost = pl.CostEstimate(
        flops=int(flops),
        transcendentals=int(transcendentals),
        bytes_accessed=int(
            4 * n_pad * (in_features + out_features) + param_bytes
        ),
    )

    out = pl.pallas_call(
        kernel,
        out_shape=jax.ShapeDtypeStruct((out_features, n_pad), jnp.float32),
        grid_spec=pltpu.PrefetchScalarGridSpec(
            num_scalar_prefetch=0,
            grid=(grid,),
            in_specs=in_specs,
            out_specs=pl.BlockSpec((out_features, tile), lambda i: (0, i)),
        ),
        compiler_params=pltpu.CompilerParams(
            dimension_semantics=("parallel",),
            vmem_limit_bytes=32 * 1024 * 1024,
        ),
        cost_estimate=cost,
    )(*flat_inputs)

    # Feature-major -> (N, out_features); skip the slice when no padding was
    # added (common case) so we don't add an extra HBM pass.
    out = out if n_pad == n else out[:, :n]
    return out.T, coords


def _reference_forward(coords, params):
    """Pure-JAX reference matching the PyTorch module semantics."""
    x = coords
    for (w, b, omega, apply_sine) in params:
        z = x @ w.T + b.T  # nn.Linear with (f_out, f_in) weight
        x = jnp.sin(omega * z) if apply_sine else z
    return x, coords


if __name__ == "__main__":
    key = jax.random.PRNGKey(0)

    in_features = 2
    hidden_features = 32
    hidden_layers = 2
    out_features = 1
    N = 1024  # number of coordinate points

    kparam, kcoords = jax.random.split(key)
    params = init_siren_params(
        kparam,
        in_features,
        hidden_features,
        hidden_layers,
        out_features,
        outermost_linear=False,
        first_omega_0=30.0,
        hidden_omega_0=30.0,
    )

    coords = jax.random.uniform(
        kcoords, (N, in_features), dtype=jnp.float32, minval=-1.0, maxval=1.0
    )

    out, coords_out = siren_forward(coords, params, tile_n=2048)
    out = jax.block_until_ready(out)
    coords_out = jax.block_until_ready(coords_out)

    # Correctness check against the pure-JAX reference.  omega folding and
    # MXU accumulation order differ slightly from the strict reference op
    # order, so allow a small absolute slack on top of rtol.
    ref_out, _ = _reference_forward(coords, params)
    np.testing.assert_allclose(
        np.asarray(out), np.asarray(ref_out), rtol=1e-5, atol=5e-5
    )
    assert out.shape == (N, out_features)
    assert coords_out.shape == coords.shape

    print("KERNEL_OK")
</pallas_src>

<mosaic_0001>
module attributes {stable_mosaic.version = 11 : i64} {
  func.func @_siren_fused_kernel(%arg0: i32, %arg1: memref<512x2xf32, #tpu.memory_space<vmem>>, %arg2: memref<32x2xf32, #tpu.memory_space<vmem>>, %arg3: memref<32x1xf32, #tpu.memory_space<vmem>>, %arg4: memref<32x32xf32, #tpu.memory_space<vmem>>, %arg5: memref<32x1xf32, #tpu.memory_space<vmem>>, %arg6: memref<32x32xf32, #tpu.memory_space<vmem>>, %arg7: memref<32x1xf32, #tpu.memory_space<vmem>>, %arg8: memref<1x32xf32, #tpu.memory_space<vmem>>, %arg9: memref<1x1xf32, #tpu.memory_space<vmem>>, %arg10: memref<1x512xf32, #tpu.memory_space<vmem>>) attributes {dimension_semantics = [#tpu.dimension_semantics<parallel>], iteration_bounds = array<i64: 2>, scalar_prefetch = 0 : i64, scratch_operands = 0 : i64, tpu.core_type = #tpu.core_type<tc>, window_params = [{transform_indices = @transform_0, window_bounds = array<i64: 512, 2>}, {pipeline_mode = #tpu.pipeline_mode<synchronous>, transform_indices = @transform_1, window_bounds = array<i64: 32, 2>}, {pipeline_mode = #tpu.pipeline_mode<synchronous>, transform_indices = @transform_2, window_bounds = array<i64: 32, 1>}, {pipeline_mode = #tpu.pipeline_mode<synchronous>, transform_indices = @transform_3, window_bounds = array<i64: 32, 32>}, {pipeline_mode = #tpu.pipeline_mode<synchronous>, transform_indices = @transform_4, window_bounds = array<i64: 32, 1>}, {pipeline_mode = #tpu.pipeline_mode<synchronous>, transform_indices = @transform_5, window_bounds = array<i64: 32, 32>}, {pipeline_mode = #tpu.pipeline_mode<synchronous>, transform_indices = @transform_6, window_bounds = array<i64: 32, 1>}, {pipeline_mode = #tpu.pipeline_mode<synchronous>, transform_indices = @transform_7, window_bounds = array<i64: 1, 32>}, {pipeline_mode = #tpu.pipeline_mode<synchronous>, transform_indices = @transform_8, window_bounds = array<i64: 1, 1>}, {transform_indices = @transform_9, window_bounds = array<i64: 1, 512>}]} {
    %c0 = arith.constant 0 : index
    %c0_0 = arith.constant 0 : index
    %0 = vector.load %arg2[%c0, %c0_0] : memref<32x2xf32, #tpu.memory_space<vmem>>, vector<32x2xf32>
    %c0_1 = arith.constant 0 : index
    %c0_2 = arith.constant 0 : index
    %1 = vector.load %arg3[%c0_1, %c0_2] : memref<32x1xf32, #tpu.memory_space<vmem>>, vector<32x1xf32>
    %c0_3 = arith.constant 0 : index
    %c0_4 = arith.constant 0 : index
    %2 = vector.load %arg1[%c0_3, %c0_4] : memref<512x2xf32, #tpu.memory_space<vmem>>, vector<512x2xf32>
    %cst = arith.constant dense<0.000000e+00> : vector<32x512xf32>
    %3 = tpu.matmul %0, %2, %cst {dimension_numbers = #tpu.dot_dimension_numbers<[1], [1], [0], [0], [0, 0, 1, 0], [], []>} : vector<32x2xf32>, vector<512x2xf32>, vector<32x512xf32> -> vector<32x512xf32>
    %4 = vector.broadcast %1 : vector<32x1xf32> to vector<32x512xf32>
    %5 = arith.addf %3, %4 : vector<32x512xf32>
    %6 = math.sin %5 : vector<32x512xf32>
    %c0_5 = arith.constant 0 : index
    %c0_6 = arith.constant 0 : index
    %7 = vector.load %arg4[%c0_5, %c0_6] : memref<32x32xf32, #tpu.memory_space<vmem>>, vector<32x32xf32>
    %c0_7 = arith.constant 0 : index
    %c0_8 = arith.constant 0 : index
    %8 = vector.load %arg5[%c0_7, %c0_8] : memref<32x1xf32, #tpu.memory_space<vmem>>, vector<32x1xf32>
    %cst_9 = arith.constant dense<0.000000e+00> : vector<32x512xf32>
    %9 = tpu.matmul %7, %6, %cst_9 {dimension_numbers = #tpu.dot_dimension_numbers<[1], [0], [0], [1], [0, 0, 1, 1], [], []>} : vector<32x32xf32>, vector<32x512xf32>, vector<32x512xf32> -> vector<32x512xf32>
    %10 = vector.broadcast %8 : vector<32x1xf32> to vector<32x512xf32>
    %11 = arith.addf %9, %10 : vector<32x512xf32>
    %12 = math.sin %11 : vector<32x512xf32>
    %c0_10 = arith.constant 0 : index
    %c0_11 = arith.constant 0 : index
    %13 = vector.load %arg6[%c0_10, %c0_11] : memref<32x32xf32, #tpu.memory_space<vmem>>, vector<32x32xf32>
    %c0_12 = arith.constant 0 : index
    %c0_13 = arith.constant 0 : index
    %14 = vector.load %arg7[%c0_12, %c0_13] : memref<32x1xf32, #tpu.memory_space<vmem>>, vector<32x1xf32>
    %cst_14 = arith.constant dense<0.000000e+00> : vector<32x512xf32>
    %15 = tpu.matmul %13, %12, %cst_14 {dimension_numbers = #tpu.dot_dimension_numbers<[1], [0], [0], [1], [0, 0, 1, 1], [], []>} : vector<32x32xf32>, vector<32x512xf32>, vector<32x512xf32> -> vector<32x512xf32>
    %16 = vector.broadcast %14 : vector<32x1xf32> to vector<32x512xf32>
    %17 = arith.addf %15, %16 : vector<32x512xf32>
    %18 = math.sin %17 : vector<32x512xf32>
    %c0_15 = arith.constant 0 : index
    %c0_16 = arith.constant 0 : index
    %19 = vector.load %arg8[%c0_15, %c0_16] : memref<1x32xf32, #tpu.memory_space<vmem>>, vector<1x32xf32>
    %c0_17 = arith.constant 0 : index
    %c0_18 = arith.constant 0 : index
    %20 = vector.load %arg9[%c0_17, %c0_18] : memref<1x1xf32, #tpu.memory_space<vmem>>, vector<1x1xf32>
    %cst_19 = arith.constant dense<0.000000e+00> : vector<1x512xf32>
    %21 = tpu.matmul %19, %18, %cst_19 {dimension_numbers = #tpu.dot_dimension_numbers<[1], [0], [0], [1], [0, 0, 1, 1], [], []>} : vector<1x32xf32>, vector<32x512xf32>, vector<1x512xf32> -> vector<1x512xf32>
    %22 = vector.broadcast %20 : vector<1x1xf32> to vector<1x512xf32>
    %23 = arith.addf %21, %22 : vector<1x512xf32>
    %24 = math.sin %23 : vector<1x512xf32>
    %c0_20 = arith.constant 0 : index
    %c0_21 = arith.constant 0 : index
    %25 = vector.load %arg10[%c0_20, %c0_21] : memref<1x512xf32, #tpu.memory_space<vmem>>, vector<1x512xf32>
    tpu.vector_store %arg10[%c0_20, %c0_21], %24 {strides = array<i32>} : memref<1x512xf32, #tpu.memory_space<vmem>>, vector<1x512xf32>,
    return
  }
  func.func @transform_0(%arg0: i32) -> (i32, i32) {
    %c0_i32 = arith.constant 0 : i32
    %c0_i32_0 = arith.constant 0 : i32
    return %arg0, %c0_i32 : i32, i32
  }
  func.func @transform_1(%arg0: i32) -> (i32, i32) {
    %c0_i32 = arith.constant 0 : i32
    %c0_i32_0 = arith.constant 0 : i32
    %c0_i32_1 = arith.constant 0 : i32
    return %c0_i32, %c0_i32_0 : i32, i32
  }
  func.func @transform_2(%arg0: i32) -> (i32, i32) {
    %c0_i32 = arith.constant 0 : i32
    %c0_i32_0 = arith.constant 0 : i32
    %c0_i32_1 = arith.constant 0 : i32
    return %c0_i32, %c0_i32_0 : i32, i32
  }
  func.func @transform_3(%arg0: i32) -> (i32, i32) {
    %c0_i32 = arith.constant 0 : i32
    %c0_i32_0 = arith.constant 0 : i32
    %c0_i32_1 = arith.constant 0 : i32
    return %c0_i32, %c0_i32_0 : i32, i32
  }
  func.func @transform_4(%arg0: i32) -> (i32, i32) {
    %c0_i32 = arith.constant 0 : i32
    %c0_i32_0 = arith.constant 0 : i32
    %c0_i32_1 = arith.constant 0 : i32
    return %c0_i32, %c0_i32_0 : i32, i32
  }
  func.func @transform_5(%arg0: i32) -> (i32, i32) {
    %c0_i32 = arith.constant 0 : i32
    %c0_i32_0 = arith.constant 0 : i32
    %c0_i32_1 = arith.constant 0 : i32
    return %c0_i32, %c0_i32_0 : i32, i32
  }
  func.func @transform_6(%arg0: i32) -> (i32, i32) {
    %c0_i32 = arith.constant 0 : i32
    %c0_i32_0 = arith.constant 0 : i32
    %c0_i32_1 = arith.constant 0 : i32
    return %c0_i32, %c0_i32_0 : i32, i32
  }
  func.func @transform_7(%arg0: i32) -> (i32, i32) {
    %c0_i32 = arith.constant 0 : i32
    %c0_i32_0 = arith.constant 0 : i32
    %c0_i32_1 = arith.constant 0 : i32
    return %c0_i32, %c0_i32_0 : i32, i32
  }
  func.func @transform_8(%arg0: i32) -> (i32, i32) {
    %c0_i32 = arith.constant 0 : i32
    %c0_i32_0 = arith.constant 0 : i32
    %c0_i32_1 = arith.constant 0 : i32
    return %c0_i32, %c0_i32_0 : i32, i32
  }
  func.func @transform_9(%arg0: i32) -> (i32, i32) {
    %c0_i32 = arith.constant 0 : i32
    %c0_i32_0 = arith.constant 0 : i32
    return %c0_i32, %arg0 : i32, i32
  }
}

</mosaic_0001>

<llo_original>
// kernel: tpu_custom_call.1
$region0: #{tpu_custom_call.1}
  #allocation0 [shape = 'u32[]', space=smem, size = 0x4, offset = 0x4, fixed_abs, tag = 'smem constant byte address 0x4 - core index']
  #allocation1 [shape = 'u32[144,128]{1,0:T(1,128)}', space=vmem, size = 0x12000, scoped, tag = 'internal scratch']
  #allocation2 [shape = 'f32[1,1]{1,0:T(1,128)S(1)}', space=vmem, size = 0x200, scoped, tag = 'scoped memory for tpu_custom_call.1']
  %s0 = inlined_call_operand.vmem [shape: f32[1024,2], index: 0, kind: input, shape index: {}]
  %s1 = inlined_call_operand.vmem [shape: f32[32,2], index: 1, kind: input, shape index: {}]
  %s2 = inlined_call_operand.vmem [shape: f32[32,1], index: 2, kind: input, shape index: {}]
  %s3 = inlined_call_operand.vmem [shape: f32[32,32], index: 3, kind: input, shape index: {}]
  %s4 = inlined_call_operand.vmem [shape: f32[32,1], index: 4, kind: input, shape index: {}]
  %s5 = inlined_call_operand.vmem [shape: f32[32,32], index: 5, kind: input, shape index: {}]
  %s6 = inlined_call_operand.vmem [shape: f32[32,1], index: 6, kind: input, shape index: {}]
  %s7 = inlined_call_operand.vmem [shape: f32[1,32], index: 7, kind: input, shape index: {}]
  %s8 = inlined_call_operand.<no memory space> [shape: f32[1,1], index: 8, kind: input, shape index: {}]
  %s9 = inlined_call_operand.hbm [shape: f32[1,1024], index: 9, kind: output, shape index: {}]
  %s10 = sld [smem:[#allocation0]]
  $region69: #{tpu_custom_call.1} parent=0
    _
  %s12 = ssub.s32 1, %s10
  %s13 = scalar_select 0, %s12, %s10
  %v14 = vstv %s8
  %15 = vst [vmem:[#allocation2] sm:$0x1] %v14
  $region1: #{tpu_custom_call.1} parent=0
    #allocation3 [shape = 'u8[4096]{0}', space=vmem, size = 0x1000, scoped, tag = 'output window, operand 0']
    #allocation4 [shape = 's32[2]{0}', space=sflag, size = 0x8, scoped, tag = 'scoped memory for tpu_custom_call.1']
    %16 = vsyncpa [#allocation4], 0
    %s17 = scalar_lea.sflag [#allocation4], 1
    %18 = vsyncpa %s17, 0
    loop: start=0, step=1, limit=4
    $region2: #{tpu_custom_call.1} parent=1 // loop_pre_header
      _
    $region3: #{tpu_custom_call.1} parent=1 // loop_header
      %s20 = sphi 0, %s24
      %p21 = scmp.ge.s32.totalorder %s20, 4
      %s30 = sphi 0, %s32
      %s33 = sphi 0, %s30
      %s34 = sphi 0, %s33
      %s50 = sphi 0, %s34
      %s54 = sphi 0, %s54
      %s56 = sphi 0, %s54
      %s57 = sphi 0, %s56
      %s71 = sphi 0, %s57
      %s75 = sphi 0, %s75
      %s77 = sphi 0, %s75
      %s78 = sphi 0, %s77
      %s92 = sphi 0, %s78
      %s96 = sphi 0, %s96
      %s98 = sphi 0, %s96
      %s99 = sphi 0, %s98
      %s113 = sphi 0, %s99
      %s117 = sphi 0, %s117
      %s119 = sphi 0, %s117
      %s120 = sphi 0, %s119
      %s134 = sphi 0, %s120
      %s138 = sphi 0, %s138
      %s140 = sphi 0, %s138
      %s141 = sphi 0, %s140
      %s155 = sphi 0, %s141
      %s159 = sphi 0, %s159
      %s161 = sphi 0, %s159
      %s162 = sphi 0, %s161
      %s176 = sphi 0, %s162
      %s180 = sphi 0, %s180
      %s182 = sphi 0, %s180
      %s183 = sphi 0, %s182
      %s197 = sphi 0, %s183
      %s201 = sphi 0, %s201
      %s203 = sphi 0, %s201
      %s204 = sphi 0, %s203
      %s218 = sphi 0, %s204
      %s224 = sphi 0, %s226
      %s227 = sphi 0, %s224
      %s228 = sphi 0, %s227
      %s244 = sphi 0, %s228
    $region4: #{tpu_custom_call.1} parent=1 // loop_header_branch
      %23 = sbr.rel (%p21) target = $region8
    $region5: #{tpu_custom_call.1} parent=1 // loop_body
      %s25 = ssub.s32 %s20, 1
      %s26 = ssub.s32 %s20, 2
      %s27 = sadd.s32 %s20, 1
      %s28 = ssub.s32 %s20, %s27
      %p29 = scmp.eq.s32.totalorder %s28, 0
      %s31 = sadd.s32 %s30, 1
      %s32 = scalar_select %p29, %s30, %s31
      %p35 = pneg %p29
      %p36 = scmp.eq.s32.totalorder %s20, 1
      %p37 = por %p35, %p36
      %p38 = scmp.ne.s32.totalorder %s30, %s33
      %p39 = scmp.eq.s32.totalorder %s20, 0
      %p40 = por %p38, %p39
      %p41 = scmp.ne.s32.totalorder %s30, %s33
      %p42 = scmp.eq.s32.totalorder %s25, 1
      %p43 = por %p41, %p42
      %p44 = scmp.ne.s32.totalorder %s33, %s34
      %p45 = scmp.eq.s32.totalorder %s25, 0
      %p46 = por %p44, %p45
      %p47 = scmp.ne.s32.totalorder %s33, %s34
      %p48 = scmp.eq.s32.totalorder %s26, 1
      %p49 = por %p47, %p48
      %p51 = scmp.ne.s32.totalorder %s34, %s50
      %p52 = scmp.eq.s32.totalorder %s26, 0
      %p53 = por %p51, %p52
      %s55 = sadd.s32 %s54, 1
      %p58 = scmp.eq.s32.totalorder %s20, 1
      %p59 = scmp.ne.s32.totalorder %s54, %s56
      %p60 = scmp.eq.s32.totalorder %s20, 0
      %p61 = por %p59, %p60
      %p62 = scmp.ne.s32.totalorder %s54, %s56
      %p63 = scmp.eq.s32.totalorder %s25, 1
      %p64 = por %p62, %p63
      %p65 = scmp.ne.s32.totalorder %s56, %s57
      %p66 = scmp.eq.s32.totalorder %s25, 0
      %p67 = por %p65, %p66
      %p68 = scmp.ne.s32.totalorder %s56, %s57
      %p69 = scmp.eq.s32.totalorder %s26, 1
      %p70 = por %p68, %p69
      %p72 = scmp.ne.s32.totalorder %s57, %s71
      %p73 = scmp.eq.s32.totalorder %s26, 0
      %p74 = por %p72, %p73
      %s76 = sadd.s32 %s75, 1
      %p79 = scmp.eq.s32.totalorder %s20, 1
      %p80 = scmp.ne.s32.totalorder %s75, %s77
      %p81 = scmp.eq.s32.totalorder %s20, 0
      %p82 = por %p80, %p81
      %p83 = scmp.ne.s32.totalorder %s75, %s77
      %p84 = scmp.eq.s32.totalorder %s25, 1
      %p85 = por %p83, %p84
      %p86 = scmp.ne.s32.totalorder %s77, %s78
      %p87 = scmp.eq.s32.totalorder %s25, 0
      %p88 = por %p86, %p87
      %p89 = scmp.ne.s32.totalorder %s77, %s78
      %p90 = scmp.eq.s32.totalorder %s26, 1
      %p91 = por %p89, %p90
      %p93 = scmp.ne.s32.totalorder %s78, %s92
      %p94 = scmp.eq.s32.totalorder %s26, 0
      %p95 = por %p93, %p94
      %s97 = sadd.s32 %s96, 1
      %p100 = scmp.eq.s32.totalorder %s20, 1
      %p101 = scmp.ne.s32.totalorder %s96, %s98
      %p102 = scmp.eq.s32.totalorder %s20, 0
      %p103 = por %p101, %p102
      %p104 = scmp.ne.s32.totalorder %s96, %s98
      %p105 = scmp.eq.s32.totalorder %s25, 1
      %p106 = por %p104, %p105
      %p107 = scmp.ne.s32.totalorder %s98, %s99
      %p108 = scmp.eq.s32.totalorder %s25, 0
      %p109 = por %p107, %p108
      %p110 = scmp.ne.s32.totalorder %s98, %s99
      %p111 = scmp.eq.s32.totalorder %s26, 1
      %p112 = por %p110, %p111
      %p114 = scmp.ne.s32.totalorder %s99, %s113
      %p115 = scmp.eq.s32.totalorder %s26, 0
      %p116 = por %p114, %p115
      %s118 = sadd.s32 %s117, 1
      %p121 = scmp.eq.s32.totalorder %s20, 1
      %p122 = scmp.ne.s32.totalorder %s117, %s119
      %p123 = scmp.eq.s32.totalorder %s20, 0
      %p124 = por %p122, %p123
      %p125 = scmp.ne.s32.totalorder %s117, %s119
      %p126 = scmp.eq.s32.totalorder %s25, 1
      %p127 = por %p125, %p126
      %p128 = scmp.ne.s32.totalorder %s119, %s120
      %p129 = scmp.eq.s32.totalorder %s25, 0
      %p130 = por %p128, %p129
      %p131 = scmp.ne.s32.totalorder %s119, %s120
      %p132 = scmp.eq.s32.totalorder %s26, 1
      %p133 = por %p131, %p132
      %p135 = scmp.ne.s32.totalorder %s120, %s134
      %p136 = scmp.eq.s32.totalorder %s26, 0
      %p137 = por %p135, %p136
      %s139 = sadd.s32 %s138, 1
      %p142 = scmp.eq.s32.totalorder %s20, 1
      %p143 = scmp.ne.s32.totalorder %s138, %s140
      %p144 = scmp.eq.s32.totalorder %s20, 0
      %p145 = por %p143, %p144
      %p146 = scmp.ne.s32.totalorder %s138, %s140
      %p147 = scmp.eq.s32.totalorder %s25, 1
      %p148 = por %p146, %p147
      %p149 = scmp.ne.s32.totalorder %s140, %s141
      %p150 = scmp.eq.s32.totalorder %s25, 0
      %p151 = por %p149, %p150
      %p152 = scmp.ne.s32.totalorder %s140, %s141
      %p153 = scmp.eq.s32.totalorder %s26, 1
      %p154 = por %p152, %p153
      %p156 = scmp.ne.s32.totalorder %s141, %s155
      %p157 = scmp.eq.s32.totalorder %s26, 0
      %p158 = por %p156, %p157
      %s160 = sadd.s32 %s159, 1
      %p163 = scmp.eq.s32.totalorder %s20, 1
      %p164 = scmp.ne.s32.totalorder %s159, %s161
      %p165 = scmp.eq.s32.totalorder %s20, 0
      %p166 = por %p164, %p165
      %p167 = scmp.ne.s32.totalorder %s159, %s161
      %p168 = scmp.eq.s32.totalorder %s25, 1
      %p169 = por %p167, %p168
      %p170 = scmp.ne.s32.totalorder %s161, %s162
      %p171 = scmp.eq.s32.totalorder %s25, 0
      %p172 = por %p170, %p171
      %p173 = scmp.ne.s32.totalorder %s161, %s162
      %p174 = scmp.eq.s32.totalorder %s26, 1
      %p175 = por %p173, %p174
      %p177 = scmp.ne.s32.totalorder %s162, %s176
      %p178 = scmp.eq.s32.totalorder %s26, 0
      %p179 = por %p177, %p178
      %s181 = sadd.s32 %s180, 1
      %p184 = scmp.eq.s32.totalorder %s20, 1
      %p185 = scmp.ne.s32.totalorder %s180, %s182
      %p186 = scmp.eq.s32.totalorder %s20, 0
      %p187 = por %p185, %p186
      %p188 = scmp.ne.s32.totalorder %s180, %s182
      %p189 = scmp.eq.s32.totalorder %s25, 1
      %p190 = por %p188, %p189
      %p191 = scmp.ne.s32.totalorder %s182, %s183
      %p192 = scmp.eq.s32.totalorder %s25, 0
      %p193 = por %p191, %p192
      %p194 = scmp.ne.s32.totalorder %s182, %s183
      %p195 = scmp.eq.s32.totalorder %s26, 1
      %p196 = por %p194, %p195
      %p198 = scmp.ne.s32.totalorder %s183, %s197
      %p199 = scmp.eq.s32.totalorder %s26, 0
      %p200 = por %p198, %p199
      %s202 = sadd.s32 %s201, 1
      %p205 = scmp.eq.s32.totalorder %s20, 1
      %p206 = scmp.ne.s32.totalorder %s201, %s203
      %p207 = scmp.eq.s32.totalorder %s20, 0
      %p208 = por %p206, %p207
      %p209 = scmp.ne.s32.totalorder %s201, %s203
      %p210 = scmp.eq.s32.totalorder %s25, 1
      %p211 = por %p209, %p210
      %p212 = scmp.ne.s32.totalorder %s203, %s204
      %p213 = scmp.eq.s32.totalorder %s25, 0
      %p214 = por %p212, %p213
      %p215 = scmp.ne.s32.totalorder %s203, %s204
      %p216 = scmp.eq.s32.totalorder %s26, 1
      %p217 = por %p215, %p216
      %p219 = scmp.ne.s32.totalorder %s204, %s218
      %p220 = scmp.eq.s32.totalorder %s26, 0
      %p221 = por %p219, %p220
      %s222 = ssub.s32 %s20, %s27
      %p223 = scmp.eq.s32.totalorder %s222, 0
      %s225 = sadd.s32 %s224, 1
      %s226 = scalar_select %p223, %s224, %s225
      %p229 = pneg %p223
      %p230 = scmp.eq.s32.totalorder %s20, 1
      %p231 = por %p229, %p230
      %p232 = scmp.ne.s32.totalorder %s224, %s227
      %p233 = scmp.eq.s32.totalorder %s20, 0
      %p234 = por %p232, %p233
      %p235 = scmp.ne.s32.totalorder %s224, %s227
      %p236 = scmp.eq.s32.totalorder %s25, 1
      %p237 = por %p235, %p236
      %p238 = scmp.ne.s32.totalorder %s227, %s228
      %p239 = scmp.eq.s32.totalorder %s25, 0
      %p240 = por %p238, %p239
      %p241 = scmp.ne.s32.totalorder %s227, %s228
      %p242 = scmp.eq.s32.totalorder %s26, 1
      %p243 = por %p241, %p242
      %p245 = scmp.ne.s32.totalorder %s228, %s244
      %p246 = scmp.eq.s32.totalorder %s26, 0
      %p247 = por %p245, %p246
      %p248 = scmp.le.s32.totalorder 1, %s20
      %p249 = scmp.lt.s32.totalorder %s20, 3
      %p250 = pnand %p248, %p249
      %p251 = pneg %p250
      // Predicated region
      $region9: #{tpu_custom_call.1} parent=5 // pred_check
        _
      $region10: #{tpu_custom_call.1} parent=5 // pred_check_branch
        %253 = sbr.rel (%p250) target = $region12
      $region11: #{tpu_custom_call.1} parent=5 // pred_region
        %s254 = ssub.s32 %s20, 1
        // Predicated region
        $region13: #{tpu_custom_call.1} parent=11 // pred_check
          %p255 = pneg %p67
        $region14: #{tpu_custom_call.1} parent=11 // pred_check_branch
          %257 = sbr.rel (%p255) target = $region16
        $region15: #{tpu_custom_call.1} parent=11 // pred_region
          _
        $region16: #{tpu_custom_call.1} parent=11 // pred_fallthru
          _
        // Predicated region
        $region17: #{tpu_custom_call.1} parent=11 // pred_check
          %p258 = pneg %p88
        $region18: #{tpu_custom_call.1} parent=11 // pred_check_branch
          %260 = sbr.rel (%p258) target = $region20
        $region19: #{tpu_custom_call.1} parent=11 // pred_region
          _
        $region20: #{tpu_custom_call.1} parent=11 // pred_fallthru
          _
        // Predicated region
        $region21: #{tpu_custom_call.1} parent=11 // pred_check
          %p261 = pneg %p109
        $region22: #{tpu_custom_call.1} parent=11 // pred_check_branch
          %263 = sbr.rel (%p261) target = $region24
        $region23: #{tpu_custom_call.1} parent=11 // pred_region
          _
        $region24: #{tpu_custom_call.1} parent=11 // pred_fallthru
          _
        // Predicated region
        $region25: #{tpu_custom_call.1} parent=11 // pred_check
          %p264 = pneg %p130
        $region26: #{tpu_custom_call.1} parent=11 // pred_check_branch
          %266 = sbr.rel (%p264) target = $region28
        $region27: #{tpu_custom_call.1} parent=11 // pred_region
          _
        $region28: #{tpu_custom_call.1} parent=11 // pred_fallthru
          _
        // Predicated region
        $region29: #{tpu_custom_call.1} parent=11 // pred_check
          %p267 = pneg %p151
        $region30: #{tpu_custom_call.1} parent=11 // pred_check_branch
          %269 = sbr.rel (%p267) target = $region32
        $region31: #{tpu_custom_call.1} parent=11 // pred_region
          _
        $region32: #{tpu_custom_call.1} parent=11 // pred_fallthru
          _
        // Predicated region
        $region33: #{tpu_custom_call.1} parent=11 // pred_check
          %p270 = pneg %p172
        $region34: #{tpu_custom_call.1} parent=11 // pred_check_branch
          %272 = sbr.rel (%p270) target = $region36
        $region35: #{tpu_custom_call.1} parent=11 // pred_region
          _
        $region36: #{tpu_custom_call.1} parent=11 // pred_fallthru
          _
        // Predicated region
        $region37: #{tpu_custom_call.1} parent=11 // pred_check
          %p273 = pneg %p193
        $region38: #{tpu_custom_call.1} parent=11 // pred_check_branch
          %275 = sbr.rel (%p273) target = $region40
        $region39: #{tpu_custom_call.1} parent=11 // pred_region
          _
        $region40: #{tpu_custom_call.1} parent=11 // pred_fallthru
          _
        // Predicated region
        $region41: #{tpu_custom_call.1} parent=11 // pred_check
          %p276 = pneg %p214
        $region42: #{tpu_custom_call.1} parent=11 // pred_check_branch
          %278 = sbr.rel (%p276) target = $region44
        $region43: #{tpu_custom_call.1} parent=11 // pred_region
          _
        $region44: #{tpu_custom_call.1} parent=11 // pred_fallthru
          _
      $region12: #{tpu_custom_call.1} parent=5 // pred_fallthru
        _
      %p279 = scmp.lt.s32.totalorder %s20, 2
      // Predicated region
      $region45: #{tpu_custom_call.1} parent=5 // pred_check
        %p280 = pneg %p279
      $region46: #{tpu_custom_call.1} parent=5 // pred_check_branch
        %282 = sbr.rel (%p280) target = $region48
      $region47: #{tpu_custom_call.1} parent=5 // pred_region
        // Predicated region
        $region49: #{tpu_custom_call.1} parent=47 // pred_check
          %p283 = pneg %p40
        $region50: #{tpu_custom_call.1} parent=47 // pred_check_branch
          %285 = sbr.rel (%p283) target = $region52
        $region51: #{tpu_custom_call.1} parent=47 // pred_region
          %s286 = smul.u32 64, %s20
          %p287 = scmp.lt.s32.totalorder %s286, 127
          %s288 = scalar_select %p287, %s286, 127
          %s289 = smul.addr %s288, 8
          %s290 = scalar_lea.vmem %s0, %s289
          %s291 = smul.u32 64, %s20
        $region52: #{tpu_custom_call.1} parent=47 // pred_fallthru
          _
      $region48: #{tpu_custom_call.1} parent=5 // pred_fallthru
        _
      %p292 = scmp.le.s32.totalorder 1, %s20
      %p293 = scmp.lt.s32.totalorder %s20, 3
      %p294 = pnand %p292, %p293
      %p295 = pneg %p294
      // Predicated region
      $region53: #{tpu_custom_call.1} parent=5 // pred_check
        _
      $region54: #{tpu_custom_call.1} parent=5 // pred_check_branch
        %297 = sbr.rel (%p294) target = $region56
      $region55: #{tpu_custom_call.1} parent=5 // pred_region
        %s298 = ssub.s32 %s20, 1
        %s299 = smul.u32 64, %s25
        %p300 = scmp.lt.s32.totalorder %s299, 127
        %s301 = scalar_select %p300, %s299, 127
        %s302 = smul.addr %s301, 8
        %s303 = scalar_lea.vmem %s0, %s302
        %p304 = pneg %p46
        %p305 = pneg %p43
        %p306 = pneg %p67
        %p307 = pneg %p64
        %p308 = pneg %p88
        %p309 = pneg %p85
        %p310 = pneg %p109
        %p311 = pneg %p106
        %p312 = pneg %p130
        %p313 = pneg %p127
        %p314 = pneg %p151
        %p315 = pneg %p148
        %p316 = pneg %p172
        %p317 = pneg %p169
        %p318 = pneg %p193
        %p319 = pneg %p190
        %p320 = pneg %p214
        %p321 = pneg %p211
        %p322 = pneg %p240
        %p323 = pneg %p237
        %s324 = sand.u32 %s227, 1
        %s325 = scalar_lea.sflag [#allocation4], %s324
        %s326 = sand.u32 %s227, 1
        %s327 = smul.addr %s326, 4
        %s328 = scalar_lea.vmem [#allocation3], %s327
        %s329 = smul.u32 64, %s25
        %p330 = scmp.lt.s32.totalorder %s329, 127
        %s331 = scalar_select %p330, %s329, 127
        %s332 = smul.addr %s331, 8
        %s333 = scalar_lea.vmem %s0, %s332
        %s334 = smul.u32 64, %s25
        %s335 = smul.u32 4, %s25
        %v336 = vld [vmem:[%s1] sm:$0xff]
        %v337 = vld [vmem:[%s1 + $0x8] sm:$0xff]
        %v338 = vld [vmem:[%s1 + $0x10] sm:$0xff]
        %v339 = vld [vmem:[%s1 + $0x18] sm:$0xff]
        %v340 = vld [vmem:[%s2] sm:$0xff]
        %v341 = vld [vmem:[%s2 + $0x8] sm:$0xff]
        %v342 = vld [vmem:[%s2 + $0x10] sm:$0xff]
        %v343 = vld [vmem:[%s2 + $0x18] sm:$0xff]
        %v344 = vld [vmem:[%s333] sm:$0xff]
        %v345 = vld [vmem:[%s333 + $0x8] sm:$0xff]
        %v346 = vld [vmem:[%s333 + $0x10] sm:$0xff]
        %v347 = vld [vmem:[%s333 + $0x18] sm:$0xff]
        %v348 = vld [vmem:[%s333 + $0x20] sm:$0xff]
        %v349 = vld [vmem:[%s333 + $0x28] sm:$0xff]
        %v350 = vld [vmem:[%s333 + $0x30] sm:$0xff]
        %v351 = vld [vmem:[%s333 + $0x38] sm:$0xff]
        %v352 = vld [vmem:[%s333 + $0x40] sm:$0xff]
        %v353 = vld [vmem:[%s333 + $0x48] sm:$0xff]
        %v354 = vld [vmem:[%s333 + $0x50] sm:$0xff]
        %v355 = vld [vmem:[%s333 + $0x58] sm:$0xff]
        %v356 = vld [vmem:[%s333 + $0x60] sm:$0xff]
        %v357 = vld [vmem:[%s333 + $0x68] sm:$0xff]
        %v358 = vld [vmem:[%s333 + $0x70] sm:$0xff]
        %v359 = vld [vmem:[%s333 + $0x78] sm:$0xff]
        %v360 = vld [vmem:[%s333 + $0x80] sm:$0xff]
        %v361 = vld [vmem:[%s333 + $0x88] sm:$0xff]
        %v362 = vld [vmem:[%s333 + $0x90] sm:$0xff]
        %v363 = vld [vmem:[%s333 + $0x98] sm:$0xff]
        %v364 = vld [vmem:[%s333 + $0xa0] sm:$0xff]
        %v365 = vld [vmem:[%s333 + $0xa8] sm:$0xff]
        %v366 = vld [vmem:[%s333 + $0xb0] sm:$0xff]
        %v367 = vld [vmem:[%s333 + $0xb8] sm:$0xff]
        %v368 = vld [vmem:[%s333 + $0xc0] sm:$0xff]
        %v369 = vld [vmem:[%s333 + $0xc8] sm:$0xff]
        %v370 = vld [vmem:[%s333 + $0xd0] sm:$0xff]
        %v371 = vld [vmem:[%s333 + $0xd8] sm:$0xff]
        %v372 = vld [vmem:[%s333 + $0xe0] sm:$0xff]
        %v373 = vld [vmem:[%s333 + $0xe8] sm:$0xff]
        %v374 = vld [vmem:[%s333 + $0xf0] sm:$0xff]
        %v375 = vld [vmem:[%s333 + $0xf8] sm:$0xff]
        %v376 = vld [vmem:[%s333 + $0x100] sm:$0xff]
        %v377 = vld [vmem:[%s333 + $0x108] sm:$0xff]
        %v378 = vld [vmem:[%s333 + $0x110] sm:$0xff]
        %v379 = vld [vmem:[%s333 + $0x118] sm:$0xff]
        %v380 = vld [vmem:[%s333 + $0x120] sm:$0xff]
        %v381 = vld [vmem:[%s333 + $0x128] sm:$0xff]
        %v382 = vld [vmem:[%s333 + $0x130] sm:$0xff]
        %v383 = vld [vmem:[%s333 + $0x138] sm:$0xff]
        %v384 = vld [vmem:[%s333 + $0x140] sm:$0xff]
        %v385 = vld [vmem:[%s333 + $0x148] sm:$0xff]
        %v386 = vld [vmem:[%s333 + $0x150] sm:$0xff]
        %v387 = vld [vmem:[%s333 + $0x158] sm:$0xff]
        %v388 = vld [vmem:[%s333 + $0x160] sm:$0xff]
        %v389 = vld [vmem:[%s333 + $0x168] sm:$0xff]
        %v390 = vld [vmem:[%s333 + $0x170] sm:$0xff]
        %v391 = vld [vmem:[%s333 + $0x178] sm:$0xff]
        %v392 = vld [vmem:[%s333 + $0x180] sm:$0xff]
        %v393 = vld [vmem:[%s333 + $0x188] sm:$0xff]
        %v394 = vld [vmem:[%s333 + $0x190] sm:$0xff]
        %v395 = vld [vmem:[%s333 + $0x198] sm:$0xff]
        %v396 = vld [vmem:[%s333 + $0x1a0] sm:$0xff]
        %v397 = vld [vmem:[%s333 + $0x1a8] sm:$0xff]
        %v398 = vld [vmem:[%s333 + $0x1b0] sm:$0xff]
        %v399 = vld [vmem:[%s333 + $0x1b8] sm:$0xff]
        %v400 = vld [vmem:[%s333 + $0x1c0] sm:$0xff]
        %v401 = vld [vmem:[%s333 + $0x1c8] sm:$0xff]
        %v402 = vld [vmem:[%s333 + $0x1d0] sm:$0xff]
        %v403 = vld [vmem:[%s333 + $0x1d8] sm:$0xff]
        %v404 = vld [vmem:[%s333 + $0x1e0] sm:$0xff]
        %v405 = vld [vmem:[%s333 + $0x1e8] sm:$0xff]
        %v406 = vld [vmem:[%s333 + $0x1f0] sm:$0xff]
        %v407 = vld [vmem:[%s333 + $0x1f8] sm:$0xff]
        %409 = vset.pattern.permute.xlu0 0
        %410 = vperm.xlu0 %409, %v340
        %v411 = vpop.permute.xlu0 %410
        %414 = vset.pattern.permute.xlu0 0
        %415 = vperm.xlu0 %414, %v341
        %v416 = vpop.permute.xlu0 %415
        %419 = vset.pattern.permute.xlu0 0
        %420 = vperm.xlu0 %419, %v342
        %v421 = vpop.permute.xlu0 %420
        %424 = vset.pattern.permute.xlu0 0
        %425 = vperm.xlu0 %424, %v343
        %v426 = vpop.permute.xlu0 %425
        %vm428 = vcmask 15360
        %v430 = vsel %vm428, %v336, 0
        %v433 = vsel %vm428, %v337, 0
        %v436 = vsel %vm428, %v338, 0
        %v439 = vsel %vm428, %v339, 0
        %v442 = vsel %vm428, %v344, 0
        %v445 = vsel %vm428, %v345, 0
        %v448 = vsel %vm428, %v346, 0
        %v451 = vsel %vm428, %v347, 0
        %v454 = vsel %vm428, %v348, 0
        %v457 = vsel %vm428, %v349, 0
        %v460 = vsel %vm428, %v350, 0
        %v463 = vsel %vm428, %v351, 0
        %v466 = vsel %vm428, %v352, 0
        %v469 = vsel %vm428, %v353, 0
        %v472 = vsel %vm428, %v354, 0
        %v475 = vsel %vm428, %v355, 0
        %v478 = vsel %vm428, %v356, 0
        %v481 = vsel %vm428, %v357, 0
        %v484 = vsel %vm428, %v358, 0
        %v487 = vsel %vm428, %v359, 0
        %v490 = vsel %vm428, %v360, 0
        %v493 = vsel %vm428, %v361, 0
        %v496 = vsel %vm428, %v362, 0
        %v499 = vsel %vm428, %v363, 0
        %v502 = vsel %vm428, %v364, 0
        %v505 = vsel %vm428, %v365, 0
        %v508 = vsel %vm428, %v366, 0
        %v511 = vsel %vm428, %v367, 0
        %v514 = vsel %vm428, %v368, 0
        %v517 = vsel %vm428, %v369, 0
        %v520 = vsel %vm428, %v370, 0
        %v523 = vsel %vm428, %v371, 0
        %v526 = vsel %vm428, %v372, 0
        %v529 = vsel %vm428, %v373, 0
        %v532 = vsel %vm428, %v374, 0
        %v535 = vsel %vm428, %v375, 0
        %v538 = vsel %vm428, %v376, 0
        %v541 = vsel %vm428, %v377, 0
        %v544 = vsel %vm428, %v378, 0
        %v547 = vsel %vm428, %v379, 0
        %v550 = vsel %vm428, %v380, 0
        %v553 = vsel %vm428, %v381, 0
        %v556 = vsel %vm428, %v382, 0
        %v559 = vsel %vm428, %v383, 0
        %v562 = vsel %vm428, %v384, 0
        %v565 = vsel %vm428, %v385, 0
        %v568 = vsel %vm428, %v386, 0
        %v571 = vsel %vm428, %v387, 0
        %v574 = vsel %vm428, %v388, 0
        %v577 = vsel %vm428, %v389, 0
        %v580 = vsel %vm428, %v390, 0
        %v583 = vsel %vm428, %v391, 0
        %v586 = vsel %vm428, %v392, 0
        %v589 = vsel %vm428, %v393, 0
        %v592 = vsel %vm428, %v394, 0
        %v595 = vsel %vm428, %v395, 0
        %v598 = vsel %vm428, %v396, 0
        %v601 = vsel %vm428, %v397, 0
        %v604 = vsel %vm428, %v398, 0
        %v607 = vsel %vm428, %v399, 0
        %v610 = vsel %vm428, %v400, 0
        %v613 = vsel %vm428, %v401, 0
        %v616 = vsel %vm428, %v402, 0
        %v619 = vsel %vm428, %v403, 0
        %v622 = vsel %vm428, %v404, 0
        %v625 = vsel %vm428, %v405, 0
        %v628 = vsel %vm428, %v406, 0
        %v631 = vsel %vm428, %v407, 0
        %633 = vmatprep.subr.mxu0 0.0
        %634 = vmatpush1.xpose.msra.mxu0 %v442
        %635 = vmatprep.subr.mxu0 0.0
        %636 = vmatpush1.xpose.msra.mxu0 %v445
        %637 = vmatprep.subr.mxu0 0.0
        %638 = vmatpush1.xpose.msra.mxu0 %v448
        %639 = vmatprep.subr.mxu0 0.0
        %640 = vmatpush1.xpose.msra.mxu0 %v451
        %641 = vmatprep.subr.mxu0 0.0
        %642 = vmatpush1.xpose.msra.mxu0 %v454
        %643 = vmatprep.subr.mxu0 0.0
        %644 = vmatpush1.xpose.msra.mxu0 %v457
        %645 = vmatprep.subr.mxu0 0.0
        %646 = vmatpush1.xpose.msra.mxu0 %v460
        %647 = vmatprep.subr.mxu0 0.0
        %648 = vmatpush1.xpose.msra.mxu0 %v463
        %649 = vmatprep.subr.mxu0 0.0
        %650 = vmatpush1.xpose.msra.mxu0 %v466
        %651 = vmatprep.subr.mxu0 0.0
        %652 = vmatpush1.xpose.msra.mxu0 %v469
        %653 = vmatprep.subr.mxu0 0.0
        %654 = vmatpush1.xpose.msra.mxu0 %v472
        %655 = vmatprep.subr.mxu0 0.0
        %656 = vmatpush1.xpose.msra.mxu0 %v475
        %657 = vmatprep.subr.mxu0 0.0
        %658 = vmatpush1.xpose.msra.mxu0 %v478
        %659 = vmatprep.subr.mxu0 0.0
        %660 = vmatpush1.xpose.msra.mxu0 %v481
        %661 = vmatprep.subr.mxu0 0.0
        %662 = vmatpush1.xpose.msra.mxu0 %v484
        %663 = vmatprep.subr.mxu0 0.0
        %664 = vmatpush1.xpose.msra.mxu0 %v487
        %665 = vmatprep.subr.mxu0 0.0
        %666 = vmatpush1.xpose.msra.mxu0 %v490
        %667 = vmatprep.subr.mxu0 0.0
        %668 = vmatpush1.xpose.msra.mxu0 %v493
        %669 = vmatprep.subr.mxu0 0.0
        %670 = vmatpush1.xpose.msra.mxu0 %v496
        %671 = vmatprep.subr.mxu0 0.0
        %672 = vmatpush1.xpose.msra.mxu0 %v499
        %673 = vmatprep.subr.mxu0 0.0
        %674 = vmatpush1.xpose.msra.mxu0 %v502
        %675 = vmatprep.subr.mxu0 0.0
        %676 = vmatpush1.xpose.msra.mxu0 %v505
        %677 = vmatprep.subr.mxu0 0.0
        %678 = vmatpush1.xpose.msra.mxu0 %v508
        %679 = vmatprep.subr.mxu0 0.0
        %680 = vmatpush1.xpose.msra.mxu0 %v511
        %681 = vmatprep.subr.mxu0 0.0
        %682 = vmatpush1.xpose.msra.mxu0 %v514
        %683 = vmatprep.subr.mxu0 0.0
        %684 = vmatpush1.xpose.msra.mxu0 %v517
        %685 = vmatprep.subr.mxu0 0.0
        %686 = vmatpush1.xpose.msra.mxu0 %v520
        %687 = vmatprep.subr.mxu0 0.0
        %688 = vmatpush1.xpose.msra.mxu0 %v523
        %689 = vmatprep.subr.mxu0 0.0
        %690 = vmatpush1.xpose.msra.mxu0 %v526
        %691 = vmatprep.subr.mxu0 0.0
        %692 = vmatpush1.xpose.msra.mxu0 %v529
        %693 = vmatprep.subr.mxu0 0.0
        %694 = vmatpush1.xpose.msra.mxu0 %v532
        %695 = vmatprep.subr.mxu0 0.0
        %696 = vmatpush1.xpose.msra.mxu0 %v535
        %697 = vmatprep.mubr.f32.mxu0 0.0
        %698 = vmatmul.mubr.f32.gmra.mrb[0].mxu0 %v430
        %v699 = vpop.f32.mrb[0].mxu0
        %v700 = vadd.f32 %v411, %v699
        %v701 = vpop.f32.mrb[0].mxu0
        %v702 = vadd.f32 %v411, %v701
        %703 = vmatprep.mubr.f32.mxu0 0.0
        %704 = vmatmul.mubr.f32.gmra.mrb[0].mxu0 %v433
        %v705 = vpop.f32.mrb[0].mxu0
        %v706 = vadd.f32 %v416, %v705
        %v707 = vpop.f32.mrb[0].mxu0
        %v708 = vadd.f32 %v416, %v707
        %709 = vmatprep.mubr.f32.mxu0 0.0
        %710 = vmatmul.mubr.f32.gmra.mrb[0].mxu0 %v436
        %v711 = vpop.f32.mrb[0].mxu0
        %v712 = vadd.f32 %v421, %v711
        %v713 = vpop.f32.mrb[0].mxu0
        %v714 = vadd.f32 %v421, %v713
        %715 = vmatprep.mubr.f32.mxu0 0.0
        %716 = vmatmul.mubr.f32.gmra.mrb[0].mxu0 %v439
        %v717 = vpop.f32.mrb[0].mxu0
        %v718 = vadd.f32 %v426, %v717
        %v719 = vpop.f32.mrb[0].mxu0
        %v720 = vadd.f32 %v426, %v719
        %721 = vdwg.mxu0
        %722 = vmatprep.subr.mxu0 0.0
        %723 = vmatpush1.xpose.msra.mxu0 %v538
        %724 = vmatprep.subr.mxu0 0.0
        %725 = vmatpush1.xpose.msra.mxu0 %v541
        %726 = vmatprep.subr.mxu0 0.0
        %727 = vmatpush1.xpose.msra.mxu0 %v544
        %728 = vmatprep.subr.mxu0 0.0
        %729 = vmatpush1.xpose.msra.mxu0 %v547
        %730 = vmatprep.subr.mxu0 0.0
        %731 = vmatpush1.xpose.msra.mxu0 %v550
        %732 = vmatprep.subr.mxu0 0.0
        %733 = vmatpush1.xpose.msra.mxu0 %v553
        %734 = vmatprep.subr.mxu0 0.0
        %735 = vmatpush1.xpose.msra.mxu0 %v556
        %736 = vmatprep.subr.mxu0 0.0
        %737 = vmatpush1.xpose.msra.mxu0 %v559
        %738 = vmatprep.subr.mxu0 0.0
        %739 = vmatpush1.xpose.msra.mxu0 %v562
        %740 = vmatprep.subr.mxu0 0.0
        %741 = vmatpush1.xpose.msra.mxu0 %v565
        %742 = vmatprep.subr.mxu0 0.0
        %743 = vmatpush1.xpose.msra.mxu0 %v568
        %744 = vmatprep.subr.mxu0 0.0
        %745 = vmatpush1.xpose.msra.mxu0 %v571
        %746 = vmatprep.subr.mxu0 0.0
        %747 = vmatpush1.xpose.msra.mxu0 %v574
        %748 = vmatprep.subr.mxu0 0.0
        %749 = vmatpush1.xpose.msra.mxu0 %v577
        %750 = vmatprep.subr.mxu0 0.0
        %751 = vmatpush1.xpose.msra.mxu0 %v580
        %752 = vmatprep.subr.mxu0 0.0
        %753 = vmatpush1.xpose.msra.mxu0 %v583
        %754 = vmatprep.subr.mxu0 0.0
        %755 = vmatpush1.xpose.msra.mxu0 %v586
        %756 = vmatprep.subr.mxu0 0.0
        %757 = vmatpush1.xpose.msra.mxu0 %v589
        %758 = vmatprep.subr.mxu0 0.0
        %759 = vmatpush1.xpose.msra.mxu0 %v592
        %760 = vmatprep.subr.mxu0 0.0
        %761 = vmatpush1.xpose.msra.mxu0 %v595
        %762 = vmatprep.subr.mxu0 0.0
        %763 = vmatpush1.xpose.msra.mxu0 %v598
        %764 = vmatprep.subr.mxu0 0.0
        %765 = vmatpush1.xpose.msra.mxu0 %v601
        %766 = vmatprep.subr.mxu0 0.0
        %767 = vmatpush1.xpose.msra.mxu0 %v604
        %768 = vmatprep.subr.mxu0 0.0
        %769 = vmatpush1.xpose.msra.mxu0 %v607
        %770 = vmatprep.subr.mxu0 0.0
        %771 = vmatpush1.xpose.msra.mxu0 %v610
        %772 = vmatprep.subr.mxu0 0.0
        %773 = vmatpush1.xpose.msra.mxu0 %v613
        %774 = vmatprep.subr.mxu0 0.0
        %775 = vmatpush1.xpose.msra.mxu0 %v616
        %776 = vmatprep.subr.mxu0 0.0
        %777 = vmatpush1.xpose.msra.mxu0 %v619
        %778 = vmatprep.subr.mxu0 0.0
        %779 = vmatpush1.xpose.msra.mxu0 %v622
        %780 = vmatprep.subr.mxu0 0.0
        %781 = vmatpush1.xpose.msra.mxu0 %v625
        %782 = vmatprep.subr.mxu0 0.0
        %783 = vmatpush1.xpose.msra.mxu0 %v628
        %784 = vmatprep.subr.mxu0 0.0
        %785 = vmatpush1.xpose.msra.mxu0 %v631
        %786 = vmatprep.mubr.f32.mxu0 0.0
        %787 = vmatmul.mubr.f32.gmra.mrb[0].mxu0 %v430
        %v788 = vpop.f32.mrb[0].mxu0
        %v789 = vadd.f32 %v411, %v788
        %v790 = vpop.f32.mrb[0].mxu0
        %v791 = vadd.f32 %v411, %v790
        %792 = vmatprep.mubr.f32.mxu0 0.0
        %793 = vmatmul.mubr.f32.gmra.mrb[0].mxu0 %v433
        %v794 = vpop.f32.mrb[0].mxu0
        %v795 = vadd.f32 %v416, %v794
        %v796 = vpop.f32.mrb[0].mxu0
        %v797 = vadd.f32 %v416, %v796
        %798 = vmatprep.mubr.f32.mxu0 0.0
        %799 = vmatmul.mubr.f32.gmra.mrb[0].mxu0 %v436
        %v800 = vpop.f32.mrb[0].mxu0
        %v801 = vadd.f32 %v421, %v800
        %v802 = vpop.f32.mrb[0].mxu0
        %v803 = vadd.f32 %v421, %v802
        %804 = vmatprep.mubr.f32.mxu0 0.0
        %805 = vmatmul.mubr.f32.gmra.mrb[0].mxu0 %v439
        %v806 = vpop.f32.mrb[0].mxu0
        %v807 = vadd.f32 %v426, %v806
        %v808 = vpop.f32.mrb[0].mxu0
        %v809 = vadd.f32 %v426, %v808
        %810 = vdwg.mxu0
        %v811 = vand.u32 2147483647, %v700
        %vm812 = vcmp.le.f32.partialorder %v811, 0.7853982
        %vm813 = vcmp.lt.s32.totalorder %v700, 0
        %v814 = vand.u32 %v700, 2139095040
        %v815 = vshrl.u32 %v814, 23
        %v816 = vsub.s32 %v815, 127
        %v817 = vand.u32 2147483647, %v700
        %v818 = vand.u32 %v817, 8388607
        %v819 = vor.u32 %v818, 8388608
        %v820 = vsub.s32 0, %v819
        %v821 = vadd.s32 %v816, 1
        %vm822 = vcmp.gt.s32.totalorder %v821, 0
        %v823 = vsel %vm822, %v821, 0
        %v824 = vshrl.u32 %v823, 5
        %v825 = vand.u32 %v823, 31
        %v826 = vsub.s32 32, %v825
        %v827 = vshrl.u32 683565275, %v826
        %v828 = vshll.u32 683565275, %v825
        %v829 = vshrl.u32 2475754826, %v826
        %v830 = vor.u32 %v828, %v829
        %v831 = vshll.u32 2475754826, %v825
        %v832 = vshrl.u32 2131351028, %v826
        %v833 = vor.u32 %v831, %v832
        %v834 = vshll.u32 2131351028, %v825
        %v835 = vshrl.u32 2102212464, %v826
        %v836 = vor.u32 %v834, %v835
        %v837 = vshll.u32 2102212464, %v825
        %v838 = vshrl.u32 920167782, %v826
        %v839 = vor.u32 %v837, %v838
        %v840 = vshll.u32 920167782, %v825
        %v841 = vshrl.u32 1326507024, %v826
        %v842 = vor.u32 %v840, %v841
        %vm843 = vcmp.lt.s32.totalorder %v824, 1
        %vm844 = vcmp.lt.s32.totalorder %v824, 2
        %vm845 = vcmp.lt.s32.totalorder %v824, 3
        %vm846 = vcmp.lt.s32.totalorder %v824, 4
        %v847 = vsel %vm843, %v827, %v830
        %v848 = vsel %vm846, %v836, 2102212464
        %v849 = vsel %vm845, %v833, %v848
        %v850 = vsel %vm844, %v847, %v849
        %v851 = vsel %vm843, %v830, %v833
        %v852 = vsel %vm846, %v839, 920167782
        %v853 = vsel %vm845, %v836, %v852
        %v854 = vsel %vm844, %v851, %v853
        %v855 = vsel %vm843, %v833, %v836
        %v856 = vsel %vm846, %v842, 1326507024
        %v857 = vsel %vm845, %v839, %v856
        %v858 = vsel %vm844, %v855, %v857
        %v859 = vshll.u32 %v819, 8
        %v860 = vmul.u32.u64.compose %v859, %v858
        %v861 = vextract.low.u32 %v860
        %v862 = vextract.high.u32 %v860
        %v863 = vmul.u32.u64.compose %v859, %v854
        %v864 = vextract.low.u32 %v863
        %v865 = vextract.high.u32 %v863
        %v866 = vmul.u32 %v859, %v850
        %v867 = vadd.s32 %v862, %v864
        %vm868 = vc.u32 %v862, %v864
        %v869 = vadd.s32 %v865, 1
        %v870 = vsel %vm868, %v869, %v865
        %v871 = vadd.s32 %v866, %v870
        %v872 = vadd.s32 %v871, 536870912
        %v873 = vshrl.u32 %v872, 30
        %v874 = vshll.u32 %v873, 30
        %v875 = vsub.s32 %v871, %v874
        %vm876 = vcmp.lt.s32.totalorder %v875, 0
        %v877 = vsub.s32 0, %v875
        %v878 = vsel %vm876, %v877, %v875
        %v879 = vclz %v878
        %v880 = vsub.s32 %v879, 2
        %vm881 = vcmp.gt.s32.totalorder 0, %v880
        %v882 = vsel %vm881, 0, %v880
        %v883 = vsub.s32 32, %v882
        %v884 = vshll.u32 %v875, %v882
        %v885 = vshrl.u32 %v867, %v883
        %v886 = vor.u32 %v884, %v885
        %v887 = vsub.s32 4294967266, %v882
        %v888 = vadd.s32 %v887, 127
        %v889 = vshll.u32 %v888, 23
        %v890 = vor.u32 4788187, %v889
        %v891 = vand.u32 2147483647, %v890
        %v893 = vcvt.s32.f32 %v886
        %v894 = vmul.f32 %v893, %v891
        %v895 = vxor.u32 %v894, 2147483648
        %v896 = vsel %vm813, %v895, %v894
        %v897 = vsub.s32 4, %v873
        %v898 = vsel %vm813, %v897, %v873
        %v899 = vsel %vm812, %v700, %v896
        %v900 = vsel %vm812, 0, %v898
        %v901 = vcosq.f32.pop %v899
        %v902 = vsinq.f32.pop %v899
        %vm903 = vweird.f32 %v700
        %v904 = vadd.s32 %v900, 3
        %v905 = vand.u32 %v904, 3
        %vm906 = vcmp.lt.s32.totalorder %v905, 2
        %vm907 = vcmp.eq.s32.totalorder %v905, 0
        %v908 = vxor.u32 %v902, 2147483648
        %v909 = vsel %vm907, %v901, %v908
        %vm910 = vcmp.eq.s32.totalorder %v905, 2
        %v911 = vxor.u32 %v901, 2147483648
        %v912 = vsel %vm910, %v911, %v902
        %v913 = vsel %vm906, %v909, %v912
        %v914 = vsel %vm903, nan, %v913
        %v915 = vand.u32 2147483647, %v702
        %vm916 = vcmp.le.f32.partialorder %v915, 0.7853982
        %vm917 = vcmp.lt.s32.totalorder %v702, 0
        %v918 = vand.u32 %v702, 2139095040
        %v919 = vshrl.u32 %v918, 23
        %v920 = vsub.s32 %v919, 127
        %v921 = vand.u32 2147483647, %v702
        %v922 = vand.u32 %v921, 8388607
        %v923 = vor.u32 %v922, 8388608
        %v924 = vsub.s32 0, %v923
        %v925 = vadd.s32 %v920, 1
        %vm926 = vcmp.gt.s32.totalorder %v925, 0
        %v927 = vsel %vm926, %v925, 0
        %v928 = vshrl.u32 %v927, 5
        %v929 = vand.u32 %v927, 31
        %v930 = vsub.s32 32, %v929
        %v931 = vshrl.u32 683565275, %v930
        %v932 = vshll.u32 683565275, %v929
        %v933 = vshrl.u32 2475754826, %v930
        %v934 = vor.u32 %v932, %v933
        %v935 = vshll.u32 2475754826, %v929
        %v936 = vshrl.u32 2131351028, %v930
        %v937 = vor.u32 %v935, %v936
        %v938 = vshll.u32 2131351028, %v929
        %v939 = vshrl.u32 2102212464, %v930
        %v940 = vor.u32 %v938, %v939
        %v941 = vshll.u32 2102212464, %v929
        %v942 = vshrl.u32 920167782, %v930
        %v943 = vor.u32 %v941, %v942
        %v944 = vshll.u32 920167782, %v929
        %v945 = vshrl.u32 1326507024, %v930
        %v946 = vor.u32 %v944, %v945
        %vm947 = vcmp.lt.s32.totalorder %v928, 1
        %vm948 = vcmp.lt.s32.totalorder %v928, 2
        %vm949 = vcmp.lt.s32.totalorder %v928, 3
        %vm950 = vcmp.lt.s32.totalorder %v928, 4
        %v951 = vsel %vm947, %v931, %v934
        %v952 = vsel %vm950, %v940, 2102212464
        %v953 = vsel %vm949, %v937, %v952
        %v954 = vsel %vm948, %v951, %v953
        %v955 = vsel %vm947, %v934, %v937
        %v956 = vsel %vm950, %v943, 920167782
        %v957 = vsel %vm949, %v940, %v956
        %v958 = vsel %vm948, %v955, %v957
        %v959 = vsel %vm947, %v937, %v940
        %v960 = vsel %vm950, %v946, 1326507024
        %v961 = vsel %vm949, %v943, %v960
        %v962 = vsel %vm948, %v959, %v961
        %v963 = vshll.u32 %v923, 8
        %v964 = vmul.u32.u64.compose %v963, %v962
        %v965 = vextract.low.u32 %v964
        %v966 = vextract.high.u32 %v964
        %v967 = vmul.u32.u64.compose %v963, %v958
        %v968 = vextract.low.u32 %v967
        %v969 = vextract.high.u32 %v967
        %v970 = vmul.u32 %v963, %v954
        %v971 = vadd.s32 %v966, %v968
        %vm972 = vc.u32 %v966, %v968
        %v973 = vadd.s32 %v969, 1
        %v974 = vsel %vm972, %v973, %v969
        %v975 = vadd.s32 %v970, %v974
        %v976 = vadd.s32 %v975, 536870912
        %v977 = vshrl.u32 %v976, 30
        %v978 = vshll.u32 %v977, 30
        %v979 = vsub.s32 %v975, %v978
        %vm980 = vcmp.lt.s32.totalorder %v979, 0
        %v981 = vsub.s32 0, %v979
        %v982 = vsel %vm980, %v981, %v979
        %v983 = vclz %v982
        %v984 = vsub.s32 %v983, 2
        %vm985 = vcmp.gt.s32.totalorder 0, %v984
        %v986 = vsel %vm985, 0, %v984
        %v987 = vsub.s32 32, %v986
        %v988 = vshll.u32 %v979, %v986
        %v989 = vshrl.u32 %v971, %v987
        %v990 = vor.u32 %v988, %v989
        %v991 = vsub.s32 4294967266, %v986
        %v992 = vadd.s32 %v991, 127
        %v993 = vshll.u32 %v992, 23
        %v994 = vor.u32 4788187, %v993
        %v995 = vand.u32 2147483647, %v994
        %v997 = vcvt.s32.f32 %v990
        %v998 = vmul.f32 %v997, %v995
        %v999 = vxor.u32 %v998, 2147483648
        %v1000 = vsel %vm917, %v999, %v998
        %v1001 = vsub.s32 4, %v977
        %v1002 = vsel %vm917, %v1001, %v977
        %v1003 = vsel %vm916, %v702, %v1000
        %v1004 = vsel %vm916, 0, %v1002
        %v1005 = vcosq.f32.pop %v1003
        %v1006 = vsinq.f32.pop %v1003
        %vm1007 = vweird.f32 %v702
        %v1008 = vadd.s32 %v1004, 3
        %v1009 = vand.u32 %v1008, 3
        %vm1010 = vcmp.lt.s32.totalorder %v1009, 2
        %vm1011 = vcmp.eq.s32.totalorder %v1009, 0
        %v1012 = vxor.u32 %v1006, 2147483648
        %v1013 = vsel %vm1011, %v1005, %v1012
        %vm1014 = vcmp.eq.s32.totalorder %v1009, 2
        %v1015 = vxor.u32 %v1005, 2147483648
        %v1016 = vsel %vm1014, %v1015, %v1006
        %v1017 = vsel %vm1010, %v1013, %v1016
        %v1018 = vsel %vm1007, nan, %v1017
        %v1019 = vand.u32 2147483647, %v789
        %vm1020 = vcmp.le.f32.partialorder %v1019, 0.7853982
        %vm1021 = vcmp.lt.s32.totalorder %v789, 0
        %v1022 = vand.u32 %v789, 2139095040
        %v1023 = vshrl.u32 %v1022, 23
        %v1024 = vsub.s32 %v1023, 127
        %v1025 = vand.u32 2147483647, %v789
        %v1026 = vand.u32 %v1025, 8388607
        %v1027 = vor.u32 %v1026, 8388608
        %v1028 = vsub.s32 0, %v1027
        %v1029 = vadd.s32 %v1024, 1
        %vm1030 = vcmp.gt.s32.totalorder %v1029, 0
        %v1031 = vsel %vm1030, %v1029, 0
        %v1032 = vshrl.u32 %v1031, 5
        %v1033 = vand.u32 %v1031, 31
        %v1034 = vsub.s32 32, %v1033
        %v1035 = vshrl.u32 683565275, %v1034
        %v1036 = vshll.u32 683565275, %v1033
        %v1037 = vshrl.u32 2475754826, %v1034
        %v1038 = vor.u32 %v1036, %v1037
        %v1039 = vshll.u32 2475754826, %v1033
        %v1040 = vshrl.u32 2131351028, %v1034
        %v1041 = vor.u32 %v1039, %v1040
        %v1042 = vshll.u32 2131351028, %v1033
        %v1043 = vshrl.u32 2102212464, %v1034
        %v1044 = vor.u32 %v1042, %v1043
        %v1045 = vshll.u32 2102212464, %v1033
        %v1046 = vshrl.u32 920167782, %v1034
        %v1047 = vor.u32 %v1045, %v1046
        %v1048 = vshll.u32 920167782, %v1033
        %v1049 = vshrl.u32 1326507024, %v1034
        %v1050 = vor.u32 %v1048, %v1049
        %vm1051 = vcmp.lt.s32.totalorder %v1032, 1
        %vm1052 = vcmp.lt.s32.totalorder %v1032, 2
        %vm1053 = vcmp.lt.s32.totalorder %v1032, 3
        %vm1054 = vcmp.lt.s32.totalorder %v1032, 4
        %v1055 = vsel %vm1051, %v1035, %v1038
        %v1056 = vsel %vm1054, %v1044, 2102212464
        %v1057 = vsel %vm1053, %v1041, %v1056
        %v1058 = vsel %vm1052, %v1055, %v1057
        %v1059 = vsel %vm1051, %v1038, %v1041
        %v1060 = vsel %vm1054, %v1047, 920167782
        %v1061 = vsel %vm1053, %v1044, %v1060
        %v1062 = vsel %vm1052, %v1059, %v1061
        %v1063 = vsel %vm1051, %v1041, %v1044
        %v1064 = vsel %vm1054, %v1050, 1326507024
        %v1065 = vsel %vm1053, %v1047, %v1064
        %v1066 = vsel %vm1052, %v1063, %v1065
        %v1067 = vshll.u32 %v1027, 8
        %v1068 = vmul.u32.u64.compose %v1067, %v1066
        %v1069 = vextract.low.u32 %v1068
        %v1070 = vextract.high.u32 %v1068
        %v1071 = vmul.u32.u64.compose %v1067, %v1062
        %v1072 = vextract.low.u32 %v1071
        %v1073 = vextract.high.u32 %v1071
        %v1074 = vmul.u32 %v1067, %v1058
        %v1075 = vadd.s32 %v1070, %v1072
        %vm1076 = vc.u32 %v1070, %v1072
        %v1077 = vadd.s32 %v1073, 1
        %v1078 = vsel %vm1076, %v1077, %v1073
        %v1079 = vadd.s32 %v1074, %v1078
        %v1080 = vadd.s32 %v1079, 536870912
        %v1081 = vshrl.u32 %v1080, 30
        %v1082 = vshll.u32 %v1081, 30
        %v1083 = vsub.s32 %v1079, %v1082
        %vm1084 = vcmp.lt.s32.totalorder %v1083, 0
        %v1085 = vsub.s32 0, %v1083
        %v1086 = vsel %vm1084, %v1085, %v1083
        %v1087 = vclz %v1086
        %v1088 = vsub.s32 %v1087, 2
        %vm1089 = vcmp.gt.s32.totalorder 0, %v1088
        %v1090 = vsel %vm1089, 0, %v1088
        %v1091 = vsub.s32 32, %v1090
        %v1092 = vshll.u32 %v1083, %v1090
        %v1093 = vshrl.u32 %v1075, %v1091
        %v1094 = vor.u32 %v1092, %v1093
        %v1095 = vsub.s32 4294967266, %v1090
        %v1096 = vadd.s32 %v1095, 127
        %v1097 = vshll.u32 %v1096, 23
        %v1098 = vor.u32 4788187, %v1097
        %v1099 = vand.u32 2147483647, %v1098
        %v1101 = vcvt.s32.f32 %v1094
        %v1102 = vmul.f32 %v1101, %v1099
        %v1103 = vxor.u32 %v1102, 2147483648
        %v1104 = vsel %vm1021, %v1103, %v1102
        %v1105 = vsub.s32 4, %v1081
        %v1106 = vsel %vm1021, %v1105, %v1081
        %v1107 = vsel %vm1020, %v789, %v1104
        %v1108 = vsel %vm1020, 0, %v1106
        %v1109 = vcosq.f32.pop %v1107
        %v1110 = vsinq.f32.pop %v1107
        %vm1111 = vweird.f32 %v789
        %v1112 = vadd.s32 %v1108, 3
        %v1113 = vand.u32 %v1112, 3
        %vm1114 = vcmp.lt.s32.totalorder %v1113, 2
        %vm1115 = vcmp.eq.s32.totalorder %v1113, 0
        %v1116 = vxor.u32 %v1110, 2147483648
        %v1117 = vsel %vm1115, %v1109, %v1116
        %vm1118 = vcmp.eq.s32.totalorder %v1113, 2
        %v1119 = vxor.u32 %v1109, 2147483648
        %v1120 = vsel %vm1118, %v1119, %v1110
        %v1121 = vsel %vm1114, %v1117, %v1120
        %v1122 = vsel %vm1111, nan, %v1121
        %v1123 = vand.u32 2147483647, %v791
        %vm1124 = vcmp.le.f32.partialorder %v1123, 0.7853982
        %vm1125 = vcmp.lt.s32.totalorder %v791, 0
        %v1126 = vand.u32 %v791, 2139095040
        %v1127 = vshrl.u32 %v1126, 23
        %v1128 = vsub.s32 %v1127, 127
        %v1129 = vand.u32 2147483647, %v791
        %v1130 = vand.u32 %v1129, 8388607
        %v1131 = vor.u32 %v1130, 8388608
        %v1132 = vsub.s32 0, %v1131
        %v1133 = vadd.s32 %v1128, 1
        %vm1134 = vcmp.gt.s32.totalorder %v1133, 0
        %v1135 = vsel %vm1134, %v1133, 0
        %v1136 = vshrl.u32 %v1135, 5
        %v1137 = vand.u32 %v1135, 31
        %v1138 = vsub.s32 32, %v1137
        %v1139 = vshrl.u32 683565275, %v1138
        %v1140 = vshll.u32 683565275, %v1137
        %v1141 = vshrl.u32 2475754826, %v1138
        %v1142 = vor.u32 %v1140, %v1141
        %v1143 = vshll.u32 2475754826, %v1137
        %v1144 = vshrl.u32 2131351028, %v1138
        %v1145 = vor.u32 %v1143, %v1144
        %v1146 = vshll.u32 2131351028, %v1137
        %v1147 = vshrl.u32 2102212464, %v1138
        %v1148 = vor.u32 %v1146, %v1147
        %v1149 = vshll.u32 2102212464, %v1137
        %v1150 = vshrl.u32 920167782, %v1138
        %v1151 = vor.u32 %v1149, %v1150
        %v1152 = vshll.u32 920167782, %v1137
        %v1153 = vshrl.u32 1326507024, %v1138
        %v1154 = vor.u32 %v1152, %v1153
        %vm1155 = vcmp.lt.s32.totalorder %v1136, 1
        %vm1156 = vcmp.lt.s32.totalorder %v1136, 2
        %vm1157 = vcmp.lt.s32.totalorder %v1136, 3
        %vm1158 = vcmp.lt.s32.totalorder %v1136, 4
        %v1159 = vsel %vm1155, %v1139, %v1142
        %v1160 = vsel %vm1158, %v1148, 2102212464
        %v1161 = vsel %vm1157, %v1145, %v1160
        %v1162 = vsel %vm1156, %v1159, %v1161
        %v1163 = vsel %vm1155, %v1142, %v1145
        %v1164 = vsel %vm1158, %v1151, 920167782
        %v1165 = vsel %vm1157, %v1148, %v1164
        %v1166 = vsel %vm1156, %v1163, %v1165
        %v1167 = vsel %vm1155, %v1145, %v1148
        %v1168 = vsel %vm1158, %v1154, 1326507024
        %v1169 = vsel %vm1157, %v1151, %v1168
        %v1170 = vsel %vm1156, %v1167, %v1169
        %v1171 = vshll.u32 %v1131, 8
        %v1172 = vmul.u32.u64.compose %v1171, %v1170
        %v1173 = vextract.low.u32 %v1172
        %v1174 = vextract.high.u32 %v1172
        %v1175 = vmul.u32.u64.compose %v1171, %v1166
        %v1176 = vextract.low.u32 %v1175
        %v1177 = vextract.high.u32 %v1175
        %v1178 = vmul.u32 %v1171, %v1162
        %v1179 = vadd.s32 %v1174, %v1176
        %vm1180 = vc.u32 %v1174, %v1176
        %v1181 = vadd.s32 %v1177, 1
        %v1182 = vsel %vm1180, %v1181, %v1177
        %v1183 = vadd.s32 %v1178, %v1182
        %v1184 = vadd.s32 %v1183, 536870912
        %v1185 = vshrl.u32 %v1184, 30
        %v1186 = vshll.u32 %v1185, 30
        %v1187 = vsub.s32 %v1183, %v1186
        %vm1188 = vcmp.lt.s32.totalorder %v1187, 0
        %v1189 = vsub.s32 0, %v1187
        %v1190 = vsel %vm1188, %v1189, %v1187
        %v1191 = vclz %v1190
        %v1192 = vsub.s32 %v1191, 2
        %vm1193 = vcmp.gt.s32.totalorder 0, %v1192
        %v1194 = vsel %vm1193, 0, %v1192
        %v1195 = vsub.s32 32, %v1194
        %v1196 = vshll.u32 %v1187, %v1194
        %v1197 = vshrl.u32 %v1179, %v1195
        %v1198 = vor.u32 %v1196, %v1197
        %v1199 = vsub.s32 4294967266, %v1194
        %v1200 = vadd.s32 %v1199, 127
        %v1201 = vshll.u32 %v1200, 23
        %v1202 = vor.u32 4788187, %v1201
        %v1203 = vand.u32 2147483647, %v1202
        %v1205 = vcvt.s32.f32 %v1198
        %v1206 = vmul.f32 %v1205, %v1203
        %v1207 = vxor.u32 %v1206, 2147483648
        %v1208 = vsel %vm1125, %v1207, %v1206
        %v1209 = vsub.s32 4, %v1185
        %v1210 = vsel %vm1125, %v1209, %v1185
        %v1211 = vsel %vm1124, %v791, %v1208
        %v1212 = vsel %vm1124, 0, %v1210
        %v1213 = vcosq.f32.pop %v1211
        %v1214 = vsinq.f32.pop %v1211
        %vm1215 = vweird.f32 %v791
        %v1216 = vadd.s32 %v1212, 3
        %v1217 = vand.u32 %v1216, 3
        %vm1218 = vcmp.lt.s32.totalorder %v1217, 2
        %vm1219 = vcmp.eq.s32.totalorder %v1217, 0
        %v1220 = vxor.u32 %v1214, 2147483648
        %v1221 = vsel %vm1219, %v1213, %v1220
        %vm1222 = vcmp.eq.s32.totalorder %v1217, 2
        %v1223 = vxor.u32 %v1213, 2147483648
        %v1224 = vsel %vm1222, %v1223, %v1214
        %v1225 = vsel %vm1218, %v1221, %v1224
        %v1226 = vsel %vm1215, nan, %v1225
        %v1227 = vand.u32 2147483647, %v706
        %vm1228 = vcmp.le.f32.partialorder %v1227, 0.7853982
        %vm1229 = vcmp.lt.s32.totalorder %v706, 0
        %v1230 = vand.u32 %v706, 2139095040
        %v1231 = vshrl.u32 %v1230, 23
        %v1232 = vsub.s32 %v1231, 127
        %v1233 = vand.u32 2147483647, %v706
        %v1234 = vand.u32 %v1233, 8388607
        %v1235 = vor.u32 %v1234, 8388608
        %v1236 = vsub.s32 0, %v1235
        %v1237 = vadd.s32 %v1232, 1
        %vm1238 = vcmp.gt.s32.totalorder %v1237, 0
        %v1239 = vsel %vm1238, %v1237, 0
        %v1240 = vshrl.u32 %v1239, 5
        %v1241 = vand.u32 %v1239, 31
        %v1242 = vsub.s32 32, %v1241
        %v1243 = vshrl.u32 683565275, %v1242
        %v1244 = vshll.u32 683565275, %v1241
        %v1245 = vshrl.u32 2475754826, %v1242
        %v1246 = vor.u32 %v1244, %v1245
        %v1247 = vshll.u32 2475754826, %v1241
        %v1248 = vshrl.u32 2131351028, %v1242
        %v1249 = vor.u32 %v1247, %v1248
        %v1250 = vshll.u32 2131351028, %v1241
        %v1251 = vshrl.u32 2102212464, %v1242
        %v1252 = vor.u32 %v1250, %v1251
        %v1253 = vshll.u32 2102212464, %v1241
        %v1254 = vshrl.u32 920167782, %v1242
        %v1255 = vor.u32 %v1253, %v1254
        %v1256 = vshll.u32 920167782, %v1241
        %v1257 = vshrl.u32 1326507024, %v1242
        %v1258 = vor.u32 %v1256, %v1257
        %vm1259 = vcmp.lt.s32.totalorder %v1240, 1
        %vm1260 = vcmp.lt.s32.totalorder %v1240, 2
        %vm1261 = vcmp.lt.s32.totalorder %v1240, 3
        %vm1262 = vcmp.lt.s32.totalorder %v1240, 4
        %v1263 = vsel %vm1259, %v1243, %v1246
        %v1264 = vsel %vm1262, %v1252, 2102212464
        %v1265 = vsel %vm1261, %v1249, %v1264
        %v1266 = vsel %vm1260, %v1263, %v1265
        %v1267 = vsel %vm1259, %v1246, %v1249
        %v1268 = vsel %vm1262, %v1255, 920167782
        %v1269 = vsel %vm1261, %v1252, %v1268
        %v1270 = vsel %vm1260, %v1267, %v1269
        %v1271 = vsel %vm1259, %v1249, %v1252
        %v1272 = vsel %vm1262, %v1258, 1326507024
        %v1273 = vsel %vm1261, %v1255, %v1272
        %v1274 = vsel %vm1260, %v1271, %v1273
        %v1275 = vshll.u32 %v1235, 8
        %v1276 = vmul.u32.u64.compose %v1275, %v1274
        %v1277 = vextract.low.u32 %v1276
        %v1278 = vextract.high.u32 %v1276
        %v1279 = vmul.u32.u64.compose %v1275, %v1270
        %v1280 = vextract.low.u32 %v1279
        %v1281 = vextract.high.u32 %v1279
        %v1282 = vmul.u32 %v1275, %v1266
        %v1283 = vadd.s32 %v1278, %v1280
        %vm1284 = vc.u32 %v1278, %v1280
        %v1285 = vadd.s32 %v1281, 1
        %v1286 = vsel %vm1284, %v1285, %v1281
        %v1287 = vadd.s32 %v1282, %v1286
        %v1288 = vadd.s32 %v1287, 536870912
        %v1289 = vshrl.u32 %v1288, 30
        %v1290 = vshll.u32 %v1289, 30
        %v1291 = vsub.s32 %v1287, %v1290
        %vm1292 = vcmp.lt.s32.totalorder %v1291, 0
        %v1293 = vsub.s32 0, %v1291
        %v1294 = vsel %vm1292, %v1293, %v1291
        %v1295 = vclz %v1294
        %v1296 = vsub.s32 %v1295, 2
        %vm1297 = vcmp.gt.s32.totalorder 0, %v1296
        %v1298 = vsel %vm1297, 0, %v1296
        %v1299 = vsub.s32 32, %v1298
        %v1300 = vshll.u32 %v1291, %v1298
        %v1301 = vshrl.u32 %v1283, %v1299
        %v1302 = vor.u32 %v1300, %v1301
        %v1303 = vsub.s32 4294967266, %v1298
        %v1304 = vadd.s32 %v1303, 127
        %v1305 = vshll.u32 %v1304, 23
        %v1306 = vor.u32 4788187, %v1305
        %v1307 = vand.u32 2147483647, %v1306
        %v1309 = vcvt.s32.f32 %v1302
        %v1310 = vmul.f32 %v1309, %v1307
        %v1311 = vxor.u32 %v1310, 2147483648
        %v1312 = vsel %vm1229, %v1311, %v1310
        %v1313 = vsub.s32 4, %v1289
        %v1314 = vsel %vm1229, %v1313, %v1289
        %v1315 = vsel %vm1228, %v706, %v1312
        %v1316 = vsel %vm1228, 0, %v1314
        %v1317 = vcosq.f32.pop %v1315
        %v1318 = vsinq.f32.pop %v1315
        %vm1319 = vweird.f32 %v706
        %v1320 = vadd.s32 %v1316, 3
        %v1321 = vand.u32 %v1320, 3
        %vm1322 = vcmp.lt.s32.totalorder %v1321, 2
        %vm1323 = vcmp.eq.s32.totalorder %v1321, 0
        %v1324 = vxor.u32 %v1318, 2147483648
        %v1325 = vsel %vm1323, %v1317, %v1324
        %vm1326 = vcmp.eq.s32.totalorder %v1321, 2
        %v1327 = vxor.u32 %v1317, 2147483648
        %v1328 = vsel %vm1326, %v1327, %v1318
        %v1329 = vsel %vm1322, %v1325, %v1328
        %v1330 = vsel %vm1319, nan, %v1329
        %v1331 = vand.u32 2147483647, %v708
        %vm1332 = vcmp.le.f32.partialorder %v1331, 0.7853982
        %vm1333 = vcmp.lt.s32.totalorder %v708, 0
        %v1334 = vand.u32 %v708, 2139095040
        %v1335 = vshrl.u32 %v1334, 23
        %v1336 = vsub.s32 %v1335, 127
        %v1337 = vand.u32 2147483647, %v708
        %v1338 = vand.u32 %v1337, 8388607
        %v1339 = vor.u32 %v1338, 8388608
        %v1340 = vsub.s32 0, %v1339
        %v1341 = vadd.s32 %v1336, 1
        %vm1342 = vcmp.gt.s32.totalorder %v1341, 0
        %v1343 = vsel %vm1342, %v1341, 0
        %v1344 = vshrl.u32 %v1343, 5
        %v1345 = vand.u32 %v1343, 31
        %v1346 = vsub.s32 32, %v1345
        %v1347 = vshrl.u32 683565275, %v1346
        %v1348 = vshll.u32 683565275, %v1345
        %v1349 = vshrl.u32 2475754826, %v1346
        %v1350 = vor.u32 %v1348, %v1349
        %v1351 = vshll.u32 2475754826, %v1345
        %v1352 = vshrl.u32 2131351028, %v1346
        %v1353 = vor.u32 %v1351, %v1352
        %v1354 = vshll.u32 2131351028, %v1345
        %v1355 = vshrl.u32 2102212464, %v1346
        %v1356 = vor.u32 %v1354, %v1355
        %v1357 = vshll.u32 2102212464, %v1345
        %v1358 = vshrl.u32 920167782, %v1346
        %v1359 = vor.u32 %v1357, %v1358
        %v1360 = vshll.u32 920167782, %v1345
        %v1361 = vshrl.u32 1326507024, %v1346
        %v1362 = vor.u32 %v1360, %v1361
        %vm1363 = vcmp.lt.s32.totalorder %v1344, 1
        %vm1364 = vcmp.lt.s32.totalorder %v1344, 2
        %vm1365 = vcmp.lt.s32.totalorder %v1344, 3
        %vm1366 = vcmp.lt.s32.totalorder %v1344, 4
        %v1367 = vsel %vm1363, %v1347, %v1350
        %v1368 = vsel %vm1366, %v1356, 2102212464
        %v1369 = vsel %vm1365, %v1353, %v1368
        %v1370 = vsel %vm1364, %v1367, %v1369
        %v1371 = vsel %vm1363, %v1350, %v1353
        %v1372 = vsel %vm1366, %v1359, 920167782
        %v1373 = vsel %vm1365, %v1356, %v1372
        %v1374 = vsel %vm1364, %v1371, %v1373
        %v1375 = vsel %vm1363, %v1353, %v1356
        %v1376 = vsel %vm1366, %v1362, 1326507024
        %v1377 = vsel %vm1365, %v1359, %v1376
        %v1378 = vsel %vm1364, %v1375, %v1377
        %v1379 = vshll.u32 %v1339, 8
        %v1380 = vmul.u32.u64.compose %v1379, %v1378
        %v1381 = vextract.low.u32 %v1380
        %v1382 = vextract.high.u32 %v1380
        %v1383 = vmul.u32.u64.compose %v1379, %v1374
        %v1384 = vextract.low.u32 %v1383
        %v1385 = vextract.high.u32 %v1383
        %v1386 = vmul.u32 %v1379, %v1370
        %v1387 = vadd.s32 %v1382, %v1384
        %vm1388 = vc.u32 %v1382, %v1384
        %v1389 = vadd.s32 %v1385, 1
        %v1390 = vsel %vm1388, %v1389, %v1385
        %v1391 = vadd.s32 %v1386, %v1390
        %v1392 = vadd.s32 %v1391, 536870912
        %v1393 = vshrl.u32 %v1392, 30
        %v1394 = vshll.u32 %v1393, 30
        %v1395 = vsub.s32 %v1391, %v1394
        %vm1396 = vcmp.lt.s32.totalorder %v1395, 0
        %v1397 = vsub.s32 0, %v1395
        %v1398 = vsel %vm1396, %v1397, %v1395
        %v1399 = vclz %v1398
        %v1400 = vsub.s32 %v1399, 2
        %vm1401 = vcmp.gt.s32.totalorder 0, %v1400
        %v1402 = vsel %vm1401, 0, %v1400
        %v1403 = vsub.s32 32, %v1402
        %v1404 = vshll.u32 %v1395, %v1402
        %v1405 = vshrl.u32 %v1387, %v1403
        %v1406 = vor.u32 %v1404, %v1405
        %v1407 = vsub.s32 4294967266, %v1402
        %v1408 = vadd.s32 %v1407, 127
        %v1409 = vshll.u32 %v1408, 23
        %v1410 = vor.u32 4788187, %v1409
        %v1411 = vand.u32 2147483647, %v1410
        %v1413 = vcvt.s32.f32 %v1406
        %v1414 = vmul.f32 %v1413, %v1411
        %v1415 = vxor.u32 %v1414, 2147483648
        %v1416 = vsel %vm1333, %v1415, %v1414
        %v1417 = vsub.s32 4, %v1393
        %v1418 = vsel %vm1333, %v1417, %v1393
        %v1419 = vsel %vm1332, %v708, %v1416
        %v1420 = vsel %vm1332, 0, %v1418
        %v1421 = vcosq.f32.pop %v1419
        %v1422 = vsinq.f32.pop %v1419
        %vm1423 = vweird.f32 %v708
        %v1424 = vadd.s32 %v1420, 3
        %v1425 = vand.u32 %v1424, 3
        %vm1426 = vcmp.lt.s32.totalorder %v1425, 2
        %vm1427 = vcmp.eq.s32.totalorder %v1425, 0
        %v1428 = vxor.u32 %v1422, 2147483648
        %v1429 = vsel %vm1427, %v1421, %v1428
        %vm1430 = vcmp.eq.s32.totalorder %v1425, 2
        %v1431 = vxor.u32 %v1421, 2147483648
        %v1432 = vsel %vm1430, %v1431, %v1422
        %v1433 = vsel %vm1426, %v1429, %v1432
        %v1434 = vsel %vm1423, nan, %v1433
        %v1435 = vand.u32 2147483647, %v795
        %vm1436 = vcmp.le.f32.partialorder %v1435, 0.7853982
        %vm1437 = vcmp.lt.s32.totalorder %v795, 0
        %v1438 = vand.u32 %v795, 2139095040
        %v1439 = vshrl.u32 %v1438, 23
        %v1440 = vsub.s32 %v1439, 127
        %v1441 = vand.u32 2147483647, %v795
        %v1442 = vand.u32 %v1441, 8388607
        %v1443 = vor.u32 %v1442, 8388608
        %v1444 = vsub.s32 0, %v1443
        %v1445 = vadd.s32 %v1440, 1
        %vm1446 = vcmp.gt.s32.totalorder %v1445, 0
        %v1447 = vsel %vm1446, %v1445, 0
        %v1448 = vshrl.u32 %v1447, 5
        %v1449 = vand.u32 %v1447, 31
        %v1450 = vsub.s32 32, %v1449
        %v1451 = vshrl.u32 683565275, %v1450
        %v1452 = vshll.u32 683565275, %v1449
        %v1453 = vshrl.u32 2475754826, %v1450
        %v1454 = vor.u32 %v1452, %v1453
        %v1455 = vshll.u32 2475754826, %v1449
        %v1456 = vshrl.u32 2131351028, %v1450
        %v1457 = vor.u32 %v1455, %v1456
        %v1458 = vshll.u32 2131351028, %v1449
        %v1459 = vshrl.u32 2102212464, %v1450
        %v1460 = vor.u32 %v1458, %v1459
        %v1461 = vshll.u32 2102212464, %v1449
        %v1462 = vshrl.u32 920167782, %v1450
        %v1463 = vor.u32 %v1461, %v1462
        %v1464 = vshll.u32 920167782, %v1449
        %v1465 = vshrl.u32 1326507024, %v1450
        %v1466 = vor.u32 %v1464, %v1465
        %vm1467 = vcmp.lt.s32.totalorder %v1448, 1
        %vm1468 = vcmp.lt.s32.totalorder %v1448, 2
        %vm1469 = vcmp.lt.s32.totalorder %v1448, 3
        %vm1470 = vcmp.lt.s32.totalorder %v1448, 4
        %v1471 = vsel %vm1467, %v1451, %v1454
        %v1472 = vsel %vm1470, %v1460, 2102212464
        %v1473 = vsel %vm1469, %v1457, %v1472
        %v1474 = vsel %vm1468, %v1471, %v1473
        %v1475 = vsel %vm1467, %v1454, %v1457
        %v1476 = vsel %vm1470, %v1463, 920167782
        %v1477 = vsel %vm1469, %v1460, %v1476
        %v1478 = vsel %vm1468, %v1475, %v1477
        %v1479 = vsel %vm1467, %v1457, %v1460
        %v1480 = vsel %vm1470, %v1466, 1326507024
        %v1481 = vsel %vm1469, %v1463, %v1480
        %v1482 = vsel %vm1468, %v1479, %v1481
        %v1483 = vshll.u32 %v1443, 8
        %v1484 = vmul.u32.u64.compose %v1483, %v1482
        %v1485 = vextract.low.u32 %v1484
        %v1486 = vextract.high.u32 %v1484
        %v1487 = vmul.u32.u64.compose %v1483, %v1478
        %v1488 = vextract.low.u32 %v1487
        %v1489 = vextract.high.u32 %v1487
        %v1490 = vmul.u32 %v1483, %v1474
        %v1491 = vadd.s32 %v1486, %v1488
        %vm1492 = vc.u32 %v1486, %v1488
        %v1493 = vadd.s32 %v1489, 1
        %v1494 = vsel %vm1492, %v1493, %v1489
        %v1495 = vadd.s32 %v1490, %v1494
        %v1496 = vadd.s32 %v1495, 536870912
        %v1497 = vshrl.u32 %v1496, 30
        %v1498 = vshll.u32 %v1497, 30
        %v1499 = vsub.s32 %v1495, %v1498
        %vm1500 = vcmp.lt.s32.totalorder %v1499, 0
        %v1501 = vsub.s32 0, %v1499
        %v1502 = vsel %vm1500, %v1501, %v1499
        %v1503 = vclz %v1502
        %v1504 = vsub.s32 %v1503, 2
        %vm1505 = vcmp.gt.s32.totalorder 0, %v1504
        %v1506 = vsel %vm1505, 0, %v1504
        %v1507 = vsub.s32 32, %v1506
        %v1508 = vshll.u32 %v1499, %v1506
        %v1509 = vshrl.u32 %v1491, %v1507
        %v1510 = vor.u32 %v1508, %v1509
        %v1511 = vsub.s32 4294967266, %v1506
        %v1512 = vadd.s32 %v1511, 127
        %v1513 = vshll.u32 %v1512, 23
        %v1514 = vor.u32 4788187, %v1513
        %v1515 = vand.u32 2147483647, %v1514
        %v1517 = vcvt.s32.f32 %v1510
        %v1518 = vmul.f32 %v1517, %v1515
        %v1519 = vxor.u32 %v1518, 2147483648
        %v1520 = vsel %vm1437, %v1519, %v1518
        %v1521 = vsub.s32 4, %v1497
        %v1522 = vsel %vm1437, %v1521, %v1497
        %v1523 = vsel %vm1436, %v795, %v1520
        %v1524 = vsel %vm1436, 0, %v1522
        %v1525 = vcosq.f32.pop %v1523
        %v1526 = vsinq.f32.pop %v1523
        %vm1527 = vweird.f32 %v795
        %v1528 = vadd.s32 %v1524, 3
        %v1529 = vand.u32 %v1528, 3
        %vm1530 = vcmp.lt.s32.totalorder %v1529, 2
        %vm1531 = vcmp.eq.s32.totalorder %v1529, 0
        %v1532 = vxor.u32 %v1526, 2147483648
        %v1533 = vsel %vm1531, %v1525, %v1532
        %vm1534 = vcmp.eq.s32.totalorder %v1529, 2
        %v1535 = vxor.u32 %v1525, 2147483648
        %v1536 = vsel %vm1534, %v1535, %v1526
        %v1537 = vsel %vm1530, %v1533, %v1536
        %v1538 = vsel %vm1527, nan, %v1537
        %v1539 = vand.u32 2147483647, %v797
        %vm1540 = vcmp.le.f32.partialorder %v1539, 0.7853982
        %vm1541 = vcmp.lt.s32.totalorder %v797, 0
        %v1542 = vand.u32 %v797, 2139095040
        %v1543 = vshrl.u32 %v1542, 23
        %v1544 = vsub.s32 %v1543, 127
        %v1545 = vand.u32 2147483647, %v797
        %v1546 = vand.u32 %v1545, 8388607
        %v1547 = vor.u32 %v1546, 8388608
        %v1548 = vsub.s32 0, %v1547
        %v1549 = vadd.s32 %v1544, 1
        %vm1550 = vcmp.gt.s32.totalorder %v1549, 0
        %v1551 = vsel %vm1550, %v1549, 0
        %v1552 = vshrl.u32 %v1551, 5
        %v1553 = vand.u32 %v1551, 31
        %v1554 = vsub.s32 32, %v1553
        %v1555 = vshrl.u32 683565275, %v1554
        %v1556 = vshll.u32 683565275, %v1553
        %v1557 = vshrl.u32 2475754826, %v1554
        %v1558 = vor.u32 %v1556, %v1557
        %v1559 = vshll.u32 2475754826, %v1553
        %v1560 = vshrl.u32 2131351028, %v1554
        %v1561 = vor.u32 %v1559, %v1560
        %v1562 = vshll.u32 2131351028, %v1553
        %v1563 = vshrl.u32 2102212464, %v1554
        %v1564 = vor.u32 %v1562, %v1563
        %v1565 = vshll.u32 2102212464, %v1553
        %v1566 = vshrl.u32 920167782, %v1554
        %v1567 = vor.u32 %v1565, %v1566
        %v1568 = vshll.u32 920167782, %v1553
        %v1569 = vshrl.u32 1326507024, %v1554
        %v1570 = vor.u32 %v1568, %v1569
        %vm1571 = vcmp.lt.s32.totalorder %v1552, 1
        %vm1572 = vcmp.lt.s32.totalorder %v1552, 2
        %vm1573 = vcmp.lt.s32.totalorder %v1552, 3
        %vm1574 = vcmp.lt.s32.totalorder %v1552, 4
        %v1575 = vsel %vm1571, %v1555, %v1558
        %v1576 = vsel %vm1574, %v1564, 2102212464
        %v1577 = vsel %vm1573, %v1561, %v1576
        %v1578 = vsel %vm1572, %v1575, %v1577
        %v1579 = vsel %vm1571, %v1558, %v1561
        %v1580 = vsel %vm1574, %v1567, 920167782
        %v1581 = vsel %vm1573, %v1564, %v1580
        %v1582 = vsel %vm1572, %v1579, %v1581
        %v1583 = vsel %vm1571, %v1561, %v1564
        %v1584 = vsel %vm1574, %v1570, 1326507024
        %v1585 = vsel %vm1573, %v1567, %v1584
        %v1586 = vsel %vm1572, %v1583, %v1585
        %v1587 = vshll.u32 %v1547, 8
        %v1588 = vmul.u32.u64.compose %v1587, %v1586
        %v1589 = vextract.low.u32 %v1588
        %v1590 = vextract.high.u32 %v1588
        %v1591 = vmul.u32.u64.compose %v1587, %v1582
        %v1592 = vextract.low.u32 %v1591
        %v1593 = vextract.high.u32 %v1591
        %v1594 = vmul.u32 %v1587, %v1578
        %v1595 = vadd.s32 %v1590, %v1592
        %vm1596 = vc.u32 %v1590, %v1592
        %v1597 = vadd.s32 %v1593, 1
        %v1598 = vsel %vm1596, %v1597, %v1593
        %v1599 = vadd.s32 %v1594, %v1598
        %v1600 = vadd.s32 %v1599, 536870912
        %v1601 = vshrl.u32 %v1600, 30
        %v1602 = vshll.u32 %v1601, 30
        %v1603 = vsub.s32 %v1599, %v1602
        %vm1604 = vcmp.lt.s32.totalorder %v1603, 0
        %v1605 = vsub.s32 0, %v1603
        %v1606 = vsel %vm1604, %v1605, %v1603
        %v1607 = vclz %v1606
        %v1608 = vsub.s32 %v1607, 2
        %vm1609 = vcmp.gt.s32.totalorder 0, %v1608
        %v1610 = vsel %vm1609, 0, %v1608
        %v1611 = vsub.s32 32, %v1610
        %v1612 = vshll.u32 %v1603, %v1610
        %v1613 = vshrl.u32 %v1595, %v1611
        %v1614 = vor.u32 %v1612, %v1613
        %v1615 = vsub.s32 4294967266, %v1610
        %v1616 = vadd.s32 %v1615, 127
        %v1617 = vshll.u32 %v1616, 23
        %v1618 = vor.u32 4788187, %v1617
        %v1619 = vand.u32 2147483647, %v1618
        %v1621 = vcvt.s32.f32 %v1614
        %v1622 = vmul.f32 %v1621, %v1619
        %v1623 = vxor.u32 %v1622, 2147483648
        %v1624 = vsel %vm1541, %v1623, %v1622
        %v1625 = vsub.s32 4, %v1601
        %v1626 = vsel %vm1541, %v1625, %v1601
        %v1627 = vsel %vm1540, %v797, %v1624
        %v1628 = vsel %vm1540, 0, %v1626
        %v1629 = vcosq.f32.pop %v1627
        %v1630 = vsinq.f32.pop %v1627
        %vm1631 = vweird.f32 %v797
        %v1632 = vadd.s32 %v1628, 3
        %v1633 = vand.u32 %v1632, 3
        %vm1634 = vcmp.lt.s32.totalorder %v1633, 2
        %vm1635 = vcmp.eq.s32.totalorder %v1633, 0
        %v1636 = vxor.u32 %v1630, 2147483648
        %v1637 = vsel %vm1635, %v1629, %v1636
        %vm1638 = vcmp.eq.s32.totalorder %v1633, 2
        %v1639 = vxor.u32 %v1629, 2147483648
        %v1640 = vsel %vm1638, %v1639, %v1630
        %v1641 = vsel %vm1634, %v1637, %v1640
        %v1642 = vsel %vm1631, nan, %v1641
        %v1643 = vand.u32 2147483647, %v712
        %vm1644 = vcmp.le.f32.partialorder %v1643, 0.7853982
        %vm1645 = vcmp.lt.s32.totalorder %v712, 0
        %v1646 = vand.u32 %v712, 2139095040
        %v1647 = vshrl.u32 %v1646, 23
        %v1648 = vsub.s32 %v1647, 127
        %v1649 = vand.u32 2147483647, %v712
        %v1650 = vand.u32 %v1649, 8388607
        %v1651 = vor.u32 %v1650, 8388608
        %v1652 = vsub.s32 0, %v1651
        %v1653 = vadd.s32 %v1648, 1
        %vm1654 = vcmp.gt.s32.totalorder %v1653, 0
        %v1655 = vsel %vm1654, %v1653, 0
        %v1656 = vshrl.u32 %v1655, 5
        %v1657 = vand.u32 %v1655, 31
        %v1658 = vsub.s32 32, %v1657
        %v1659 = vshrl.u32 683565275, %v1658
        %v1660 = vshll.u32 683565275, %v1657
        %v1661 = vshrl.u32 2475754826, %v1658
        %v1662 = vor.u32 %v1660, %v1661
        %v1663 = vshll.u32 2475754826, %v1657
        %v1664 = vshrl.u32 2131351028, %v1658
        %v1665 = vor.u32 %v1663, %v1664
        %v1666 = vshll.u32 2131351028, %v1657
        %v1667 = vshrl.u32 2102212464, %v1658
        %v1668 = vor.u32 %v1666, %v1667
        %v1669 = vshll.u32 2102212464, %v1657
        %v1670 = vshrl.u32 920167782, %v1658
        %v1671 = vor.u32 %v1669, %v1670
        %v1672 = vshll.u32 920167782, %v1657
        %v1673 = vshrl.u32 1326507024, %v1658
        %v1674 = vor.u32 %v1672, %v1673
        %vm1675 = vcmp.lt.s32.totalorder %v1656, 1
        %vm1676 = vcmp.lt.s32.totalorder %v1656, 2
        %vm1677 = vcmp.lt.s32.totalorder %v1656, 3
        %vm1678 = vcmp.lt.s32.totalorder %v1656, 4
        %v1679 = vsel %vm1675, %v1659, %v1662
        %v1680 = vsel %vm1678, %v1668, 2102212464
        %v1681 = vsel %vm1677, %v1665, %v1680
        %v1682 = vsel %vm1676, %v1679, %v1681
        %v1683 = vsel %vm1675, %v1662, %v1665
        %v1684 = vsel %vm1678, %v1671, 920167782
        %v1685 = vsel %vm1677, %v1668, %v1684
        %v1686 = vsel %vm1676, %v1683, %v1685
        %v1687 = vsel %vm1675, %v1665, %v1668
        %v1688 = vsel %vm1678, %v1674, 1326507024
        %v1689 = vsel %vm1677, %v1671, %v1688
        %v1690 = vsel %vm1676, %v1687, %v1689
        %v1691 = vshll.u32 %v1651, 8
        %v1692 = vmul.u32.u64.compose %v1691, %v1690
        %v1693 = vextract.low.u32 %v1692
        %v1694 = vextract.high.u32 %v1692
        %v1695 = vmul.u32.u64.compose %v1691, %v1686
        %v1696 = vextract.low.u32 %v1695
        %v1697 = vextract.high.u32 %v1695
        %v1698 = vmul.u32 %v1691, %v1682
        %v1699 = vadd.s32 %v1694, %v1696
        %vm1700 = vc.u32 %v1694, %v1696
        %v1701 = vadd.s32 %v1697, 1
        %v1702 = vsel %vm1700, %v1701, %v1697
        %v1703 = vadd.s32 %v1698, %v1702
        %v1704 = vadd.s32 %v1703, 536870912
        %v1705 = vshrl.u32 %v1704, 30
        %v1706 = vshll.u32 %v1705, 30
        %v1707 = vsub.s32 %v1703, %v1706
        %vm1708 = vcmp.lt.s32.totalorder %v1707, 0
        %v1709 = vsub.s32 0, %v1707
        %v1710 = vsel %vm1708, %v1709, %v1707
        %v1711 = vclz %v1710
        %v1712 = vsub.s32 %v1711, 2
        %vm1713 = vcmp.gt.s32.totalorder 0, %v1712
        %v1714 = vsel %vm1713, 0, %v1712
        %v1715 = vsub.s32 32, %v1714
        %v1716 = vshll.u32 %v1707, %v1714
        %v1717 = vshrl.u32 %v1699, %v1715
        %v1718 = vor.u32 %v1716, %v1717
        %v1719 = vsub.s32 4294967266, %v1714
        %v1720 = vadd.s32 %v1719, 127
        %v1721 = vshll.u32 %v1720, 23
        %v1722 = vor.u32 4788187, %v1721
        %v1723 = vand.u32 2147483647, %v1722
        %v1725 = vcvt.s32.f32 %v1718
        %v1726 = vmul.f32 %v1725, %v1723
        %v1727 = vxor.u32 %v1726, 2147483648
        %v1728 = vsel %vm1645, %v1727, %v1726
        %v1729 = vsub.s32 4, %v1705
        %v1730 = vsel %vm1645, %v1729, %v1705
        %v1731 = vsel %vm1644, %v712, %v1728
        %v1732 = vsel %vm1644, 0, %v1730
        %v1733 = vcosq.f32.pop %v1731
        %v1734 = vsinq.f32.pop %v1731
        %vm1735 = vweird.f32 %v712
        %v1736 = vadd.s32 %v1732, 3
        %v1737 = vand.u32 %v1736, 3
        %vm1738 = vcmp.lt.s32.totalorder %v1737, 2
        %vm1739 = vcmp.eq.s32.totalorder %v1737, 0
        %v1740 = vxor.u32 %v1734, 2147483648
        %v1741 = vsel %vm1739, %v1733, %v1740
        %vm1742 = vcmp.eq.s32.totalorder %v1737, 2
        %v1743 = vxor.u32 %v1733, 2147483648
        %v1744 = vsel %vm1742, %v1743, %v1734
        %v1745 = vsel %vm1738, %v1741, %v1744
        %v1746 = vsel %vm1735, nan, %v1745
        %v1747 = vand.u32 2147483647, %v714
        %vm1748 = vcmp.le.f32.partialorder %v1747, 0.7853982
        %vm1749 = vcmp.lt.s32.totalorder %v714, 0
        %v1750 = vand.u32 %v714, 2139095040
        %v1751 = vshrl.u32 %v1750, 23
        %v1752 = vsub.s32 %v1751, 127
        %v1753 = vand.u32 2147483647, %v714
        %v1754 = vand.u32 %v1753, 8388607
        %v1755 = vor.u32 %v1754, 8388608
        %v1756 = vsub.s32 0, %v1755
        %v1757 = vadd.s32 %v1752, 1
        %vm1758 = vcmp.gt.s32.totalorder %v1757, 0
        %v1759 = vsel %vm1758, %v1757, 0
        %v1760 = vshrl.u32 %v1759, 5
        %v1761 = vand.u32 %v1759, 31
        %v1762 = vsub.s32 32, %v1761
        %v1763 = vshrl.u32 683565275, %v1762
        %v1764 = vshll.u32 683565275, %v1761
        %v1765 = vshrl.u32 2475754826, %v1762
        %v1766 = vor.u32 %v1764, %v1765
        %v1767 = vshll.u32 2475754826, %v1761
        %v1768 = vshrl.u32 2131351028, %v1762
        %v1769 = vor.u32 %v1767, %v1768
        %v1770 = vshll.u32 2131351028, %v1761
        %v1771 = vshrl.u32 2102212464, %v1762
        %v1772 = vor.u32 %v1770, %v1771
        %v1773 = vshll.u32 2102212464, %v1761
        %v1774 = vshrl.u32 920167782, %v1762
        %v1775 = vor.u32 %v1773, %v1774
        %v1776 = vshll.u32 920167782, %v1761
        %v1777 = vshrl.u32 1326507024, %v1762
        %v1778 = vor.u32 %v1776, %v1777
        %vm1779 = vcmp.lt.s32.totalorder %v1760, 1
        %vm1780 = vcmp.lt.s32.totalorder %v1760, 2
        %vm1781 = vcmp.lt.s32.totalorder %v1760, 3
        %vm1782 = vcmp.lt.s32.totalorder %v1760, 4
        %v1783 = vsel %vm1779, %v1763, %v1766
        %v1784 = vsel %vm1782, %v1772, 2102212464
        %v1785 = vsel %vm1781, %v1769, %v1784
        %v1786 = vsel %vm1780, %v1783, %v1785
        %v1787 = vsel %vm1779, %v1766, %v1769
        %v1788 = vsel %vm1782, %v1775, 920167782
        %v1789 = vsel %vm1781, %v1772, %v1788
        %v1790 = vsel %vm1780, %v1787, %v1789
        %v1791 = vsel %vm1779, %v1769, %v1772
        %v1792 = vsel %vm1782, %v1778, 1326507024
        %v1793 = vsel %vm1781, %v1775, %v1792
        %v1794 = vsel %vm1780, %v1791, %v1793
        %v1795 = vshll.u32 %v1755, 8
        %v1796 = vmul.u32.u64.compose %v1795, %v1794
        %v1797 = vextract.low.u32 %v1796
        %v1798 = vextract.high.u32 %v1796
        %v1799 = vmul.u32.u64.compose %v1795, %v1790
        %v1800 = vextract.low.u32 %v1799
        %v1801 = vextract.high.u32 %v1799
        %v1802 = vmul.u32 %v1795, %v1786
        %v1803 = vadd.s32 %v1798, %v1800
        %vm1804 = vc.u32 %v1798, %v1800
        %v1805 = vadd.s32 %v1801, 1
        %v1806 = vsel %vm1804, %v1805, %v1801
        %v1807 = vadd.s32 %v1802, %v1806
        %v1808 = vadd.s32 %v1807, 536870912
        %v1809 = vshrl.u32 %v1808, 30
        %v1810 = vshll.u32 %v1809, 30
        %v1811 = vsub.s32 %v1807, %v1810
        %vm1812 = vcmp.lt.s32.totalorder %v1811, 0
        %v1813 = vsub.s32 0, %v1811
        %v1814 = vsel %vm1812, %v1813, %v1811
        %v1815 = vclz %v1814
        %v1816 = vsub.s32 %v1815, 2
        %vm1817 = vcmp.gt.s32.totalorder 0, %v1816
        %v1818 = vsel %vm1817, 0, %v1816
        %v1819 = vsub.s32 32, %v1818
        %v1820 = vshll.u32 %v1811, %v1818
        %v1821 = vshrl.u32 %v1803, %v1819
        %v1822 = vor.u32 %v1820, %v1821
        %v1823 = vsub.s32 4294967266, %v1818
        %v1824 = vadd.s32 %v1823, 127
        %v1825 = vshll.u32 %v1824, 23
        %v1826 = vor.u32 4788187, %v1825
        %v1827 = vand.u32 2147483647, %v1826
        %v1829 = vcvt.s32.f32 %v1822
        %v1830 = vmul.f32 %v1829, %v1827
        %v1831 = vxor.u32 %v1830, 2147483648
        %v1832 = vsel %vm1749, %v1831, %v1830
        %v1833 = vsub.s32 4, %v1809
        %v1834 = vsel %vm1749, %v1833, %v1809
        %v1835 = vsel %vm1748, %v714, %v1832
        %v1836 = vsel %vm1748, 0, %v1834
        %v1837 = vcosq.f32.pop %v1835
        %v1838 = vsinq.f32.pop %v1835
        %vm1839 = vweird.f32 %v714
        %v1840 = vadd.s32 %v1836, 3
        %v1841 = vand.u32 %v1840, 3
        %vm1842 = vcmp.lt.s32.totalorder %v1841, 2
        %vm1843 = vcmp.eq.s32.totalorder %v1841, 0
        %v1844 = vxor.u32 %v1838, 2147483648
        %v1845 = vsel %vm1843, %v1837, %v1844
        %vm1846 = vcmp.eq.s32.totalorder %v1841, 2
        %v1847 = vxor.u32 %v1837, 2147483648
        %v1848 = vsel %vm1846, %v1847, %v1838
        %v1849 = vsel %vm1842, %v1845, %v1848
        %v1850 = vsel %vm1839, nan, %v1849
        %v1851 = vand.u32 2147483647, %v801
        %vm1852 = vcmp.le.f32.partialorder %v1851, 0.7853982
        %vm1853 = vcmp.lt.s32.totalorder %v801, 0
        %v1854 = vand.u32 %v801, 2139095040
        %v1855 = vshrl.u32 %v1854, 23
        %v1856 = vsub.s32 %v1855, 127
        %v1857 = vand.u32 2147483647, %v801
        %v1858 = vand.u32 %v1857, 8388607
        %v1859 = vor.u32 %v1858, 8388608
        %v1860 = vsub.s32 0, %v1859
        %v1861 = vadd.s32 %v1856, 1
        %vm1862 = vcmp.gt.s32.totalorder %v1861, 0
        %v1863 = vsel %vm1862, %v1861, 0
        %v1864 = vshrl.u32 %v1863, 5
        %v1865 = vand.u32 %v1863, 31
        %v1866 = vsub.s32 32, %v1865
        %v1867 = vshrl.u32 683565275, %v1866
        %v1868 = vshll.u32 683565275, %v1865
        %v1869 = vshrl.u32 2475754826, %v1866
        %v1870 = vor.u32 %v1868, %v1869
        %v1871 = vshll.u32 2475754826, %v1865
        %v1872 = vshrl.u32 2131351028, %v1866
        %v1873 = vor.u32 %v1871, %v1872
        %v1874 = vshll.u32 2131351028, %v1865
        %v1875 = vshrl.u32 2102212464, %v1866
        %v1876 = vor.u32 %v1874, %v1875
        %v1877 = vshll.u32 2102212464, %v1865
        %v1878 = vshrl.u32 920167782, %v1866
        %v1879 = vor.u32 %v1877, %v1878
        %v1880 = vshll.u32 920167782, %v1865
        %v1881 = vshrl.u32 1326507024, %v1866
        %v1882 = vor.u32 %v1880, %v1881
        %vm1883 = vcmp.lt.s32.totalorder %v1864, 1
        %vm1884 = vcmp.lt.s32.totalorder %v1864, 2
        %vm1885 = vcmp.lt.s32.totalorder %v1864, 3
        %vm1886 = vcmp.lt.s32.totalorder %v1864, 4
        %v1887 = vsel %vm1883, %v1867, %v1870
        %v1888 = vsel %vm1886, %v1876, 2102212464
        %v1889 = vsel %vm1885, %v1873, %v1888
        %v1890 = vsel %vm1884, %v1887, %v1889
        %v1891 = vsel %vm1883, %v1870, %v1873
        %v1892 = vsel %vm1886, %v1879, 920167782
        %v1893 = vsel %vm1885, %v1876, %v1892
        %v1894 = vsel %vm1884, %v1891, %v1893
        %v1895 = vsel %vm1883, %v1873, %v1876
        %v1896 = vsel %vm1886, %v1882, 1326507024
        %v1897 = vsel %vm1885, %v1879, %v1896
        %v1898 = vsel %vm1884, %v1895, %v1897
        %v1899 = vshll.u32 %v1859, 8
        %v1900 = vmul.u32.u64.compose %v1899, %v1898
        %v1901 = vextract.low.u32 %v1900
        %v1902 = vextract.high.u32 %v1900
        %v1903 = vmul.u32.u64.compose %v1899, %v1894
        %v1904 = vextract.low.u32 %v1903
        %v1905 = vextract.high.u32 %v1903
        %v1906 = vmul.u32 %v1899, %v1890
        %v1907 = vadd.s32 %v1902, %v1904
        %vm1908 = vc.u32 %v1902, %v1904
        %v1909 = vadd.s32 %v1905, 1
        %v1910 = vsel %vm1908, %v1909, %v1905
        %v1911 = vadd.s32 %v1906, %v1910
        %v1912 = vadd.s32 %v1911, 536870912
        %v1913 = vshrl.u32 %v1912, 30
        %v1914 = vshll.u32 %v1913, 30
        %v1915 = vsub.s32 %v1911, %v1914
        %vm1916 = vcmp.lt.s32.totalorder %v1915, 0
        %v1917 = vsub.s32 0, %v1915
        %v1918 = vsel %vm1916, %v1917, %v1915
        %v1919 = vclz %v1918
        %v1920 = vsub.s32 %v1919, 2
        %vm1921 = vcmp.gt.s32.totalorder 0, %v1920
        %v1922 = vsel %vm1921, 0, %v1920
        %v1923 = vsub.s32 32, %v1922
        %v1924 = vshll.u32 %v1915, %v1922
        %v1925 = vshrl.u32 %v1907, %v1923
        %v1926 = vor.u32 %v1924, %v1925
        %v1927 = vsub.s32 4294967266, %v1922
        %v1928 = vadd.s32 %v1927, 127
        %v1929 = vshll.u32 %v1928, 23
        %v1930 = vor.u32 4788187, %v1929
        %v1931 = vand.u32 2147483647, %v1930
        %v1933 = vcvt.s32.f32 %v1926
        %v1934 = vmul.f32 %v1933, %v1931
        %v1935 = vxor.u32 %v1934, 2147483648
        %v1936 = vsel %vm1853, %v1935, %v1934
        %v1937 = vsub.s32 4, %v1913
        %v1938 = vsel %vm1853, %v1937, %v1913
        %v1939 = vsel %vm1852, %v801, %v1936
        %v1940 = vsel %vm1852, 0, %v1938
        %v1941 = vcosq.f32.pop %v1939
        %v1942 = vsinq.f32.pop %v1939
        %vm1943 = vweird.f32 %v801
        %v1944 = vadd.s32 %v1940, 3
        %v1945 = vand.u32 %v1944, 3
        %vm1946 = vcmp.lt.s32.totalorder %v1945, 2
        %vm1947 = vcmp.eq.s32.totalorder %v1945, 0
        %v1948 = vxor.u32 %v1942, 2147483648
        %v1949 = vsel %vm1947, %v1941, %v1948
        %vm1950 = vcmp.eq.s32.totalorder %v1945, 2
        %v1951 = vxor.u32 %v1941, 2147483648
        %v1952 = vsel %vm1950, %v1951, %v1942
        %v1953 = vsel %vm1946, %v1949, %v1952
        %v1954 = vsel %vm1943, nan, %v1953
        %v1955 = vand.u32 2147483647, %v803
        %vm1956 = vcmp.le.f32.partialorder %v1955, 0.7853982
        %vm1957 = vcmp.lt.s32.totalorder %v803, 0
        %v1958 = vand.u32 %v803, 2139095040
        %v1959 = vshrl.u32 %v1958, 23
        %v1960 = vsub.s32 %v1959, 127
        %v1961 = vand.u32 2147483647, %v803
        %v1962 = vand.u32 %v1961, 8388607
        %v1963 = vor.u32 %v1962, 8388608
        %v1964 = vsub.s32 0, %v1963
        %v1965 = vadd.s32 %v1960, 1
        %vm1966 = vcmp.gt.s32.totalorder %v1965, 0
        %v1967 = vsel %vm1966, %v1965, 0
        %v1968 = vshrl.u32 %v1967, 5
        %v1969 = vand.u32 %v1967, 31
        %v1970 = vsub.s32 32, %v1969
        %v1971 = vshrl.u32 683565275, %v1970
        %v1972 = vshll.u32 683565275, %v1969
        %v1973 = vshrl.u32 2475754826, %v1970
        %v1974 = vor.u32 %v1972, %v1973
        %v1975 = vshll.u32 2475754826, %v1969
        %v1976 = vshrl.u32 2131351028, %v1970
        %v1977 = vor.u32 %v1975, %v1976
        %v1978 = vshll.u32 2131351028, %v1969
        %v1979 = vshrl.u32 2102212464, %v1970
        %v1980 = vor.u32 %v1978, %v1979
        %v1981 = vshll.u32 2102212464, %v1969
        %v1982 = vshrl.u32 920167782, %v1970
        %v1983 = vor.u32 %v1981, %v1982
        %v1984 = vshll.u32 920167782, %v1969
        %v1985 = vshrl.u32 1326507024, %v1970
        %v1986 = vor.u32 %v1984, %v1985
        %vm1987 = vcmp.lt.s32.totalorder %v1968, 1
        %vm1988 = vcmp.lt.s32.totalorder %v1968, 2
        %vm1989 = vcmp.lt.s32.totalorder %v1968, 3
        %vm1990 = vcmp.lt.s32.totalorder %v1968, 4
        %v1991 = vsel %vm1987, %v1971, %v1974
        %v1992 = vsel %vm1990, %v1980, 2102212464
        %v1993 = vsel %vm1989, %v1977, %v1992
        %v1994 = vsel %vm1988, %v1991, %v1993
        %v1995 = vsel %vm1987, %v1974, %v1977
        %v1996 = vsel %vm1990, %v1983, 920167782
        %v1997 = vsel %vm1989, %v1980, %v1996
        %v1998 = vsel %vm1988, %v1995, %v1997
        %v1999 = vsel %vm1987, %v1977, %v1980
        %v2000 = vsel %vm1990, %v1986, 1326507024
        %v2001 = vsel %vm1989, %v1983, %v2000
        %v2002 = vsel %vm1988, %v1999, %v2001
        %v2003 = vshll.u32 %v1963, 8
        %v2004 = vmul.u32.u64.compose %v2003, %v2002
        %v2005 = vextract.low.u32 %v2004
        %v2006 = vextract.high.u32 %v2004
        %v2007 = vmul.u32.u64.compose %v2003, %v1998
        %v2008 = vextract.low.u32 %v2007
        %v2009 = vextract.high.u32 %v2007
        %v2010 = vmul.u32 %v2003, %v1994
        %v2011 = vadd.s32 %v2006, %v2008
        %vm2012 = vc.u32 %v2006, %v2008
        %v2013 = vadd.s32 %v2009, 1
        %v2014 = vsel %vm2012, %v2013, %v2009
        %v2015 = vadd.s32 %v2010, %v2014
        %v2016 = vadd.s32 %v2015, 536870912
        %v2017 = vshrl.u32 %v2016, 30
        %v2018 = vshll.u32 %v2017, 30
        %v2019 = vsub.s32 %v2015, %v2018
        %vm2020 = vcmp.lt.s32.totalorder %v2019, 0
        %v2021 = vsub.s32 0, %v2019
        %v2022 = vsel %vm2020, %v2021, %v2019
        %v2023 = vclz %v2022
        %v2024 = vsub.s32 %v2023, 2
        %vm2025 = vcmp.gt.s32.totalorder 0, %v2024
        %v2026 = vsel %vm2025, 0, %v2024
        %v2027 = vsub.s32 32, %v2026
        %v2028 = vshll.u32 %v2019, %v2026
        %v2029 = vshrl.u32 %v2011, %v2027
        %v2030 = vor.u32 %v2028, %v2029
        %v2031 = vsub.s32 4294967266, %v2026
        %v2032 = vadd.s32 %v2031, 127
        %v2033 = vshll.u32 %v2032, 23
        %v2034 = vor.u32 4788187, %v2033
        %v2035 = vand.u32 2147483647, %v2034
        %v2037 = vcvt.s32.f32 %v2030
        %v2038 = vmul.f32 %v2037, %v2035
        %v2039 = vxor.u32 %v2038, 2147483648
        %v2040 = vsel %vm1957, %v2039, %v2038
        %v2041 = vsub.s32 4, %v2017
        %v2042 = vsel %vm1957, %v2041, %v2017
        %v2043 = vsel %vm1956, %v803, %v2040
        %v2044 = vsel %vm1956, 0, %v2042
        %v2045 = vcosq.f32.pop %v2043
        %v2046 = vsinq.f32.pop %v2043
        %vm2047 = vweird.f32 %v803
        %v2048 = vadd.s32 %v2044, 3
        %v2049 = vand.u32 %v2048, 3
        %vm2050 = vcmp.lt.s32.totalorder %v2049, 2
        %vm2051 = vcmp.eq.s32.totalorder %v2049, 0
        %v2052 = vxor.u32 %v2046, 2147483648
        %v2053 = vsel %vm2051, %v2045, %v2052
        %vm2054 = vcmp.eq.s32.totalorder %v2049, 2
        %v2055 = vxor.u32 %v2045, 2147483648
        %v2056 = vsel %vm2054, %v2055, %v2046
        %v2057 = vsel %vm2050, %v2053, %v2056
        %v2058 = vsel %vm2047, nan, %v2057
        %v2059 = vand.u32 2147483647, %v718
        %vm2060 = vcmp.le.f32.partialorder %v2059, 0.7853982
        %vm2061 = vcmp.lt.s32.totalorder %v718, 0
        %v2062 = vand.u32 %v718, 2139095040
        %v2063 = vshrl.u32 %v2062, 23
        %v2064 = vsub.s32 %v2063, 127
        %v2065 = vand.u32 2147483647, %v718
        %v2066 = vand.u32 %v2065, 8388607
        %v2067 = vor.u32 %v2066, 8388608
        %v2068 = vsub.s32 0, %v2067
        %v2069 = vadd.s32 %v2064, 1
        %vm2070 = vcmp.gt.s32.totalorder %v2069, 0
        %v2071 = vsel %vm2070, %v2069, 0
        %v2072 = vshrl.u32 %v2071, 5
        %v2073 = vand.u32 %v2071, 31
        %v2074 = vsub.s32 32, %v2073
        %v2075 = vshrl.u32 683565275, %v2074
        %v2076 = vshll.u32 683565275, %v2073
        %v2077 = vshrl.u32 2475754826, %v2074
        %v2078 = vor.u32 %v2076, %v2077
        %v2079 = vshll.u32 2475754826, %v2073
        %v2080 = vshrl.u32 2131351028, %v2074
        %v2081 = vor.u32 %v2079, %v2080
        %v2082 = vshll.u32 2131351028, %v2073
        %v2083 = vshrl.u32 2102212464, %v2074
        %v2084 = vor.u32 %v2082, %v2083
        %v2085 = vshll.u32 2102212464, %v2073
        %v2086 = vshrl.u32 920167782, %v2074
        %v2087 = vor.u32 %v2085, %v2086
        %v2088 = vshll.u32 920167782, %v2073
        %v2089 = vshrl.u32 1326507024, %v2074
        %v2090 = vor.u32 %v2088, %v2089
        %vm2091 = vcmp.lt.s32.totalorder %v2072, 1
        %vm2092 = vcmp.lt.s32.totalorder %v2072, 2
        %vm2093 = vcmp.lt.s32.totalorder %v2072, 3
        %vm2094 = vcmp.lt.s32.totalorder %v2072, 4
        %v2095 = vsel %vm2091, %v2075, %v2078
        %v2096 = vsel %vm2094, %v2084, 2102212464
        %v2097 = vsel %vm2093, %v2081, %v2096
        %v2098 = vsel %vm2092, %v2095, %v2097
        %v2099 = vsel %vm2091, %v2078, %v2081
        %v2100 = vsel %vm2094, %v2087, 920167782
        %v2101 = vsel %vm2093, %v2084, %v2100
        %v2102 = vsel %vm2092, %v2099, %v2101
        %v2103 = vsel %vm2091, %v2081, %v2084
        %v2104 = vsel %vm2094, %v2090, 1326507024
        %v2105 = vsel %vm2093, %v2087, %v2104
        %v2106 = vsel %vm2092, %v2103, %v2105
        %v2107 = vshll.u32 %v2067, 8
        %v2108 = vmul.u32.u64.compose %v2107, %v2106
        %v2109 = vextract.low.u32 %v2108
        %v2110 = vextract.high.u32 %v2108
        %v2111 = vmul.u32.u64.compose %v2107, %v2102
        %v2112 = vextract.low.u32 %v2111
        %v2113 = vextract.high.u32 %v2111
        %v2114 = vmul.u32 %v2107, %v2098
        %v2115 = vadd.s32 %v2110, %v2112
        %vm2116 = vc.u32 %v2110, %v2112
        %v2117 = vadd.s32 %v2113, 1
        %v2118 = vsel %vm2116, %v2117, %v2113
        %v2119 = vadd.s32 %v2114, %v2118
        %v2120 = vadd.s32 %v2119, 536870912
        %v2121 = vshrl.u32 %v2120, 30
        %v2122 = vshll.u32 %v2121, 30
        %v2123 = vsub.s32 %v2119, %v2122
        %vm2124 = vcmp.lt.s32.totalorder %v2123, 0
        %v2125 = vsub.s32 0, %v2123
        %v2126 = vsel %vm2124, %v2125, %v2123
        %v2127 = vclz %v2126
        %v2128 = vsub.s32 %v2127, 2
        %vm2129 = vcmp.gt.s32.totalorder 0, %v2128
        %v2130 = vsel %vm2129, 0, %v2128
        %v2131 = vsub.s32 32, %v2130
        %v2132 = vshll.u32 %v2123, %v2130
        %v2133 = vshrl.u32 %v2115, %v2131
        %v2134 = vor.u32 %v2132, %v2133
        %v2135 = vsub.s32 4294967266, %v2130
        %v2136 = vadd.s32 %v2135, 127
        %v2137 = vshll.u32 %v2136, 23
        %v2138 = vor.u32 4788187, %v2137
        %v2139 = vand.u32 2147483647, %v2138
        %v2141 = vcvt.s32.f32 %v2134
        %v2142 = vmul.f32 %v2141, %v2139
        %v2143 = vxor.u32 %v2142, 2147483648
        %v2144 = vsel %vm2061, %v2143, %v2142
        %v2145 = vsub.s32 4, %v2121
        %v2146 = vsel %vm2061, %v2145, %v2121
        %v2147 = vsel %vm2060, %v718, %v2144
        %v2148 = vsel %vm2060, 0, %v2146
        %v2149 = vcosq.f32.pop %v2147
        %v2150 = vsinq.f32.pop %v2147
        %vm2151 = vweird.f32 %v718
        %v2152 = vadd.s32 %v2148, 3
        %v2153 = vand.u32 %v2152, 3
        %vm2154 = vcmp.lt.s32.totalorder %v2153, 2
        %vm2155 = vcmp.eq.s32.totalorder %v2153, 0
        %v2156 = vxor.u32 %v2150, 2147483648
        %v2157 = vsel %vm2155, %v2149, %v2156
        %vm2158 = vcmp.eq.s32.totalorder %v2153, 2
        %v2159 = vxor.u32 %v2149, 2147483648
        %v2160 = vsel %vm2158, %v2159, %v2150
        %v2161 = vsel %vm2154, %v2157, %v2160
        %v2162 = vsel %vm2151, nan, %v2161
        %v2163 = vand.u32 2147483647, %v720
        %vm2164 = vcmp.le.f32.partialorder %v2163, 0.7853982
        %vm2165 = vcmp.lt.s32.totalorder %v720, 0
        %v2166 = vand.u32 %v720, 2139095040
        %v2167 = vshrl.u32 %v2166, 23
        %v2168 = vsub.s32 %v2167, 127
        %v2169 = vand.u32 2147483647, %v720
        %v2170 = vand.u32 %v2169, 8388607
        %v2171 = vor.u32 %v2170, 8388608
        %v2172 = vsub.s32 0, %v2171
        %v2173 = vadd.s32 %v2168, 1
        %vm2174 = vcmp.gt.s32.totalorder %v2173, 0
        %v2175 = vsel %vm2174, %v2173, 0
        %v2176 = vshrl.u32 %v2175, 5
        %v2177 = vand.u32 %v2175, 31
        %v2178 = vsub.s32 32, %v2177
        %v2179 = vshrl.u32 683565275, %v2178
        %v2180 = vshll.u32 683565275, %v2177
        %v2181 = vshrl.u32 2475754826, %v2178
        %v2182 = vor.u32 %v2180, %v2181
        %v2183 = vshll.u32 2475754826, %v2177
        %v2184 = vshrl.u32 2131351028, %v2178
        %v2185 = vor.u32 %v2183, %v2184
        %v2186 = vshll.u32 2131351028, %v2177
        %v2187 = vshrl.u32 2102212464, %v2178
        %v2188 = vor.u32 %v2186, %v2187
        %v2189 = vshll.u32 2102212464, %v2177
        %v2190 = vshrl.u32 920167782, %v2178
        %v2191 = vor.u32 %v2189, %v2190
        %v2192 = vshll.u32 920167782, %v2177
        %v2193 = vshrl.u32 1326507024, %v2178
        %v2194 = vor.u32 %v2192, %v2193
        %vm2195 = vcmp.lt.s32.totalorder %v2176, 1
        %vm2196 = vcmp.lt.s32.totalorder %v2176, 2
        %vm2197 = vcmp.lt.s32.totalorder %v2176, 3
        %vm2198 = vcmp.lt.s32.totalorder %v2176, 4
        %v2199 = vsel %vm2195, %v2179, %v2182
        %v2200 = vsel %vm2198, %v2188, 2102212464
        %v2201 = vsel %vm2197, %v2185, %v2200
        %v2202 = vsel %vm2196, %v2199, %v2201
        %v2203 = vsel %vm2195, %v2182, %v2185
        %v2204 = vsel %vm2198, %v2191, 920167782
        %v2205 = vsel %vm2197, %v2188, %v2204
        %v2206 = vsel %vm2196, %v2203, %v2205
        %v2207 = vsel %vm2195, %v2185, %v2188
        %v2208 = vsel %vm2198, %v2194, 1326507024
        %v2209 = vsel %vm2197, %v2191, %v2208
        %v2210 = vsel %vm2196, %v2207, %v2209
        %v2211 = vshll.u32 %v2171, 8
        %v2212 = vmul.u32.u64.compose %v2211, %v2210
        %v2213 = vextract.low.u32 %v2212
        %v2214 = vextract.high.u32 %v2212
        %v2215 = vmul.u32.u64.compose %v2211, %v2206
        %v2216 = vextract.low.u32 %v2215
        %v2217 = vextract.high.u32 %v2215
        %v2218 = vmul.u32 %v2211, %v2202
        %v2219 = vadd.s32 %v2214, %v2216
        %vm2220 = vc.u32 %v2214, %v2216
        %v2221 = vadd.s32 %v2217, 1
        %v2222 = vsel %vm2220, %v2221, %v2217
        %v2223 = vadd.s32 %v2218, %v2222
        %v2224 = vadd.s32 %v2223, 536870912
        %v2225 = vshrl.u32 %v2224, 30
        %v2226 = vshll.u32 %v2225, 30
        %v2227 = vsub.s32 %v2223, %v2226
        %vm2228 = vcmp.lt.s32.totalorder %v2227, 0
        %v2229 = vsub.s32 0, %v2227
        %v2230 = vsel %vm2228, %v2229, %v2227
        %v2231 = vclz %v2230
        %v2232 = vsub.s32 %v2231, 2
        %vm2233 = vcmp.gt.s32.totalorder 0, %v2232
        %v2234 = vsel %vm2233, 0, %v2232
        %v2235 = vsub.s32 32, %v2234
        %v2236 = vshll.u32 %v2227, %v2234
        %v2237 = vshrl.u32 %v2219, %v2235
        %v2238 = vor.u32 %v2236, %v2237
        %v2239 = vsub.s32 4294967266, %v2234
        %v2240 = vadd.s32 %v2239, 127
        %v2241 = vshll.u32 %v2240, 23
        %v2242 = vor.u32 4788187, %v2241
        %v2243 = vand.u32 2147483647, %v2242
        %v2245 = vcvt.s32.f32 %v2238
        %v2246 = vmul.f32 %v2245, %v2243
        %v2247 = vxor.u32 %v2246, 2147483648
        %v2248 = vsel %vm2165, %v2247, %v2246
        %v2249 = vsub.s32 4, %v2225
        %v2250 = vsel %vm2165, %v2249, %v2225
        %v2251 = vsel %vm2164, %v720, %v2248
        %v2252 = vsel %vm2164, 0, %v2250
        %v2253 = vcosq.f32.pop %v2251
        %v2254 = vsinq.f32.pop %v2251
        %vm2255 = vweird.f32 %v720
        %v2256 = vadd.s32 %v2252, 3
        %v2257 = vand.u32 %v2256, 3
        %vm2258 = vcmp.lt.s32.totalorder %v2257, 2
        %vm2259 = vcmp.eq.s32.totalorder %v2257, 0
        %v2260 = vxor.u32 %v2254, 2147483648
        %v2261 = vsel %vm2259, %v2253, %v2260
        %vm2262 = vcmp.eq.s32.totalorder %v2257, 2
        %v2263 = vxor.u32 %v2253, 2147483648
        %v2264 = vsel %vm2262, %v2263, %v2254
        %v2265 = vsel %vm2258, %v2261, %v2264
        %v2266 = vsel %vm2255, nan, %v2265
        %v2267 = vand.u32 2147483647, %v807
        %vm2268 = vcmp.le.f32.partialorder %v2267, 0.7853982
        %vm2269 = vcmp.lt.s32.totalorder %v807, 0
        %v2270 = vand.u32 %v807, 2139095040
        %v2271 = vshrl.u32 %v2270, 23
        %v2272 = vsub.s32 %v2271, 127
        %v2273 = vand.u32 2147483647, %v807
        %v2274 = vand.u32 %v2273, 8388607
        %v2275 = vor.u32 %v2274, 8388608
        %v2276 = vsub.s32 0, %v2275
        %v2277 = vadd.s32 %v2272, 1
        %vm2278 = vcmp.gt.s32.totalorder %v2277, 0
        %v2279 = vsel %vm2278, %v2277, 0
        %v2280 = vshrl.u32 %v2279, 5
        %v2281 = vand.u32 %v2279, 31
        %v2282 = vsub.s32 32, %v2281
        %v2283 = vshrl.u32 683565275, %v2282
        %v2284 = vshll.u32 683565275, %v2281
        %v2285 = vshrl.u32 2475754826, %v2282
        %v2286 = vor.u32 %v2284, %v2285
        %v2287 = vshll.u32 2475754826, %v2281
        %v2288 = vshrl.u32 2131351028, %v2282
        %v2289 = vor.u32 %v2287, %v2288
        %v2290 = vshll.u32 2131351028, %v2281
        %v2291 = vshrl.u32 2102212464, %v2282
        %v2292 = vor.u32 %v2290, %v2291
        %v2293 = vshll.u32 2102212464, %v2281
        %v2294 = vshrl.u32 920167782, %v2282
        %v2295 = vor.u32 %v2293, %v2294
        %v2296 = vshll.u32 920167782, %v2281
        %v2297 = vshrl.u32 1326507024, %v2282
        %v2298 = vor.u32 %v2296, %v2297
        %vm2299 = vcmp.lt.s32.totalorder %v2280, 1
        %vm2300 = vcmp.lt.s32.totalorder %v2280, 2
        %vm2301 = vcmp.lt.s32.totalorder %v2280, 3
        %vm2302 = vcmp.lt.s32.totalorder %v2280, 4
        %v2303 = vsel %vm2299, %v2283, %v2286
        %v2304 = vsel %vm2302, %v2292, 2102212464
        %v2305 = vsel %vm2301, %v2289, %v2304
        %v2306 = vsel %vm2300, %v2303, %v2305
        %v2307 = vsel %vm2299, %v2286, %v2289
        %v2308 = vsel %vm2302, %v2295, 920167782
        %v2309 = vsel %vm2301, %v2292, %v2308
        %v2310 = vsel %vm2300, %v2307, %v2309
        %v2311 = vsel %vm2299, %v2289, %v2292
        %v2312 = vsel %vm2302, %v2298, 1326507024
        %v2313 = vsel %vm2301, %v2295, %v2312
        %v2314 = vsel %vm2300, %v2311, %v2313
        %v2315 = vshll.u32 %v2275, 8
        %v2316 = vmul.u32.u64.compose %v2315, %v2314
        %v2317 = vextract.low.u32 %v2316
        %v2318 = vextract.high.u32 %v2316
        %v2319 = vmul.u32.u64.compose %v2315, %v2310
        %v2320 = vextract.low.u32 %v2319
        %v2321 = vextract.high.u32 %v2319
        %v2322 = vmul.u32 %v2315, %v2306
        %v2323 = vadd.s32 %v2318, %v2320
        %vm2324 = vc.u32 %v2318, %v2320
        %v2325 = vadd.s32 %v2321, 1
        %v2326 = vsel %vm2324, %v2325, %v2321
        %v2327 = vadd.s32 %v2322, %v2326
        %v2328 = vadd.s32 %v2327, 536870912
        %v2329 = vshrl.u32 %v2328, 30
        %v2330 = vshll.u32 %v2329, 30
        %v2331 = vsub.s32 %v2327, %v2330
        %vm2332 = vcmp.lt.s32.totalorder %v2331, 0
        %v2333 = vsub.s32 0, %v2331
        %v2334 = vsel %vm2332, %v2333, %v2331
        %v2335 = vclz %v2334
        %v2336 = vsub.s32 %v2335, 2
        %vm2337 = vcmp.gt.s32.totalorder 0, %v2336
        %v2338 = vsel %vm2337, 0, %v2336
        %v2339 = vsub.s32 32, %v2338
        %v2340 = vshll.u32 %v2331, %v2338
        %v2341 = vshrl.u32 %v2323, %v2339
        %v2342 = vor.u32 %v2340, %v2341
        %v2343 = vsub.s32 4294967266, %v2338
        %v2344 = vadd.s32 %v2343, 127
        %v2345 = vshll.u32 %v2344, 23
        %v2346 = vor.u32 4788187, %v2345
        %v2347 = vand.u32 2147483647, %v2346
        %v2349 = vcvt.s32.f32 %v2342
        %v2350 = vmul.f32 %v2349, %v2347
        %v2351 = vxor.u32 %v2350, 2147483648
        %v2352 = vsel %vm2269, %v2351, %v2350
        %v2353 = vsub.s32 4, %v2329
        %v2354 = vsel %vm2269, %v2353, %v2329
        %v2355 = vsel %vm2268, %v807, %v2352
        %v2356 = vsel %vm2268, 0, %v2354
        %v2357 = vcosq.f32.pop %v2355
        %v2358 = vsinq.f32.pop %v2355
        %vm2359 = vweird.f32 %v807
        %v2360 = vadd.s32 %v2356, 3
        %v2361 = vand.u32 %v2360, 3
        %vm2362 = vcmp.lt.s32.totalorder %v2361, 2
        %vm2363 = vcmp.eq.s32.totalorder %v2361, 0
        %v2364 = vxor.u32 %v2358, 2147483648
        %v2365 = vsel %vm2363, %v2357, %v2364
        %vm2366 = vcmp.eq.s32.totalorder %v2361, 2
        %v2367 = vxor.u32 %v2357, 2147483648
        %v2368 = vsel %vm2366, %v2367, %v2358
        %v2369 = vsel %vm2362, %v2365, %v2368
        %v2370 = vsel %vm2359, nan, %v2369
        %v2371 = vand.u32 2147483647, %v809
        %vm2372 = vcmp.le.f32.partialorder %v2371, 0.7853982
        %vm2373 = vcmp.lt.s32.totalorder %v809, 0
        %v2374 = vand.u32 %v809, 2139095040
        %v2375 = vshrl.u32 %v2374, 23
        %v2376 = vsub.s32 %v2375, 127
        %v2377 = vand.u32 2147483647, %v809
        %v2378 = vand.u32 %v2377, 8388607
        %v2379 = vor.u32 %v2378, 8388608
        %v2380 = vsub.s32 0, %v2379
        %v2381 = vadd.s32 %v2376, 1
        %vm2382 = vcmp.gt.s32.totalorder %v2381, 0
        %v2383 = vsel %vm2382, %v2381, 0
        %v2384 = vshrl.u32 %v2383, 5
        %v2385 = vand.u32 %v2383, 31
        %v2386 = vsub.s32 32, %v2385
        %v2387 = vshrl.u32 683565275, %v2386
        %v2388 = vshll.u32 683565275, %v2385
        %v2389 = vshrl.u32 2475754826, %v2386
        %v2390 = vor.u32 %v2388, %v2389
        %v2391 = vshll.u32 2475754826, %v2385
        %v2392 = vshrl.u32 2131351028, %v2386
        %v2393 = vor.u32 %v2391, %v2392
        %v2394 = vshll.u32 2131351028, %v2385
        %v2395 = vshrl.u32 2102212464, %v2386
        %v2396 = vor.u32 %v2394, %v2395
        %v2397 = vshll.u32 2102212464, %v2385
        %v2398 = vshrl.u32 920167782, %v2386
        %v2399 = vor.u32 %v2397, %v2398
        %v2400 = vshll.u32 920167782, %v2385
        %v2401 = vshrl.u32 1326507024, %v2386
        %v2402 = vor.u32 %v2400, %v2401
        %vm2403 = vcmp.lt.s32.totalorder %v2384, 1
        %vm2404 = vcmp.lt.s32.totalorder %v2384, 2
        %vm2405 = vcmp.lt.s32.totalorder %v2384, 3
        %vm2406 = vcmp.lt.s32.totalorder %v2384, 4
        %v2407 = vsel %vm2403, %v2387, %v2390
        %v2408 = vsel %vm2406, %v2396, 2102212464
        %v2409 = vsel %vm2405, %v2393, %v2408
        %v2410 = vsel %vm2404, %v2407, %v2409
        %v2411 = vsel %vm2403, %v2390, %v2393
        %v2412 = vsel %vm2406, %v2399, 920167782
        %v2413 = vsel %vm2405, %v2396, %v2412
        %v2414 = vsel %vm2404, %v2411, %v2413
        %v2415 = vsel %vm2403, %v2393, %v2396
        %v2416 = vsel %vm2406, %v2402, 1326507024
        %v2417 = vsel %vm2405, %v2399, %v2416
        %v2418 = vsel %vm2404, %v2415, %v2417
        %v2419 = vshll.u32 %v2379, 8
        %v2420 = vmul.u32.u64.compose %v2419, %v2418
        %v2421 = vextract.low.u32 %v2420
        %v2422 = vextract.high.u32 %v2420
        %v2423 = vmul.u32.u64.compose %v2419, %v2414
        %v2424 = vextract.low.u32 %v2423
        %v2425 = vextract.high.u32 %v2423
        %v2426 = vmul.u32 %v2419, %v2410
        %v2427 = vadd.s32 %v2422, %v2424
        %vm2428 = vc.u32 %v2422, %v2424
        %v2429 = vadd.s32 %v2425, 1
        %v2430 = vsel %vm2428, %v2429, %v2425
        %v2431 = vadd.s32 %v2426, %v2430
        %v2432 = vadd.s32 %v2431, 536870912
        %v2433 = vshrl.u32 %v2432, 30
        %v2434 = vshll.u32 %v2433, 30
        %v2435 = vsub.s32 %v2431, %v2434
        %vm2436 = vcmp.lt.s32.totalorder %v2435, 0
        %v2437 = vsub.s32 0, %v2435
        %v2438 = vsel %vm2436, %v2437, %v2435
        %v2439 = vclz %v2438
        %v2440 = vsub.s32 %v2439, 2
        %vm2441 = vcmp.gt.s32.totalorder 0, %v2440
        %v2442 = vsel %vm2441, 0, %v2440
        %v2443 = vsub.s32 32, %v2442
        %v2444 = vshll.u32 %v2435, %v2442
        %v2445 = vshrl.u32 %v2427, %v2443
        %v2446 = vor.u32 %v2444, %v2445
        %v2447 = vsub.s32 4294967266, %v2442
        %v2448 = vadd.s32 %v2447, 127
        %v2449 = vshll.u32 %v2448, 23
        %v2450 = vor.u32 4788187, %v2449
        %v2451 = vand.u32 2147483647, %v2450
        %v2453 = vcvt.s32.f32 %v2446
        %v2454 = vmul.f32 %v2453, %v2451
        %v2455 = vxor.u32 %v2454, 2147483648
        %v2456 = vsel %vm2373, %v2455, %v2454
        %v2457 = vsub.s32 4, %v2433
        %v2458 = vsel %vm2373, %v2457, %v2433
        %v2459 = vsel %vm2372, %v809, %v2456
        %v2460 = vsel %vm2372, 0, %v2458
        %v2461 = vcosq.f32.pop %v2459
        %v2462 = vsinq.f32.pop %v2459
        %vm2463 = vweird.f32 %v809
        %v2464 = vadd.s32 %v2460, 3
        %v2465 = vand.u32 %v2464, 3
        %vm2466 = vcmp.lt.s32.totalorder %v2465, 2
        %vm2467 = vcmp.eq.s32.totalorder %v2465, 0
        %v2468 = vxor.u32 %v2462, 2147483648
        %v2469 = vsel %vm2467, %v2461, %v2468
        %vm2470 = vcmp.eq.s32.totalorder %v2465, 2
        %v2471 = vxor.u32 %v2461, 2147483648
        %v2472 = vsel %vm2470, %v2471, %v2462
        %v2473 = vsel %vm2466, %v2469, %v2472
        %v2474 = vsel %vm2463, nan, %v2473
        %v2475 = vld [vmem:[%s3] sm:$0xff]
        %v2476 = vld [vmem:[%s3 + $0x8] sm:$0xff]
        %v2477 = vld [vmem:[%s3 + $0x10] sm:$0xff]
        %v2478 = vld [vmem:[%s3 + $0x18] sm:$0xff]
        %v2479 = vld [vmem:[%s4] sm:$0xff]
        %v2480 = vld [vmem:[%s4 + $0x8] sm:$0xff]
        %v2481 = vld [vmem:[%s4 + $0x10] sm:$0xff]
        %v2482 = vld [vmem:[%s4 + $0x18] sm:$0xff]
        %2484 = vset.pattern.permute.xlu0 0
        %2485 = vperm.xlu0 %2484, %v2479
        %v2486 = vpop.permute.xlu0 %2485
        %2489 = vset.pattern.permute.xlu0 0
        %2490 = vperm.xlu0 %2489, %v2480
        %v2491 = vpop.permute.xlu0 %2490
        %2494 = vset.pattern.permute.xlu0 0
        %2495 = vperm.xlu0 %2494, %v2481
        %v2496 = vpop.permute.xlu0 %2495
        %2499 = vset.pattern.permute.xlu0 0
        %2500 = vperm.xlu0 %2499, %v2482
        %v2501 = vpop.permute.xlu0 %2500
        %vm2503 = vcmask 261120
        %v2505 = vsel %vm2503, %v2475, 0
        %v2508 = vsel %vm2503, %v2476, 0
        %v2511 = vsel %vm2503, %v2477, 0
        %v2514 = vsel %vm2503, %v2478, 0
        %2516 = vmatprep.subr.mxu0 %v1018
        %2517 = vmatpush1.msra.mxu0 %v914
        %2518 = vmatprep.subr.mxu0 %v1434
        %2519 = vmatpush1.msra.mxu0 %v1330
        %2520 = vmatprep.subr.mxu0 %v1850
        %2521 = vmatpush1.msra.mxu0 %v1746
        %2522 = vmatprep.subr.mxu0 %v2266
        %2523 = vmatpush1.msra.mxu0 %v2162
        %2524 = vmatprep.subr.mxu0 0.0
        %2525 = vmatpush1.msra.mxu0 0.0
        %2526 = vmatprep.subr.mxu0 0.0
        %2527 = vmatpush1.msra.mxu0 0.0
        %2528 = vmatprep.subr.mxu0 0.0
        %2529 = vmatpush1.msra.mxu0 0.0
        %2530 = vmatprep.subr.mxu0 0.0
        %2531 = vmatpush1.msra.mxu0 0.0
        %2532 = vmatprep.subr.mxu0 0.0
        %2533 = vmatpush1.msra.mxu0 0.0
        %2534 = vmatprep.subr.mxu0 0.0
        %2535 = vmatpush1.msra.mxu0 0.0
        %2536 = vmatprep.subr.mxu0 0.0
        %2537 = vmatpush1.msra.mxu0 0.0
        %2538 = vmatprep.subr.mxu0 0.0
        %2539 = vmatpush1.msra.mxu0 0.0
        %2540 = vmatprep.subr.mxu0 0.0
        %2541 = vmatpush1.msra.mxu0 0.0
        %2542 = vmatprep.subr.mxu0 0.0
        %2543 = vmatpush1.msra.mxu0 0.0
        %2544 = vmatprep.subr.mxu0 0.0
        %2545 = vmatpush1.msra.mxu0 0.0
        %2546 = vmatprep.subr.mxu0 0.0
        %2547 = vmatpush1.msra.mxu0 0.0
        %2548 = vmatprep.subr.mxu0 0.0
        %2549 = vmatpush1.msra.mxu0 0.0
        %2550 = vmatprep.subr.mxu0 0.0
        %2551 = vmatpush1.msra.mxu0 0.0
        %2552 = vmatprep.subr.mxu0 0.0
        %2553 = vmatpush1.msra.mxu0 0.0
        %2554 = vmatprep.subr.mxu0 0.0
        %2555 = vmatpush1.msra.mxu0 0.0
        %2556 = vmatprep.subr.mxu0 0.0
        %2557 = vmatpush1.msra.mxu0 0.0
        %2558 = vmatprep.subr.mxu0 0.0
        %2559 = vmatpush1.msra.mxu0 0.0
        %2560 = vmatprep.subr.mxu0 0.0
        %2561 = vmatpush1.msra.mxu0 0.0
        %2562 = vmatprep.subr.mxu0 0.0
        %2563 = vmatpush1.msra.mxu0 0.0
        %2564 = vmatprep.subr.mxu0 0.0
        %2565 = vmatpush1.msra.mxu0 0.0
        %2566 = vmatprep.subr.mxu0 0.0
        %2567 = vmatpush1.msra.mxu0 0.0
        %2568 = vmatprep.subr.mxu0 0.0
        %2569 = vmatpush1.msra.mxu0 0.0
        %2570 = vmatprep.subr.mxu0 0.0
        %2571 = vmatpush1.msra.mxu0 0.0
        %2572 = vmatprep.subr.mxu0 0.0
        %2573 = vmatpush1.msra.mxu0 0.0
        %2574 = vmatprep.subr.mxu0 0.0
        %2575 = vmatpush1.msra.mxu0 0.0
        %2576 = vmatprep.subr.mxu0 0.0
        %2577 = vmatpush1.msra.mxu0 0.0
        %2578 = vmatprep.subr.mxu0 0.0
        %2579 = vmatpush1.msra.mxu0 0.0
        %2580 = vmatprep.mubr.f32.mxu0 0.0
        %2581 = vmatmul.mubr.f32.gmra.mrb[0].mxu0 %v2505
        %v2582 = vpop.f32.mrb[0].mxu0
        %v2583 = vadd.f32 %v2486, %v2582
        %v2584 = vpop.f32.mrb[0].mxu0
        %v2585 = vadd.f32 %v2486, %v2584
        %2586 = vmatprep.mubr.f32.mxu0 0.0
        %2587 = vmatmul.mubr.f32.gmra.mrb[0].mxu0 %v2508
        %v2588 = vpop.f32.mrb[0].mxu0
        %v2589 = vadd.f32 %v2491, %v2588
        %v2590 = vpop.f32.mrb[0].mxu0
        %v2591 = vadd.f32 %v2491, %v2590
        %2592 = vmatprep.mubr.f32.mxu0 0.0
        %2593 = vmatmul.mubr.f32.gmra.mrb[0].mxu0 %v2511
        %v2594 = vpop.f32.mrb[0].mxu0
        %v2595 = vadd.f32 %v2496, %v2594
        %v2596 = vpop.f32.mrb[0].mxu0
        %v2597 = vadd.f32 %v2496, %v2596
        %2598 = vmatprep.mubr.f32.mxu0 0.0
        %2599 = vmatmul.mubr.f32.gmra.mrb[0].mxu0 %v2514
        %v2600 = vpop.f32.mrb[0].mxu0
        %v2601 = vadd.f32 %v2501, %v2600
        %v2602 = vpop.f32.mrb[0].mxu0
        %v2603 = vadd.f32 %v2501, %v2602
        %2604 = vdwg.mxu0
        %2605 = vmatprep.subr.mxu0 %v1226
        %2606 = vmatpush1.msra.mxu0 %v1122
        %2607 = vmatprep.subr.mxu0 %v1642
        %2608 = vmatpush1.msra.mxu0 %v1538
        %2609 = vmatprep.subr.mxu0 %v2058
        %2610 = vmatpush1.msra.mxu0 %v1954
        %2611 = vmatprep.subr.mxu0 %v2474
        %2612 = vmatpush1.msra.mxu0 %v2370
        %2613 = vmatprep.subr.mxu0 0.0
        %2614 = vmatpush1.msra.mxu0 0.0
        %2615 = vmatprep.subr.mxu0 0.0
        %2616 = vmatpush1.msra.mxu0 0.0
        %2617 = vmatprep.subr.mxu0 0.0
        %2618 = vmatpush1.msra.mxu0 0.0
        %2619 = vmatprep.subr.mxu0 0.0
        %2620 = vmatpush1.msra.mxu0 0.0
        %2621 = vmatprep.subr.mxu0 0.0
        %2622 = vmatpush1.msra.mxu0 0.0
        %2623 = vmatprep.subr.mxu0 0.0
        %2624 = vmatpush1.msra.mxu0 0.0
        %2625 = vmatprep.subr.mxu0 0.0
        %2626 = vmatpush1.msra.mxu0 0.0
        %2627 = vmatprep.subr.mxu0 0.0
        %2628 = vmatpush1.msra.mxu0 0.0
        %2629 = vmatprep.subr.mxu0 0.0
        %2630 = vmatpush1.msra.mxu0 0.0
        %2631 = vmatprep.subr.mxu0 0.0
        %2632 = vmatpush1.msra.mxu0 0.0
        %2633 = vmatprep.subr.mxu0 0.0
        %2634 = vmatpush1.msra.mxu0 0.0
        %2635 = vmatprep.subr.mxu0 0.0
        %2636 = vmatpush1.msra.mxu0 0.0
        %2637 = vmatprep.subr.mxu0 0.0
        %2638 = vmatpush1.msra.mxu0 0.0
        %2639 = vmatprep.subr.mxu0 0.0
        %2640 = vmatpush1.msra.mxu0 0.0
        %2641 = vmatprep.subr.mxu0 0.0
        %2642 = vmatpush1.msra.mxu0 0.0
        %2643 = vmatprep.subr.mxu0 0.0
        %2644 = vmatpush1.msra.mxu0 0.0
        %2645 = vmatprep.subr.mxu0 0.0
        %2646 = vmatpush1.msra.mxu0 0.0
        %2647 = vmatprep.subr.mxu0 0.0
        %2648 = vmatpush1.msra.mxu0 0.0
        %2649 = vmatprep.subr.mxu0 0.0
        %2650 = vmatpush1.msra.mxu0 0.0
        %2651 = vmatprep.subr.mxu0 0.0
        %2652 = vmatpush1.msra.mxu0 0.0
        %2653 = vmatprep.subr.mxu0 0.0
        %2654 = vmatpush1.msra.mxu0 0.0
        %2655 = vmatprep.subr.mxu0 0.0
        %2656 = vmatpush1.msra.mxu0 0.0
        %2657 = vmatprep.subr.mxu0 0.0
        %2658 = vmatpush1.msra.mxu0 0.0
        %2659 = vmatprep.subr.mxu0 0.0
        %2660 = vmatpush1.msra.mxu0 0.0
        %2661 = vmatprep.subr.mxu0 0.0
        %2662 = vmatpush1.msra.mxu0 0.0
        %2663 = vmatprep.subr.mxu0 0.0
        %2664 = vmatpush1.msra.mxu0 0.0
        %2665 = vmatprep.subr.mxu0 0.0
        %2666 = vmatpush1.msra.mxu0 0.0
        %2667 = vmatprep.subr.mxu0 0.0
        %2668 = vmatpush1.msra.mxu0 0.0
        %2669 = vmatprep.mubr.f32.mxu0 0.0
        %2670 = vmatmul.mubr.f32.gmra.mrb[0].mxu0 %v2505
        %v2671 = vpop.f32.mrb[0].mxu0
        %v2672 = vadd.f32 %v2486, %v2671
        %v2673 = vpop.f32.mrb[0].mxu0
        %v2674 = vadd.f32 %v2486, %v2673
        %2675 = vmatprep.mubr.f32.mxu0 0.0
        %2676 = vmatmul.mubr.f32.gmra.mrb[0].mxu0 %v2508
        %v2677 = vpop.f32.mrb[0].mxu0
        %v2678 = vadd.f32 %v2491, %v2677
        %v2679 = vpop.f32.mrb[0].mxu0
        %v2680 = vadd.f32 %v2491, %v2679
        %2681 = vmatprep.mubr.f32.mxu0 0.0
        %2682 = vmatmul.mubr.f32.gmra.mrb[0].mxu0 %v2511
        %v2683 = vpop.f32.mrb[0].mxu0
        %v2684 = vadd.f32 %v2496, %v2683
        %v2685 = vpop.f32.mrb[0].mxu0
        %v2686 = vadd.f32 %v2496, %v2685
        %2687 = vmatprep.mubr.f32.mxu0 0.0
        %2688 = vmatmul.mubr.f32.gmra.mrb[0].mxu0 %v2514
        %v2689 = vpop.f32.mrb[0].mxu0
        %v2690 = vadd.f32 %v2501, %v2689
        %v2691 = vpop.f32.mrb[0].mxu0
        %v2692 = vadd.f32 %v2501, %v2691
        %2693 = vdwg.mxu0
        %v2694 = vand.u32 2147483647, %v2583
        %vm2695 = vcmp.le.f32.partialorder %v2694, 0.7853982
        %vm2696 = vcmp.lt.s32.totalorder %v2583, 0
        %v2697 = vand.u32 %v2583, 2139095040
        %v2698 = vshrl.u32 %v2697, 23
        %v2699 = vsub.s32 %v2698, 127
        %v2700 = vand.u32 2147483647, %v2583
        %v2701 = vand.u32 %v2700, 8388607
        %v2702 = vor.u32 %v2701, 8388608
        %v2703 = vsub.s32 0, %v2702
        %v2704 = vadd.s32 %v2699, 1
        %vm2705 = vcmp.gt.s32.totalorder %v2704, 0
        %v2706 = vsel %vm2705, %v2704, 0
        %v2707 = vshrl.u32 %v2706, 5
        %v2708 = vand.u32 %v2706, 31
        %v2709 = vsub.s32 32, %v2708
        %v2710 = vshrl.u32 683565275, %v2709
        %v2711 = vshll.u32 683565275, %v2708
        %v2712 = vshrl.u32 2475754826, %v2709
        %v2713 = vor.u32 %v2711, %v2712
        %v2714 = vshll.u32 2475754826, %v2708
        %v2715 = vshrl.u32 2131351028, %v2709
        %v2716 = vor.u32 %v2714, %v2715
        %v2717 = vshll.u32 2131351028, %v2708
        %v2718 = vshrl.u32 2102212464, %v2709
        %v2719 = vor.u32 %v2717, %v2718
        %v2720 = vshll.u32 2102212464, %v2708
        %v2721 = vshrl.u32 920167782, %v2709
        %v2722 = vor.u32 %v2720, %v2721
        %v2723 = vshll.u32 920167782, %v2708
        %v2724 = vshrl.u32 1326507024, %v2709
        %v2725 = vor.u32 %v2723, %v2724
        %vm2726 = vcmp.lt.s32.totalorder %v2707, 1
        %vm2727 = vcmp.lt.s32.totalorder %v2707, 2
        %vm2728 = vcmp.lt.s32.totalorder %v2707, 3
        %vm2729 = vcmp.lt.s32.totalorder %v2707, 4
        %v2730 = vsel %vm2726, %v2710, %v2713
        %v2731 = vsel %vm2729, %v2719, 2102212464
        %v2732 = vsel %vm2728, %v2716, %v2731
        %v2733 = vsel %vm2727, %v2730, %v2732
        %v2734 = vsel %vm2726, %v2713, %v2716
        %v2735 = vsel %vm2729, %v2722, 920167782
        %v2736 = vsel %vm2728, %v2719, %v2735
        %v2737 = vsel %vm2727, %v2734, %v2736
        %v2738 = vsel %vm2726, %v2716, %v2719
        %v2739 = vsel %vm2729, %v2725, 1326507024
        %v2740 = vsel %vm2728, %v2722, %v2739
        %v2741 = vsel %vm2727, %v2738, %v2740
        %v2742 = vshll.u32 %v2702, 8
        %v2743 = vmul.u32.u64.compose %v2742, %v2741
        %v2744 = vextract.low.u32 %v2743
        %v2745 = vextract.high.u32 %v2743
        %v2746 = vmul.u32.u64.compose %v2742, %v2737
        %v2747 = vextract.low.u32 %v2746
        %v2748 = vextract.high.u32 %v2746
        %v2749 = vmul.u32 %v2742, %v2733
        %v2750 = vadd.s32 %v2745, %v2747
        %vm2751 = vc.u32 %v2745, %v2747
        %v2752 = vadd.s32 %v2748, 1
        %v2753 = vsel %vm2751, %v2752, %v2748
        %v2754 = vadd.s32 %v2749, %v2753
        %v2755 = vadd.s32 %v2754, 536870912
        %v2756 = vshrl.u32 %v2755, 30
        %v2757 = vshll.u32 %v2756, 30
        %v2758 = vsub.s32 %v2754, %v2757
        %vm2759 = vcmp.lt.s32.totalorder %v2758, 0
        %v2760 = vsub.s32 0, %v2758
        %v2761 = vsel %vm2759, %v2760, %v2758
        %v2762 = vclz %v2761
        %v2763 = vsub.s32 %v2762, 2
        %vm2764 = vcmp.gt.s32.totalorder 0, %v2763
        %v2765 = vsel %vm2764, 0, %v2763
        %v2766 = vsub.s32 32, %v2765
        %v2767 = vshll.u32 %v2758, %v2765
        %v2768 = vshrl.u32 %v2750, %v2766
        %v2769 = vor.u32 %v2767, %v2768
        %v2770 = vsub.s32 4294967266, %v2765
        %v2771 = vadd.s32 %v2770, 127
        %v2772 = vshll.u32 %v2771, 23
        %v2773 = vor.u32 4788187, %v2772
        %v2774 = vand.u32 2147483647, %v2773
        %v2776 = vcvt.s32.f32 %v2769
        %v2777 = vmul.f32 %v2776, %v2774
        %v2778 = vxor.u32 %v2777, 2147483648
        %v2779 = vsel %vm2696, %v2778, %v2777
        %v2780 = vsub.s32 4, %v2756
        %v2781 = vsel %vm2696, %v2780, %v2756
        %v2782 = vsel %vm2695, %v2583, %v2779
        %v2783 = vsel %vm2695, 0, %v2781
        %v2784 = vcosq.f32.pop %v2782
        %v2785 = vsinq.f32.pop %v2782
        %vm2786 = vweird.f32 %v2583
        %v2787 = vadd.s32 %v2783, 3
        %v2788 = vand.u32 %v2787, 3
        %vm2789 = vcmp.lt.s32.totalorder %v2788, 2
        %vm2790 = vcmp.eq.s32.totalorder %v2788, 0
        %v2791 = vxor.u32 %v2785, 2147483648
        %v2792 = vsel %vm2790, %v2784, %v2791
        %vm2793 = vcmp.eq.s32.totalorder %v2788, 2
        %v2794 = vxor.u32 %v2784, 2147483648
        %v2795 = vsel %vm2793, %v2794, %v2785
        %v2796 = vsel %vm2789, %v2792, %v2795
        %v2797 = vsel %vm2786, nan, %v2796
        %v2798 = vand.u32 2147483647, %v2585
        %vm2799 = vcmp.le.f32.partialorder %v2798, 0.7853982
        %vm2800 = vcmp.lt.s32.totalorder %v2585, 0
        %v2801 = vand.u32 %v2585, 2139095040
        %v2802 = vshrl.u32 %v2801, 23
        %v2803 = vsub.s32 %v2802, 127
        %v2804 = vand.u32 2147483647, %v2585
        %v2805 = vand.u32 %v2804, 8388607
        %v2806 = vor.u32 %v2805, 8388608
        %v2807 = vsub.s32 0, %v2806
        %v2808 = vadd.s32 %v2803, 1
        %vm2809 = vcmp.gt.s32.totalorder %v2808, 0
        %v2810 = vsel %vm2809, %v2808, 0
        %v2811 = vshrl.u32 %v2810, 5
        %v2812 = vand.u32 %v2810, 31
        %v2813 = vsub.s32 32, %v2812
        %v2814 = vshrl.u32 683565275, %v2813
        %v2815 = vshll.u32 683565275, %v2812
        %v2816 = vshrl.u32 2475754826, %v2813
        %v2817 = vor.u32 %v2815, %v2816
        %v2818 = vshll.u32 2475754826, %v2812
        %v2819 = vshrl.u32 2131351028, %v2813
        %v2820 = vor.u32 %v2818, %v2819
        %v2821 = vshll.u32 2131351028, %v2812
        %v2822 = vshrl.u32 2102212464, %v2813
        %v2823 = vor.u32 %v2821, %v2822
        %v2824 = vshll.u32 2102212464, %v2812
        %v2825 = vshrl.u32 920167782, %v2813
        %v2826 = vor.u32 %v2824, %v2825
        %v2827 = vshll.u32 920167782, %v2812
        %v2828 = vshrl.u32 1326507024, %v2813
        %v2829 = vor.u32 %v2827, %v2828
        %vm2830 = vcmp.lt.s32.totalorder %v2811, 1
        %vm2831 = vcmp.lt.s32.totalorder %v2811, 2
        %vm2832 = vcmp.lt.s32.totalorder %v2811, 3
        %vm2833 = vcmp.lt.s32.totalorder %v2811, 4
        %v2834 = vsel %vm2830, %v2814, %v2817
        %v2835 = vsel %vm2833, %v2823, 2102212464
        %v2836 = vsel %vm2832, %v2820, %v2835
        %v2837 = vsel %vm2831, %v2834, %v2836
        %v2838 = vsel %vm2830, %v2817, %v2820
        %v2839 = vsel %vm2833, %v2826, 920167782
        %v2840 = vsel %vm2832, %v2823, %v2839
        %v2841 = vsel %vm2831, %v2838, %v2840
        %v2842 = vsel %vm2830, %v2820, %v2823
        %v2843 = vsel %vm2833, %v2829, 1326507024
        %v2844 = vsel %vm2832, %v2826, %v2843
        %v2845 = vsel %vm2831, %v2842, %v2844
        %v2846 = vshll.u32 %v2806, 8
        %v2847 = vmul.u32.u64.compose %v2846, %v2845
        %v2848 = vextract.low.u32 %v2847
        %v2849 = vextract.high.u32 %v2847
        %v2850 = vmul.u32.u64.compose %v2846, %v2841
        %v2851 = vextract.low.u32 %v2850
        %v2852 = vextract.high.u32 %v2850
        %v2853 = vmul.u32 %v2846, %v2837
        %v2854 = vadd.s32 %v2849, %v2851
        %vm2855 = vc.u32 %v2849, %v2851
        %v2856 = vadd.s32 %v2852, 1
        %v2857 = vsel %vm2855, %v2856, %v2852
        %v2858 = vadd.s32 %v2853, %v2857
        %v2859 = vadd.s32 %v2858, 536870912
        %v2860 = vshrl.u32 %v2859, 30
        %v2861 = vshll.u32 %v2860, 30
        %v2862 = vsub.s32 %v2858, %v2861
        %vm2863 = vcmp.lt.s32.totalorder %v2862, 0
        %v2864 = vsub.s32 0, %v2862
        %v2865 = vsel %vm2863, %v2864, %v2862
        %v2866 = vclz %v2865
        %v2867 = vsub.s32 %v2866, 2
        %vm2868 = vcmp.gt.s32.totalorder 0, %v2867
        %v2869 = vsel %vm2868, 0, %v2867
        %v2870 = vsub.s32 32, %v2869
        %v2871 = vshll.u32 %v2862, %v2869
        %v2872 = vshrl.u32 %v2854, %v2870
        %v2873 = vor.u32 %v2871, %v2872
        %v2874 = vsub.s32 4294967266, %v2869
        %v2875 = vadd.s32 %v2874, 127
        %v2876 = vshll.u32 %v2875, 23
        %v2877 = vor.u32 4788187, %v2876
        %v2878 = vand.u32 2147483647, %v2877
        %v2880 = vcvt.s32.f32 %v2873
        %v2881 = vmul.f32 %v2880, %v2878
        %v2882 = vxor.u32 %v2881, 2147483648
        %v2883 = vsel %vm2800, %v2882, %v2881
        %v2884 = vsub.s32 4, %v2860
        %v2885 = vsel %vm2800, %v2884, %v2860
        %v2886 = vsel %vm2799, %v2585, %v2883
        %v2887 = vsel %vm2799, 0, %v2885
        %v2888 = vcosq.f32.pop %v2886
        %v2889 = vsinq.f32.pop %v2886
        %vm2890 = vweird.f32 %v2585
        %v2891 = vadd.s32 %v2887, 3
        %v2892 = vand.u32 %v2891, 3
        %vm2893 = vcmp.lt.s32.totalorder %v2892, 2
        %vm2894 = vcmp.eq.s32.totalorder %v2892, 0
        %v2895 = vxor.u32 %v2889, 2147483648
        %v2896 = vsel %vm2894, %v2888, %v2895
        %vm2897 = vcmp.eq.s32.totalorder %v2892, 2
        %v2898 = vxor.u32 %v2888, 2147483648
        %v2899 = vsel %vm2897, %v2898, %v2889
        %v2900 = vsel %vm2893, %v2896, %v2899
        %v2901 = vsel %vm2890, nan, %v2900
        %v2902 = vand.u32 2147483647, %v2672
        %vm2903 = vcmp.le.f32.partialorder %v2902, 0.7853982
        %vm2904 = vcmp.lt.s32.totalorder %v2672, 0
        %v2905 = vand.u32 %v2672, 2139095040
        %v2906 = vshrl.u32 %v2905, 23
        %v2907 = vsub.s32 %v2906, 127
        %v2908 = vand.u32 2147483647, %v2672
        %v2909 = vand.u32 %v2908, 8388607
        %v2910 = vor.u32 %v2909, 8388608
        %v2911 = vsub.s32 0, %v2910
        %v2912 = vadd.s32 %v2907, 1
        %vm2913 = vcmp.gt.s32.totalorder %v2912, 0
        %v2914 = vsel %vm2913, %v2912, 0
        %v2915 = vshrl.u32 %v2914, 5
        %v2916 = vand.u32 %v2914, 31
        %v2917 = vsub.s32 32, %v2916
        %v2918 = vshrl.u32 683565275, %v2917
        %v2919 = vshll.u32 683565275, %v2916
        %v2920 = vshrl.u32 2475754826, %v2917
        %v2921 = vor.u32 %v2919, %v2920
        %v2922 = vshll.u32 2475754826, %v2916
        %v2923 = vshrl.u32 2131351028, %v2917
        %v2924 = vor.u32 %v2922, %v2923
        %v2925 = vshll.u32 2131351028, %v2916
        %v2926 = vshrl.u32 2102212464, %v2917
        %v2927 = vor.u32 %v2925, %v2926
        %v2928 = vshll.u32 2102212464, %v2916
        %v2929 = vshrl.u32 920167782, %v2917
        %v2930 = vor.u32 %v2928, %v2929
        %v2931 = vshll.u32 920167782, %v2916
        %v2932 = vshrl.u32 1326507024, %v2917
        %v2933 = vor.u32 %v2931, %v2932
        %vm2934 = vcmp.lt.s32.totalorder %v2915, 1
        %vm2935 = vcmp.lt.s32.totalorder %v2915, 2
        %vm2936 = vcmp.lt.s32.totalorder %v2915, 3
        %vm2937 = vcmp.lt.s32.totalorder %v2915, 4
        %v2938 = vsel %vm2934, %v2918, %v2921
        %v2939 = vsel %vm2937, %v2927, 2102212464
        %v2940 = vsel %vm2936, %v2924, %v2939
        %v2941 = vsel %vm2935, %v2938, %v2940
        %v2942 = vsel %vm2934, %v2921, %v2924
        %v2943 = vsel %vm2937, %v2930, 920167782
        %v2944 = vsel %vm2936, %v2927, %v2943
        %v2945 = vsel %vm2935, %v2942, %v2944
        %v2946 = vsel %vm2934, %v2924, %v2927
        %v2947 = vsel %vm2937, %v2933, 1326507024
        %v2948 = vsel %vm2936, %v2930, %v2947
        %v2949 = vsel %vm2935, %v2946, %v2948
        %v2950 = vshll.u32 %v2910, 8
        %v2951 = vmul.u32.u64.compose %v2950, %v2949
        %v2952 = vextract.low.u32 %v2951
        %v2953 = vextract.high.u32 %v2951
        %v2954 = vmul.u32.u64.compose %v2950, %v2945
        %v2955 = vextract.low.u32 %v2954
        %v2956 = vextract.high.u32 %v2954
        %v2957 = vmul.u32 %v2950, %v2941
        %v2958 = vadd.s32 %v2953, %v2955
        %vm2959 = vc.u32 %v2953, %v2955
        %v2960 = vadd.s32 %v2956, 1
        %v2961 = vsel %vm2959, %v2960, %v2956
        %v2962 = vadd.s32 %v2957, %v2961
        %v2963 = vadd.s32 %v2962, 536870912
        %v2964 = vshrl.u32 %v2963, 30
        %v2965 = vshll.u32 %v2964, 30
        %v2966 = vsub.s32 %v2962, %v2965
        %vm2967 = vcmp.lt.s32.totalorder %v2966, 0
        %v2968 = vsub.s32 0, %v2966
        %v2969 = vsel %vm2967, %v2968, %v2966
        %v2970 = vclz %v2969
        %v2971 = vsub.s32 %v2970, 2
        %vm2972 = vcmp.gt.s32.totalorder 0, %v2971
        %v2973 = vsel %vm2972, 0, %v2971
        %v2974 = vsub.s32 32, %v2973
        %v2975 = vshll.u32 %v2966, %v2973
        %v2976 = vshrl.u32 %v2958, %v2974
        %v2977 = vor.u32 %v2975, %v2976
        %v2978 = vsub.s32 4294967266, %v2973
        %v2979 = vadd.s32 %v2978, 127
        %v2980 = vshll.u32 %v2979, 23
        %v2981 = vor.u32 4788187, %v2980
        %v2982 = vand.u32 2147483647, %v2981
        %v2984 = vcvt.s32.f32 %v2977
        %v2985 = vmul.f32 %v2984, %v2982
        %v2986 = vxor.u32 %v2985, 2147483648
        %v2987 = vsel %vm2904, %v2986, %v2985
        %v2988 = vsub.s32 4, %v2964
        %v2989 = vsel %vm2904, %v2988, %v2964
        %v2990 = vsel %vm2903, %v2672, %v2987
        %v2991 = vsel %vm2903, 0, %v2989
        %v2992 = vcosq.f32.pop %v2990
        %v2993 = vsinq.f32.pop %v2990
        %vm2994 = vweird.f32 %v2672
        %v2995 = vadd.s32 %v2991, 3
        %v2996 = vand.u32 %v2995, 3
        %vm2997 = vcmp.lt.s32.totalorder %v2996, 2
        %vm2998 = vcmp.eq.s32.totalorder %v2996, 0
        %v2999 = vxor.u32 %v2993, 2147483648
        %v3000 = vsel %vm2998, %v2992, %v2999
        %vm3001 = vcmp.eq.s32.totalorder %v2996, 2
        %v3002 = vxor.u32 %v2992, 2147483648
        %v3003 = vsel %vm3001, %v3002, %v2993
        %v3004 = vsel %vm2997, %v3000, %v3003
        %v3005 = vsel %vm2994, nan, %v3004
        %v3006 = vand.u32 2147483647, %v2674
        %vm3007 = vcmp.le.f32.partialorder %v3006, 0.7853982
        %vm3008 = vcmp.lt.s32.totalorder %v2674, 0
        %v3009 = vand.u32 %v2674, 2139095040
        %v3010 = vshrl.u32 %v3009, 23
        %v3011 = vsub.s32 %v3010, 127
        %v3012 = vand.u32 2147483647, %v2674
        %v3013 = vand.u32 %v3012, 8388607
        %v3014 = vor.u32 %v3013, 8388608
        %v3015 = vsub.s32 0, %v3014
        %v3016 = vadd.s32 %v3011, 1
        %vm3017 = vcmp.gt.s32.totalorder %v3016, 0
        %v3018 = vsel %vm3017, %v3016, 0
        %v3019 = vshrl.u32 %v3018, 5
        %v3020 = vand.u32 %v3018, 31
        %v3021 = vsub.s32 32, %v3020
        %v3022 = vshrl.u32 683565275, %v3021
        %v3023 = vshll.u32 683565275, %v3020
        %v3024 = vshrl.u32 2475754826, %v3021
        %v3025 = vor.u32 %v3023, %v3024
        %v3026 = vshll.u32 2475754826, %v3020
        %v3027 = vshrl.u32 2131351028, %v3021
        %v3028 = vor.u32 %v3026, %v3027
        %v3029 = vshll.u32 2131351028, %v3020
        %v3030 = vshrl.u32 2102212464, %v3021
        %v3031 = vor.u32 %v3029, %v3030
        %v3032 = vshll.u32 2102212464, %v3020
        %v3033 = vshrl.u32 920167782, %v3021
        %v3034 = vor.u32 %v3032, %v3033
        %v3035 = vshll.u32 920167782, %v3020
        %v3036 = vshrl.u32 1326507024, %v3021
        %v3037 = vor.u32 %v3035, %v3036
        %vm3038 = vcmp.lt.s32.totalorder %v3019, 1
        %vm3039 = vcmp.lt.s32.totalorder %v3019, 2
        %vm3040 = vcmp.lt.s32.totalorder %v3019, 3
        %vm3041 = vcmp.lt.s32.totalorder %v3019, 4
        %v3042 = vsel %vm3038, %v3022, %v3025
        %v3043 = vsel %vm3041, %v3031, 2102212464
        %v3044 = vsel %vm3040, %v3028, %v3043
        %v3045 = vsel %vm3039, %v3042, %v3044
        %v3046 = vsel %vm3038, %v3025, %v3028
        %v3047 = vsel %vm3041, %v3034, 920167782
        %v3048 = vsel %vm3040, %v3031, %v3047
        %v3049 = vsel %vm3039, %v3046, %v3048
        %v3050 = vsel %vm3038, %v3028, %v3031
        %v3051 = vsel %vm3041, %v3037, 1326507024
        %v3052 = vsel %vm3040, %v3034, %v3051
        %v3053 = vsel %vm3039, %v3050, %v3052
        %v3054 = vshll.u32 %v3014, 8
        %v3055 = vmul.u32.u64.compose %v3054, %v3053
        %v3056 = vextract.low.u32 %v3055
        %v3057 = vextract.high.u32 %v3055
        %v3058 = vmul.u32.u64.compose %v3054, %v3049
        %v3059 = vextract.low.u32 %v3058
        %v3060 = vextract.high.u32 %v3058
        %v3061 = vmul.u32 %v3054, %v3045
        %v3062 = vadd.s32 %v3057, %v3059
        %vm3063 = vc.u32 %v3057, %v3059
        %v3064 = vadd.s32 %v3060, 1
        %v3065 = vsel %vm3063, %v3064, %v3060
        %v3066 = vadd.s32 %v3061, %v3065
        %v3067 = vadd.s32 %v3066, 536870912
        %v3068 = vshrl.u32 %v3067, 30
        %v3069 = vshll.u32 %v3068, 30
        %v3070 = vsub.s32 %v3066, %v3069
        %vm3071 = vcmp.lt.s32.totalorder %v3070, 0
        %v3072 = vsub.s32 0, %v3070
        %v3073 = vsel %vm3071, %v3072, %v3070
        %v3074 = vclz %v3073
        %v3075 = vsub.s32 %v3074, 2
        %vm3076 = vcmp.gt.s32.totalorder 0, %v3075
        %v3077 = vsel %vm3076, 0, %v3075
        %v3078 = vsub.s32 32, %v3077
        %v3079 = vshll.u32 %v3070, %v3077
        %v3080 = vshrl.u32 %v3062, %v3078
        %v3081 = vor.u32 %v3079, %v3080
        %v3082 = vsub.s32 4294967266, %v3077
        %v3083 = vadd.s32 %v3082, 127
        %v3084 = vshll.u32 %v3083, 23
        %v3085 = vor.u32 4788187, %v3084
        %v3086 = vand.u32 2147483647, %v3085
        %v3088 = vcvt.s32.f32 %v3081
        %v3089 = vmul.f32 %v3088, %v3086
        %v3090 = vxor.u32 %v3089, 2147483648
        %v3091 = vsel %vm3008, %v3090, %v3089
        %v3092 = vsub.s32 4, %v3068
        %v3093 = vsel %vm3008, %v3092, %v3068
        %v3094 = vsel %vm3007, %v2674, %v3091
        %v3095 = vsel %vm3007, 0, %v3093
        %v3096 = vcosq.f32.pop %v3094
        %v3097 = vsinq.f32.pop %v3094
        %vm3098 = vweird.f32 %v2674
        %v3099 = vadd.s32 %v3095, 3
        %v3100 = vand.u32 %v3099, 3
        %vm3101 = vcmp.lt.s32.totalorder %v3100, 2
        %vm3102 = vcmp.eq.s32.totalorder %v3100, 0
        %v3103 = vxor.u32 %v3097, 2147483648
        %v3104 = vsel %vm3102, %v3096, %v3103
        %vm3105 = vcmp.eq.s32.totalorder %v3100, 2
        %v3106 = vxor.u32 %v3096, 2147483648
        %v3107 = vsel %vm3105, %v3106, %v3097
        %v3108 = vsel %vm3101, %v3104, %v3107
        %v3109 = vsel %vm3098, nan, %v3108
        %v3110 = vand.u32 2147483647, %v2589
        %vm3111 = vcmp.le.f32.partialorder %v3110, 0.7853982
        %vm3112 = vcmp.lt.s32.totalorder %v2589, 0
        %v3113 = vand.u32 %v2589, 2139095040
        %v3114 = vshrl.u32 %v3113, 23
        %v3115 = vsub.s32 %v3114, 127
        %v3116 = vand.u32 2147483647, %v2589
        %v3117 = vand.u32 %v3116, 8388607
        %v3118 = vor.u32 %v3117, 8388608
        %v3119 = vsub.s32 0, %v3118
        %v3120 = vadd.s32 %v3115, 1
        %vm3121 = vcmp.gt.s32.totalorder %v3120, 0
        %v3122 = vsel %vm3121, %v3120, 0
        %v3123 = vshrl.u32 %v3122, 5
        %v3124 = vand.u32 %v3122, 31
        %v3125 = vsub.s32 32, %v3124
        %v3126 = vshrl.u32 683565275, %v3125
        %v3127 = vshll.u32 683565275, %v3124
        %v3128 = vshrl.u32 2475754826, %v3125
        %v3129 = vor.u32 %v3127, %v3128
        %v3130 = vshll.u32 2475754826, %v3124
        %v3131 = vshrl.u32 2131351028, %v3125
        %v3132 = vor.u32 %v3130, %v3131
        %v3133 = vshll.u32 2131351028, %v3124
        %v3134 = vshrl.u32 2102212464, %v3125
        %v3135 = vor.u32 %v3133, %v3134
        %v3136 = vshll.u32 2102212464, %v3124
        %v3137 = vshrl.u32 920167782, %v3125
        %v3138 = vor.u32 %v3136, %v3137
        %v3139 = vshll.u32 920167782, %v3124
        %v3140 = vshrl.u32 1326507024, %v3125
        %v3141 = vor.u32 %v3139, %v3140
        %vm3142 = vcmp.lt.s32.totalorder %v3123, 1
        %vm3143 = vcmp.lt.s32.totalorder %v3123, 2
        %vm3144 = vcmp.lt.s32.totalorder %v3123, 3
        %vm3145 = vcmp.lt.s32.totalorder %v3123, 4
        %v3146 = vsel %vm3142, %v3126, %v3129
        %v3147 = vsel %vm3145, %v3135, 2102212464
        %v3148 = vsel %vm3144, %v3132, %v3147
        %v3149 = vsel %vm3143, %v3146, %v3148
        %v3150 = vsel %vm3142, %v3129, %v3132
        %v3151 = vsel %vm3145, %v3138, 920167782
        %v3152 = vsel %vm3144, %v3135, %v3151
        %v3153 = vsel %vm3143, %v3150, %v3152
        %v3154 = vsel %vm3142, %v3132, %v3135
        %v3155 = vsel %vm3145, %v3141, 1326507024
        %v3156 = vsel %vm3144, %v3138, %v3155
        %v3157 = vsel %vm3143, %v3154, %v3156
        %v3158 = vshll.u32 %v3118, 8
        %v3159 = vmul.u32.u64.compose %v3158, %v3157
        %v3160 = vextract.low.u32 %v3159
        %v3161 = vextract.high.u32 %v3159
        %v3162 = vmul.u32.u64.compose %v3158, %v3153
        %v3163 = vextract.low.u32 %v3162
        %v3164 = vextract.high.u32 %v3162
        %v3165 = vmul.u32 %v3158, %v3149
        %v3166 = vadd.s32 %v3161, %v3163
        %vm3167 = vc.u32 %v3161, %v3163
        %v3168 = vadd.s32 %v3164, 1
        %v3169 = vsel %vm3167, %v3168, %v3164
        %v3170 = vadd.s32 %v3165, %v3169
        %v3171 = vadd.s32 %v3170, 536870912
        %v3172 = vshrl.u32 %v3171, 30
        %v3173 = vshll.u32 %v3172, 30
        %v3174 = vsub.s32 %v3170, %v3173
        %vm3175 = vcmp.lt.s32.totalorder %v3174, 0
        %v3176 = vsub.s32 0, %v3174
        %v3177 = vsel %vm3175, %v3176, %v3174
        %v3178 = vclz %v3177
        %v3179 = vsub.s32 %v3178, 2
        %vm3180 = vcmp.gt.s32.totalorder 0, %v3179
        %v3181 = vsel %vm3180, 0, %v3179
        %v3182 = vsub.s32 32, %v3181
        %v3183 = vshll.u32 %v3174, %v3181
        %v3184 = vshrl.u32 %v3166, %v3182
        %v3185 = vor.u32 %v3183, %v3184
        %v3186 = vsub.s32 4294967266, %v3181
        %v3187 = vadd.s32 %v3186, 127
        %v3188 = vshll.u32 %v3187, 23
        %v3189 = vor.u32 4788187, %v3188
        %v3190 = vand.u32 2147483647, %v3189
        %v3192 = vcvt.s32.f32 %v3185
        %v3193 = vmul.f32 %v3192, %v3190
        %v3194 = vxor.u32 %v3193, 2147483648
        %v3195 = vsel %vm3112, %v3194, %v3193
        %v3196 = vsub.s32 4, %v3172
        %v3197 = vsel %vm3112, %v3196, %v3172
        %v3198 = vsel %vm3111, %v2589, %v3195
        %v3199 = vsel %vm3111, 0, %v3197
        %v3200 = vcosq.f32.pop %v3198
        %v3201 = vsinq.f32.pop %v3198
        %vm3202 = vweird.f32 %v2589
        %v3203 = vadd.s32 %v3199, 3
        %v3204 = vand.u32 %v3203, 3
        %vm3205 = vcmp.lt.s32.totalorder %v3204, 2
        %vm3206 = vcmp.eq.s32.totalorder %v3204, 0
        %v3207 = vxor.u32 %v3201, 2147483648
        %v3208 = vsel %vm3206, %v3200, %v3207
        %vm3209 = vcmp.eq.s32.totalorder %v3204, 2
        %v3210 = vxor.u32 %v3200, 2147483648
        %v3211 = vsel %vm3209, %v3210, %v3201
        %v3212 = vsel %vm3205, %v3208, %v3211
        %v3213 = vsel %vm3202, nan, %v3212
        %v3214 = vand.u32 2147483647, %v2591
        %vm3215 = vcmp.le.f32.partialorder %v3214, 0.7853982
        %vm3216 = vcmp.lt.s32.totalorder %v2591, 0
        %v3217 = vand.u32 %v2591, 2139095040
        %v3218 = vshrl.u32 %v3217, 23
        %v3219 = vsub.s32 %v3218, 127
        %v3220 = vand.u32 2147483647, %v2591
        %v3221 = vand.u32 %v3220, 8388607
        %v3222 = vor.u32 %v3221, 8388608
        %v3223 = vsub.s32 0, %v3222
        %v3224 = vadd.s32 %v3219, 1
        %vm3225 = vcmp.gt.s32.totalorder %v3224, 0
        %v3226 = vsel %vm3225, %v3224, 0
        %v3227 = vshrl.u32 %v3226, 5
        %v3228 = vand.u32 %v3226, 31
        %v3229 = vsub.s32 32, %v3228
        %v3230 = vshrl.u32 683565275, %v3229
        %v3231 = vshll.u32 683565275, %v3228
        %v3232 = vshrl.u32 2475754826, %v3229
        %v3233 = vor.u32 %v3231, %v3232
        %v3234 = vshll.u32 2475754826, %v3228
        %v3235 = vshrl.u32 2131351028, %v3229
        %v3236 = vor.u32 %v3234, %v3235
        %v3237 = vshll.u32 2131351028, %v3228
        %v3238 = vshrl.u32 2102212464, %v3229
        %v3239 = vor.u32 %v3237, %v3238
        %v3240 = vshll.u32 2102212464, %v3228
        %v3241 = vshrl.u32 920167782, %v3229
        %v3242 = vor.u32 %v3240, %v3241
        %v3243 = vshll.u32 920167782, %v3228
        %v3244 = vshrl.u32 1326507024, %v3229
        %v3245 = vor.u32 %v3243, %v3244
        %vm3246 = vcmp.lt.s32.totalorder %v3227, 1
        %vm3247 = vcmp.lt.s32.totalorder %v3227, 2
        %vm3248 = vcmp.lt.s32.totalorder %v3227, 3
        %vm3249 = vcmp.lt.s32.totalorder %v3227, 4
        %v3250 = vsel %vm3246, %v3230, %v3233
        %v3251 = vsel %vm3249, %v3239, 2102212464
        %v3252 = vsel %vm3248, %v3236, %v3251
        %v3253 = vsel %vm3247, %v3250, %v3252
        %v3254 = vsel %vm3246, %v3233, %v3236
        %v3255 = vsel %vm3249, %v3242, 920167782
        %v3256 = vsel %vm3248, %v3239, %v3255
        %v3257 = vsel %vm3247, %v3254, %v3256
        %v3258 = vsel %vm3246, %v3236, %v3239
        %v3259 = vsel %vm3249, %v3245, 1326507024
        %v3260 = vsel %vm3248, %v3242, %v3259
        %v3261 = vsel %vm3247, %v3258, %v3260
        %v3262 = vshll.u32 %v3222, 8
        %v3263 = vmul.u32.u64.compose %v3262, %v3261
        %v3264 = vextract.low.u32 %v3263
        %v3265 = vextract.high.u32 %v3263
        %v3266 = vmul.u32.u64.compose %v3262, %v3257
        %v3267 = vextract.low.u32 %v3266
        %v3268 = vextract.high.u32 %v3266
        %v3269 = vmul.u32 %v3262, %v3253
        %v3270 = vadd.s32 %v3265, %v3267
        %vm3271 = vc.u32 %v3265, %v3267
        %v3272 = vadd.s32 %v3268, 1
        %v3273 = vsel %vm3271, %v3272, %v3268
        %v3274 = vadd.s32 %v3269, %v3273
        %v3275 = vadd.s32 %v3274, 536870912
        %v3276 = vshrl.u32 %v3275, 30
        %v3277 = vshll.u32 %v3276, 30
        %v3278 = vsub.s32 %v3274, %v3277
        %vm3279 = vcmp.lt.s32.totalorder %v3278, 0
        %v3280 = vsub.s32 0, %v3278
        %v3281 = vsel %vm3279, %v3280, %v3278
        %v3282 = vclz %v3281
        %v3283 = vsub.s32 %v3282, 2
        %vm3284 = vcmp.gt.s32.totalorder 0, %v3283
        %v3285 = vsel %vm3284, 0, %v3283
        %v3286 = vsub.s32 32, %v3285
        %v3287 = vshll.u32 %v3278, %v3285
        %v3288 = vshrl.u32 %v3270, %v3286
        %v3289 = vor.u32 %v3287, %v3288
        %v3290 = vsub.s32 4294967266, %v3285
        %v3291 = vadd.s32 %v3290, 127
        %v3292 = vshll.u32 %v3291, 23
        %v3293 = vor.u32 4788187, %v3292
        %v3294 = vand.u32 2147483647, %v3293
        %v3296 = vcvt.s32.f32 %v3289
        %v3297 = vmul.f32 %v3296, %v3294
        %v3298 = vxor.u32 %v3297, 2147483648
        %v3299 = vsel %vm3216, %v3298, %v3297
        %v3300 = vsub.s32 4, %v3276
        %v3301 = vsel %vm3216, %v3300, %v3276
        %v3302 = vsel %vm3215, %v2591, %v3299
        %v3303 = vsel %vm3215, 0, %v3301
        %v3304 = vcosq.f32.pop %v3302
        %v3305 = vsinq.f32.pop %v3302
        %vm3306 = vweird.f32 %v2591
        %v3307 = vadd.s32 %v3303, 3
        %v3308 = vand.u32 %v3307, 3
        %vm3309 = vcmp.lt.s32.totalorder %v3308, 2
        %vm3310 = vcmp.eq.s32.totalorder %v3308, 0
        %v3311 = vxor.u32 %v3305, 2147483648
        %v3312 = vsel %vm3310, %v3304, %v3311
        %vm3313 = vcmp.eq.s32.totalorder %v3308, 2
        %v3314 = vxor.u32 %v3304, 2147483648
        %v3315 = vsel %vm3313, %v3314, %v3305
        %v3316 = vsel %vm3309, %v3312, %v3315
        %v3317 = vsel %vm3306, nan, %v3316
        %v3318 = vand.u32 2147483647, %v2678
        %vm3319 = vcmp.le.f32.partialorder %v3318, 0.7853982
        %vm3320 = vcmp.lt.s32.totalorder %v2678, 0
        %v3321 = vand.u32 %v2678, 2139095040
        %v3322 = vshrl.u32 %v3321, 23
        %v3323 = vsub.s32 %v3322, 127
        %v3324 = vand.u32 2147483647, %v2678
        %v3325 = vand.u32 %v3324, 8388607
        %v3326 = vor.u32 %v3325, 8388608
        %v3327 = vsub.s32 0, %v3326
        %v3328 = vadd.s32 %v3323, 1
        %vm3329 = vcmp.gt.s32.totalorder %v3328, 0
        %v3330 = vsel %vm3329, %v3328, 0
        %v3331 = vshrl.u32 %v3330, 5
        %v3332 = vand.u32 %v3330, 31
        %v3333 = vsub.s32 32, %v3332
        %v3334 = vshrl.u32 683565275, %v3333
        %v3335 = vshll.u32 683565275, %v3332
        %v3336 = vshrl.u32 2475754826, %v3333
        %v3337 = vor.u32 %v3335, %v3336
        %v3338 = vshll.u32 2475754826, %v3332
        %v3339 = vshrl.u32 2131351028, %v3333
        %v3340 = vor.u32 %v3338, %v3339
        %v3341 = vshll.u32 2131351028, %v3332
        %v3342 = vshrl.u32 2102212464, %v3333
        %v3343 = vor.u32 %v3341, %v3342
        %v3344 = vshll.u32 2102212464, %v3332
        %v3345 = vshrl.u32 920167782, %v3333
        %v3346 = vor.u32 %v3344, %v3345
        %v3347 = vshll.u32 920167782, %v3332
        %v3348 = vshrl.u32 1326507024, %v3333
        %v3349 = vor.u32 %v3347, %v3348
        %vm3350 = vcmp.lt.s32.totalorder %v3331, 1
        %vm3351 = vcmp.lt.s32.totalorder %v3331, 2
        %vm3352 = vcmp.lt.s32.totalorder %v3331, 3
        %vm3353 = vcmp.lt.s32.totalorder %v3331, 4
        %v3354 = vsel %vm3350, %v3334, %v3337
        %v3355 = vsel %vm3353, %v3343, 2102212464
        %v3356 = vsel %vm3352, %v3340, %v3355
        %v3357 = vsel %vm3351, %v3354, %v3356
        %v3358 = vsel %vm3350, %v3337, %v3340
        %v3359 = vsel %vm3353, %v3346, 920167782
        %v3360 = vsel %vm3352, %v3343, %v3359
        %v3361 = vsel %vm3351, %v3358, %v3360
        %v3362 = vsel %vm3350, %v3340, %v3343
        %v3363 = vsel %vm3353, %v3349, 1326507024
        %v3364 = vsel %vm3352, %v3346, %v3363
        %v3365 = vsel %vm3351, %v3362, %v3364
        %v3366 = vshll.u32 %v3326, 8
        %v3367 = vmul.u32.u64.compose %v3366, %v3365
        %v3368 = vextract.low.u32 %v3367
        %v3369 = vextract.high.u32 %v3367
        %v3370 = vmul.u32.u64.compose %v3366, %v3361
        %v3371 = vextract.low.u32 %v3370
        %v3372 = vextract.high.u32 %v3370
        %v3373 = vmul.u32 %v3366, %v3357
        %v3374 = vadd.s32 %v3369, %v3371
        %vm3375 = vc.u32 %v3369, %v3371
        %v3376 = vadd.s32 %v3372, 1
        %v3377 = vsel %vm3375, %v3376, %v3372
        %v3378 = vadd.s32 %v3373, %v3377
        %v3379 = vadd.s32 %v3378, 536870912
        %v3380 = vshrl.u32 %v3379, 30
        %v3381 = vshll.u32 %v3380, 30
        %v3382 = vsub.s32 %v3378, %v3381
        %vm3383 = vcmp.lt.s32.totalorder %v3382, 0
        %v3384 = vsub.s32 0, %v3382
        %v3385 = vsel %vm3383, %v3384, %v3382
        %v3386 = vclz %v3385
        %v3387 = vsub.s32 %v3386, 2
        %vm3388 = vcmp.gt.s32.totalorder 0, %v3387
        %v3389 = vsel %vm3388, 0, %v3387
        %v3390 = vsub.s32 32, %v3389
        %v3391 = vshll.u32 %v3382, %v3389
        %v3392 = vshrl.u32 %v3374, %v3390
        %v3393 = vor.u32 %v3391, %v3392
        %v3394 = vsub.s32 4294967266, %v3389
        %v3395 = vadd.s32 %v3394, 127
        %v3396 = vshll.u32 %v3395, 23
        %v3397 = vor.u32 4788187, %v3396
        %v3398 = vand.u32 2147483647, %v3397
        %v3400 = vcvt.s32.f32 %v3393
        %v3401 = vmul.f32 %v3400, %v3398
        %v3402 = vxor.u32 %v3401, 2147483648
        %v3403 = vsel %vm3320, %v3402, %v3401
        %v3404 = vsub.s32 4, %v3380
        %v3405 = vsel %vm3320, %v3404, %v3380
        %v3406 = vsel %vm3319, %v2678, %v3403
        %v3407 = vsel %vm3319, 0, %v3405
        %v3408 = vcosq.f32.pop %v3406
        %v3409 = vsinq.f32.pop %v3406
        %vm3410 = vweird.f32 %v2678
        %v3411 = vadd.s32 %v3407, 3
        %v3412 = vand.u32 %v3411, 3
        %vm3413 = vcmp.lt.s32.totalorder %v3412, 2
        %vm3414 = vcmp.eq.s32.totalorder %v3412, 0
        %v3415 = vxor.u32 %v3409, 2147483648
        %v3416 = vsel %vm3414, %v3408, %v3415
        %vm3417 = vcmp.eq.s32.totalorder %v3412, 2
        %v3418 = vxor.u32 %v3408, 2147483648
        %v3419 = vsel %vm3417, %v3418, %v3409
        %v3420 = vsel %vm3413, %v3416, %v3419
        %v3421 = vsel %vm3410, nan, %v3420
        %v3422 = vand.u32 2147483647, %v2680
        %vm3423 = vcmp.le.f32.partialorder %v3422, 0.7853982
        %vm3424 = vcmp.lt.s32.totalorder %v2680, 0
        %v3425 = vand.u32 %v2680, 2139095040
        %v3426 = vshrl.u32 %v3425, 23
        %v3427 = vsub.s32 %v3426, 127
        %v3428 = vand.u32 2147483647, %v2680
        %v3429 = vand.u32 %v3428, 8388607
        %v3430 = vor.u32 %v3429, 8388608
        %v3431 = vsub.s32 0, %v3430
        %v3432 = vadd.s32 %v3427, 1
        %vm3433 = vcmp.gt.s32.totalorder %v3432, 0
        %v3434 = vsel %vm3433, %v3432, 0
        %v3435 = vshrl.u32 %v3434, 5
        %v3436 = vand.u32 %v3434, 31
        %v3437 = vsub.s32 32, %v3436
        %v3438 = vshrl.u32 683565275, %v3437
        %v3439 = vshll.u32 683565275, %v3436
        %v3440 = vshrl.u32 2475754826, %v3437
        %v3441 = vor.u32 %v3439, %v3440
        %v3442 = vshll.u32 2475754826, %v3436
        %v3443 = vshrl.u32 2131351028, %v3437
        %v3444 = vor.u32 %v3442, %v3443
        %v3445 = vshll.u32 2131351028, %v3436
        %v3446 = vshrl.u32 2102212464, %v3437
        %v3447 = vor.u32 %v3445, %v3446
        %v3448 = vshll.u32 2102212464, %v3436
        %v3449 = vshrl.u32 920167782, %v3437
        %v3450 = vor.u32 %v3448, %v3449
        %v3451 = vshll.u32 920167782, %v3436
        %v3452 = vshrl.u32 1326507024, %v3437
        %v3453 = vor.u32 %v3451, %v3452
        %vm3454 = vcmp.lt.s32.totalorder %v3435, 1
        %vm3455 = vcmp.lt.s32.totalorder %v3435, 2
        %vm3456 = vcmp.lt.s32.totalorder %v3435, 3
        %vm3457 = vcmp.lt.s32.totalorder %v3435, 4
        %v3458 = vsel %vm3454, %v3438, %v3441
        %v3459 = vsel %vm3457, %v3447, 2102212464
        %v3460 = vsel %vm3456, %v3444, %v3459
        %v3461 = vsel %vm3455, %v3458, %v3460
        %v3462 = vsel %vm3454, %v3441, %v3444
        %v3463 = vsel %vm3457, %v3450, 920167782
        %v3464 = vsel %vm3456, %v3447, %v3463
        %v3465 = vsel %vm3455, %v3462, %v3464
        %v3466 = vsel %vm3454, %v3444, %v3447
        %v3467 = vsel %vm3457, %v3453, 1326507024
        %v3468 = vsel %vm3456, %v3450, %v3467
        %v3469 = vsel %vm3455, %v3466, %v3468
        %v3470 = vshll.u32 %v3430, 8
        %v3471 = vmul.u32.u64.compose %v3470, %v3469
        %v3472 = vextract.low.u32 %v3471
        %v3473 = vextract.high.u32 %v3471
        %v3474 = vmul.u32.u64.compose %v3470, %v3465
        %v3475 = vextract.low.u32 %v3474
        %v3476 = vextract.high.u32 %v3474
        %v3477 = vmul.u32 %v3470, %v3461
        %v3478 = vadd.s32 %v3473, %v3475
        %vm3479 = vc.u32 %v3473, %v3475
        %v3480 = vadd.s32 %v3476, 1
        %v3481 = vsel %vm3479, %v3480, %v3476
        %v3482 = vadd.s32 %v3477, %v3481
        %v3483 = vadd.s32 %v3482, 536870912
        %v3484 = vshrl.u32 %v3483, 30
        %v3485 = vshll.u32 %v3484, 30
        %v3486 = vsub.s32 %v3482, %v3485
        %vm3487 = vcmp.lt.s32.totalorder %v3486, 0
        %v3488 = vsub.s32 0, %v3486
        %v3489 = vsel %vm3487, %v3488, %v3486
        %v3490 = vclz %v3489
        %v3491 = vsub.s32 %v3490, 2
        %vm3492 = vcmp.gt.s32.totalorder 0, %v3491
        %v3493 = vsel %vm3492, 0, %v3491
        %v3494 = vsub.s32 32, %v3493
        %v3495 = vshll.u32 %v3486, %v3493
        %v3496 = vshrl.u32 %v3478, %v3494
        %v3497 = vor.u32 %v3495, %v3496
        %v3498 = vsub.s32 4294967266, %v3493
        %v3499 = vadd.s32 %v3498, 127
        %v3500 = vshll.u32 %v3499, 23
        %v3501 = vor.u32 4788187, %v3500
        %v3502 = vand.u32 2147483647, %v3501
        %v3504 = vcvt.s32.f32 %v3497
        %v3505 = vmul.f32 %v3504, %v3502
        %v3506 = vxor.u32 %v3505, 2147483648
        %v3507 = vsel %vm3424, %v3506, %v3505
        %v3508 = vsub.s32 4, %v3484
        %v3509 = vsel %vm3424, %v3508, %v3484
        %v3510 = vsel %vm3423, %v2680, %v3507
        %v3511 = vsel %vm3423, 0, %v3509
        %v3512 = vcosq.f32.pop %v3510
        %v3513 = vsinq.f32.pop %v3510
        %vm3514 = vweird.f32 %v2680
        %v3515 = vadd.s32 %v3511, 3
        %v3516 = vand.u32 %v3515, 3
        %vm3517 = vcmp.lt.s32.totalorder %v3516, 2
        %vm3518 = vcmp.eq.s32.totalorder %v3516, 0
        %v3519 = vxor.u32 %v3513, 2147483648
        %v3520 = vsel %vm3518, %v3512, %v3519
        %vm3521 = vcmp.eq.s32.totalorder %v3516, 2
        %v3522 = vxor.u32 %v3512, 2147483648
        %v3523 = vsel %vm3521, %v3522, %v3513
        %v3524 = vsel %vm3517, %v3520, %v3523
        %v3525 = vsel %vm3514, nan, %v3524
        %v3526 = vand.u32 2147483647, %v2595
        %vm3527 = vcmp.le.f32.partialorder %v3526, 0.7853982
        %vm3528 = vcmp.lt.s32.totalorder %v2595, 0
        %v3529 = vand.u32 %v2595, 2139095040
        %v3530 = vshrl.u32 %v3529, 23
        %v3531 = vsub.s32 %v3530, 127
        %v3532 = vand.u32 2147483647, %v2595
        %v3533 = vand.u32 %v3532, 8388607
        %v3534 = vor.u32 %v3533, 8388608
        %v3535 = vsub.s32 0, %v3534
        %v3536 = vadd.s32 %v3531, 1
        %vm3537 = vcmp.gt.s32.totalorder %v3536, 0
        %v3538 = vsel %vm3537, %v3536, 0
        %v3539 = vshrl.u32 %v3538, 5
        %v3540 = vand.u32 %v3538, 31
        %v3541 = vsub.s32 32, %v3540
        %v3542 = vshrl.u32 683565275, %v3541
        %v3543 = vshll.u32 683565275, %v3540
        %v3544 = vshrl.u32 2475754826, %v3541
        %v3545 = vor.u32 %v3543, %v3544
        %v3546 = vshll.u32 2475754826, %v3540
        %v3547 = vshrl.u32 2131351028, %v3541
        %v3548 = vor.u32 %v3546, %v3547
        %v3549 = vshll.u32 2131351028, %v3540
        %v3550 = vshrl.u32 2102212464, %v3541
        %v3551 = vor.u32 %v3549, %v3550
        %v3552 = vshll.u32 2102212464, %v3540
        %v3553 = vshrl.u32 920167782, %v3541
        %v3554 = vor.u32 %v3552, %v3553
        %v3555 = vshll.u32 920167782, %v3540
        %v3556 = vshrl.u32 1326507024, %v3541
        %v3557 = vor.u32 %v3555, %v3556
        %vm3558 = vcmp.lt.s32.totalorder %v3539, 1
        %vm3559 = vcmp.lt.s32.totalorder %v3539, 2
        %vm3560 = vcmp.lt.s32.totalorder %v3539, 3
        %vm3561 = vcmp.lt.s32.totalorder %v3539, 4
        %v3562 = vsel %vm3558, %v3542, %v3545
        %v3563 = vsel %vm3561, %v3551, 2102212464
        %v3564 = vsel %vm3560, %v3548, %v3563
        %v3565 = vsel %vm3559, %v3562, %v3564
        %v3566 = vsel %vm3558, %v3545, %v3548
        %v3567 = vsel %vm3561, %v3554, 920167782
        %v3568 = vsel %vm3560, %v3551, %v3567
        %v3569 = vsel %vm3559, %v3566, %v3568
        %v3570 = vsel %vm3558, %v3548, %v3551
        %v3571 = vsel %vm3561, %v3557, 1326507024
        %v3572 = vsel %vm3560, %v3554, %v3571
        %v3573 = vsel %vm3559, %v3570, %v3572
        %v3574 = vshll.u32 %v3534, 8
        %v3575 = vmul.u32.u64.compose %v3574, %v3573
        %v3576 = vextract.low.u32 %v3575
        %v3577 = vextract.high.u32 %v3575
        %v3578 = vmul.u32.u64.compose %v3574, %v3569
        %v3579 = vextract.low.u32 %v3578
        %v3580 = vextract.high.u32 %v3578
        %v3581 = vmul.u32 %v3574, %v3565
        %v3582 = vadd.s32 %v3577, %v3579
        %vm3583 = vc.u32 %v3577, %v3579
        %v3584 = vadd.s32 %v3580, 1
        %v3585 = vsel %vm3583, %v3584, %v3580
        %v3586 = vadd.s32 %v3581, %v3585
        %v3587 = vadd.s32 %v3586, 536870912
        %v3588 = vshrl.u32 %v3587, 30
        %v3589 = vshll.u32 %v3588, 30
        %v3590 = vsub.s32 %v3586, %v3589
        %vm3591 = vcmp.lt.s32.totalorder %v3590, 0
        %v3592 = vsub.s32 0, %v3590
        %v3593 = vsel %vm3591, %v3592, %v3590
        %v3594 = vclz %v3593
        %v3595 = vsub.s32 %v3594, 2
        %vm3596 = vcmp.gt.s32.totalorder 0, %v3595
        %v3597 = vsel %vm3596, 0, %v3595
        %v3598 = vsub.s32 32, %v3597
        %v3599 = vshll.u32 %v3590, %v3597
        %v3600 = vshrl.u32 %v3582, %v3598
        %v3601 = vor.u32 %v3599, %v3600
        %v3602 = vsub.s32 4294967266, %v3597
        %v3603 = vadd.s32 %v3602, 127
        %v3604 = vshll.u32 %v3603, 23
        %v3605 = vor.u32 4788187, %v3604
        %v3606 = vand.u32 2147483647, %v3605
        %v3608 = vcvt.s32.f32 %v3601
        %v3609 = vmul.f32 %v3608, %v3606
        %v3610 = vxor.u32 %v3609, 2147483648
        %v3611 = vsel %vm3528, %v3610, %v3609
        %v3612 = vsub.s32 4, %v3588
        %v3613 = vsel %vm3528, %v3612, %v3588
        %v3614 = vsel %vm3527, %v2595, %v3611
        %v3615 = vsel %vm3527, 0, %v3613
        %v3616 = vcosq.f32.pop %v3614
        %v3617 = vsinq.f32.pop %v3614
        %vm3618 = vweird.f32 %v2595
        %v3619 = vadd.s32 %v3615, 3
        %v3620 = vand.u32 %v3619, 3
        %vm3621 = vcmp.lt.s32.totalorder %v3620, 2
        %vm3622 = vcmp.eq.s32.totalorder %v3620, 0
        %v3623 = vxor.u32 %v3617, 2147483648
        %v3624 = vsel %vm3622, %v3616, %v3623
        %vm3625 = vcmp.eq.s32.totalorder %v3620, 2
        %v3626 = vxor.u32 %v3616, 2147483648
        %v3627 = vsel %vm3625, %v3626, %v3617
        %v3628 = vsel %vm3621, %v3624, %v3627
        %v3629 = vsel %vm3618, nan, %v3628
        %v3630 = vand.u32 2147483647, %v2597
        %vm3631 = vcmp.le.f32.partialorder %v3630, 0.7853982
        %vm3632 = vcmp.lt.s32.totalorder %v2597, 0
        %v3633 = vand.u32 %v2597, 2139095040
        %v3634 = vshrl.u32 %v3633, 23
        %v3635 = vsub.s32 %v3634, 127
        %v3636 = vand.u32 2147483647, %v2597
        %v3637 = vand.u32 %v3636, 8388607
        %v3638 = vor.u32 %v3637, 8388608
        %v3639 = vsub.s32 0, %v3638
        %v3640 = vadd.s32 %v3635, 1
        %vm3641 = vcmp.gt.s32.totalorder %v3640, 0
        %v3642 = vsel %vm3641, %v3640, 0
        %v3643 = vshrl.u32 %v3642, 5
        %v3644 = vand.u32 %v3642, 31
        %v3645 = vsub.s32 32, %v3644
        %v3646 = vshrl.u32 683565275, %v3645
        %v3647 = vshll.u32 683565275, %v3644
        %v3648 = vshrl.u32 2475754826, %v3645
        %v3649 = vor.u32 %v3647, %v3648
        %v3650 = vshll.u32 2475754826, %v3644
        %v3651 = vshrl.u32 2131351028, %v3645
        %v3652 = vor.u32 %v3650, %v3651
        %v3653 = vshll.u32 2131351028, %v3644
        %v3654 = vshrl.u32 2102212464, %v3645
        %v3655 = vor.u32 %v3653, %v3654
        %v3656 = vshll.u32 2102212464, %v3644
        %v3657 = vshrl.u32 920167782, %v3645
        %v3658 = vor.u32 %v3656, %v3657
        %v3659 = vshll.u32 920167782, %v3644
        %v3660 = vshrl.u32 1326507024, %v3645
        %v3661 = vor.u32 %v3659, %v3660
        %vm3662 = vcmp.lt.s32.totalorder %v3643, 1
        %vm3663 = vcmp.lt.s32.totalorder %v3643, 2
        %vm3664 = vcmp.lt.s32.totalorder %v3643, 3
        %vm3665 = vcmp.lt.s32.totalorder %v3643, 4
        %v3666 = vsel %vm3662, %v3646, %v3649
        %v3667 = vsel %vm3665, %v3655, 2102212464
        %v3668 = vsel %vm3664, %v3652, %v3667
        %v3669 = vsel %vm3663, %v3666, %v3668
        %v3670 = vsel %vm3662, %v3649, %v3652
        %v3671 = vsel %vm3665, %v3658, 920167782
        %v3672 = vsel %vm3664, %v3655, %v3671
        %v3673 = vsel %vm3663, %v3670, %v3672
        %v3674 = vsel %vm3662, %v3652, %v3655
        %v3675 = vsel %vm3665, %v3661, 1326507024
        %v3676 = vsel %vm3664, %v3658, %v3675
        %v3677 = vsel %vm3663, %v3674, %v3676
        %v3678 = vshll.u32 %v3638, 8
        %v3679 = vmul.u32.u64.compose %v3678, %v3677
        %v3680 = vextract.low.u32 %v3679
        %v3681 = vextract.high.u32 %v3679
        %v3682 = vmul.u32.u64.compose %v3678, %v3673
        %v3683 = vextract.low.u32 %v3682
        %v3684 = vextract.high.u32 %v3682
        %v3685 = vmul.u32 %v3678, %v3669
        %v3686 = vadd.s32 %v3681, %v3683
        %vm3687 = vc.u32 %v3681, %v3683
        %v3688 = vadd.s32 %v3684, 1
        %v3689 = vsel %vm3687, %v3688, %v3684
        %v3690 = vadd.s32 %v3685, %v3689
        %v3691 = vadd.s32 %v3690, 536870912
        %v3692 = vshrl.u32 %v3691, 30
        %v3693 = vshll.u32 %v3692, 30
        %v3694 = vsub.s32 %v3690, %v3693
        %vm3695 = vcmp.lt.s32.totalorder %v3694, 0
        %v3696 = vsub.s32 0, %v3694
        %v3697 = vsel %vm3695, %v3696, %v3694
        %v3698 = vclz %v3697
        %v3699 = vsub.s32 %v3698, 2
        %vm3700 = vcmp.gt.s32.totalorder 0, %v3699
        %v3701 = vsel %vm3700, 0, %v3699
        %v3702 = vsub.s32 32, %v3701
        %v3703 = vshll.u32 %v3694, %v3701
        %v3704 = vshrl.u32 %v3686, %v3702
        %v3705 = vor.u32 %v3703, %v3704
        %v3706 = vsub.s32 4294967266, %v3701
        %v3707 = vadd.s32 %v3706, 127
        %v3708 = vshll.u32 %v3707, 23
        %v3709 = vor.u32 4788187, %v3708
        %v3710 = vand.u32 2147483647, %v3709
        %v3712 = vcvt.s32.f32 %v3705
        %v3713 = vmul.f32 %v3712, %v3710
        %v3714 = vxor.u32 %v3713, 2147483648
        %v3715 = vsel %vm3632, %v3714, %v3713
        %v3716 = vsub.s32 4, %v3692
        %v3717 = vsel %vm3632, %v3716, %v3692
        %v3718 = vsel %vm3631, %v2597, %v3715
        %v3719 = vsel %vm3631, 0, %v3717
        %v3720 = vcosq.f32.pop %v3718
        %v3721 = vsinq.f32.pop %v3718
        %vm3722 = vweird.f32 %v2597
        %v3723 = vadd.s32 %v3719, 3
        %v3724 = vand.u32 %v3723, 3
        %vm3725 = vcmp.lt.s32.totalorder %v3724, 2
        %vm3726 = vcmp.eq.s32.totalorder %v3724, 0
        %v3727 = vxor.u32 %v3721, 2147483648
        %v3728 = vsel %vm3726, %v3720, %v3727
        %vm3729 = vcmp.eq.s32.totalorder %v3724, 2
        %v3730 = vxor.u32 %v3720, 2147483648
        %v3731 = vsel %vm3729, %v3730, %v3721
        %v3732 = vsel %vm3725, %v3728, %v3731
        %v3733 = vsel %vm3722, nan, %v3732
        %v3734 = vand.u32 2147483647, %v2684
        %vm3735 = vcmp.le.f32.partialorder %v3734, 0.7853982
        %vm3736 = vcmp.lt.s32.totalorder %v2684, 0
        %v3737 = vand.u32 %v2684, 2139095040
        %v3738 = vshrl.u32 %v3737, 23
        %v3739 = vsub.s32 %v3738, 127
        %v3740 = vand.u32 2147483647, %v2684
        %v3741 = vand.u32 %v3740, 8388607
        %v3742 = vor.u32 %v3741, 8388608
        %v3743 = vsub.s32 0, %v3742
        %v3744 = vadd.s32 %v3739, 1
        %vm3745 = vcmp.gt.s32.totalorder %v3744, 0
        %v3746 = vsel %vm3745, %v3744, 0
        %v3747 = vshrl.u32 %v3746, 5
        %v3748 = vand.u32 %v3746, 31
        %v3749 = vsub.s32 32, %v3748
        %v3750 = vshrl.u32 683565275, %v3749
        %v3751 = vshll.u32 683565275, %v3748
        %v3752 = vshrl.u32 2475754826, %v3749
        %v3753 = vor.u32 %v3751, %v3752
        %v3754 = vshll.u32 2475754826, %v3748
        %v3755 = vshrl.u32 2131351028, %v3749
        %v3756 = vor.u32 %v3754, %v3755
        %v3757 = vshll.u32 2131351028, %v3748
        %v3758 = vshrl.u32 2102212464, %v3749
        %v3759 = vor.u32 %v3757, %v3758
        %v3760 = vshll.u32 2102212464, %v3748
        %v3761 = vshrl.u32 920167782, %v3749
        %v3762 = vor.u32 %v3760, %v3761
        %v3763 = vshll.u32 920167782, %v3748
        %v3764 = vshrl.u32 1326507024, %v3749
        %v3765 = vor.u32 %v3763, %v3764
        %vm3766 = vcmp.lt.s32.totalorder %v3747, 1
        %vm3767 = vcmp.lt.s32.totalorder %v3747, 2
        %vm3768 = vcmp.lt.s32.totalorder %v3747, 3
        %vm3769 = vcmp.lt.s32.totalorder %v3747, 4
        %v3770 = vsel %vm3766, %v3750, %v3753
        %v3771 = vsel %vm3769, %v3759, 2102212464
        %v3772 = vsel %vm3768, %v3756, %v3771
        %v3773 = vsel %vm3767, %v3770, %v3772
        %v3774 = vsel %vm3766, %v3753, %v3756
        %v3775 = vsel %vm3769, %v3762, 920167782
        %v3776 = vsel %vm3768, %v3759, %v3775
        %v3777 = vsel %vm3767, %v3774, %v3776
        %v3778 = vsel %vm3766, %v3756, %v3759
        %v3779 = vsel %vm3769, %v3765, 1326507024
        %v3780 = vsel %vm3768, %v3762, %v3779
        %v3781 = vsel %vm3767, %v3778, %v3780
        %v3782 = vshll.u32 %v3742, 8
        %v3783 = vmul.u32.u64.compose %v3782, %v3781
        %v3784 = vextract.low.u32 %v3783
        %v3785 = vextract.high.u32 %v3783
        %v3786 = vmul.u32.u64.compose %v3782, %v3777
        %v3787 = vextract.low.u32 %v3786
        %v3788 = vextract.high.u32 %v3786
        %v3789 = vmul.u32 %v3782, %v3773
        %v3790 = vadd.s32 %v3785, %v3787
        %vm3791 = vc.u32 %v3785, %v3787
        %v3792 = vadd.s32 %v3788, 1
        %v3793 = vsel %vm3791, %v3792, %v3788
        %v3794 = vadd.s32 %v3789, %v3793
        %v3795 = vadd.s32 %v3794, 536870912
        %v3796 = vshrl.u32 %v3795, 30
        %v3797 = vshll.u32 %v3796, 30
        %v3798 = vsub.s32 %v3794, %v3797
        %vm3799 = vcmp.lt.s32.totalorder %v3798, 0
        %v3800 = vsub.s32 0, %v3798
        %v3801 = vsel %vm3799, %v3800, %v3798
        %v3802 = vclz %v3801
        %v3803 = vsub.s32 %v3802, 2
        %vm3804 = vcmp.gt.s32.totalorder 0, %v3803
        %v3805 = vsel %vm3804, 0, %v3803
        %v3806 = vsub.s32 32, %v3805
        %v3807 = vshll.u32 %v3798, %v3805
        %v3808 = vshrl.u32 %v3790, %v3806
        %v3809 = vor.u32 %v3807, %v3808
        %v3810 = vsub.s32 4294967266, %v3805
        %v3811 = vadd.s32 %v3810, 127
        %v3812 = vshll.u32 %v3811, 23
        %v3813 = vor.u32 4788187, %v3812
        %v3814 = vand.u32 2147483647, %v3813
        %v3816 = vcvt.s32.f32 %v3809
        %v3817 = vmul.f32 %v3816, %v3814
        %v3818 = vxor.u32 %v3817, 2147483648
        %v3819 = vsel %vm3736, %v3818, %v3817
        %v3820 = vsub.s32 4, %v3796
        %v3821 = vsel %vm3736, %v3820, %v3796
        %v3822 = vsel %vm3735, %v2684, %v3819
        %v3823 = vsel %vm3735, 0, %v3821
        %v3824 = vcosq.f32.pop %v3822
        %v3825 = vsinq.f32.pop %v3822
        %vm3826 = vweird.f32 %v2684
        %v3827 = vadd.s32 %v3823, 3
        %v3828 = vand.u32 %v3827, 3
        %vm3829 = vcmp.lt.s32.totalorder %v3828, 2
        %vm3830 = vcmp.eq.s32.totalorder %v3828, 0
        %v3831 = vxor.u32 %v3825, 2147483648
        %v3832 = vsel %vm3830, %v3824, %v3831
        %vm3833 = vcmp.eq.s32.totalorder %v3828, 2
        %v3834 = vxor.u32 %v3824, 2147483648
        %v3835 = vsel %vm3833, %v3834, %v3825
        %v3836 = vsel %vm3829, %v3832, %v3835
        %v3837 = vsel %vm3826, nan, %v3836
        %v3838 = vand.u32 2147483647, %v2686
        %vm3839 = vcmp.le.f32.partialorder %v3838, 0.7853982
        %vm3840 = vcmp.lt.s32.totalorder %v2686, 0
        %v3841 = vand.u32 %v2686, 2139095040
        %v3842 = vshrl.u32 %v3841, 23
        %v3843 = vsub.s32 %v3842, 127
        %v3844 = vand.u32 2147483647, %v2686
        %v3845 = vand.u32 %v3844, 8388607
        %v3846 = vor.u32 %v3845, 8388608
        %v3847 = vsub.s32 0, %v3846
        %v3848 = vadd.s32 %v3843, 1
        %vm3849 = vcmp.gt.s32.totalorder %v3848, 0
        %v3850 = vsel %vm3849, %v3848, 0
        %v3851 = vshrl.u32 %v3850, 5
        %v3852 = vand.u32 %v3850, 31
        %v3853 = vsub.s32 32, %v3852
        %v3854 = vshrl.u32 683565275, %v3853
        %v3855 = vshll.u32 683565275, %v3852
        %v3856 = vshrl.u32 2475754826, %v3853
        %v3857 = vor.u32 %v3855, %v3856
        %v3858 = vshll.u32 2475754826, %v3852
        %v3859 = vshrl.u32 2131351028, %v3853
        %v3860 = vor.u32 %v3858, %v3859
        %v3861 = vshll.u32 2131351028, %v3852
        %v3862 = vshrl.u32 2102212464, %v3853
        %v3863 = vor.u32 %v3861, %v3862
        %v3864 = vshll.u32 2102212464, %v3852
        %v3865 = vshrl.u32 920167782, %v3853
        %v3866 = vor.u32 %v3864, %v3865
        %v3867 = vshll.u32 920167782, %v3852
        %v3868 = vshrl.u32 1326507024, %v3853
        %v3869 = vor.u32 %v3867, %v3868
        %vm3870 = vcmp.lt.s32.totalorder %v3851, 1
        %vm3871 = vcmp.lt.s32.totalorder %v3851, 2
        %vm3872 = vcmp.lt.s32.totalorder %v3851, 3
        %vm3873 = vcmp.lt.s32.totalorder %v3851, 4
        %v3874 = vsel %vm3870, %v3854, %v3857
        %v3875 = vsel %vm3873, %v3863, 2102212464
        %v3876 = vsel %vm3872, %v3860, %v3875
        %v3877 = vsel %vm3871, %v3874, %v3876
        %v3878 = vsel %vm3870, %v3857, %v3860
        %v3879 = vsel %vm3873, %v3866, 920167782
        %v3880 = vsel %vm3872, %v3863, %v3879
        %v3881 = vsel %vm3871, %v3878, %v3880
        %v3882 = vsel %vm3870, %v3860, %v3863
        %v3883 = vsel %vm3873, %v3869, 1326507024
        %v3884 = vsel %vm3872, %v3866, %v3883
        %v3885 = vsel %vm3871, %v3882, %v3884
        %v3886 = vshll.u32 %v3846, 8
        %v3887 = vmul.u32.u64.compose %v3886, %v3885
        %v3888 = vextract.low.u32 %v3887
        %v3889 = vextract.high.u32 %v3887
        %v3890 = vmul.u32.u64.compose %v3886, %v3881
        %v3891 = vextract.low.u32 %v3890
        %v3892 = vextract.high.u32 %v3890
        %v3893 = vmul.u32 %v3886, %v3877
        %v3894 = vadd.s32 %v3889, %v3891
        %vm3895 = vc.u32 %v3889, %v3891
        %v3896 = vadd.s32 %v3892, 1
        %v3897 = vsel %vm3895, %v3896, %v3892
        %v3898 = vadd.s32 %v3893, %v3897
        %v3899 = vadd.s32 %v3898, 536870912
        %v3900 = vshrl.u32 %v3899, 30
        %v3901 = vshll.u32 %v3900, 30
        %v3902 = vsub.s32 %v3898, %v3901
        %vm3903 = vcmp.lt.s32.totalorder %v3902, 0
        %v3904 = vsub.s32 0, %v3902
        %v3905 = vsel %vm3903, %v3904, %v3902
        %v3906 = vclz %v3905
        %v3907 = vsub.s32 %v3906, 2
        %vm3908 = vcmp.gt.s32.totalorder 0, %v3907
        %v3909 = vsel %vm3908, 0, %v3907
        %v3910 = vsub.s32 32, %v3909
        %v3911 = vshll.u32 %v3902, %v3909
        %v3912 = vshrl.u32 %v3894, %v3910
        %v3913 = vor.u32 %v3911, %v3912
        %v3914 = vsub.s32 4294967266, %v3909
        %v3915 = vadd.s32 %v3914, 127
        %v3916 = vshll.u32 %v3915, 23
        %v3917 = vor.u32 4788187, %v3916
        %v3918 = vand.u32 2147483647, %v3917
        %v3920 = vcvt.s32.f32 %v3913
        %v3921 = vmul.f32 %v3920, %v3918
        %v3922 = vxor.u32 %v3921, 2147483648
        %v3923 = vsel %vm3840, %v3922, %v3921
        %v3924 = vsub.s32 4, %v3900
        %v3925 = vsel %vm3840, %v3924, %v3900
        %v3926 = vsel %vm3839, %v2686, %v3923
        %v3927 = vsel %vm3839, 0, %v3925
        %v3928 = vcosq.f32.pop %v3926
        %v3929 = vsinq.f32.pop %v3926
        %vm3930 = vweird.f32 %v2686
        %v3931 = vadd.s32 %v3927, 3
        %v3932 = vand.u32 %v3931, 3
        %vm3933 = vcmp.lt.s32.totalorder %v3932, 2
        %vm3934 = vcmp.eq.s32.totalorder %v3932, 0
        %v3935 = vxor.u32 %v3929, 2147483648
        %v3936 = vsel %vm3934, %v3928, %v3935
        %vm3937 = vcmp.eq.s32.totalorder %v3932, 2
        %v3938 = vxor.u32 %v3928, 2147483648
        %v3939 = vsel %vm3937, %v3938, %v3929
        %v3940 = vsel %vm3933, %v3936, %v3939
        %v3941 = vsel %vm3930, nan, %v3940
        %v3942 = vand.u32 2147483647, %v2601
        %vm3943 = vcmp.le.f32.partialorder %v3942, 0.7853982
        %vm3944 = vcmp.lt.s32.totalorder %v2601, 0
        %v3945 = vand.u32 %v2601, 2139095040
        %v3946 = vshrl.u32 %v3945, 23
        %v3947 = vsub.s32 %v3946, 127
        %v3948 = vand.u32 2147483647, %v2601
        %v3949 = vand.u32 %v3948, 8388607
        %v3950 = vor.u32 %v3949, 8388608
        %v3951 = vsub.s32 0, %v3950
        %v3952 = vadd.s32 %v3947, 1
        %vm3953 = vcmp.gt.s32.totalorder %v3952, 0
        %v3954 = vsel %vm3953, %v3952, 0
        %v3955 = vshrl.u32 %v3954, 5
        %v3956 = vand.u32 %v3954, 31
        %v3957 = vsub.s32 32, %v3956
        %v3958 = vshrl.u32 683565275, %v3957
        %v3959 = vshll.u32 683565275, %v3956
        %v3960 = vshrl.u32 2475754826, %v3957
        %v3961 = vor.u32 %v3959, %v3960
        %v3962 = vshll.u32 2475754826, %v3956
        %v3963 = vshrl.u32 2131351028, %v3957
        %v3964 = vor.u32 %v3962, %v3963
        %v3965 = vshll.u32 2131351028, %v3956
        %v3966 = vshrl.u32 2102212464, %v3957
        %v3967 = vor.u32 %v3965, %v3966
        %v3968 = vshll.u32 2102212464, %v3956
        %v3969 = vshrl.u32 920167782, %v3957
        %v3970 = vor.u32 %v3968, %v3969
        %v3971 = vshll.u32 920167782, %v3956
        %v3972 = vshrl.u32 1326507024, %v3957
        %v3973 = vor.u32 %v3971, %v3972
        %vm3974 = vcmp.lt.s32.totalorder %v3955, 1
        %vm3975 = vcmp.lt.s32.totalorder %v3955, 2
        %vm3976 = vcmp.lt.s32.totalorder %v3955, 3
        %vm3977 = vcmp.lt.s32.totalorder %v3955, 4
        %v3978 = vsel %vm3974, %v3958, %v3961
        %v3979 = vsel %vm3977, %v3967, 2102212464
        %v3980 = vsel %vm3976, %v3964, %v3979
        %v3981 = vsel %vm3975, %v3978, %v3980
        %v3982 = vsel %vm3974, %v3961, %v3964
        %v3983 = vsel %vm3977, %v3970, 920167782
        %v3984 = vsel %vm3976, %v3967, %v3983
        %v3985 = vsel %vm3975, %v3982, %v3984
        %v3986 = vsel %vm3974, %v3964, %v3967
        %v3987 = vsel %vm3977, %v3973, 1326507024
        %v3988 = vsel %vm3976, %v3970, %v3987
        %v3989 = vsel %vm3975, %v3986, %v3988
        %v3990 = vshll.u32 %v3950, 8
        %v3991 = vmul.u32.u64.compose %v3990, %v3989
        %v3992 = vextract.low.u32 %v3991
        %v3993 = vextract.high.u32 %v3991
        %v3994 = vmul.u32.u64.compose %v3990, %v3985
        %v3995 = vextract.low.u32 %v3994
        %v3996 = vextract.high.u32 %v3994
        %v3997 = vmul.u32 %v3990, %v3981
        %v3998 = vadd.s32 %v3993, %v3995
        %vm3999 = vc.u32 %v3993, %v3995
        %v4000 = vadd.s32 %v3996, 1
        %v4001 = vsel %vm3999, %v4000, %v3996
        %v4002 = vadd.s32 %v3997, %v4001
        %v4003 = vadd.s32 %v4002, 536870912
        %v4004 = vshrl.u32 %v4003, 30
        %v4005 = vshll.u32 %v4004, 30
        %v4006 = vsub.s32 %v4002, %v4005
        %vm4007 = vcmp.lt.s32.totalorder %v4006, 0
        %v4008 = vsub.s32 0, %v4006
        %v4009 = vsel %vm4007, %v4008, %v4006
        %v4010 = vclz %v4009
        %v4011 = vsub.s32 %v4010, 2
        %vm4012 = vcmp.gt.s32.totalorder 0, %v4011
        %v4013 = vsel %vm4012, 0, %v4011
        %v4014 = vsub.s32 32, %v4013
        %v4015 = vshll.u32 %v4006, %v4013
        %v4016 = vshrl.u32 %v3998, %v4014
        %v4017 = vor.u32 %v4015, %v4016
        %v4018 = vsub.s32 4294967266, %v4013
        %v4019 = vadd.s32 %v4018, 127
        %v4020 = vshll.u32 %v4019, 23
        %v4021 = vor.u32 4788187, %v4020
        %v4022 = vand.u32 2147483647, %v4021
        %v4024 = vcvt.s32.f32 %v4017
        %v4025 = vmul.f32 %v4024, %v4022
        %v4026 = vxor.u32 %v4025, 2147483648
        %v4027 = vsel %vm3944, %v4026, %v4025
        %v4028 = vsub.s32 4, %v4004
        %v4029 = vsel %vm3944, %v4028, %v4004
        %v4030 = vsel %vm3943, %v2601, %v4027
        %v4031 = vsel %vm3943, 0, %v4029
        %v4032 = vcosq.f32.pop %v4030
        %v4033 = vsinq.f32.pop %v4030
        %vm4034 = vweird.f32 %v2601
        %v4035 = vadd.s32 %v4031, 3
        %v4036 = vand.u32 %v4035, 3
        %vm4037 = vcmp.lt.s32.totalorder %v4036, 2
        %vm4038 = vcmp.eq.s32.totalorder %v4036, 0
        %v4039 = vxor.u32 %v4033, 2147483648
        %v4040 = vsel %vm4038, %v4032, %v4039
        %vm4041 = vcmp.eq.s32.totalorder %v4036, 2
        %v4042 = vxor.u32 %v4032, 2147483648
        %v4043 = vsel %vm4041, %v4042, %v4033
        %v4044 = vsel %vm4037, %v4040, %v4043
        %v4045 = vsel %vm4034, nan, %v4044
        %v4046 = vand.u32 2147483647, %v2603
        %vm4047 = vcmp.le.f32.partialorder %v4046, 0.7853982
        %vm4048 = vcmp.lt.s32.totalorder %v2603, 0
        %v4049 = vand.u32 %v2603, 2139095040
        %v4050 = vshrl.u32 %v4049, 23
        %v4051 = vsub.s32 %v4050, 127
        %v4052 = vand.u32 2147483647, %v2603
        %v4053 = vand.u32 %v4052, 8388607
        %v4054 = vor.u32 %v4053, 8388608
        %v4055 = vsub.s32 0, %v4054
        %v4056 = vadd.s32 %v4051, 1
        %vm4057 = vcmp.gt.s32.totalorder %v4056, 0
        %v4058 = vsel %vm4057, %v4056, 0
        %v4059 = vshrl.u32 %v4058, 5
        %v4060 = vand.u32 %v4058, 31
        %v4061 = vsub.s32 32, %v4060
        %v4062 = vshrl.u32 683565275, %v4061
        %v4063 = vshll.u32 683565275, %v4060
        %v4064 = vshrl.u32 2475754826, %v4061
        %v4065 = vor.u32 %v4063, %v4064
        %v4066 = vshll.u32 2475754826, %v4060
        %v4067 = vshrl.u32 2131351028, %v4061
        %v4068 = vor.u32 %v4066, %v4067
        %v4069 = vshll.u32 2131351028, %v4060
        %v4070 = vshrl.u32 2102212464, %v4061
        %v4071 = vor.u32 %v4069, %v4070
        %v4072 = vshll.u32 2102212464, %v4060
        %v4073 = vshrl.u32 920167782, %v4061
        %v4074 = vor.u32 %v4072, %v4073
        %v4075 = vshll.u32 920167782, %v4060
        %v4076 = vshrl.u32 1326507024, %v4061
        %v4077 = vor.u32 %v4075, %v4076
        %vm4078 = vcmp.lt.s32.totalorder %v4059, 1
        %vm4079 = vcmp.lt.s32.totalorder %v4059, 2
        %vm4080 = vcmp.lt.s32.totalorder %v4059, 3
        %vm4081 = vcmp.lt.s32.totalorder %v4059, 4
        %v4082 = vsel %vm4078, %v4062, %v4065
        %v4083 = vsel %vm4081, %v4071, 2102212464
        %v4084 = vsel %vm4080, %v4068, %v4083
        %v4085 = vsel %vm4079, %v4082, %v4084
        %v4086 = vsel %vm4078, %v4065, %v4068
        %v4087 = vsel %vm4081, %v4074, 920167782
        %v4088 = vsel %vm4080, %v4071, %v4087
        %v4089 = vsel %vm4079, %v4086, %v4088
        %v4090 = vsel %vm4078, %v4068, %v4071
        %v4091 = vsel %vm4081, %v4077, 1326507024
        %v4092 = vsel %vm4080, %v4074, %v4091
        %v4093 = vsel %vm4079, %v4090, %v4092
        %v4094 = vshll.u32 %v4054, 8
        %v4095 = vmul.u32.u64.compose %v4094, %v4093
        %v4096 = vextract.low.u32 %v4095
        %v4097 = vextract.high.u32 %v4095
        %v4098 = vmul.u32.u64.compose %v4094, %v4089
        %v4099 = vextract.low.u32 %v4098
        %v4100 = vextract.high.u32 %v4098
        %v4101 = vmul.u32 %v4094, %v4085
        %v4102 = vadd.s32 %v4097, %v4099
        %vm4103 = vc.u32 %v4097, %v4099
        %v4104 = vadd.s32 %v4100, 1
        %v4105 = vsel %vm4103, %v4104, %v4100
        %v4106 = vadd.s32 %v4101, %v4105
        %v4107 = vadd.s32 %v4106, 536870912
        %v4108 = vshrl.u32 %v4107, 30
        %v4109 = vshll.u32 %v4108, 30
        %v4110 = vsub.s32 %v4106, %v4109
        %vm4111 = vcmp.lt.s32.totalorder %v4110, 0
        %v4112 = vsub.s32 0, %v4110
        %v4113 = vsel %vm4111, %v4112, %v4110
        %v4114 = vclz %v4113
        %v4115 = vsub.s32 %v4114, 2
        %vm4116 = vcmp.gt.s32.totalorder 0, %v4115
        %v4117 = vsel %vm4116, 0, %v4115
        %v4118 = vsub.s32 32, %v4117
        %v4119 = vshll.u32 %v4110, %v4117
        %v4120 = vshrl.u32 %v4102, %v4118
        %v4121 = vor.u32 %v4119, %v4120
        %v4122 = vsub.s32 4294967266, %v4117
        %v4123 = vadd.s32 %v4122, 127
        %v4124 = vshll.u32 %v4123, 23
        %v4125 = vor.u32 4788187, %v4124
        %v4126 = vand.u32 2147483647, %v4125
        %v4128 = vcvt.s32.f32 %v4121
        %v4129 = vmul.f32 %v4128, %v4126
        %v4130 = vxor.u32 %v4129, 2147483648
        %v4131 = vsel %vm4048, %v4130, %v4129
        %v4132 = vsub.s32 4, %v4108
        %v4133 = vsel %vm4048, %v4132, %v4108
        %v4134 = vsel %vm4047, %v2603, %v4131
        %v4135 = vsel %vm4047, 0, %v4133
        %v4136 = vcosq.f32.pop %v4134
        %v4137 = vsinq.f32.pop %v4134
        %vm4138 = vweird.f32 %v2603
        %v4139 = vadd.s32 %v4135, 3
        %v4140 = vand.u32 %v4139, 3
        %vm4141 = vcmp.lt.s32.totalorder %v4140, 2
        %vm4142 = vcmp.eq.s32.totalorder %v4140, 0
        %v4143 = vxor.u32 %v4137, 2147483648
        %v4144 = vsel %vm4142, %v4136, %v4143
        %vm4145 = vcmp.eq.s32.totalorder %v4140, 2
        %v4146 = vxor.u32 %v4136, 2147483648
        %v4147 = vsel %vm4145, %v4146, %v4137
        %v4148 = vsel %vm4141, %v4144, %v4147
        %v4149 = vsel %vm4138, nan, %v4148
        %v4150 = vand.u32 2147483647, %v2690
        %vm4151 = vcmp.le.f32.partialorder %v4150, 0.7853982
        %vm4152 = vcmp.lt.s32.totalorder %v2690, 0
        %v4153 = vand.u32 %v2690, 2139095040
        %v4154 = vshrl.u32 %v4153, 23
        %v4155 = vsub.s32 %v4154, 127
        %v4156 = vand.u32 2147483647, %v2690
        %v4157 = vand.u32 %v4156, 8388607
        %v4158 = vor.u32 %v4157, 8388608
        %v4159 = vsub.s32 0, %v4158
        %v4160 = vadd.s32 %v4155, 1
        %vm4161 = vcmp.gt.s32.totalorder %v4160, 0
        %v4162 = vsel %vm4161, %v4160, 0
        %v4163 = vshrl.u32 %v4162, 5
        %v4164 = vand.u32 %v4162, 31
        %v4165 = vsub.s32 32, %v4164
        %v4166 = vshrl.u32 683565275, %v4165
        %v4167 = vshll.u32 683565275, %v4164
        %v4168 = vshrl.u32 2475754826, %v4165
        %v4169 = vor.u32 %v4167, %v4168
        %v4170 = vshll.u32 2475754826, %v4164
        %v4171 = vshrl.u32 2131351028, %v4165
        %v4172 = vor.u32 %v4170, %v4171
        %v4173 = vshll.u32 2131351028, %v4164
        %v4174 = vshrl.u32 2102212464, %v4165
        %v4175 = vor.u32 %v4173, %v4174
        %v4176 = vshll.u32 2102212464, %v4164
        %v4177 = vshrl.u32 920167782, %v4165
        %v4178 = vor.u32 %v4176, %v4177
        %v4179 = vshll.u32 920167782, %v4164
        %v4180 = vshrl.u32 1326507024, %v4165
        %v4181 = vor.u32 %v4179, %v4180
        %vm4182 = vcmp.lt.s32.totalorder %v4163, 1
        %vm4183 = vcmp.lt.s32.totalorder %v4163, 2
        %vm4184 = vcmp.lt.s32.totalorder %v4163, 3
        %vm4185 = vcmp.lt.s32.totalorder %v4163, 4
        %v4186 = vsel %vm4182, %v4166, %v4169
        %v4187 = vsel %vm4185, %v4175, 2102212464
        %v4188 = vsel %vm4184, %v4172, %v4187
        %v4189 = vsel %vm4183, %v4186, %v4188
        %v4190 = vsel %vm4182, %v4169, %v4172
        %v4191 = vsel %vm4185, %v4178, 920167782
        %v4192 = vsel %vm4184, %v4175, %v4191
        %v4193 = vsel %vm4183, %v4190, %v4192
        %v4194 = vsel %vm4182, %v4172, %v4175
        %v4195 = vsel %vm4185, %v4181, 1326507024
        %v4196 = vsel %vm4184, %v4178, %v4195
        %v4197 = vsel %vm4183, %v4194, %v4196
        %v4198 = vshll.u32 %v4158, 8
        %v4199 = vmul.u32.u64.compose %v4198, %v4197
        %v4200 = vextract.low.u32 %v4199
        %v4201 = vextract.high.u32 %v4199
        %v4202 = vmul.u32.u64.compose %v4198, %v4193
        %v4203 = vextract.low.u32 %v4202
        %v4204 = vextract.high.u32 %v4202
        %v4205 = vmul.u32 %v4198, %v4189
        %v4206 = vadd.s32 %v4201, %v4203
        %vm4207 = vc.u32 %v4201, %v4203
        %v4208 = vadd.s32 %v4204, 1
        %v4209 = vsel %vm4207, %v4208, %v4204
        %v4210 = vadd.s32 %v4205, %v4209
        %v4211 = vadd.s32 %v4210, 536870912
        %v4212 = vshrl.u32 %v4211, 30
        %v4213 = vshll.u32 %v4212, 30
        %v4214 = vsub.s32 %v4210, %v4213
        %vm4215 = vcmp.lt.s32.totalorder %v4214, 0
        %v4216 = vsub.s32 0, %v4214
        %v4217 = vsel %vm4215, %v4216, %v4214
        %v4218 = vclz %v4217
        %v4219 = vsub.s32 %v4218, 2
        %vm4220 = vcmp.gt.s32.totalorder 0, %v4219
        %v4221 = vsel %vm4220, 0, %v4219
        %v4222 = vsub.s32 32, %v4221
        %v4223 = vshll.u32 %v4214, %v4221
        %v4224 = vshrl.u32 %v4206, %v4222
        %v4225 = vor.u32 %v4223, %v4224
        %v4226 = vsub.s32 4294967266, %v4221
        %v4227 = vadd.s32 %v4226, 127
        %v4228 = vshll.u32 %v4227, 23
        %v4229 = vor.u32 4788187, %v4228
        %v4230 = vand.u32 2147483647, %v4229
        %v4232 = vcvt.s32.f32 %v4225
        %v4233 = vmul.f32 %v4232, %v4230
        %v4234 = vxor.u32 %v4233, 2147483648
        %v4235 = vsel %vm4152, %v4234, %v4233
        %v4236 = vsub.s32 4, %v4212
        %v4237 = vsel %vm4152, %v4236, %v4212
        %v4238 = vsel %vm4151, %v2690, %v4235
        %v4239 = vsel %vm4151, 0, %v4237
        %v4240 = vcosq.f32.pop %v4238
        %v4241 = vsinq.f32.pop %v4238
        %vm4242 = vweird.f32 %v2690
        %v4243 = vadd.s32 %v4239, 3
        %v4244 = vand.u32 %v4243, 3
        %vm4245 = vcmp.lt.s32.totalorder %v4244, 2
        %vm4246 = vcmp.eq.s32.totalorder %v4244, 0
        %v4247 = vxor.u32 %v4241, 2147483648
        %v4248 = vsel %vm4246, %v4240, %v4247
        %vm4249 = vcmp.eq.s32.totalorder %v4244, 2
        %v4250 = vxor.u32 %v4240, 2147483648
        %v4251 = vsel %vm4249, %v4250, %v4241
        %v4252 = vsel %vm4245, %v4248, %v4251
        %v4253 = vsel %vm4242, nan, %v4252
        %v4254 = vand.u32 2147483647, %v2692
        %vm4255 = vcmp.le.f32.partialorder %v4254, 0.7853982
        %vm4256 = vcmp.lt.s32.totalorder %v2692, 0
        %v4257 = vand.u32 %v2692, 2139095040
        %v4258 = vshrl.u32 %v4257, 23
        %v4259 = vsub.s32 %v4258, 127
        %v4260 = vand.u32 2147483647, %v2692
        %v4261 = vand.u32 %v4260, 8388607
        %v4262 = vor.u32 %v4261, 8388608
        %v4263 = vsub.s32 0, %v4262
        %v4264 = vadd.s32 %v4259, 1
        %vm4265 = vcmp.gt.s32.totalorder %v4264, 0
        %v4266 = vsel %vm4265, %v4264, 0
        %v4267 = vshrl.u32 %v4266, 5
        %v4268 = vand.u32 %v4266, 31
        %v4269 = vsub.s32 32, %v4268
        %v4270 = vshrl.u32 683565275, %v4269
        %v4271 = vshll.u32 683565275, %v4268
        %v4272 = vshrl.u32 2475754826, %v4269
        %v4273 = vor.u32 %v4271, %v4272
        %v4274 = vshll.u32 2475754826, %v4268
        %v4275 = vshrl.u32 2131351028, %v4269
        %v4276 = vor.u32 %v4274, %v4275
        %v4277 = vshll.u32 2131351028, %v4268
        %v4278 = vshrl.u32 2102212464, %v4269
        %v4279 = vor.u32 %v4277, %v4278
        %v4280 = vshll.u32 2102212464, %v4268
        %v4281 = vshrl.u32 920167782, %v4269
        %v4282 = vor.u32 %v4280, %v4281
        %v4283 = vshll.u32 920167782, %v4268
        %v4284 = vshrl.u32 1326507024, %v4269
        %v4285 = vor.u32 %v4283, %v4284
        %vm4286 = vcmp.lt.s32.totalorder %v4267, 1
        %vm4287 = vcmp.lt.s32.totalorder %v4267, 2
        %vm4288 = vcmp.lt.s32.totalorder %v4267, 3
        %vm4289 = vcmp.lt.s32.totalorder %v4267, 4
        %v4290 = vsel %vm4286, %v4270, %v4273
        %v4291 = vsel %vm4289, %v4279, 2102212464
        %v4292 = vsel %vm4288, %v4276, %v4291
        %v4293 = vsel %vm4287, %v4290, %v4292
        %v4294 = vsel %vm4286, %v4273, %v4276
        %v4295 = vsel %vm4289, %v4282, 920167782
        %v4296 = vsel %vm4288, %v4279, %v4295
        %v4297 = vsel %vm4287, %v4294, %v4296
        %v4298 = vsel %vm4286, %v4276, %v4279
        %v4299 = vsel %vm4289, %v4285, 1326507024
        %v4300 = vsel %vm4288, %v4282, %v4299
        %v4301 = vsel %vm4287, %v4298, %v4300
        %v4302 = vshll.u32 %v4262, 8
        %v4303 = vmul.u32.u64.compose %v4302, %v4301
        %v4304 = vextract.low.u32 %v4303
        %v4305 = vextract.high.u32 %v4303
        %v4306 = vmul.u32.u64.compose %v4302, %v4297
        %v4307 = vextract.low.u32 %v4306
        %v4308 = vextract.high.u32 %v4306
        %v4309 = vmul.u32 %v4302, %v4293
        %v4310 = vadd.s32 %v4305, %v4307
        %vm4311 = vc.u32 %v4305, %v4307
        %v4312 = vadd.s32 %v4308, 1
        %v4313 = vsel %vm4311, %v4312, %v4308
        %v4314 = vadd.s32 %v4309, %v4313
        %v4315 = vadd.s32 %v4314, 536870912
        %v4316 = vshrl.u32 %v4315, 30
        %v4317 = vshll.u32 %v4316, 30
        %v4318 = vsub.s32 %v4314, %v4317
        %vm4319 = vcmp.lt.s32.totalorder %v4318, 0
        %v4320 = vsub.s32 0, %v4318
        %v4321 = vsel %vm4319, %v4320, %v4318
        %v4322 = vclz %v4321
        %v4323 = vsub.s32 %v4322, 2
        %vm4324 = vcmp.gt.s32.totalorder 0, %v4323
        %v4325 = vsel %vm4324, 0, %v4323
        %v4326 = vsub.s32 32, %v4325
        %v4327 = vshll.u32 %v4318, %v4325
        %v4328 = vshrl.u32 %v4310, %v4326
        %v4329 = vor.u32 %v4327, %v4328
        %v4330 = vsub.s32 4294967266, %v4325
        %v4331 = vadd.s32 %v4330, 127
        %v4332 = vshll.u32 %v4331, 23
        %v4333 = vor.u32 4788187, %v4332
        %v4334 = vand.u32 2147483647, %v4333
        %v4336 = vcvt.s32.f32 %v4329
        %v4337 = vmul.f32 %v4336, %v4334
        %v4338 = vxor.u32 %v4337, 2147483648
        %v4339 = vsel %vm4256, %v4338, %v4337
        %v4340 = vsub.s32 4, %v4316
        %v4341 = vsel %vm4256, %v4340, %v4316
        %v4342 = vsel %vm4255, %v2692, %v4339
        %v4343 = vsel %vm4255, 0, %v4341
        %v4344 = vcosq.f32.pop %v4342
        %v4345 = vsinq.f32.pop %v4342
        %vm4346 = vweird.f32 %v2692
        %v4347 = vadd.s32 %v4343, 3
        %v4348 = vand.u32 %v4347, 3
        %vm4349 = vcmp.lt.s32.totalorder %v4348, 2
        %vm4350 = vcmp.eq.s32.totalorder %v4348, 0
        %v4351 = vxor.u32 %v4345, 2147483648
        %v4352 = vsel %vm4350, %v4344, %v4351
        %vm4353 = vcmp.eq.s32.totalorder %v4348, 2
        %v4354 = vxor.u32 %v4344, 2147483648
        %v4355 = vsel %vm4353, %v4354, %v4345
        %v4356 = vsel %vm4349, %v4352, %v4355
        %v4357 = vsel %vm4346, nan, %v4356
        %v4358 = vld [vmem:[%s5] sm:$0xff]
        %v4359 = vld [vmem:[%s5 + $0x8] sm:$0xff]
        %v4360 = vld [vmem:[%s5 + $0x10] sm:$0xff]
        %v4361 = vld [vmem:[%s5 + $0x18] sm:$0xff]
        %v4362 = vld [vmem:[%s6] sm:$0xff]
        %v4363 = vld [vmem:[%s6 + $0x8] sm:$0xff]
        %v4364 = vld [vmem:[%s6 + $0x10] sm:$0xff]
        %v4365 = vld [vmem:[%s6 + $0x18] sm:$0xff]
        %4367 = vset.pattern.permute.xlu0 0
        %4368 = vperm.xlu0 %4367, %v4362
        %v4369 = vpop.permute.xlu0 %4368
        %4372 = vset.pattern.permute.xlu0 0
        %4373 = vperm.xlu0 %4372, %v4363
        %v4374 = vpop.permute.xlu0 %4373
        %4377 = vset.pattern.permute.xlu0 0
        %4378 = vperm.xlu0 %4377, %v4364
        %v4379 = vpop.permute.xlu0 %4378
        %4382 = vset.pattern.permute.xlu0 0
        %4383 = vperm.xlu0 %4382, %v4365
        %v4384 = vpop.permute.xlu0 %4383
        %v4387 = vsel %vm2503, %v4358, 0
        %v4390 = vsel %vm2503, %v4359, 0
        %v4393 = vsel %vm2503, %v4360, 0
        %v4396 = vsel %vm2503, %v4361, 0
        %4398 = vmatprep.subr.mxu0 %v2901
        %4399 = vmatpush1.msra.mxu0 %v2797
        %4400 = vmatprep.subr.mxu0 %v3317
        %4401 = vmatpush1.msra.mxu0 %v3213
        %4402 = vmatprep.subr.mxu0 %v3733
        %4403 = vmatpush1.msra.mxu0 %v3629
        %4404 = vmatprep.subr.mxu0 %v4149
        %4405 = vmatpush1.msra.mxu0 %v4045
        %4406 = vmatprep.subr.mxu0 0.0
        %4407 = vmatpush1.msra.mxu0 0.0
        %4408 = vmatprep.subr.mxu0 0.0
        %4409 = vmatpush1.msra.mxu0 0.0
        %4410 = vmatprep.subr.mxu0 0.0
        %4411 = vmatpush1.msra.mxu0 0.0
        %4412 = vmatprep.subr.mxu0 0.0
        %4413 = vmatpush1.msra.mxu0 0.0
        %4414 = vmatprep.subr.mxu0 0.0
        %4415 = vmatpush1.msra.mxu0 0.0
        %4416 = vmatprep.subr.mxu0 0.0
        %4417 = vmatpush1.msra.mxu0 0.0
        %4418 = vmatprep.subr.mxu0 0.0
        %4419 = vmatpush1.msra.mxu0 0.0
        %4420 = vmatprep.subr.mxu0 0.0
        %4421 = vmatpush1.msra.mxu0 0.0
        %4422 = vmatprep.subr.mxu0 0.0
        %4423 = vmatpush1.msra.mxu0 0.0
        %4424 = vmatprep.subr.mxu0 0.0
        %4425 = vmatpush1.msra.mxu0 0.0
        %4426 = vmatprep.subr.mxu0 0.0
        %4427 = vmatpush1.msra.mxu0 0.0
        %4428 = vmatprep.subr.mxu0 0.0
        %4429 = vmatpush1.msra.mxu0 0.0
        %4430 = vmatprep.subr.mxu0 0.0
        %4431 = vmatpush1.msra.mxu0 0.0
        %4432 = vmatprep.subr.mxu0 0.0
        %4433 = vmatpush1.msra.mxu0 0.0
        %4434 = vmatprep.subr.mxu0 0.0
        %4435 = vmatpush1.msra.mxu0 0.0
        %4436 = vmatprep.subr.mxu0 0.0
        %4437 = vmatpush1.msra.mxu0 0.0
        %4438 = vmatprep.subr.mxu0 0.0
        %4439 = vmatpush1.msra.mxu0 0.0
        %4440 = vmatprep.subr.mxu0 0.0
        %4441 = vmatpush1.msra.mxu0 0.0
        %4442 = vmatprep.subr.mxu0 0.0
        %4443 = vmatpush1.msra.mxu0 0.0
        %4444 = vmatprep.subr.mxu0 0.0
        %4445 = vmatpush1.msra.mxu0 0.0
        %4446 = vmatprep.subr.mxu0 0.0
        %4447 = vmatpush1.msra.mxu0 0.0
        %4448 = vmatprep.subr.mxu0 0.0
        %4449 = vmatpush1.msra.mxu0 0.0
        %4450 = vmatprep.subr.mxu0 0.0
        %4451 = vmatpush1.msra.mxu0 0.0
        %4452 = vmatprep.subr.mxu0 0.0
        %4453 = vmatpush1.msra.mxu0 0.0
        %4454 = vmatprep.subr.mxu0 0.0
        %4455 = vmatpush1.msra.mxu0 0.0
        %4456 = vmatprep.subr.mxu0 0.0
        %4457 = vmatpush1.msra.mxu0 0.0
        %4458 = vmatprep.subr.mxu0 0.0
        %4459 = vmatpush1.msra.mxu0 0.0
        %4460 = vmatprep.subr.mxu0 0.0
        %4461 = vmatpush1.msra.mxu0 0.0
        %4462 = vmatprep.mubr.f32.mxu0 0.0
        %4463 = vmatmul.mubr.f32.gmra.mrb[0].mxu0 %v4387
        %v4464 = vpop.f32.mrb[0].mxu0
        %v4465 = vadd.f32 %v4369, %v4464
        %v4466 = vpop.f32.mrb[0].mxu0
        %v4467 = vadd.f32 %v4369, %v4466
        %4468 = vmatprep.mubr.f32.mxu0 0.0
        %4469 = vmatmul.mubr.f32.gmra.mrb[0].mxu0 %v4390
        %v4470 = vpop.f32.mrb[0].mxu0
        %v4471 = vadd.f32 %v4374, %v4470
        %v4472 = vpop.f32.mrb[0].mxu0
        %v4473 = vadd.f32 %v4374, %v4472
        %4474 = vmatprep.mubr.f32.mxu0 0.0
        %4475 = vmatmul.mubr.f32.gmra.mrb[0].mxu0 %v4393
        %v4476 = vpop.f32.mrb[0].mxu0
        %v4477 = vadd.f32 %v4379, %v4476
        %v4478 = vpop.f32.mrb[0].mxu0
        %v4479 = vadd.f32 %v4379, %v4478
        %4480 = vmatprep.mubr.f32.mxu0 0.0
        %4481 = vmatmul.mubr.f32.gmra.mrb[0].mxu0 %v4396
        %v4482 = vpop.f32.mrb[0].mxu0
        %v4483 = vadd.f32 %v4384, %v4482
        %v4484 = vpop.f32.mrb[0].mxu0
        %v4485 = vadd.f32 %v4384, %v4484
        %4486 = vdwg.mxu0
        %4487 = vmatprep.subr.mxu0 %v3109
        %4488 = vmatpush1.msra.mxu0 %v3005
        %4489 = vmatprep.subr.mxu0 %v3525
        %4490 = vmatpush1.msra.mxu0 %v3421
        %4491 = vmatprep.subr.mxu0 %v3941
        %4492 = vmatpush1.msra.mxu0 %v3837
        %4493 = vmatprep.subr.mxu0 %v4357
        %4494 = vmatpush1.msra.mxu0 %v4253
        %4495 = vmatprep.subr.mxu0 0.0
        %4496 = vmatpush1.msra.mxu0 0.0
        %4497 = vmatprep.subr.mxu0 0.0
        %4498 = vmatpush1.msra.mxu0 0.0
        %4499 = vmatprep.subr.mxu0 0.0
        %4500 = vmatpush1.msra.mxu0 0.0
        %4501 = vmatprep.subr.mxu0 0.0
        %4502 = vmatpush1.msra.mxu0 0.0
        %4503 = vmatprep.subr.mxu0 0.0
        %4504 = vmatpush1.msra.mxu0 0.0
        %4505 = vmatprep.subr.mxu0 0.0
        %4506 = vmatpush1.msra.mxu0 0.0
        %4507 = vmatprep.subr.mxu0 0.0
        %4508 = vmatpush1.msra.mxu0 0.0
        %4509 = vmatprep.subr.mxu0 0.0
        %4510 = vmatpush1.msra.mxu0 0.0
        %4511 = vmatprep.subr.mxu0 0.0
        %4512 = vmatpush1.msra.mxu0 0.0
        %4513 = vmatprep.subr.mxu0 0.0
        %4514 = vmatpush1.msra.mxu0 0.0
        %4515 = vmatprep.subr.mxu0 0.0
        %4516 = vmatpush1.msra.mxu0 0.0
        %4517 = vmatprep.subr.mxu0 0.0
        %4518 = vmatpush1.msra.mxu0 0.0
        %4519 = vmatprep.subr.mxu0 0.0
        %4520 = vmatpush1.msra.mxu0 0.0
        %4521 = vmatprep.subr.mxu0 0.0
        %4522 = vmatpush1.msra.mxu0 0.0
        %4523 = vmatprep.subr.mxu0 0.0
        %4524 = vmatpush1.msra.mxu0 0.0
        %4525 = vmatprep.subr.mxu0 0.0
        %4526 = vmatpush1.msra.mxu0 0.0
        %4527 = vmatprep.subr.mxu0 0.0
        %4528 = vmatpush1.msra.mxu0 0.0
        %4529 = vmatprep.subr.mxu0 0.0
        %4530 = vmatpush1.msra.mxu0 0.0
        %4531 = vmatprep.subr.mxu0 0.0
        %4532 = vmatpush1.msra.mxu0 0.0
        %4533 = vmatprep.subr.mxu0 0.0
        %4534 = vmatpush1.msra.mxu0 0.0
        %4535 = vmatprep.subr.mxu0 0.0
        %4536 = vmatpush1.msra.mxu0 0.0
        %4537 = vmatprep.subr.mxu0 0.0
        %4538 = vmatpush1.msra.mxu0 0.0
        %4539 = vmatprep.subr.mxu0 0.0
        %4540 = vmatpush1.msra.mxu0 0.0
        %4541 = vmatprep.subr.mxu0 0.0
        %4542 = vmatpush1.msra.mxu0 0.0
        %4543 = vmatprep.subr.mxu0 0.0
        %4544 = vmatpush1.msra.mxu0 0.0
        %4545 = vmatprep.subr.mxu0 0.0
        %4546 = vmatpush1.msra.mxu0 0.0
        %4547 = vmatprep.subr.mxu0 0.0
        %4548 = vmatpush1.msra.mxu0 0.0
        %4549 = vmatprep.subr.mxu0 0.0
        %4550 = vmatpush1.msra.mxu0 0.0
        %4551 = vmatprep.mubr.f32.mxu0 0.0
        %4552 = vmatmul.mubr.f32.gmra.mrb[0].mxu0 %v4387
        %v4553 = vpop.f32.mrb[0].mxu0
        %v4554 = vadd.f32 %v4369, %v4553
        %v4555 = vpop.f32.mrb[0].mxu0
        %v4556 = vadd.f32 %v4369, %v4555
        %4557 = vmatprep.mubr.f32.mxu0 0.0
        %4558 = vmatmul.mubr.f32.gmra.mrb[0].mxu0 %v4390
        %v4559 = vpop.f32.mrb[0].mxu0
        %v4560 = vadd.f32 %v4374, %v4559
        %v4561 = vpop.f32.mrb[0].mxu0
        %v4562 = vadd.f32 %v4374, %v4561
        %4563 = vmatprep.mubr.f32.mxu0 0.0
        %4564 = vmatmul.mubr.f32.gmra.mrb[0].mxu0 %v4393
        %v4565 = vpop.f32.mrb[0].mxu0
        %v4566 = vadd.f32 %v4379, %v4565
        %v4567 = vpop.f32.mrb[0].mxu0
        %v4568 = vadd.f32 %v4379, %v4567
        %4569 = vmatprep.mubr.f32.mxu0 0.0
        %4570 = vmatmul.mubr.f32.gmra.mrb[0].mxu0 %v4396
        %v4571 = vpop.f32.mrb[0].mxu0
        %v4572 = vadd.f32 %v4384, %v4571
        %v4573 = vpop.f32.mrb[0].mxu0
        %v4574 = vadd.f32 %v4384, %v4573
        %4575 = vdwg.mxu0
        %v4576 = vand.u32 2147483647, %v4465
        %vm4577 = vcmp.le.f32.partialorder %v4576, 0.7853982
        %vm4578 = vcmp.lt.s32.totalorder %v4465, 0
        %v4579 = vand.u32 %v4465, 2139095040
        %v4580 = vshrl.u32 %v4579, 23
        %v4581 = vsub.s32 %v4580, 127
        %v4582 = vand.u32 2147483647, %v4465
        %v4583 = vand.u32 %v4582, 8388607
        %v4584 = vor.u32 %v4583, 8388608
        %v4585 = vsub.s32 0, %v4584
        %v4586 = vadd.s32 %v4581, 1
        %vm4587 = vcmp.gt.s32.totalorder %v4586, 0
        %v4588 = vsel %vm4587, %v4586, 0
        %v4589 = vshrl.u32 %v4588, 5
        %v4590 = vand.u32 %v4588, 31
        %v4591 = vsub.s32 32, %v4590
        %v4592 = vshrl.u32 683565275, %v4591
        %v4593 = vshll.u32 683565275, %v4590
        %v4594 = vshrl.u32 2475754826, %v4591
        %v4595 = vor.u32 %v4593, %v4594
        %v4596 = vshll.u32 2475754826, %v4590
        %v4597 = vshrl.u32 2131351028, %v4591
        %v4598 = vor.u32 %v4596, %v4597
        %v4599 = vshll.u32 2131351028, %v4590
        %v4600 = vshrl.u32 2102212464, %v4591
        %v4601 = vor.u32 %v4599, %v4600
        %v4602 = vshll.u32 2102212464, %v4590
        %v4603 = vshrl.u32 920167782, %v4591
        %v4604 = vor.u32 %v4602, %v4603
        %v4605 = vshll.u32 920167782, %v4590
        %v4606 = vshrl.u32 1326507024, %v4591
        %v4607 = vor.u32 %v4605, %v4606
        %vm4608 = vcmp.lt.s32.totalorder %v4589, 1
        %vm4609 = vcmp.lt.s32.totalorder %v4589, 2
        %vm4610 = vcmp.lt.s32.totalorder %v4589, 3
        %vm4611 = vcmp.lt.s32.totalorder %v4589, 4
        %v4612 = vsel %vm4608, %v4592, %v4595
        %v4613 = vsel %vm4611, %v4601, 2102212464
        %v4614 = vsel %vm4610, %v4598, %v4613
        %v4615 = vsel %vm4609, %v4612, %v4614
        %v4616 = vsel %vm4608, %v4595, %v4598
        %v4617 = vsel %vm4611, %v4604, 920167782
        %v4618 = vsel %vm4610, %v4601, %v4617
        %v4619 = vsel %vm4609, %v4616, %v4618
        %v4620 = vsel %vm4608, %v4598, %v4601
        %v4621 = vsel %vm4611, %v4607, 1326507024
        %v4622 = vsel %vm4610, %v4604, %v4621
        %v4623 = vsel %vm4609, %v4620, %v4622
        %v4624 = vshll.u32 %v4584, 8
        %v4625 = vmul.u32.u64.compose %v4624, %v4623
        %v4626 = vextract.low.u32 %v4625
        %v4627 = vextract.high.u32 %v4625
        %v4628 = vmul.u32.u64.compose %v4624, %v4619
        %v4629 = vextract.low.u32 %v4628
        %v4630 = vextract.high.u32 %v4628
        %v4631 = vmul.u32 %v4624, %v4615
        %v4632 = vadd.s32 %v4627, %v4629
        %vm4633 = vc.u32 %v4627, %v4629
        %v4634 = vadd.s32 %v4630, 1
        %v4635 = vsel %vm4633, %v4634, %v4630
        %v4636 = vadd.s32 %v4631, %v4635
        %v4637 = vadd.s32 %v4636, 536870912
        %v4638 = vshrl.u32 %v4637, 30
        %v4639 = vshll.u32 %v4638, 30
        %v4640 = vsub.s32 %v4636, %v4639
        %vm4641 = vcmp.lt.s32.totalorder %v4640, 0
        %v4642 = vsub.s32 0, %v4640
        %v4643 = vsel %vm4641, %v4642, %v4640
        %v4644 = vclz %v4643
        %v4645 = vsub.s32 %v4644, 2
        %vm4646 = vcmp.gt.s32.totalorder 0, %v4645
        %v4647 = vsel %vm4646, 0, %v4645
        %v4648 = vsub.s32 32, %v4647
        %v4649 = vshll.u32 %v4640, %v4647
        %v4650 = vshrl.u32 %v4632, %v4648
        %v4651 = vor.u32 %v4649, %v4650
        %v4652 = vsub.s32 4294967266, %v4647
        %v4653 = vadd.s32 %v4652, 127
        %v4654 = vshll.u32 %v4653, 23
        %v4655 = vor.u32 4788187, %v4654
        %v4656 = vand.u32 2147483647, %v4655
        %v4658 = vcvt.s32.f32 %v4651
        %v4659 = vmul.f32 %v4658, %v4656
        %v4660 = vxor.u32 %v4659, 2147483648
        %v4661 = vsel %vm4578, %v4660, %v4659
        %v4662 = vsub.s32 4, %v4638
        %v4663 = vsel %vm4578, %v4662, %v4638
        %v4664 = vsel %vm4577, %v4465, %v4661
        %v4665 = vsel %vm4577, 0, %v4663
        %v4666 = vcosq.f32.pop %v4664
        %v4667 = vsinq.f32.pop %v4664
        %vm4668 = vweird.f32 %v4465
        %v4669 = vadd.s32 %v4665, 3
        %v4670 = vand.u32 %v4669, 3
        %vm4671 = vcmp.lt.s32.totalorder %v4670, 2
        %vm4672 = vcmp.eq.s32.totalorder %v4670, 0
        %v4673 = vxor.u32 %v4667, 2147483648
        %v4674 = vsel %vm4672, %v4666, %v4673
        %vm4675 = vcmp.eq.s32.totalorder %v4670, 2
        %v4676 = vxor.u32 %v4666, 2147483648
        %v4677 = vsel %vm4675, %v4676, %v4667
        %v4678 = vsel %vm4671, %v4674, %v4677
        %v4679 = vsel %vm4668, nan, %v4678
        %v4680 = vand.u32 2147483647, %v4467
        %vm4681 = vcmp.le.f32.partialorder %v4680, 0.7853982
        %vm4682 = vcmp.lt.s32.totalorder %v4467, 0
        %v4683 = vand.u32 %v4467, 2139095040
        %v4684 = vshrl.u32 %v4683, 23
        %v4685 = vsub.s32 %v4684, 127
        %v4686 = vand.u32 2147483647, %v4467
        %v4687 = vand.u32 %v4686, 8388607
        %v4688 = vor.u32 %v4687, 8388608
        %v4689 = vsub.s32 0, %v4688
        %v4690 = vadd.s32 %v4685, 1
        %vm4691 = vcmp.gt.s32.totalorder %v4690, 0
        %v4692 = vsel %vm4691, %v4690, 0
        %v4693 = vshrl.u32 %v4692, 5
        %v4694 = vand.u32 %v4692, 31
        %v4695 = vsub.s32 32, %v4694
        %v4696 = vshrl.u32 683565275, %v4695
        %v4697 = vshll.u32 683565275, %v4694
        %v4698 = vshrl.u32 2475754826, %v4695
        %v4699 = vor.u32 %v4697, %v4698
        %v4700 = vshll.u32 2475754826, %v4694
        %v4701 = vshrl.u32 2131351028, %v4695
        %v4702 = vor.u32 %v4700, %v4701
        %v4703 = vshll.u32 2131351028, %v4694
        %v4704 = vshrl.u32 2102212464, %v4695
        %v4705 = vor.u32 %v4703, %v4704
        %v4706 = vshll.u32 2102212464, %v4694
        %v4707 = vshrl.u32 920167782, %v4695
        %v4708 = vor.u32 %v4706, %v4707
        %v4709 = vshll.u32 920167782, %v4694
        %v4710 = vshrl.u32 1326507024, %v4695
        %v4711 = vor.u32 %v4709, %v4710
        %vm4712 = vcmp.lt.s32.totalorder %v4693, 1
        %vm4713 = vcmp.lt.s32.totalorder %v4693, 2
        %vm4714 = vcmp.lt.s32.totalorder %v4693, 3
        %vm4715 = vcmp.lt.s32.totalorder %v4693, 4
        %v4716 = vsel %vm4712, %v4696, %v4699
        %v4717 = vsel %vm4715, %v4705, 2102212464
        %v4718 = vsel %vm4714, %v4702, %v4717
        %v4719 = vsel %vm4713, %v4716, %v4718
        %v4720 = vsel %vm4712, %v4699, %v4702
        %v4721 = vsel %vm4715, %v4708, 920167782
        %v4722 = vsel %vm4714, %v4705, %v4721
        %v4723 = vsel %vm4713, %v4720, %v4722
        %v4724 = vsel %vm4712, %v4702, %v4705
        %v4725 = vsel %vm4715, %v4711, 1326507024
        %v4726 = vsel %vm4714, %v4708, %v4725
        %v4727 = vsel %vm4713, %v4724, %v4726
        %v4728 = vshll.u32 %v4688, 8
        %v4729 = vmul.u32.u64.compose %v4728, %v4727
        %v4730 = vextract.low.u32 %v4729
        %v4731 = vextract.high.u32 %v4729
        %v4732 = vmul.u32.u64.compose %v4728, %v4723
        %v4733 = vextract.low.u32 %v4732
        %v4734 = vextract.high.u32 %v4732
        %v4735 = vmul.u32 %v4728, %v4719
        %v4736 = vadd.s32 %v4731, %v4733
        %vm4737 = vc.u32 %v4731, %v4733
        %v4738 = vadd.s32 %v4734, 1
        %v4739 = vsel %vm4737, %v4738, %v4734
        %v4740 = vadd.s32 %v4735, %v4739
        %v4741 = vadd.s32 %v4740, 536870912
        %v4742 = vshrl.u32 %v4741, 30
        %v4743 = vshll.u32 %v4742, 30
        %v4744 = vsub.s32 %v4740, %v4743
        %vm4745 = vcmp.lt.s32.totalorder %v4744, 0
        %v4746 = vsub.s32 0, %v4744
        %v4747 = vsel %vm4745, %v4746, %v4744
        %v4748 = vclz %v4747
        %v4749 = vsub.s32 %v4748, 2
        %vm4750 = vcmp.gt.s32.totalorder 0, %v4749
        %v4751 = vsel %vm4750, 0, %v4749
        %v4752 = vsub.s32 32, %v4751
        %v4753 = vshll.u32 %v4744, %v4751
        %v4754 = vshrl.u32 %v4736, %v4752
        %v4755 = vor.u32 %v4753, %v4754
        %v4756 = vsub.s32 4294967266, %v4751
        %v4757 = vadd.s32 %v4756, 127
        %v4758 = vshll.u32 %v4757, 23
        %v4759 = vor.u32 4788187, %v4758
        %v4760 = vand.u32 2147483647, %v4759
        %v4762 = vcvt.s32.f32 %v4755
        %v4763 = vmul.f32 %v4762, %v4760
        %v4764 = vxor.u32 %v4763, 2147483648
        %v4765 = vsel %vm4682, %v4764, %v4763
        %v4766 = vsub.s32 4, %v4742
        %v4767 = vsel %vm4682, %v4766, %v4742
        %v4768 = vsel %vm4681, %v4467, %v4765
        %v4769 = vsel %vm4681, 0, %v4767
        %v4770 = vcosq.f32.pop %v4768
        %v4771 = vsinq.f32.pop %v4768
        %vm4772 = vweird.f32 %v4467
        %v4773 = vadd.s32 %v4769, 3
        %v4774 = vand.u32 %v4773, 3
        %vm4775 = vcmp.lt.s32.totalorder %v4774, 2
        %vm4776 = vcmp.eq.s32.totalorder %v4774, 0
        %v4777 = vxor.u32 %v4771, 2147483648
        %v4778 = vsel %vm4776, %v4770, %v4777
        %vm4779 = vcmp.eq.s32.totalorder %v4774, 2
        %v4780 = vxor.u32 %v4770, 2147483648
        %v4781 = vsel %vm4779, %v4780, %v4771
        %v4782 = vsel %vm4775, %v4778, %v4781
        %v4783 = vsel %vm4772, nan, %v4782
        %v4784 = vand.u32 2147483647, %v4554
        %vm4785 = vcmp.le.f32.partialorder %v4784, 0.7853982
        %vm4786 = vcmp.lt.s32.totalorder %v4554, 0
        %v4787 = vand.u32 %v4554, 2139095040
        %v4788 = vshrl.u32 %v4787, 23
        %v4789 = vsub.s32 %v4788, 127
        %v4790 = vand.u32 2147483647, %v4554
        %v4791 = vand.u32 %v4790, 8388607
        %v4792 = vor.u32 %v4791, 8388608
        %v4793 = vsub.s32 0, %v4792
        %v4794 = vadd.s32 %v4789, 1
        %vm4795 = vcmp.gt.s32.totalorder %v4794, 0
        %v4796 = vsel %vm4795, %v4794, 0
        %v4797 = vshrl.u32 %v4796, 5
        %v4798 = vand.u32 %v4796, 31
        %v4799 = vsub.s32 32, %v4798
        %v4800 = vshrl.u32 683565275, %v4799
        %v4801 = vshll.u32 683565275, %v4798
        %v4802 = vshrl.u32 2475754826, %v4799
        %v4803 = vor.u32 %v4801, %v4802
        %v4804 = vshll.u32 2475754826, %v4798
        %v4805 = vshrl.u32 2131351028, %v4799
        %v4806 = vor.u32 %v4804, %v4805
        %v4807 = vshll.u32 2131351028, %v4798
        %v4808 = vshrl.u32 2102212464, %v4799
        %v4809 = vor.u32 %v4807, %v4808
        %v4810 = vshll.u32 2102212464, %v4798
        %v4811 = vshrl.u32 920167782, %v4799
        %v4812 = vor.u32 %v4810, %v4811
        %v4813 = vshll.u32 920167782, %v4798
        %v4814 = vshrl.u32 1326507024, %v4799
        %v4815 = vor.u32 %v4813, %v4814
        %vm4816 = vcmp.lt.s32.totalorder %v4797, 1
        %vm4817 = vcmp.lt.s32.totalorder %v4797, 2
        %vm4818 = vcmp.lt.s32.totalorder %v4797, 3
        %vm4819 = vcmp.lt.s32.totalorder %v4797, 4
        %v4820 = vsel %vm4816, %v4800, %v4803
        %v4821 = vsel %vm4819, %v4809, 2102212464
        %v4822 = vsel %vm4818, %v4806, %v4821
        %v4823 = vsel %vm4817, %v4820, %v4822
        %v4824 = vsel %vm4816, %v4803, %v4806
        %v4825 = vsel %vm4819, %v4812, 920167782
        %v4826 = vsel %vm4818, %v4809, %v4825
        %v4827 = vsel %vm4817, %v4824, %v4826
        %v4828 = vsel %vm4816, %v4806, %v4809
        %v4829 = vsel %vm4819, %v4815, 1326507024
        %v4830 = vsel %vm4818, %v4812, %v4829
        %v4831 = vsel %vm4817, %v4828, %v4830
        %v4832 = vshll.u32 %v4792, 8
        %v4833 = vmul.u32.u64.compose %v4832, %v4831
        %v4834 = vextract.low.u32 %v4833
        %v4835 = vextract.high.u32 %v4833
        %v4836 = vmul.u32.u64.compose %v4832, %v4827
        %v4837 = vextract.low.u32 %v4836
        %v4838 = vextract.high.u32 %v4836
        %v4839 = vmul.u32 %v4832, %v4823
        %v4840 = vadd.s32 %v4835, %v4837
        %vm4841 = vc.u32 %v4835, %v4837
        %v4842 = vadd.s32 %v4838, 1
        %v4843 = vsel %vm4841, %v4842, %v4838
        %v4844 = vadd.s32 %v4839, %v4843
        %v4845 = vadd.s32 %v4844, 536870912
        %v4846 = vshrl.u32 %v4845, 30
        %v4847 = vshll.u32 %v4846, 30
        %v4848 = vsub.s32 %v4844, %v4847
        %vm4849 = vcmp.lt.s32.totalorder %v4848, 0
        %v4850 = vsub.s32 0, %v4848
        %v4851 = vsel %vm4849, %v4850, %v4848
        %v4852 = vclz %v4851
        %v4853 = vsub.s32 %v4852, 2
        %vm4854 = vcmp.gt.s32.totalorder 0, %v4853
        %v4855 = vsel %vm4854, 0, %v4853
        %v4856 = vsub.s32 32, %v4855
        %v4857 = vshll.u32 %v4848, %v4855
        %v4858 = vshrl.u32 %v4840, %v4856
        %v4859 = vor.u32 %v4857, %v4858
        %v4860 = vsub.s32 4294967266, %v4855
        %v4861 = vadd.s32 %v4860, 127
        %v4862 = vshll.u32 %v4861, 23
        %v4863 = vor.u32 4788187, %v4862
        %v4864 = vand.u32 2147483647, %v4863
        %v4866 = vcvt.s32.f32 %v4859
        %v4867 = vmul.f32 %v4866, %v4864
        %v4868 = vxor.u32 %v4867, 2147483648
        %v4869 = vsel %vm4786, %v4868, %v4867
        %v4870 = vsub.s32 4, %v4846
        %v4871 = vsel %vm4786, %v4870, %v4846
        %v4872 = vsel %vm4785, %v4554, %v4869
        %v4873 = vsel %vm4785, 0, %v4871
        %v4874 = vcosq.f32.pop %v4872
        %v4875 = vsinq.f32.pop %v4872
        %vm4876 = vweird.f32 %v4554
        %v4877 = vadd.s32 %v4873, 3
        %v4878 = vand.u32 %v4877, 3
        %vm4879 = vcmp.lt.s32.totalorder %v4878, 2
        %vm4880 = vcmp.eq.s32.totalorder %v4878, 0
        %v4881 = vxor.u32 %v4875, 2147483648
        %v4882 = vsel %vm4880, %v4874, %v4881
        %vm4883 = vcmp.eq.s32.totalorder %v4878, 2
        %v4884 = vxor.u32 %v4874, 2147483648
        %v4885 = vsel %vm4883, %v4884, %v4875
        %v4886 = vsel %vm4879, %v4882, %v4885
        %v4887 = vsel %vm4876, nan, %v4886
        %v4888 = vand.u32 2147483647, %v4556
        %vm4889 = vcmp.le.f32.partialorder %v4888, 0.7853982
        %vm4890 = vcmp.lt.s32.totalorder %v4556, 0
        %v4891 = vand.u32 %v4556, 2139095040
        %v4892 = vshrl.u32 %v4891, 23
        %v4893 = vsub.s32 %v4892, 127
        %v4894 = vand.u32 2147483647, %v4556
        %v4895 = vand.u32 %v4894, 8388607
        %v4896 = vor.u32 %v4895, 8388608
        %v4897 = vsub.s32 0, %v4896
        %v4898 = vadd.s32 %v4893, 1
        %vm4899 = vcmp.gt.s32.totalorder %v4898, 0
        %v4900 = vsel %vm4899, %v4898, 0
        %v4901 = vshrl.u32 %v4900, 5
        %v4902 = vand.u32 %v4900, 31
        %v4903 = vsub.s32 32, %v4902
        %v4904 = vshrl.u32 683565275, %v4903
        %v4905 = vshll.u32 683565275, %v4902
        %v4906 = vshrl.u32 2475754826, %v4903
        %v4907 = vor.u32 %v4905, %v4906
        %v4908 = vshll.u32 2475754826, %v4902
        %v4909 = vshrl.u32 2131351028, %v4903
        %v4910 = vor.u32 %v4908, %v4909
        %v4911 = vshll.u32 2131351028, %v4902
        %v4912 = vshrl.u32 2102212464, %v4903
        %v4913 = vor.u32 %v4911, %v4912
        %v4914 = vshll.u32 2102212464, %v4902
        %v4915 = vshrl.u32 920167782, %v4903
        %v4916 = vor.u32 %v4914, %v4915
        %v4917 = vshll.u32 920167782, %v4902
        %v4918 = vshrl.u32 1326507024, %v4903
        %v4919 = vor.u32 %v4917, %v4918
        %vm4920 = vcmp.lt.s32.totalorder %v4901, 1
        %vm4921 = vcmp.lt.s32.totalorder %v4901, 2
        %vm4922 = vcmp.lt.s32.totalorder %v4901, 3
        %vm4923 = vcmp.lt.s32.totalorder %v4901, 4
        %v4924 = vsel %vm4920, %v4904, %v4907
        %v4925 = vsel %vm4923, %v4913, 2102212464
        %v4926 = vsel %vm4922, %v4910, %v4925
        %v4927 = vsel %vm4921, %v4924, %v4926
        %v4928 = vsel %vm4920, %v4907, %v4910
        %v4929 = vsel %vm4923, %v4916, 920167782
        %v4930 = vsel %vm4922, %v4913, %v4929
        %v4931 = vsel %vm4921, %v4928, %v4930
        %v4932 = vsel %vm4920, %v4910, %v4913
        %v4933 = vsel %vm4923, %v4919, 1326507024
        %v4934 = vsel %vm4922, %v4916, %v4933
        %v4935 = vsel %vm4921, %v4932, %v4934
        %v4936 = vshll.u32 %v4896, 8
        %v4937 = vmul.u32.u64.compose %v4936, %v4935
        %v4938 = vextract.low.u32 %v4937
        %v4939 = vextract.high.u32 %v4937
        %v4940 = vmul.u32.u64.compose %v4936, %v4931
        %v4941 = vextract.low.u32 %v4940
        %v4942 = vextract.high.u32 %v4940
        %v4943 = vmul.u32 %v4936, %v4927
        %v4944 = vadd.s32 %v4939, %v4941
        %vm4945 = vc.u32 %v4939, %v4941
        %v4946 = vadd.s32 %v4942, 1
        %v4947 = vsel %vm4945, %v4946, %v4942
        %v4948 = vadd.s32 %v4943, %v4947
        %v4949 = vadd.s32 %v4948, 536870912
        %v4950 = vshrl.u32 %v4949, 30
        %v4951 = vshll.u32 %v4950, 30
        %v4952 = vsub.s32 %v4948, %v4951
        %vm4953 = vcmp.lt.s32.totalorder %v4952, 0
        %v4954 = vsub.s32 0, %v4952
        %v4955 = vsel %vm4953, %v4954, %v4952
        %v4956 = vclz %v4955
        %v4957 = vsub.s32 %v4956, 2
        %vm4958 = vcmp.gt.s32.totalorder 0, %v4957
        %v4959 = vsel %vm4958, 0, %v4957
        %v4960 = vsub.s32 32, %v4959
        %v4961 = vshll.u32 %v4952, %v4959
        %v4962 = vshrl.u32 %v4944, %v4960
        %v4963 = vor.u32 %v4961, %v4962
        %v4964 = vsub.s32 4294967266, %v4959
        %v4965 = vadd.s32 %v4964, 127
        %v4966 = vshll.u32 %v4965, 23
        %v4967 = vor.u32 4788187, %v4966
        %v4968 = vand.u32 2147483647, %v4967
        %v4970 = vcvt.s32.f32 %v4963
        %v4971 = vmul.f32 %v4970, %v4968
        %v4972 = vxor.u32 %v4971, 2147483648
        %v4973 = vsel %vm4890, %v4972, %v4971
        %v4974 = vsub.s32 4, %v4950
        %v4975 = vsel %vm4890, %v4974, %v4950
        %v4976 = vsel %vm4889, %v4556, %v4973
        %v4977 = vsel %vm4889, 0, %v4975
        %v4978 = vcosq.f32.pop %v4976
        %v4979 = vsinq.f32.pop %v4976
        %vm4980 = vweird.f32 %v4556
        %v4981 = vadd.s32 %v4977, 3
        %v4982 = vand.u32 %v4981, 3
        %vm4983 = vcmp.lt.s32.totalorder %v4982, 2
        %vm4984 = vcmp.eq.s32.totalorder %v4982, 0
        %v4985 = vxor.u32 %v4979, 2147483648
        %v4986 = vsel %vm4984, %v4978, %v4985
        %vm4987 = vcmp.eq.s32.totalorder %v4982, 2
        %v4988 = vxor.u32 %v4978, 2147483648
        %v4989 = vsel %vm4987, %v4988, %v4979
        %v4990 = vsel %vm4983, %v4986, %v4989
        %v4991 = vsel %vm4980, nan, %v4990
        %v4992 = vand.u32 2147483647, %v4471
        %vm4993 = vcmp.le.f32.partialorder %v4992, 0.7853982
        %vm4994 = vcmp.lt.s32.totalorder %v4471, 0
        %v4995 = vand.u32 %v4471, 2139095040
        %v4996 = vshrl.u32 %v4995, 23
        %v4997 = vsub.s32 %v4996, 127
        %v4998 = vand.u32 2147483647, %v4471
        %v4999 = vand.u32 %v4998, 8388607
        %v5000 = vor.u32 %v4999, 8388608
        %v5001 = vsub.s32 0, %v5000
        %v5002 = vadd.s32 %v4997, 1
        %vm5003 = vcmp.gt.s32.totalorder %v5002, 0
        %v5004 = vsel %vm5003, %v5002, 0
        %v5005 = vshrl.u32 %v5004, 5
        %v5006 = vand.u32 %v5004, 31
        %v5007 = vsub.s32 32, %v5006
        %v5008 = vshrl.u32 683565275, %v5007
        %v5009 = vshll.u32 683565275, %v5006
        %v5010 = vshrl.u32 2475754826, %v5007
        %v5011 = vor.u32 %v5009, %v5010
        %v5012 = vshll.u32 2475754826, %v5006
        %v5013 = vshrl.u32 2131351028, %v5007
        %v5014 = vor.u32 %v5012, %v5013
        %v5015 = vshll.u32 2131351028, %v5006
        %v5016 = vshrl.u32 2102212464, %v5007
        %v5017 = vor.u32 %v5015, %v5016
        %v5018 = vshll.u32 2102212464, %v5006
        %v5019 = vshrl.u32 920167782, %v5007
        %v5020 = vor.u32 %v5018, %v5019
        %v5021 = vshll.u32 920167782, %v5006
        %v5022 = vshrl.u32 1326507024, %v5007
        %v5023 = vor.u32 %v5021, %v5022
        %vm5024 = vcmp.lt.s32.totalorder %v5005, 1
        %vm5025 = vcmp.lt.s32.totalorder %v5005, 2
        %vm5026 = vcmp.lt.s32.totalorder %v5005, 3
        %vm5027 = vcmp.lt.s32.totalorder %v5005, 4
        %v5028 = vsel %vm5024, %v5008, %v5011
        %v5029 = vsel %vm5027, %v5017, 2102212464
        %v5030 = vsel %vm5026, %v5014, %v5029
        %v5031 = vsel %vm5025, %v5028, %v5030
        %v5032 = vsel %vm5024, %v5011, %v5014
        %v5033 = vsel %vm5027, %v5020, 920167782
        %v5034 = vsel %vm5026, %v5017, %v5033
        %v5035 = vsel %vm5025, %v5032, %v5034
        %v5036 = vsel %vm5024, %v5014, %v5017
        %v5037 = vsel %vm5027, %v5023, 1326507024
        %v5038 = vsel %vm5026, %v5020, %v5037
        %v5039 = vsel %vm5025, %v5036, %v5038
        %v5040 = vshll.u32 %v5000, 8
        %v5041 = vmul.u32.u64.compose %v5040, %v5039
        %v5042 = vextract.low.u32 %v5041
        %v5043 = vextract.high.u32 %v5041
        %v5044 = vmul.u32.u64.compose %v5040, %v5035
        %v5045 = vextract.low.u32 %v5044
        %v5046 = vextract.high.u32 %v5044
        %v5047 = vmul.u32 %v5040, %v5031
        %v5048 = vadd.s32 %v5043, %v5045
        %vm5049 = vc.u32 %v5043, %v5045
        %v5050 = vadd.s32 %v5046, 1
        %v5051 = vsel %vm5049, %v5050, %v5046
        %v5052 = vadd.s32 %v5047, %v5051
        %v5053 = vadd.s32 %v5052, 536870912
        %v5054 = vshrl.u32 %v5053, 30
        %v5055 = vshll.u32 %v5054, 30
        %v5056 = vsub.s32 %v5052, %v5055
        %vm5057 = vcmp.lt.s32.totalorder %v5056, 0
        %v5058 = vsub.s32 0, %v5056
        %v5059 = vsel %vm5057, %v5058, %v5056
        %v5060 = vclz %v5059
        %v5061 = vsub.s32 %v5060, 2
        %vm5062 = vcmp.gt.s32.totalorder 0, %v5061
        %v5063 = vsel %vm5062, 0, %v5061
        %v5064 = vsub.s32 32, %v5063
        %v5065 = vshll.u32 %v5056, %v5063
        %v5066 = vshrl.u32 %v5048, %v5064
        %v5067 = vor.u32 %v5065, %v5066
        %v5068 = vsub.s32 4294967266, %v5063
        %v5069 = vadd.s32 %v5068, 127
        %v5070 = vshll.u32 %v5069, 23
        %v5071 = vor.u32 4788187, %v5070
        %v5072 = vand.u32 2147483647, %v5071
        %v5074 = vcvt.s32.f32 %v5067
        %v5075 = vmul.f32 %v5074, %v5072
        %v5076 = vxor.u32 %v5075, 2147483648
        %v5077 = vsel %vm4994, %v5076, %v5075
        %v5078 = vsub.s32 4, %v5054
        %v5079 = vsel %vm4994, %v5078, %v5054
        %v5080 = vsel %vm4993, %v4471, %v5077
        %v5081 = vsel %vm4993, 0, %v5079
        %v5082 = vcosq.f32.pop %v5080
        %v5083 = vsinq.f32.pop %v5080
        %vm5084 = vweird.f32 %v4471
        %v5085 = vadd.s32 %v5081, 3
        %v5086 = vand.u32 %v5085, 3
        %vm5087 = vcmp.lt.s32.totalorder %v5086, 2
        %vm5088 = vcmp.eq.s32.totalorder %v5086, 0
        %v5089 = vxor.u32 %v5083, 2147483648
        %v5090 = vsel %vm5088, %v5082, %v5089
        %vm5091 = vcmp.eq.s32.totalorder %v5086, 2
        %v5092 = vxor.u32 %v5082, 2147483648
        %v5093 = vsel %vm5091, %v5092, %v5083
        %v5094 = vsel %vm5087, %v5090, %v5093
        %v5095 = vsel %vm5084, nan, %v5094
        %v5096 = vand.u32 2147483647, %v4473
        %vm5097 = vcmp.le.f32.partialorder %v5096, 0.7853982
        %vm5098 = vcmp.lt.s32.totalorder %v4473, 0
        %v5099 = vand.u32 %v4473, 2139095040
        %v5100 = vshrl.u32 %v5099, 23
        %v5101 = vsub.s32 %v5100, 127
        %v5102 = vand.u32 2147483647, %v4473
        %v5103 = vand.u32 %v5102, 8388607
        %v5104 = vor.u32 %v5103, 8388608
        %v5105 = vsub.s32 0, %v5104
        %v5106 = vadd.s32 %v5101, 1
        %vm5107 = vcmp.gt.s32.totalorder %v5106, 0
        %v5108 = vsel %vm5107, %v5106, 0
        %v5109 = vshrl.u32 %v5108, 5
        %v5110 = vand.u32 %v5108, 31
        %v5111 = vsub.s32 32, %v5110
        %v5112 = vshrl.u32 683565275, %v5111
        %v5113 = vshll.u32 683565275, %v5110
        %v5114 = vshrl.u32 2475754826, %v5111
        %v5115 = vor.u32 %v5113, %v5114
        %v5116 = vshll.u32 2475754826, %v5110
        %v5117 = vshrl.u32 2131351028, %v5111
        %v5118 = vor.u32 %v5116, %v5117
        %v5119 = vshll.u32 2131351028, %v5110
        %v5120 = vshrl.u32 2102212464, %v5111
        %v5121 = vor.u32 %v5119, %v5120
        %v5122 = vshll.u32 2102212464, %v5110
        %v5123 = vshrl.u32 920167782, %v5111
        %v5124 = vor.u32 %v5122, %v5123
        %v5125 = vshll.u32 920167782, %v5110
        %v5126 = vshrl.u32 1326507024, %v5111
        %v5127 = vor.u32 %v5125, %v5126
        %vm5128 = vcmp.lt.s32.totalorder %v5109, 1
        %vm5129 = vcmp.lt.s32.totalorder %v5109, 2
        %vm5130 = vcmp.lt.s32.totalorder %v5109, 3
        %vm5131 = vcmp.lt.s32.totalorder %v5109, 4
        %v5132 = vsel %vm5128, %v5112, %v5115
        %v5133 = vsel %vm5131, %v5121, 2102212464
        %v5134 = vsel %vm5130, %v5118, %v5133
        %v5135 = vsel %vm5129, %v5132, %v5134
        %v5136 = vsel %vm5128, %v5115, %v5118
        %v5137 = vsel %vm5131, %v5124, 920167782
        %v5138 = vsel %vm5130, %v5121, %v5137
        %v5139 = vsel %vm5129, %v5136, %v5138
        %v5140 = vsel %vm5128, %v5118, %v5121
        %v5141 = vsel %vm5131, %v5127, 1326507024
        %v5142 = vsel %vm5130, %v5124, %v5141
        %v5143 = vsel %vm5129, %v5140, %v5142
        %v5144 = vshll.u32 %v5104, 8
        %v5145 = vmul.u32.u64.compose %v5144, %v5143
        %v5146 = vextract.low.u32 %v5145
        %v5147 = vextract.high.u32 %v5145
        %v5148 = vmul.u32.u64.compose %v5144, %v5139
        %v5149 = vextract.low.u32 %v5148
        %v5150 = vextract.high.u32 %v5148
        %v5151 = vmul.u32 %v5144, %v5135
        %v5152 = vadd.s32 %v5147, %v5149
        %vm5153 = vc.u32 %v5147, %v5149
        %v5154 = vadd.s32 %v5150, 1
        %v5155 = vsel %vm5153, %v5154, %v5150
        %v5156 = vadd.s32 %v5151, %v5155
        %v5157 = vadd.s32 %v5156, 536870912
        %v5158 = vshrl.u32 %v5157, 30
        %v5159 = vshll.u32 %v5158, 30
        %v5160 = vsub.s32 %v5156, %v5159
        %vm5161 = vcmp.lt.s32.totalorder %v5160, 0
        %v5162 = vsub.s32 0, %v5160
        %v5163 = vsel %vm5161, %v5162, %v5160
        %v5164 = vclz %v5163
        %v5165 = vsub.s32 %v5164, 2
        %vm5166 = vcmp.gt.s32.totalorder 0, %v5165
        %v5167 = vsel %vm5166, 0, %v5165
        %v5168 = vsub.s32 32, %v5167
        %v5169 = vshll.u32 %v5160, %v5167
        %v5170 = vshrl.u32 %v5152, %v5168
        %v5171 = vor.u32 %v5169, %v5170
        %v5172 = vsub.s32 4294967266, %v5167
        %v5173 = vadd.s32 %v5172, 127
        %v5174 = vshll.u32 %v5173, 23
        %v5175 = vor.u32 4788187, %v5174
        %v5176 = vand.u32 2147483647, %v5175
        %v5178 = vcvt.s32.f32 %v5171
        %v5179 = vmul.f32 %v5178, %v5176
        %v5180 = vxor.u32 %v5179, 2147483648
        %v5181 = vsel %vm5098, %v5180, %v5179
        %v5182 = vsub.s32 4, %v5158
        %v5183 = vsel %vm5098, %v5182, %v5158
        %v5184 = vsel %vm5097, %v4473, %v5181
        %v5185 = vsel %vm5097, 0, %v5183
        %v5186 = vcosq.f32.pop %v5184
        %v5187 = vsinq.f32.pop %v5184
        %vm5188 = vweird.f32 %v4473
        %v5189 = vadd.s32 %v5185, 3
        %v5190 = vand.u32 %v5189, 3
        %vm5191 = vcmp.lt.s32.totalorder %v5190, 2
        %vm5192 = vcmp.eq.s32.totalorder %v5190, 0
        %v5193 = vxor.u32 %v5187, 2147483648
        %v5194 = vsel %vm5192, %v5186, %v5193
        %vm5195 = vcmp.eq.s32.totalorder %v5190, 2
        %v5196 = vxor.u32 %v5186, 2147483648
        %v5197 = vsel %vm5195, %v5196, %v5187
        %v5198 = vsel %vm5191, %v5194, %v5197
        %v5199 = vsel %vm5188, nan, %v5198
        %v5200 = vand.u32 2147483647, %v4560
        %vm5201 = vcmp.le.f32.partialorder %v5200, 0.7853982
        %vm5202 = vcmp.lt.s32.totalorder %v4560, 0
        %v5203 = vand.u32 %v4560, 2139095040
        %v5204 = vshrl.u32 %v5203, 23
        %v5205 = vsub.s32 %v5204, 127
        %v5206 = vand.u32 2147483647, %v4560
        %v5207 = vand.u32 %v5206, 8388607
        %v5208 = vor.u32 %v5207, 8388608
        %v5209 = vsub.s32 0, %v5208
        %v5210 = vadd.s32 %v5205, 1
        %vm5211 = vcmp.gt.s32.totalorder %v5210, 0
        %v5212 = vsel %vm5211, %v5210, 0
        %v5213 = vshrl.u32 %v5212, 5
        %v5214 = vand.u32 %v5212, 31
        %v5215 = vsub.s32 32, %v5214
        %v5216 = vshrl.u32 683565275, %v5215
        %v5217 = vshll.u32 683565275, %v5214
        %v5218 = vshrl.u32 2475754826, %v5215
        %v5219 = vor.u32 %v5217, %v5218
        %v5220 = vshll.u32 2475754826, %v5214
        %v5221 = vshrl.u32 2131351028, %v5215
        %v5222 = vor.u32 %v5220, %v5221
        %v5223 = vshll.u32 2131351028, %v5214
        %v5224 = vshrl.u32 2102212464, %v5215
        %v5225 = vor.u32 %v5223, %v5224
        %v5226 = vshll.u32 2102212464, %v5214
        %v5227 = vshrl.u32 920167782, %v5215
        %v5228 = vor.u32 %v5226, %v5227
        %v5229 = vshll.u32 920167782, %v5214
        %v5230 = vshrl.u32 1326507024, %v5215
        %v5231 = vor.u32 %v5229, %v5230
        %vm5232 = vcmp.lt.s32.totalorder %v5213, 1
        %vm5233 = vcmp.lt.s32.totalorder %v5213, 2
        %vm5234 = vcmp.lt.s32.totalorder %v5213, 3
        %vm5235 = vcmp.lt.s32.totalorder %v5213, 4
        %v5236 = vsel %vm5232, %v5216, %v5219
        %v5237 = vsel %vm5235, %v5225, 2102212464
        %v5238 = vsel %vm5234, %v5222, %v5237
        %v5239 = vsel %vm5233, %v5236, %v5238
        %v5240 = vsel %vm5232, %v5219, %v5222
        %v5241 = vsel %vm5235, %v5228, 920167782
        %v5242 = vsel %vm5234, %v5225, %v5241
        %v5243 = vsel %vm5233, %v5240, %v5242
        %v5244 = vsel %vm5232, %v5222, %v5225
        %v5245 = vsel %vm5235, %v5231, 1326507024
        %v5246 = vsel %vm5234, %v5228, %v5245
        %v5247 = vsel %vm5233, %v5244, %v5246
        %v5248 = vshll.u32 %v5208, 8
        %v5249 = vmul.u32.u64.compose %v5248, %v5247
        %v5250 = vextract.low.u32 %v5249
        %v5251 = vextract.high.u32 %v5249
        %v5252 = vmul.u32.u64.compose %v5248, %v5243
        %v5253 = vextract.low.u32 %v5252
        %v5254 = vextract.high.u32 %v5252
        %v5255 = vmul.u32 %v5248, %v5239
        %v5256 = vadd.s32 %v5251, %v5253
        %vm5257 = vc.u32 %v5251, %v5253
        %v5258 = vadd.s32 %v5254, 1
        %v5259 = vsel %vm5257, %v5258, %v5254
        %v5260 = vadd.s32 %v5255, %v5259
        %v5261 = vadd.s32 %v5260, 536870912
        %v5262 = vshrl.u32 %v5261, 30
        %v5263 = vshll.u32 %v5262, 30
        %v5264 = vsub.s32 %v5260, %v5263
        %vm5265 = vcmp.lt.s32.totalorder %v5264, 0
        %v5266 = vsub.s32 0, %v5264
        %v5267 = vsel %vm5265, %v5266, %v5264
        %v5268 = vclz %v5267
        %v5269 = vsub.s32 %v5268, 2
        %vm5270 = vcmp.gt.s32.totalorder 0, %v5269
        %v5271 = vsel %vm5270, 0, %v5269
        %v5272 = vsub.s32 32, %v5271
        %v5273 = vshll.u32 %v5264, %v5271
        %v5274 = vshrl.u32 %v5256, %v5272
        %v5275 = vor.u32 %v5273, %v5274
        %v5276 = vsub.s32 4294967266, %v5271
        %v5277 = vadd.s32 %v5276, 127
        %v5278 = vshll.u32 %v5277, 23
        %v5279 = vor.u32 4788187, %v5278
        %v5280 = vand.u32 2147483647, %v5279
        %v5282 = vcvt.s32.f32 %v5275
        %v5283 = vmul.f32 %v5282, %v5280
        %v5284 = vxor.u32 %v5283, 2147483648
        %v5285 = vsel %vm5202, %v5284, %v5283
        %v5286 = vsub.s32 4, %v5262
        %v5287 = vsel %vm5202, %v5286, %v5262
        %v5288 = vsel %vm5201, %v4560, %v5285
        %v5289 = vsel %vm5201, 0, %v5287
        %v5290 = vcosq.f32.pop %v5288
        %v5291 = vsinq.f32.pop %v5288
        %vm5292 = vweird.f32 %v4560
        %v5293 = vadd.s32 %v5289, 3
        %v5294 = vand.u32 %v5293, 3
        %vm5295 = vcmp.lt.s32.totalorder %v5294, 2
        %vm5296 = vcmp.eq.s32.totalorder %v5294, 0
        %v5297 = vxor.u32 %v5291, 2147483648
        %v5298 = vsel %vm5296, %v5290, %v5297
        %vm5299 = vcmp.eq.s32.totalorder %v5294, 2
        %v5300 = vxor.u32 %v5290, 2147483648
        %v5301 = vsel %vm5299, %v5300, %v5291
        %v5302 = vsel %vm5295, %v5298, %v5301
        %v5303 = vsel %vm5292, nan, %v5302
        %v5304 = vand.u32 2147483647, %v4562
        %vm5305 = vcmp.le.f32.partialorder %v5304, 0.7853982
        %vm5306 = vcmp.lt.s32.totalorder %v4562, 0
        %v5307 = vand.u32 %v4562, 2139095040
        %v5308 = vshrl.u32 %v5307, 23
        %v5309 = vsub.s32 %v5308, 127
        %v5310 = vand.u32 2147483647, %v4562
        %v5311 = vand.u32 %v5310, 8388607
        %v5312 = vor.u32 %v5311, 8388608
        %v5313 = vsub.s32 0, %v5312
        %v5314 = vadd.s32 %v5309, 1
        %vm5315 = vcmp.gt.s32.totalorder %v5314, 0
        %v5316 = vsel %vm5315, %v5314, 0
        %v5317 = vshrl.u32 %v5316, 5
        %v5318 = vand.u32 %v5316, 31
        %v5319 = vsub.s32 32, %v5318
        %v5320 = vshrl.u32 683565275, %v5319
        %v5321 = vshll.u32 683565275, %v5318
        %v5322 = vshrl.u32 2475754826, %v5319
        %v5323 = vor.u32 %v5321, %v5322
        %v5324 = vshll.u32 2475754826, %v5318
        %v5325 = vshrl.u32 2131351028, %v5319
        %v5326 = vor.u32 %v5324, %v5325
        %v5327 = vshll.u32 2131351028, %v5318
        %v5328 = vshrl.u32 2102212464, %v5319
        %v5329 = vor.u32 %v5327, %v5328
        %v5330 = vshll.u32 2102212464, %v5318
        %v5331 = vshrl.u32 920167782, %v5319
        %v5332 = vor.u32 %v5330, %v5331
        %v5333 = vshll.u32 920167782, %v5318
        %v5334 = vshrl.u32 1326507024, %v5319
        %v5335 = vor.u32 %v5333, %v5334
        %vm5336 = vcmp.lt.s32.totalorder %v5317, 1
        %vm5337 = vcmp.lt.s32.totalorder %v5317, 2
        %vm5338 = vcmp.lt.s32.totalorder %v5317, 3
        %vm5339 = vcmp.lt.s32.totalorder %v5317, 4
        %v5340 = vsel %vm5336, %v5320, %v5323
        %v5341 = vsel %vm5339, %v5329, 2102212464
        %v5342 = vsel %vm5338, %v5326, %v5341
        %v5343 = vsel %vm5337, %v5340, %v5342
        %v5344 = vsel %vm5336, %v5323, %v5326
        %v5345 = vsel %vm5339, %v5332, 920167782
        %v5346 = vsel %vm5338, %v5329, %v5345
        %v5347 = vsel %vm5337, %v5344, %v5346
        %v5348 = vsel %vm5336, %v5326, %v5329
        %v5349 = vsel %vm5339, %v5335, 1326507024
        %v5350 = vsel %vm5338, %v5332, %v5349
        %v5351 = vsel %vm5337, %v5348, %v5350
        %v5352 = vshll.u32 %v5312, 8
        %v5353 = vmul.u32.u64.compose %v5352, %v5351
        %v5354 = vextract.low.u32 %v5353
        %v5355 = vextract.high.u32 %v5353
        %v5356 = vmul.u32.u64.compose %v5352, %v5347
        %v5357 = vextract.low.u32 %v5356
        %v5358 = vextract.high.u32 %v5356
        %v5359 = vmul.u32 %v5352, %v5343
        %v5360 = vadd.s32 %v5355, %v5357
        %vm5361 = vc.u32 %v5355, %v5357
        %v5362 = vadd.s32 %v5358, 1
        %v5363 = vsel %vm5361, %v5362, %v5358
        %v5364 = vadd.s32 %v5359, %v5363
        %v5365 = vadd.s32 %v5364, 536870912
        %v5366 = vshrl.u32 %v5365, 30
        %v5367 = vshll.u32 %v5366, 30
        %v5368 = vsub.s32 %v5364, %v5367
        %vm5369 = vcmp.lt.s32.totalorder %v5368, 0
        %v5370 = vsub.s32 0, %v5368
        %v5371 = vsel %vm5369, %v5370, %v5368
        %v5372 = vclz %v5371
        %v5373 = vsub.s32 %v5372, 2
        %vm5374 = vcmp.gt.s32.totalorder 0, %v5373
        %v5375 = vsel %vm5374, 0, %v5373
        %v5376 = vsub.s32 32, %v5375
        %v5377 = vshll.u32 %v5368, %v5375
        %v5378 = vshrl.u32 %v5360, %v5376
        %v5379 = vor.u32 %v5377, %v5378
        %v5380 = vsub.s32 4294967266, %v5375
        %v5381 = vadd.s32 %v5380, 127
        %v5382 = vshll.u32 %v5381, 23
        %v5383 = vor.u32 4788187, %v5382
        %v5384 = vand.u32 2147483647, %v5383
        %v5386 = vcvt.s32.f32 %v5379
        %v5387 = vmul.f32 %v5386, %v5384
        %v5388 = vxor.u32 %v5387, 2147483648
        %v5389 = vsel %vm5306, %v5388, %v5387
        %v5390 = vsub.s32 4, %v5366
        %v5391 = vsel %vm5306, %v5390, %v5366
        %v5392 = vsel %vm5305, %v4562, %v5389
        %v5393 = vsel %vm5305, 0, %v5391
        %v5394 = vcosq.f32.pop %v5392
        %v5395 = vsinq.f32.pop %v5392
        %vm5396 = vweird.f32 %v4562
        %v5397 = vadd.s32 %v5393, 3
        %v5398 = vand.u32 %v5397, 3
        %vm5399 = vcmp.lt.s32.totalorder %v5398, 2
        %vm5400 = vcmp.eq.s32.totalorder %v5398, 0
        %v5401 = vxor.u32 %v5395, 2147483648
        %v5402 = vsel %vm5400, %v5394, %v5401
        %vm5403 = vcmp.eq.s32.totalorder %v5398, 2
        %v5404 = vxor.u32 %v5394, 2147483648
        %v5405 = vsel %vm5403, %v5404, %v5395
        %v5406 = vsel %vm5399, %v5402, %v5405
        %v5407 = vsel %vm5396, nan, %v5406
        %v5408 = vand.u32 2147483647, %v4477
        %vm5409 = vcmp.le.f32.partialorder %v5408, 0.7853982
        %vm5410 = vcmp.lt.s32.totalorder %v4477, 0
        %v5411 = vand.u32 %v4477, 2139095040
        %v5412 = vshrl.u32 %v5411, 23
        %v5413 = vsub.s32 %v5412, 127
        %v5414 = vand.u32 2147483647, %v4477
        %v5415 = vand.u32 %v5414, 8388607
        %v5416 = vor.u32 %v5415, 8388608
        %v5417 = vsub.s32 0, %v5416
        %v5418 = vadd.s32 %v5413, 1
        %vm5419 = vcmp.gt.s32.totalorder %v5418, 0
        %v5420 = vsel %vm5419, %v5418, 0
        %v5421 = vshrl.u32 %v5420, 5
        %v5422 = vand.u32 %v5420, 31
        %v5423 = vsub.s32 32, %v5422
        %v5424 = vshrl.u32 683565275, %v5423
        %v5425 = vshll.u32 683565275, %v5422
        %v5426 = vshrl.u32 2475754826, %v5423
        %v5427 = vor.u32 %v5425, %v5426
        %v5428 = vshll.u32 2475754826, %v5422
        %v5429 = vshrl.u32 2131351028, %v5423
        %v5430 = vor.u32 %v5428, %v5429
        %v5431 = vshll.u32 2131351028, %v5422
        %v5432 = vshrl.u32 2102212464, %v5423
        %v5433 = vor.u32 %v5431, %v5432
        %v5434 = vshll.u32 2102212464, %v5422
        %v5435 = vshrl.u32 920167782, %v5423
        %v5436 = vor.u32 %v5434, %v5435
        %v5437 = vshll.u32 920167782, %v5422
        %v5438 = vshrl.u32 1326507024, %v5423
        %v5439 = vor.u32 %v5437, %v5438
        %vm5440 = vcmp.lt.s32.totalorder %v5421, 1
        %vm5441 = vcmp.lt.s32.totalorder %v5421, 2
        %vm5442 = vcmp.lt.s32.totalorder %v5421, 3
        %vm5443 = vcmp.lt.s32.totalorder %v5421, 4
        %v5444 = vsel %vm5440, %v5424, %v5427
        %v5445 = vsel %vm5443, %v5433, 2102212464
        %v5446 = vsel %vm5442, %v5430, %v5445
        %v5447 = vsel %vm5441, %v5444, %v5446
        %v5448 = vsel %vm5440, %v5427, %v5430
        %v5449 = vsel %vm5443, %v5436, 920167782
        %v5450 = vsel %vm5442, %v5433, %v5449
        %v5451 = vsel %vm5441, %v5448, %v5450
        %v5452 = vsel %vm5440, %v5430, %v5433
        %v5453 = vsel %vm5443, %v5439, 1326507024
        %v5454 = vsel %vm5442, %v5436, %v5453
        %v5455 = vsel %vm5441, %v5452, %v5454
        %v5456 = vshll.u32 %v5416, 8
        %v5457 = vmul.u32.u64.compose %v5456, %v5455
        %v5458 = vextract.low.u32 %v5457
        %v5459 = vextract.high.u32 %v5457
        %v5460 = vmul.u32.u64.compose %v5456, %v5451
        %v5461 = vextract.low.u32 %v5460
        %v5462 = vextract.high.u32 %v5460
        %v5463 = vmul.u32 %v5456, %v5447
        %v5464 = vadd.s32 %v5459, %v5461
        %vm5465 = vc.u32 %v5459, %v5461
        %v5466 = vadd.s32 %v5462, 1
        %v5467 = vsel %vm5465, %v5466, %v5462
        %v5468 = vadd.s32 %v5463, %v5467
        %v5469 = vadd.s32 %v5468, 536870912
        %v5470 = vshrl.u32 %v5469, 30
        %v5471 = vshll.u32 %v5470, 30
        %v5472 = vsub.s32 %v5468, %v5471
        %vm5473 = vcmp.lt.s32.totalorder %v5472, 0
        %v5474 = vsub.s32 0, %v5472
        %v5475 = vsel %vm5473, %v5474, %v5472
        %v5476 = vclz %v5475
        %v5477 = vsub.s32 %v5476, 2
        %vm5478 = vcmp.gt.s32.totalorder 0, %v5477
        %v5479 = vsel %vm5478, 0, %v5477
        %v5480 = vsub.s32 32, %v5479
        %v5481 = vshll.u32 %v5472, %v5479
        %v5482 = vshrl.u32 %v5464, %v5480
        %v5483 = vor.u32 %v5481, %v5482
        %v5484 = vsub.s32 4294967266, %v5479
        %v5485 = vadd.s32 %v5484, 127
        %v5486 = vshll.u32 %v5485, 23
        %v5487 = vor.u32 4788187, %v5486
        %v5488 = vand.u32 2147483647, %v5487
        %v5490 = vcvt.s32.f32 %v5483
        %v5491 = vmul.f32 %v5490, %v5488
        %v5492 = vxor.u32 %v5491, 2147483648
        %v5493 = vsel %vm5410, %v5492, %v5491
        %v5494 = vsub.s32 4, %v5470
        %v5495 = vsel %vm5410, %v5494, %v5470
        %v5496 = vsel %vm5409, %v4477, %v5493
        %v5497 = vsel %vm5409, 0, %v5495
        %v5498 = vcosq.f32.pop %v5496
        %v5499 = vsinq.f32.pop %v5496
        %vm5500 = vweird.f32 %v4477
        %v5501 = vadd.s32 %v5497, 3
        %v5502 = vand.u32 %v5501, 3
        %vm5503 = vcmp.lt.s32.totalorder %v5502, 2
        %vm5504 = vcmp.eq.s32.totalorder %v5502, 0
        %v5505 = vxor.u32 %v5499, 2147483648
        %v5506 = vsel %vm5504, %v5498, %v5505
        %vm5507 = vcmp.eq.s32.totalorder %v5502, 2
        %v5508 = vxor.u32 %v5498, 2147483648
        %v5509 = vsel %vm5507, %v5508, %v5499
        %v5510 = vsel %vm5503, %v5506, %v5509
        %v5511 = vsel %vm5500, nan, %v5510
        %v5512 = vand.u32 2147483647, %v4479
        %vm5513 = vcmp.le.f32.partialorder %v5512, 0.7853982
        %vm5514 = vcmp.lt.s32.totalorder %v4479, 0
        %v5515 = vand.u32 %v4479, 2139095040
        %v5516 = vshrl.u32 %v5515, 23
        %v5517 = vsub.s32 %v5516, 127
        %v5518 = vand.u32 2147483647, %v4479
        %v5519 = vand.u32 %v5518, 8388607
        %v5520 = vor.u32 %v5519, 8388608
        %v5521 = vsub.s32 0, %v5520
        %v5522 = vadd.s32 %v5517, 1
        %vm5523 = vcmp.gt.s32.totalorder %v5522, 0
        %v5524 = vsel %vm5523, %v5522, 0
        %v5525 = vshrl.u32 %v5524, 5
        %v5526 = vand.u32 %v5524, 31
        %v5527 = vsub.s32 32, %v5526
        %v5528 = vshrl.u32 683565275, %v5527
        %v5529 = vshll.u32 683565275, %v5526
        %v5530 = vshrl.u32 2475754826, %v5527
        %v5531 = vor.u32 %v5529, %v5530
        %v5532 = vshll.u32 2475754826, %v5526
        %v5533 = vshrl.u32 2131351028, %v5527
        %v5534 = vor.u32 %v5532, %v5533
        %v5535 = vshll.u32 2131351028, %v5526
        %v5536 = vshrl.u32 2102212464, %v5527
        %v5537 = vor.u32 %v5535, %v5536
        %v5538 = vshll.u32 2102212464, %v5526
        %v5539 = vshrl.u32 920167782, %v5527
        %v5540 = vor.u32 %v5538, %v5539
        %v5541 = vshll.u32 920167782, %v5526
        %v5542 = vshrl.u32 1326507024, %v5527
        %v5543 = vor.u32 %v5541, %v5542
        %vm5544 = vcmp.lt.s32.totalorder %v5525, 1
        %vm5545 = vcmp.lt.s32.totalorder %v5525, 2
        %vm5546 = vcmp.lt.s32.totalorder %v5525, 3
        %vm5547 = vcmp.lt.s32.totalorder %v5525, 4
        %v5548 = vsel %vm5544, %v5528, %v5531
        %v5549 = vsel %vm5547, %v5537, 2102212464
        %v5550 = vsel %vm5546, %v5534, %v5549
        %v5551 = vsel %vm5545, %v5548, %v5550
        %v5552 = vsel %vm5544, %v5531, %v5534
        %v5553 = vsel %vm5547, %v5540, 920167782
        %v5554 = vsel %vm5546, %v5537, %v5553
        %v5555 = vsel %vm5545, %v5552, %v5554
        %v5556 = vsel %vm5544, %v5534, %v5537
        %v5557 = vsel %vm5547, %v5543, 1326507024
        %v5558 = vsel %vm5546, %v5540, %v5557
        %v5559 = vsel %vm5545, %v5556, %v5558
        %v5560 = vshll.u32 %v5520, 8
        %v5561 = vmul.u32.u64.compose %v5560, %v5559
        %v5562 = vextract.low.u32 %v5561
        %v5563 = vextract.high.u32 %v5561
        %v5564 = vmul.u32.u64.compose %v5560, %v5555
        %v5565 = vextract.low.u32 %v5564
        %v5566 = vextract.high.u32 %v5564
        %v5567 = vmul.u32 %v5560, %v5551
        %v5568 = vadd.s32 %v5563, %v5565
        %vm5569 = vc.u32 %v5563, %v5565
        %v5570 = vadd.s32 %v5566, 1
        %v5571 = vsel %vm5569, %v5570, %v5566
        %v5572 = vadd.s32 %v5567, %v5571
        %v5573 = vadd.s32 %v5572, 536870912
        %v5574 = vshrl.u32 %v5573, 30
        %v5575 = vshll.u32 %v5574, 30
        %v5576 = vsub.s32 %v5572, %v5575
        %vm5577 = vcmp.lt.s32.totalorder %v5576, 0
        %v5578 = vsub.s32 0, %v5576
        %v5579 = vsel %vm5577, %v5578, %v5576
        %v5580 = vclz %v5579
        %v5581 = vsub.s32 %v5580, 2
        %vm5582 = vcmp.gt.s32.totalorder 0, %v5581
        %v5583 = vsel %vm5582, 0, %v5581
        %v5584 = vsub.s32 32, %v5583
        %v5585 = vshll.u32 %v5576, %v5583
        %v5586 = vshrl.u32 %v5568, %v5584
        %v5587 = vor.u32 %v5585, %v5586
        %v5588 = vsub.s32 4294967266, %v5583
        %v5589 = vadd.s32 %v5588, 127
        %v5590 = vshll.u32 %v5589, 23
        %v5591 = vor.u32 4788187, %v5590
        %v5592 = vand.u32 2147483647, %v5591
        %v5594 = vcvt.s32.f32 %v5587
        %v5595 = vmul.f32 %v5594, %v5592
        %v5596 = vxor.u32 %v5595, 2147483648
        %v5597 = vsel %vm5514, %v5596, %v5595
        %v5598 = vsub.s32 4, %v5574
        %v5599 = vsel %vm5514, %v5598, %v5574
        %v5600 = vsel %vm5513, %v4479, %v5597
        %v5601 = vsel %vm5513, 0, %v5599
        %v5602 = vcosq.f32.pop %v5600
        %v5603 = vsinq.f32.pop %v5600
        %vm5604 = vweird.f32 %v4479
        %v5605 = vadd.s32 %v5601, 3
        %v5606 = vand.u32 %v5605, 3
        %vm5607 = vcmp.lt.s32.totalorder %v5606, 2
        %vm5608 = vcmp.eq.s32.totalorder %v5606, 0
        %v5609 = vxor.u32 %v5603, 2147483648
        %v5610 = vsel %vm5608, %v5602, %v5609
        %vm5611 = vcmp.eq.s32.totalorder %v5606, 2
        %v5612 = vxor.u32 %v5602, 2147483648
        %v5613 = vsel %vm5611, %v5612, %v5603
        %v5614 = vsel %vm5607, %v5610, %v5613
        %v5615 = vsel %vm5604, nan, %v5614
        %v5616 = vand.u32 2147483647, %v4566
        %vm5617 = vcmp.le.f32.partialorder %v5616, 0.7853982
        %vm5618 = vcmp.lt.s32.totalorder %v4566, 0
        %v5619 = vand.u32 %v4566, 2139095040
        %v5620 = vshrl.u32 %v5619, 23
        %v5621 = vsub.s32 %v5620, 127
        %v5622 = vand.u32 2147483647, %v4566
        %v5623 = vand.u32 %v5622, 8388607
        %v5624 = vor.u32 %v5623, 8388608
        %v5625 = vsub.s32 0, %v5624
        %v5626 = vadd.s32 %v5621, 1
        %vm5627 = vcmp.gt.s32.totalorder %v5626, 0
        %v5628 = vsel %vm5627, %v5626, 0
        %v5629 = vshrl.u32 %v5628, 5
        %v5630 = vand.u32 %v5628, 31
        %v5631 = vsub.s32 32, %v5630
        %v5632 = vshrl.u32 683565275, %v5631
        %v5633 = vshll.u32 683565275, %v5630
        %v5634 = vshrl.u32 2475754826, %v5631
        %v5635 = vor.u32 %v5633, %v5634
        %v5636 = vshll.u32 2475754826, %v5630
        %v5637 = vshrl.u32 2131351028, %v5631
        %v5638 = vor.u32 %v5636, %v5637
        %v5639 = vshll.u32 2131351028, %v5630
        %v5640 = vshrl.u32 2102212464, %v5631
        %v5641 = vor.u32 %v5639, %v5640
        %v5642 = vshll.u32 2102212464, %v5630
        %v5643 = vshrl.u32 920167782, %v5631
        %v5644 = vor.u32 %v5642, %v5643
        %v5645 = vshll.u32 920167782, %v5630
        %v5646 = vshrl.u32 1326507024, %v5631
        %v5647 = vor.u32 %v5645, %v5646
        %vm5648 = vcmp.lt.s32.totalorder %v5629, 1
        %vm5649 = vcmp.lt.s32.totalorder %v5629, 2
        %vm5650 = vcmp.lt.s32.totalorder %v5629, 3
        %vm5651 = vcmp.lt.s32.totalorder %v5629, 4
        %v5652 = vsel %vm5648, %v5632, %v5635
        %v5653 = vsel %vm5651, %v5641, 2102212464
        %v5654 = vsel %vm5650, %v5638, %v5653
        %v5655 = vsel %vm5649, %v5652, %v5654
        %v5656 = vsel %vm5648, %v5635, %v5638
        %v5657 = vsel %vm5651, %v5644, 920167782
        %v5658 = vsel %vm5650, %v5641, %v5657
        %v5659 = vsel %vm5649, %v5656, %v5658
        %v5660 = vsel %vm5648, %v5638, %v5641
        %v5661 = vsel %vm5651, %v5647, 1326507024
        %v5662 = vsel %vm5650, %v5644, %v5661
        %v5663 = vsel %vm5649, %v5660, %v5662
        %v5664 = vshll.u32 %v5624, 8
        %v5665 = vmul.u32.u64.compose %v5664, %v5663
        %v5666 = vextract.low.u32 %v5665
        %v5667 = vextract.high.u32 %v5665
        %v5668 = vmul.u32.u64.compose %v5664, %v5659
        %v5669 = vextract.low.u32 %v5668
        %v5670 = vextract.high.u32 %v5668
        %v5671 = vmul.u32 %v5664, %v5655
        %v5672 = vadd.s32 %v5667, %v5669
        %vm5673 = vc.u32 %v5667, %v5669
        %v5674 = vadd.s32 %v5670, 1
        %v5675 = vsel %vm5673, %v5674, %v5670
        %v5676 = vadd.s32 %v5671, %v5675
        %v5677 = vadd.s32 %v5676, 536870912
        %v5678 = vshrl.u32 %v5677, 30
        %v5679 = vshll.u32 %v5678, 30
        %v5680 = vsub.s32 %v5676, %v5679
        %vm5681 = vcmp.lt.s32.totalorder %v5680, 0
        %v5682 = vsub.s32 0, %v5680
        %v5683 = vsel %vm5681, %v5682, %v5680
        %v5684 = vclz %v5683
        %v5685 = vsub.s32 %v5684, 2
        %vm5686 = vcmp.gt.s32.totalorder 0, %v5685
        %v5687 = vsel %vm5686, 0, %v5685
        %v5688 = vsub.s32 32, %v5687
        %v5689 = vshll.u32 %v5680, %v5687
        %v5690 = vshrl.u32 %v5672, %v5688
        %v5691 = vor.u32 %v5689, %v5690
        %v5692 = vsub.s32 4294967266, %v5687
        %v5693 = vadd.s32 %v5692, 127
        %v5694 = vshll.u32 %v5693, 23
        %v5695 = vor.u32 4788187, %v5694
        %v5696 = vand.u32 2147483647, %v5695
        %v5698 = vcvt.s32.f32 %v5691
        %v5699 = vmul.f32 %v5698, %v5696
        %v5700 = vxor.u32 %v5699, 2147483648
        %v5701 = vsel %vm5618, %v5700, %v5699
        %v5702 = vsub.s32 4, %v5678
        %v5703 = vsel %vm5618, %v5702, %v5678
        %v5704 = vsel %vm5617, %v4566, %v5701
        %v5705 = vsel %vm5617, 0, %v5703
        %v5706 = vcosq.f32.pop %v5704
        %v5707 = vsinq.f32.pop %v5704
        %vm5708 = vweird.f32 %v4566
        %v5709 = vadd.s32 %v5705, 3
        %v5710 = vand.u32 %v5709, 3
        %vm5711 = vcmp.lt.s32.totalorder %v5710, 2
        %vm5712 = vcmp.eq.s32.totalorder %v5710, 0
        %v5713 = vxor.u32 %v5707, 2147483648
        %v5714 = vsel %vm5712, %v5706, %v5713
        %vm5715 = vcmp.eq.s32.totalorder %v5710, 2
        %v5716 = vxor.u32 %v5706, 2147483648
        %v5717 = vsel %vm5715, %v5716, %v5707
        %v5718 = vsel %vm5711, %v5714, %v5717
        %v5719 = vsel %vm5708, nan, %v5718
        %v5720 = vand.u32 2147483647, %v4568
        %vm5721 = vcmp.le.f32.partialorder %v5720, 0.7853982
        %vm5722 = vcmp.lt.s32.totalorder %v4568, 0
        %v5723 = vand.u32 %v4568, 2139095040
        %v5724 = vshrl.u32 %v5723, 23
        %v5725 = vsub.s32 %v5724, 127
        %v5726 = vand.u32 2147483647, %v4568
        %v5727 = vand.u32 %v5726, 8388607
        %v5728 = vor.u32 %v5727, 8388608
        %v5729 = vsub.s32 0, %v5728
        %v5730 = vadd.s32 %v5725, 1
        %vm5731 = vcmp.gt.s32.totalorder %v5730, 0
        %v5732 = vsel %vm5731, %v5730, 0
        %v5733 = vshrl.u32 %v5732, 5
        %v5734 = vand.u32 %v5732, 31
        %v5735 = vsub.s32 32, %v5734
        %v5736 = vshrl.u32 683565275, %v5735
        %v5737 = vshll.u32 683565275, %v5734
        %v5738 = vshrl.u32 2475754826, %v5735
        %v5739 = vor.u32 %v5737, %v5738
        %v5740 = vshll.u32 2475754826, %v5734
        %v5741 = vshrl.u32 2131351028, %v5735
        %v5742 = vor.u32 %v5740, %v5741
        %v5743 = vshll.u32 2131351028, %v5734
        %v5744 = vshrl.u32 2102212464, %v5735
        %v5745 = vor.u32 %v5743, %v5744
        %v5746 = vshll.u32 2102212464, %v5734
        %v5747 = vshrl.u32 920167782, %v5735
        %v5748 = vor.u32 %v5746, %v5747
        %v5749 = vshll.u32 920167782, %v5734
        %v5750 = vshrl.u32 1326507024, %v5735
        %v5751 = vor.u32 %v5749, %v5750
        %vm5752 = vcmp.lt.s32.totalorder %v5733, 1
        %vm5753 = vcmp.lt.s32.totalorder %v5733, 2
        %vm5754 = vcmp.lt.s32.totalorder %v5733, 3
        %vm5755 = vcmp.lt.s32.totalorder %v5733, 4
        %v5756 = vsel %vm5752, %v5736, %v5739
        %v5757 = vsel %vm5755, %v5745, 2102212464
        %v5758 = vsel %vm5754, %v5742, %v5757
        %v5759 = vsel %vm5753, %v5756, %v5758
        %v5760 = vsel %vm5752, %v5739, %v5742
        %v5761 = vsel %vm5755, %v5748, 920167782
        %v5762 = vsel %vm5754, %v5745, %v5761
        %v5763 = vsel %vm5753, %v5760, %v5762
        %v5764 = vsel %vm5752, %v5742, %v5745
        %v5765 = vsel %vm5755, %v5751, 1326507024
        %v5766 = vsel %vm5754, %v5748, %v5765
        %v5767 = vsel %vm5753, %v5764, %v5766
        %v5768 = vshll.u32 %v5728, 8
        %v5769 = vmul.u32.u64.compose %v5768, %v5767
        %v5770 = vextract.low.u32 %v5769
        %v5771 = vextract.high.u32 %v5769
        %v5772 = vmul.u32.u64.compose %v5768, %v5763
        %v5773 = vextract.low.u32 %v5772
        %v5774 = vextract.high.u32 %v5772
        %v5775 = vmul.u32 %v5768, %v5759
        %v5776 = vadd.s32 %v5771, %v5773
        %vm5777 = vc.u32 %v5771, %v5773
        %v5778 = vadd.s32 %v5774, 1
        %v5779 = vsel %vm5777, %v5778, %v5774
        %v5780 = vadd.s32 %v5775, %v5779
        %v5781 = vadd.s32 %v5780, 536870912
        %v5782 = vshrl.u32 %v5781, 30
        %v5783 = vshll.u32 %v5782, 30
        %v5784 = vsub.s32 %v5780, %v5783
        %vm5785 = vcmp.lt.s32.totalorder %v5784, 0
        %v5786 = vsub.s32 0, %v5784
        %v5787 = vsel %vm5785, %v5786, %v5784
        %v5788 = vclz %v5787
        %v5789 = vsub.s32 %v5788, 2
        %vm5790 = vcmp.gt.s32.totalorder 0, %v5789
        %v5791 = vsel %vm5790, 0, %v5789
        %v5792 = vsub.s32 32, %v5791
        %v5793 = vshll.u32 %v5784, %v5791
        %v5794 = vshrl.u32 %v5776, %v5792
        %v5795 = vor.u32 %v5793, %v5794
        %v5796 = vsub.s32 4294967266, %v5791
        %v5797 = vadd.s32 %v5796, 127
        %v5798 = vshll.u32 %v5797, 23
        %v5799 = vor.u32 4788187, %v5798
        %v5800 = vand.u32 2147483647, %v5799
        %v5802 = vcvt.s32.f32 %v5795
        %v5803 = vmul.f32 %v5802, %v5800
        %v5804 = vxor.u32 %v5803, 2147483648
        %v5805 = vsel %vm5722, %v5804, %v5803
        %v5806 = vsub.s32 4, %v5782
        %v5807 = vsel %vm5722, %v5806, %v5782
        %v5808 = vsel %vm5721, %v4568, %v5805
        %v5809 = vsel %vm5721, 0, %v5807
        %v5810 = vcosq.f32.pop %v5808
        %v5811 = vsinq.f32.pop %v5808
        %vm5812 = vweird.f32 %v4568
        %v5813 = vadd.s32 %v5809, 3
        %v5814 = vand.u32 %v5813, 3
        %vm5815 = vcmp.lt.s32.totalorder %v5814, 2
        %vm5816 = vcmp.eq.s32.totalorder %v5814, 0
        %v5817 = vxor.u32 %v5811, 2147483648
        %v5818 = vsel %vm5816, %v5810, %v5817
        %vm5819 = vcmp.eq.s32.totalorder %v5814, 2
        %v5820 = vxor.u32 %v5810, 2147483648
        %v5821 = vsel %vm5819, %v5820, %v5811
        %v5822 = vsel %vm5815, %v5818, %v5821
        %v5823 = vsel %vm5812, nan, %v5822
        %v5824 = vand.u32 2147483647, %v4483
        %vm5825 = vcmp.le.f32.partialorder %v5824, 0.7853982
        %vm5826 = vcmp.lt.s32.totalorder %v4483, 0
        %v5827 = vand.u32 %v4483, 2139095040
        %v5828 = vshrl.u32 %v5827, 23
        %v5829 = vsub.s32 %v5828, 127
        %v5830 = vand.u32 2147483647, %v4483
        %v5831 = vand.u32 %v5830, 8388607
        %v5832 = vor.u32 %v5831, 8388608
        %v5833 = vsub.s32 0, %v5832
        %v5834 = vadd.s32 %v5829, 1
        %vm5835 = vcmp.gt.s32.totalorder %v5834, 0
        %v5836 = vsel %vm5835, %v5834, 0
        %v5837 = vshrl.u32 %v5836, 5
        %v5838 = vand.u32 %v5836, 31
        %v5839 = vsub.s32 32, %v5838
        %v5840 = vshrl.u32 683565275, %v5839
        %v5841 = vshll.u32 683565275, %v5838
        %v5842 = vshrl.u32 2475754826, %v5839
        %v5843 = vor.u32 %v5841, %v5842
        %v5844 = vshll.u32 2475754826, %v5838
        %v5845 = vshrl.u32 2131351028, %v5839
        %v5846 = vor.u32 %v5844, %v5845
        %v5847 = vshll.u32 2131351028, %v5838
        %v5848 = vshrl.u32 2102212464, %v5839
        %v5849 = vor.u32 %v5847, %v5848
        %v5850 = vshll.u32 2102212464, %v5838
        %v5851 = vshrl.u32 920167782, %v5839
        %v5852 = vor.u32 %v5850, %v5851
        %v5853 = vshll.u32 920167782, %v5838
        %v5854 = vshrl.u32 1326507024, %v5839
        %v5855 = vor.u32 %v5853, %v5854
        %vm5856 = vcmp.lt.s32.totalorder %v5837, 1
        %vm5857 = vcmp.lt.s32.totalorder %v5837, 2
        %vm5858 = vcmp.lt.s32.totalorder %v5837, 3
        %vm5859 = vcmp.lt.s32.totalorder %v5837, 4
        %v5860 = vsel %vm5856, %v5840, %v5843
        %v5861 = vsel %vm5859, %v5849, 2102212464
        %v5862 = vsel %vm5858, %v5846, %v5861
        %v5863 = vsel %vm5857, %v5860, %v5862
        %v5864 = vsel %vm5856, %v5843, %v5846
        %v5865 = vsel %vm5859, %v5852, 920167782
        %v5866 = vsel %vm5858, %v5849, %v5865
        %v5867 = vsel %vm5857, %v5864, %v5866
        %v5868 = vsel %vm5856, %v5846, %v5849
        %v5869 = vsel %vm5859, %v5855, 1326507024
        %v5870 = vsel %vm5858, %v5852, %v5869
        %v5871 = vsel %vm5857, %v5868, %v5870
        %v5872 = vshll.u32 %v5832, 8
        %v5873 = vmul.u32.u64.compose %v5872, %v5871
        %v5874 = vextract.low.u32 %v5873
        %v5875 = vextract.high.u32 %v5873
        %v5876 = vmul.u32.u64.compose %v5872, %v5867
        %v5877 = vextract.low.u32 %v5876
        %v5878 = vextract.high.u32 %v5876
        %v5879 = vmul.u32 %v5872, %v5863
        %v5880 = vadd.s32 %v5875, %v5877
        %vm5881 = vc.u32 %v5875, %v5877
        %v5882 = vadd.s32 %v5878, 1
        %v5883 = vsel %vm5881, %v5882, %v5878
        %v5884 = vadd.s32 %v5879, %v5883
        %v5885 = vadd.s32 %v5884, 536870912
        %v5886 = vshrl.u32 %v5885, 30
        %v5887 = vshll.u32 %v5886, 30
        %v5888 = vsub.s32 %v5884, %v5887
        %vm5889 = vcmp.lt.s32.totalorder %v5888, 0
        %v5890 = vsub.s32 0, %v5888
        %v5891 = vsel %vm5889, %v5890, %v5888
        %v5892 = vclz %v5891
        %v5893 = vsub.s32 %v5892, 2
        %vm5894 = vcmp.gt.s32.totalorder 0, %v5893
        %v5895 = vsel %vm5894, 0, %v5893
        %v5896 = vsub.s32 32, %v5895
        %v5897 = vshll.u32 %v5888, %v5895
        %v5898 = vshrl.u32 %v5880, %v5896
        %v5899 = vor.u32 %v5897, %v5898
        %v5900 = vsub.s32 4294967266, %v5895
        %v5901 = vadd.s32 %v5900, 127
        %v5902 = vshll.u32 %v5901, 23
        %v5903 = vor.u32 4788187, %v5902
        %v5904 = vand.u32 2147483647, %v5903
        %v5906 = vcvt.s32.f32 %v5899
        %v5907 = vmul.f32 %v5906, %v5904
        %v5908 = vxor.u32 %v5907, 2147483648
        %v5909 = vsel %vm5826, %v5908, %v5907
        %v5910 = vsub.s32 4, %v5886
        %v5911 = vsel %vm5826, %v5910, %v5886
        %v5912 = vsel %vm5825, %v4483, %v5909
        %v5913 = vsel %vm5825, 0, %v5911
        %v5914 = vcosq.f32.pop %v5912
        %v5915 = vsinq.f32.pop %v5912
        %vm5916 = vweird.f32 %v4483
        %v5917 = vadd.s32 %v5913, 3
        %v5918 = vand.u32 %v5917, 3
        %vm5919 = vcmp.lt.s32.totalorder %v5918, 2
        %vm5920 = vcmp.eq.s32.totalorder %v5918, 0
        %v5921 = vxor.u32 %v5915, 2147483648
        %v5922 = vsel %vm5920, %v5914, %v5921
        %vm5923 = vcmp.eq.s32.totalorder %v5918, 2
        %v5924 = vxor.u32 %v5914, 2147483648
        %v5925 = vsel %vm5923, %v5924, %v5915
        %v5926 = vsel %vm5919, %v5922, %v5925
        %v5927 = vsel %vm5916, nan, %v5926
        %v5928 = vand.u32 2147483647, %v4485
        %vm5929 = vcmp.le.f32.partialorder %v5928, 0.7853982
        %vm5930 = vcmp.lt.s32.totalorder %v4485, 0
        %v5931 = vand.u32 %v4485, 2139095040
        %v5932 = vshrl.u32 %v5931, 23
        %v5933 = vsub.s32 %v5932, 127
        %v5934 = vand.u32 2147483647, %v4485
        %v5935 = vand.u32 %v5934, 8388607
        %v5936 = vor.u32 %v5935, 8388608
        %v5937 = vsub.s32 0, %v5936
        %v5938 = vadd.s32 %v5933, 1
        %vm5939 = vcmp.gt.s32.totalorder %v5938, 0
        %v5940 = vsel %vm5939, %v5938, 0
        %v5941 = vshrl.u32 %v5940, 5
        %v5942 = vand.u32 %v5940, 31
        %v5943 = vsub.s32 32, %v5942
        %v5944 = vshrl.u32 683565275, %v5943
        %v5945 = vshll.u32 683565275, %v5942
        %v5946 = vshrl.u32 2475754826, %v5943
        %v5947 = vor.u32 %v5945, %v5946
        %v5948 = vshll.u32 2475754826, %v5942
        %v5949 = vshrl.u32 2131351028, %v5943
        %v5950 = vor.u32 %v5948, %v5949
        %v5951 = vshll.u32 2131351028, %v5942
        %v5952 = vshrl.u32 2102212464, %v5943
        %v5953 = vor.u32 %v5951, %v5952
        %v5954 = vshll.u32 2102212464, %v5942
        %v5955 = vshrl.u32 920167782, %v5943
        %v5956 = vor.u32 %v5954, %v5955
        %v5957 = vshll.u32 920167782, %v5942
        %v5958 = vshrl.u32 1326507024, %v5943
        %v5959 = vor.u32 %v5957, %v5958
        %vm5960 = vcmp.lt.s32.totalorder %v5941, 1
        %vm5961 = vcmp.lt.s32.totalorder %v5941, 2
        %vm5962 = vcmp.lt.s32.totalorder %v5941, 3
        %vm5963 = vcmp.lt.s32.totalorder %v5941, 4
        %v5964 = vsel %vm5960, %v5944, %v5947
        %v5965 = vsel %vm5963, %v5953, 2102212464
        %v5966 = vsel %vm5962, %v5950, %v5965
        %v5967 = vsel %vm5961, %v5964, %v5966
        %v5968 = vsel %vm5960, %v5947, %v5950
        %v5969 = vsel %vm5963, %v5956, 920167782
        %v5970 = vsel %vm5962, %v5953, %v5969
        %v5971 = vsel %vm5961, %v5968, %v5970
        %v5972 = vsel %vm5960, %v5950, %v5953
        %v5973 = vsel %vm5963, %v5959, 1326507024
        %v5974 = vsel %vm5962, %v5956, %v5973
        %v5975 = vsel %vm5961, %v5972, %v5974
        %v5976 = vshll.u32 %v5936, 8
        %v5977 = vmul.u32.u64.compose %v5976, %v5975
        %v5978 = vextract.low.u32 %v5977
        %v5979 = vextract.high.u32 %v5977
        %v5980 = vmul.u32.u64.compose %v5976, %v5971
        %v5981 = vextract.low.u32 %v5980
        %v5982 = vextract.high.u32 %v5980
        %v5983 = vmul.u32 %v5976, %v5967
        %v5984 = vadd.s32 %v5979, %v5981
        %vm5985 = vc.u32 %v5979, %v5981
        %v5986 = vadd.s32 %v5982, 1
        %v5987 = vsel %vm5985, %v5986, %v5982
        %v5988 = vadd.s32 %v5983, %v5987
        %v5989 = vadd.s32 %v5988, 536870912
        %v5990 = vshrl.u32 %v5989, 30
        %v5991 = vshll.u32 %v5990, 30
        %v5992 = vsub.s32 %v5988, %v5991
        %vm5993 = vcmp.lt.s32.totalorder %v5992, 0
        %v5994 = vsub.s32 0, %v5992
        %v5995 = vsel %vm5993, %v5994, %v5992
        %v5996 = vclz %v5995
        %v5997 = vsub.s32 %v5996, 2
        %vm5998 = vcmp.gt.s32.totalorder 0, %v5997
        %v5999 = vsel %vm5998, 0, %v5997
        %v6000 = vsub.s32 32, %v5999
        %v6001 = vshll.u32 %v5992, %v5999
        %v6002 = vshrl.u32 %v5984, %v6000
        %v6003 = vor.u32 %v6001, %v6002
        %v6004 = vsub.s32 4294967266, %v5999
        %v6005 = vadd.s32 %v6004, 127
        %v6006 = vshll.u32 %v6005, 23
        %v6007 = vor.u32 4788187, %v6006
        %v6008 = vand.u32 2147483647, %v6007
        %v6010 = vcvt.s32.f32 %v6003
        %v6011 = vmul.f32 %v6010, %v6008
        %v6012 = vxor.u32 %v6011, 2147483648
        %v6013 = vsel %vm5930, %v6012, %v6011
        %v6014 = vsub.s32 4, %v5990
        %v6015 = vsel %vm5930, %v6014, %v5990
        %v6016 = vsel %vm5929, %v4485, %v6013
        %v6017 = vsel %vm5929, 0, %v6015
        %v6018 = vcosq.f32.pop %v6016
        %v6019 = vsinq.f32.pop %v6016
        %vm6020 = vweird.f32 %v4485
        %v6021 = vadd.s32 %v6017, 3
        %v6022 = vand.u32 %v6021, 3
        %vm6023 = vcmp.lt.s32.totalorder %v6022, 2
        %vm6024 = vcmp.eq.s32.totalorder %v6022, 0
        %v6025 = vxor.u32 %v6019, 2147483648
        %v6026 = vsel %vm6024, %v6018, %v6025
        %vm6027 = vcmp.eq.s32.totalorder %v6022, 2
        %v6028 = vxor.u32 %v6018, 2147483648
        %v6029 = vsel %vm6027, %v6028, %v6019
        %v6030 = vsel %vm6023, %v6026, %v6029
        %v6031 = vsel %vm6020, nan, %v6030
        %v6032 = vand.u32 2147483647, %v4572
        %vm6033 = vcmp.le.f32.partialorder %v6032, 0.7853982
        %vm6034 = vcmp.lt.s32.totalorder %v4572, 0
        %v6035 = vand.u32 %v4572, 2139095040
        %v6036 = vshrl.u32 %v6035, 23
        %v6037 = vsub.s32 %v6036, 127
        %v6038 = vand.u32 2147483647, %v4572
        %v6039 = vand.u32 %v6038, 8388607
        %v6040 = vor.u32 %v6039, 8388608
        %v6041 = vsub.s32 0, %v6040
        %v6042 = vadd.s32 %v6037, 1
        %vm6043 = vcmp.gt.s32.totalorder %v6042, 0
        %v6044 = vsel %vm6043, %v6042, 0
        %v6045 = vshrl.u32 %v6044, 5
        %v6046 = vand.u32 %v6044, 31
        %v6047 = vsub.s32 32, %v6046
        %v6048 = vshrl.u32 683565275, %v6047
        %v6049 = vshll.u32 683565275, %v6046
        %v6050 = vshrl.u32 2475754826, %v6047
        %v6051 = vor.u32 %v6049, %v6050
        %v6052 = vshll.u32 2475754826, %v6046
        %v6053 = vshrl.u32 2131351028, %v6047
        %v6054 = vor.u32 %v6052, %v6053
        %v6055 = vshll.u32 2131351028, %v6046
        %v6056 = vshrl.u32 2102212464, %v6047
        %v6057 = vor.u32 %v6055, %v6056
        %v6058 = vshll.u32 2102212464, %v6046
        %v6059 = vshrl.u32 920167782, %v6047
        %v6060 = vor.u32 %v6058, %v6059
        %v6061 = vshll.u32 920167782, %v6046
        %v6062 = vshrl.u32 1326507024, %v6047
        %v6063 = vor.u32 %v6061, %v6062
        %vm6064 = vcmp.lt.s32.totalorder %v6045, 1
        %vm6065 = vcmp.lt.s32.totalorder %v6045, 2
        %vm6066 = vcmp.lt.s32.totalorder %v6045, 3
        %vm6067 = vcmp.lt.s32.totalorder %v6045, 4
        %v6068 = vsel %vm6064, %v6048, %v6051
        %v6069 = vsel %vm6067, %v6057, 2102212464
        %v6070 = vsel %vm6066, %v6054, %v6069
        %v6071 = vsel %vm6065, %v6068, %v6070
        %v6072 = vsel %vm6064, %v6051, %v6054
        %v6073 = vsel %vm6067, %v6060, 920167782
        %v6074 = vsel %vm6066, %v6057, %v6073
        %v6075 = vsel %vm6065, %v6072, %v6074
        %v6076 = vsel %vm6064, %v6054, %v6057
        %v6077 = vsel %vm6067, %v6063, 1326507024
        %v6078 = vsel %vm6066, %v6060, %v6077
        %v6079 = vsel %vm6065, %v6076, %v6078
        %v6080 = vshll.u32 %v6040, 8
        %v6081 = vmul.u32.u64.compose %v6080, %v6079
        %v6082 = vextract.low.u32 %v6081
        %v6083 = vextract.high.u32 %v6081
        %v6084 = vmul.u32.u64.compose %v6080, %v6075
        %v6085 = vextract.low.u32 %v6084
        %v6086 = vextract.high.u32 %v6084
        %v6087 = vmul.u32 %v6080, %v6071
        %v6088 = vadd.s32 %v6083, %v6085
        %vm6089 = vc.u32 %v6083, %v6085
        %v6090 = vadd.s32 %v6086, 1
        %v6091 = vsel %vm6089, %v6090, %v6086
        %v6092 = vadd.s32 %v6087, %v6091
        %v6093 = vadd.s32 %v6092, 536870912
        %v6094 = vshrl.u32 %v6093, 30
        %v6095 = vshll.u32 %v6094, 30
        %v6096 = vsub.s32 %v6092, %v6095
        %vm6097 = vcmp.lt.s32.totalorder %v6096, 0
        %v6098 = vsub.s32 0, %v6096
        %v6099 = vsel %vm6097, %v6098, %v6096
        %v6100 = vclz %v6099
        %v6101 = vsub.s32 %v6100, 2
        %vm6102 = vcmp.gt.s32.totalorder 0, %v6101
        %v6103 = vsel %vm6102, 0, %v6101
        %v6104 = vsub.s32 32, %v6103
        %v6105 = vshll.u32 %v6096, %v6103
        %v6106 = vshrl.u32 %v6088, %v6104
        %v6107 = vor.u32 %v6105, %v6106
        %v6108 = vsub.s32 4294967266, %v6103
        %v6109 = vadd.s32 %v6108, 127
        %v6110 = vshll.u32 %v6109, 23
        %v6111 = vor.u32 4788187, %v6110
        %v6112 = vand.u32 2147483647, %v6111
        %v6114 = vcvt.s32.f32 %v6107
        %v6115 = vmul.f32 %v6114, %v6112
        %v6116 = vxor.u32 %v6115, 2147483648
        %v6117 = vsel %vm6034, %v6116, %v6115
        %v6118 = vsub.s32 4, %v6094
        %v6119 = vsel %vm6034, %v6118, %v6094
        %v6120 = vsel %vm6033, %v4572, %v6117
        %v6121 = vsel %vm6033, 0, %v6119
        %v6122 = vcosq.f32.pop %v6120
        %v6123 = vsinq.f32.pop %v6120
        %vm6124 = vweird.f32 %v4572
        %v6125 = vadd.s32 %v6121, 3
        %v6126 = vand.u32 %v6125, 3
        %vm6127 = vcmp.lt.s32.totalorder %v6126, 2
        %vm6128 = vcmp.eq.s32.totalorder %v6126, 0
        %v6129 = vxor.u32 %v6123, 2147483648
        %v6130 = vsel %vm6128, %v6122, %v6129
        %vm6131 = vcmp.eq.s32.totalorder %v6126, 2
        %v6132 = vxor.u32 %v6122, 2147483648
        %v6133 = vsel %vm6131, %v6132, %v6123
        %v6134 = vsel %vm6127, %v6130, %v6133
        %v6135 = vsel %vm6124, nan, %v6134
        %v6136 = vand.u32 2147483647, %v4574
        %vm6137 = vcmp.le.f32.partialorder %v6136, 0.7853982
        %vm6138 = vcmp.lt.s32.totalorder %v4574, 0
        %v6139 = vand.u32 %v4574, 2139095040
        %v6140 = vshrl.u32 %v6139, 23
        %v6141 = vsub.s32 %v6140, 127
        %v6142 = vand.u32 2147483647, %v4574
        %v6143 = vand.u32 %v6142, 8388607
        %v6144 = vor.u32 %v6143, 8388608
        %v6145 = vsub.s32 0, %v6144
        %v6146 = vadd.s32 %v6141, 1
        %vm6147 = vcmp.gt.s32.totalorder %v6146, 0
        %v6148 = vsel %vm6147, %v6146, 0
        %v6149 = vshrl.u32 %v6148, 5
        %v6150 = vand.u32 %v6148, 31
        %v6151 = vsub.s32 32, %v6150
        %v6152 = vshrl.u32 683565275, %v6151
        %v6153 = vshll.u32 683565275, %v6150
        %v6154 = vshrl.u32 2475754826, %v6151
        %v6155 = vor.u32 %v6153, %v6154
        %v6156 = vshll.u32 2475754826, %v6150
        %v6157 = vshrl.u32 2131351028, %v6151
        %v6158 = vor.u32 %v6156, %v6157
        %v6159 = vshll.u32 2131351028, %v6150
        %v6160 = vshrl.u32 2102212464, %v6151
        %v6161 = vor.u32 %v6159, %v6160
        %v6162 = vshll.u32 2102212464, %v6150
        %v6163 = vshrl.u32 920167782, %v6151
        %v6164 = vor.u32 %v6162, %v6163
        %v6165 = vshll.u32 920167782, %v6150
        %v6166 = vshrl.u32 1326507024, %v6151
        %v6167 = vor.u32 %v6165, %v6166
        %vm6168 = vcmp.lt.s32.totalorder %v6149, 1
        %vm6169 = vcmp.lt.s32.totalorder %v6149, 2
        %vm6170 = vcmp.lt.s32.totalorder %v6149, 3
        %vm6171 = vcmp.lt.s32.totalorder %v6149, 4
        %v6172 = vsel %vm6168, %v6152, %v6155
        %v6173 = vsel %vm6171, %v6161, 2102212464
        %v6174 = vsel %vm6170, %v6158, %v6173
        %v6175 = vsel %vm6169, %v6172, %v6174
        %v6176 = vsel %vm6168, %v6155, %v6158
        %v6177 = vsel %vm6171, %v6164, 920167782
        %v6178 = vsel %vm6170, %v6161, %v6177
        %v6179 = vsel %vm6169, %v6176, %v6178
        %v6180 = vsel %vm6168, %v6158, %v6161
        %v6181 = vsel %vm6171, %v6167, 1326507024
        %v6182 = vsel %vm6170, %v6164, %v6181
        %v6183 = vsel %vm6169, %v6180, %v6182
        %v6184 = vshll.u32 %v6144, 8
        %v6185 = vmul.u32.u64.compose %v6184, %v6183
        %v6186 = vextract.low.u32 %v6185
        %v6187 = vextract.high.u32 %v6185
        %v6188 = vmul.u32.u64.compose %v6184, %v6179
        %v6189 = vextract.low.u32 %v6188
        %v6190 = vextract.high.u32 %v6188
        %v6191 = vmul.u32 %v6184, %v6175
        %v6192 = vadd.s32 %v6187, %v6189
        %vm6193 = vc.u32 %v6187, %v6189
        %v6194 = vadd.s32 %v6190, 1
        %v6195 = vsel %vm6193, %v6194, %v6190
        %v6196 = vadd.s32 %v6191, %v6195
        %v6197 = vadd.s32 %v6196, 536870912
        %v6198 = vshrl.u32 %v6197, 30
        %v6199 = vshll.u32 %v6198, 30
        %v6200 = vsub.s32 %v6196, %v6199
        %vm6201 = vcmp.lt.s32.totalorder %v6200, 0
        %v6202 = vsub.s32 0, %v6200
        %v6203 = vsel %vm6201, %v6202, %v6200
        %v6204 = vclz %v6203
        %v6205 = vsub.s32 %v6204, 2
        %vm6206 = vcmp.gt.s32.totalorder 0, %v6205
        %v6207 = vsel %vm6206, 0, %v6205
        %v6208 = vsub.s32 32, %v6207
        %v6209 = vshll.u32 %v6200, %v6207
        %v6210 = vshrl.u32 %v6192, %v6208
        %v6211 = vor.u32 %v6209, %v6210
        %v6212 = vsub.s32 4294967266, %v6207
        %v6213 = vadd.s32 %v6212, 127
        %v6214 = vshll.u32 %v6213, 23
        %v6215 = vor.u32 4788187, %v6214
        %v6216 = vand.u32 2147483647, %v6215
        %v6218 = vcvt.s32.f32 %v6211
        %v6219 = vmul.f32 %v6218, %v6216
        %v6220 = vxor.u32 %v6219, 2147483648
        %v6221 = vsel %vm6138, %v6220, %v6219
        %v6222 = vsub.s32 4, %v6198
        %v6223 = vsel %vm6138, %v6222, %v6198
        %v6224 = vsel %vm6137, %v4574, %v6221
        %v6225 = vsel %vm6137, 0, %v6223
        %v6226 = vcosq.f32.pop %v6224
        %v6227 = vsinq.f32.pop %v6224
        %vm6228 = vweird.f32 %v4574
        %v6229 = vadd.s32 %v6225, 3
        %v6230 = vand.u32 %v6229, 3
        %vm6231 = vcmp.lt.s32.totalorder %v6230, 2
        %vm6232 = vcmp.eq.s32.totalorder %v6230, 0
        %v6233 = vxor.u32 %v6227, 2147483648
        %v6234 = vsel %vm6232, %v6226, %v6233
        %vm6235 = vcmp.eq.s32.totalorder %v6230, 2
        %v6236 = vxor.u32 %v6226, 2147483648
        %v6237 = vsel %vm6235, %v6236, %v6227
        %v6238 = vsel %vm6231, %v6234, %v6237
        %v6239 = vsel %vm6228, nan, %v6238
        %v6240 = vld [vmem:[%s7] sm:$0x1]
        %v6241 = vld [vmem:[#allocation2] sm:$0x1]
        %6243 = vset.pattern.permute.xlu0 0
        %6244 = vperm.xlu0 %6243, %v6241
        %v6245 = vpop.permute.xlu0 %6244
        %v6247 = vlaneseq
        %v6248 = vshrl.u32 %v6247, 7
        %v6249 = vsub.s32 0, %v6248
        %v6250 = vrot.slane %v6245, %v6249
        %v6252 = vsel %vm2503, %v6240, 0
        %6254 = vmatprep.subr.mxu0 %v4783
        %6255 = vmatpush1.msra.mxu0 %v4679
        %6256 = vmatprep.subr.mxu0 %v5199
        %6257 = vmatpush1.msra.mxu0 %v5095
        %6258 = vmatprep.subr.mxu0 %v5615
        %6259 = vmatpush1.msra.mxu0 %v5511
        %6260 = vmatprep.subr.mxu0 %v6031
        %6261 = vmatpush1.msra.mxu0 %v5927
        %6262 = vmatprep.subr.mxu0 0.0
        %6263 = vmatpush1.msra.mxu0 0.0
        %6264 = vmatprep.subr.mxu0 0.0
        %6265 = vmatpush1.msra.mxu0 0.0
        %6266 = vmatprep.subr.mxu0 0.0
        %6267 = vmatpush1.msra.mxu0 0.0
        %6268 = vmatprep.subr.mxu0 0.0
        %6269 = vmatpush1.msra.mxu0 0.0
        %6270 = vmatprep.subr.mxu0 0.0
        %6271 = vmatpush1.msra.mxu0 0.0
        %6272 = vmatprep.subr.mxu0 0.0
        %6273 = vmatpush1.msra.mxu0 0.0
        %6274 = vmatprep.subr.mxu0 0.0
        %6275 = vmatpush1.msra.mxu0 0.0
        %6276 = vmatprep.subr.mxu0 0.0
        %6277 = vmatpush1.msra.mxu0 0.0
        %6278 = vmatprep.subr.mxu0 0.0
        %6279 = vmatpush1.msra.mxu0 0.0
        %6280 = vmatprep.subr.mxu0 0.0
        %6281 = vmatpush1.msra.mxu0 0.0
        %6282 = vmatprep.subr.mxu0 0.0
        %6283 = vmatpush1.msra.mxu0 0.0
        %6284 = vmatprep.subr.mxu0 0.0
        %6285 = vmatpush1.msra.mxu0 0.0
        %6286 = vmatprep.subr.mxu0 0.0
        %6287 = vmatpush1.msra.mxu0 0.0
        %6288 = vmatprep.subr.mxu0 0.0
        %6289 = vmatpush1.msra.mxu0 0.0
        %6290 = vmatprep.subr.mxu0 0.0
        %6291 = vmatpush1.msra.mxu0 0.0
        %6292 = vmatprep.subr.mxu0 0.0
        %6293 = vmatpush1.msra.mxu0 0.0
        %6294 = vmatprep.subr.mxu0 0.0
        %6295 = vmatpush1.msra.mxu0 0.0
        %6296 = vmatprep.subr.mxu0 0.0
        %6297 = vmatpush1.msra.mxu0 0.0
        %6298 = vmatprep.subr.mxu0 0.0
        %6299 = vmatpush1.msra.mxu0 0.0
        %6300 = vmatprep.subr.mxu0 0.0
        %6301 = vmatpush1.msra.mxu0 0.0
        %6302 = vmatprep.subr.mxu0 0.0
        %6303 = vmatpush1.msra.mxu0 0.0
        %6304 = vmatprep.subr.mxu0 0.0
        %6305 = vmatpush1.msra.mxu0 0.0
        %6306 = vmatprep.subr.mxu0 0.0
        %6307 = vmatpush1.msra.mxu0 0.0
        %6308 = vmatprep.subr.mxu0 0.0
        %6309 = vmatpush1.msra.mxu0 0.0
        %6310 = vmatprep.subr.mxu0 0.0
        %6311 = vmatpush1.msra.mxu0 0.0
        %6312 = vmatprep.subr.mxu0 0.0
        %6313 = vmatpush1.msra.mxu0 0.0
        %6314 = vmatprep.subr.mxu0 0.0
        %6315 = vmatpush1.msra.mxu0 0.0
        %6316 = vmatprep.subr.mxu0 0.0
        %6317 = vmatpush1.msra.mxu0 0.0
        %6318 = vmatprep.mubr.f32.mxu0 0.0
        %6319 = vmatmul.mubr.f32.gmra.mrb[0].mxu0 %v6252
        %v6320 = vpop.f32.mrb[0].mxu0
        %v6321 = vadd.f32 %v6250, %v6320
        %v6322 = vpop.f32.mrb[0].mxu0
        %v6323 = vadd.f32 %v6250, %v6322
        %6324 = vdwg.mxu0
        %6325 = vmatprep.subr.mxu0 %v4991
        %6326 = vmatpush1.msra.mxu0 %v4887
        %6327 = vmatprep.subr.mxu0 %v5407
        %6328 = vmatpush1.msra.mxu0 %v5303
        %6329 = vmatprep.subr.mxu0 %v5823
        %6330 = vmatpush1.msra.mxu0 %v5719
        %6331 = vmatprep.subr.mxu0 %v6239
        %6332 = vmatpush1.msra.mxu0 %v6135
        %6333 = vmatprep.subr.mxu0 0.0
        %6334 = vmatpush1.msra.mxu0 0.0
        %6335 = vmatprep.subr.mxu0 0.0
        %6336 = vmatpush1.msra.mxu0 0.0
        %6337 = vmatprep.subr.mxu0 0.0
        %6338 = vmatpush1.msra.mxu0 0.0
        %6339 = vmatprep.subr.mxu0 0.0
        %6340 = vmatpush1.msra.mxu0 0.0
        %6341 = vmatprep.subr.mxu0 0.0
        %6342 = vmatpush1.msra.mxu0 0.0
        %6343 = vmatprep.subr.mxu0 0.0
        %6344 = vmatpush1.msra.mxu0 0.0
        %6345 = vmatprep.subr.mxu0 0.0
        %6346 = vmatpush1.msra.mxu0 0.0
        %6347 = vmatprep.subr.mxu0 0.0
        %6348 = vmatpush1.msra.mxu0 0.0
        %6349 = vmatprep.subr.mxu0 0.0
        %6350 = vmatpush1.msra.mxu0 0.0
        %6351 = vmatprep.subr.mxu0 0.0
        %6352 = vmatpush1.msra.mxu0 0.0
        %6353 = vmatprep.subr.mxu0 0.0
        %6354 = vmatpush1.msra.mxu0 0.0
        %6355 = vmatprep.subr.mxu0 0.0
        %6356 = vmatpush1.msra.mxu0 0.0
        %6357 = vmatprep.subr.mxu0 0.0
        %6358 = vmatpush1.msra.mxu0 0.0
        %6359 = vmatprep.subr.mxu0 0.0
        %6360 = vmatpush1.msra.mxu0 0.0
        %6361 = vmatprep.subr.mxu0 0.0
        %6362 = vmatpush1.msra.mxu0 0.0
        %6363 = vmatprep.subr.mxu0 0.0
        %6364 = vmatpush1.msra.mxu0 0.0
        %6365 = vmatprep.subr.mxu0 0.0
        %6366 = vmatpush1.msra.mxu0 0.0
        %6367 = vmatprep.subr.mxu0 0.0
        %6368 = vmatpush1.msra.mxu0 0.0
        %6369 = vmatprep.subr.mxu0 0.0
        %6370 = vmatpush1.msra.mxu0 0.0
        %6371 = vmatprep.subr.mxu0 0.0
        %6372 = vmatpush1.msra.mxu0 0.0
        %6373 = vmatprep.subr.mxu0 0.0
        %6374 = vmatpush1.msra.mxu0 0.0
        %6375 = vmatprep.subr.mxu0 0.0
        %6376 = vmatpush1.msra.mxu0 0.0
        %6377 = vmatprep.subr.mxu0 0.0
        %6378 = vmatpush1.msra.mxu0 0.0
        %6379 = vmatprep.subr.mxu0 0.0
        %6380 = vmatpush1.msra.mxu0 0.0
        %6381 = vmatprep.subr.mxu0 0.0
        %6382 = vmatpush1.msra.mxu0 0.0
        %6383 = vmatprep.subr.mxu0 0.0
        %6384 = vmatpush1.msra.mxu0 0.0
        %6385 = vmatprep.subr.mxu0 0.0
        %6386 = vmatpush1.msra.mxu0 0.0
        %6387 = vmatprep.subr.mxu0 0.0
        %6388 = vmatpush1.msra.mxu0 0.0
        %6389 = vmatprep.mubr.f32.mxu0 0.0
        %6390 = vmatmul.mubr.f32.gmra.mrb[0].mxu0 %v6252
        %v6391 = vpop.f32.mrb[0].mxu0
        %v6392 = vadd.f32 %v6250, %v6391
        %v6393 = vpop.f32.mrb[0].mxu0
        %v6394 = vadd.f32 %v6250, %v6393
        %6395 = vdwg.mxu0
        %v6396 = vand.u32 2147483647, %v6321
        %vm6397 = vcmp.le.f32.partialorder %v6396, 0.7853982
        %vm6398 = vcmp.lt.s32.totalorder %v6321, 0
        %v6399 = vand.u32 %v6321, 2139095040
        %v6400 = vshrl.u32 %v6399, 23
        %v6401 = vsub.s32 %v6400, 127
        %v6402 = vand.u32 2147483647, %v6321
        %v6403 = vand.u32 %v6402, 8388607
        %v6404 = vor.u32 %v6403, 8388608
        %v6405 = vsub.s32 0, %v6404
        %v6406 = vadd.s32 %v6401, 1
        %vm6407 = vcmp.gt.s32.totalorder %v6406, 0
        %v6408 = vsel %vm6407, %v6406, 0
        %v6409 = vshrl.u32 %v6408, 5
        %v6410 = vand.u32 %v6408, 31
        %v6411 = vsub.s32 32, %v6410
        %v6412 = vshrl.u32 683565275, %v6411
        %v6413 = vshll.u32 683565275, %v6410
        %v6414 = vshrl.u32 2475754826, %v6411
        %v6415 = vor.u32 %v6413, %v6414
        %v6416 = vshll.u32 2475754826, %v6410
        %v6417 = vshrl.u32 2131351028, %v6411
        %v6418 = vor.u32 %v6416, %v6417
        %v6419 = vshll.u32 2131351028, %v6410
        %v6420 = vshrl.u32 2102212464, %v6411
        %v6421 = vor.u32 %v6419, %v6420
        %v6422 = vshll.u32 2102212464, %v6410
        %v6423 = vshrl.u32 920167782, %v6411
        %v6424 = vor.u32 %v6422, %v6423
        %v6425 = vshll.u32 920167782, %v6410
        %v6426 = vshrl.u32 1326507024, %v6411
        %v6427 = vor.u32 %v6425, %v6426
        %vm6428 = vcmp.lt.s32.totalorder %v6409, 1
        %vm6429 = vcmp.lt.s32.totalorder %v6409, 2
        %vm6430 = vcmp.lt.s32.totalorder %v6409, 3
        %vm6431 = vcmp.lt.s32.totalorder %v6409, 4
        %v6432 = vsel %vm6428, %v6412, %v6415
        %v6433 = vsel %vm6431, %v6421, 2102212464
        %v6434 = vsel %vm6430, %v6418, %v6433
        %v6435 = vsel %vm6429, %v6432, %v6434
        %v6436 = vsel %vm6428, %v6415, %v6418
        %v6437 = vsel %vm6431, %v6424, 920167782
        %v6438 = vsel %vm6430, %v6421, %v6437
        %v6439 = vsel %vm6429, %v6436, %v6438
        %v6440 = vsel %vm6428, %v6418, %v6421
        %v6441 = vsel %vm6431, %v6427, 1326507024
        %v6442 = vsel %vm6430, %v6424, %v6441
        %v6443 = vsel %vm6429, %v6440, %v6442
        %v6444 = vshll.u32 %v6404, 8
        %v6445 = vmul.u32.u64.compose %v6444, %v6443
        %v6446 = vextract.low.u32 %v6445
        %v6447 = vextract.high.u32 %v6445
        %v6448 = vmul.u32.u64.compose %v6444, %v6439
        %v6449 = vextract.low.u32 %v6448
        %v6450 = vextract.high.u32 %v6448
        %v6451 = vmul.u32 %v6444, %v6435
        %v6452 = vadd.s32 %v6447, %v6449
        %vm6453 = vc.u32 %v6447, %v6449
        %v6454 = vadd.s32 %v6450, 1
        %v6455 = vsel %vm6453, %v6454, %v6450
        %v6456 = vadd.s32 %v6451, %v6455
        %v6457 = vadd.s32 %v6456, 536870912
        %v6458 = vshrl.u32 %v6457, 30
        %v6459 = vshll.u32 %v6458, 30
        %v6460 = vsub.s32 %v6456, %v6459
        %vm6461 = vcmp.lt.s32.totalorder %v6460, 0
        %v6462 = vsub.s32 0, %v6460
        %v6463 = vsel %vm6461, %v6462, %v6460
        %v6464 = vclz %v6463
        %v6465 = vsub.s32 %v6464, 2
        %vm6466 = vcmp.gt.s32.totalorder 0, %v6465
        %v6467 = vsel %vm6466, 0, %v6465
        %v6468 = vsub.s32 32, %v6467
        %v6469 = vshll.u32 %v6460, %v6467
        %v6470 = vshrl.u32 %v6452, %v6468
        %v6471 = vor.u32 %v6469, %v6470
        %v6472 = vsub.s32 4294967266, %v6467
        %v6473 = vadd.s32 %v6472, 127
        %v6474 = vshll.u32 %v6473, 23
        %v6475 = vor.u32 4788187, %v6474
        %v6476 = vand.u32 2147483647, %v6475
        %v6478 = vcvt.s32.f32 %v6471
        %v6479 = vmul.f32 %v6478, %v6476
        %v6480 = vxor.u32 %v6479, 2147483648
        %v6481 = vsel %vm6398, %v6480, %v6479
        %v6482 = vsub.s32 4, %v6458
        %v6483 = vsel %vm6398, %v6482, %v6458
        %v6484 = vsel %vm6397, %v6321, %v6481
        %v6485 = vsel %vm6397, 0, %v6483
        %v6486 = vcosq.f32.pop %v6484
        %v6487 = vsinq.f32.pop %v6484
        %vm6488 = vweird.f32 %v6321
        %v6489 = vadd.s32 %v6485, 3
        %v6490 = vand.u32 %v6489, 3
        %vm6491 = vcmp.lt.s32.totalorder %v6490, 2
        %vm6492 = vcmp.eq.s32.totalorder %v6490, 0
        %v6493 = vxor.u32 %v6487, 2147483648
        %v6494 = vsel %vm6492, %v6486, %v6493
        %vm6495 = vcmp.eq.s32.totalorder %v6490, 2
        %v6496 = vxor.u32 %v6486, 2147483648
        %v6497 = vsel %vm6495, %v6496, %v6487
        %v6498 = vsel %vm6491, %v6494, %v6497
        %v6499 = vsel %vm6488, nan, %v6498
        %v6500 = vand.u32 2147483647, %v6323
        %vm6501 = vcmp.le.f32.partialorder %v6500, 0.7853982
        %vm6502 = vcmp.lt.s32.totalorder %v6323, 0
        %v6503 = vand.u32 %v6323, 2139095040
        %v6504 = vshrl.u32 %v6503, 23
        %v6505 = vsub.s32 %v6504, 127
        %v6506 = vand.u32 2147483647, %v6323
        %v6507 = vand.u32 %v6506, 8388607
        %v6508 = vor.u32 %v6507, 8388608
        %v6509 = vsub.s32 0, %v6508
        %v6510 = vadd.s32 %v6505, 1
        %vm6511 = vcmp.gt.s32.totalorder %v6510, 0
        %v6512 = vsel %vm6511, %v6510, 0
        %v6513 = vshrl.u32 %v6512, 5
        %v6514 = vand.u32 %v6512, 31
        %v6515 = vsub.s32 32, %v6514
        %v6516 = vshrl.u32 683565275, %v6515
        %v6517 = vshll.u32 683565275, %v6514
        %v6518 = vshrl.u32 2475754826, %v6515
        %v6519 = vor.u32 %v6517, %v6518
        %v6520 = vshll.u32 2475754826, %v6514
        %v6521 = vshrl.u32 2131351028, %v6515
        %v6522 = vor.u32 %v6520, %v6521
        %v6523 = vshll.u32 2131351028, %v6514
        %v6524 = vshrl.u32 2102212464, %v6515
        %v6525 = vor.u32 %v6523, %v6524
        %v6526 = vshll.u32 2102212464, %v6514
        %v6527 = vshrl.u32 920167782, %v6515
        %v6528 = vor.u32 %v6526, %v6527
        %v6529 = vshll.u32 920167782, %v6514
        %v6530 = vshrl.u32 1326507024, %v6515
        %v6531 = vor.u32 %v6529, %v6530
        %vm6532 = vcmp.lt.s32.totalorder %v6513, 1
        %vm6533 = vcmp.lt.s32.totalorder %v6513, 2
        %vm6534 = vcmp.lt.s32.totalorder %v6513, 3
        %vm6535 = vcmp.lt.s32.totalorder %v6513, 4
        %v6536 = vsel %vm6532, %v6516, %v6519
        %v6537 = vsel %vm6535, %v6525, 2102212464
        %v6538 = vsel %vm6534, %v6522, %v6537
        %v6539 = vsel %vm6533, %v6536, %v6538
        %v6540 = vsel %vm6532, %v6519, %v6522
        %v6541 = vsel %vm6535, %v6528, 920167782
        %v6542 = vsel %vm6534, %v6525, %v6541
        %v6543 = vsel %vm6533, %v6540, %v6542
        %v6544 = vsel %vm6532, %v6522, %v6525
        %v6545 = vsel %vm6535, %v6531, 1326507024
        %v6546 = vsel %vm6534, %v6528, %v6545
        %v6547 = vsel %vm6533, %v6544, %v6546
        %v6548 = vshll.u32 %v6508, 8
        %v6549 = vmul.u32.u64.compose %v6548, %v6547
        %v6550 = vextract.low.u32 %v6549
        %v6551 = vextract.high.u32 %v6549
        %v6552 = vmul.u32.u64.compose %v6548, %v6543
        %v6553 = vextract.low.u32 %v6552
        %v6554 = vextract.high.u32 %v6552
        %v6555 = vmul.u32 %v6548, %v6539
        %v6556 = vadd.s32 %v6551, %v6553
        %vm6557 = vc.u32 %v6551, %v6553
        %v6558 = vadd.s32 %v6554, 1
        %v6559 = vsel %vm6557, %v6558, %v6554
        %v6560 = vadd.s32 %v6555, %v6559
        %v6561 = vadd.s32 %v6560, 536870912
        %v6562 = vshrl.u32 %v6561, 30
        %v6563 = vshll.u32 %v6562, 30
        %v6564 = vsub.s32 %v6560, %v6563
        %vm6565 = vcmp.lt.s32.totalorder %v6564, 0
        %v6566 = vsub.s32 0, %v6564
        %v6567 = vsel %vm6565, %v6566, %v6564
        %v6568 = vclz %v6567
        %v6569 = vsub.s32 %v6568, 2
        %vm6570 = vcmp.gt.s32.totalorder 0, %v6569
        %v6571 = vsel %vm6570, 0, %v6569
        %v6572 = vsub.s32 32, %v6571
        %v6573 = vshll.u32 %v6564, %v6571
        %v6574 = vshrl.u32 %v6556, %v6572
        %v6575 = vor.u32 %v6573, %v6574
        %v6576 = vsub.s32 4294967266, %v6571
        %v6577 = vadd.s32 %v6576, 127
        %v6578 = vshll.u32 %v6577, 23
        %v6579 = vor.u32 4788187, %v6578
        %v6580 = vand.u32 2147483647, %v6579
        %v6582 = vcvt.s32.f32 %v6575
        %v6583 = vmul.f32 %v6582, %v6580
        %v6584 = vxor.u32 %v6583, 2147483648
        %v6585 = vsel %vm6502, %v6584, %v6583
        %v6586 = vsub.s32 4, %v6562
        %v6587 = vsel %vm6502, %v6586, %v6562
        %v6588 = vsel %vm6501, %v6323, %v6585
        %v6589 = vsel %vm6501, 0, %v6587
        %v6590 = vcosq.f32.pop %v6588
        %v6591 = vsinq.f32.pop %v6588
        %vm6592 = vweird.f32 %v6323
        %v6593 = vadd.s32 %v6589, 3
        %v6594 = vand.u32 %v6593, 3
        %vm6595 = vcmp.lt.s32.totalorder %v6594, 2
        %vm6596 = vcmp.eq.s32.totalorder %v6594, 0
        %v6597 = vxor.u32 %v6591, 2147483648
        %v6598 = vsel %vm6596, %v6590, %v6597
        %vm6599 = vcmp.eq.s32.totalorder %v6594, 2
        %v6600 = vxor.u32 %v6590, 2147483648
        %v6601 = vsel %vm6599, %v6600, %v6591
        %v6602 = vsel %vm6595, %v6598, %v6601
        %v6603 = vsel %vm6592, nan, %v6602
        %v6604 = vand.u32 2147483647, %v6392
        %vm6605 = vcmp.le.f32.partialorder %v6604, 0.7853982
        %vm6606 = vcmp.lt.s32.totalorder %v6392, 0
        %v6607 = vand.u32 %v6392, 2139095040
        %v6608 = vshrl.u32 %v6607, 23
        %v6609 = vsub.s32 %v6608, 127
        %v6610 = vand.u32 2147483647, %v6392
        %v6611 = vand.u32 %v6610, 8388607
        %v6612 = vor.u32 %v6611, 8388608
        %v6613 = vsub.s32 0, %v6612
        %v6614 = vadd.s32 %v6609, 1
        %vm6615 = vcmp.gt.s32.totalorder %v6614, 0
        %v6616 = vsel %vm6615, %v6614, 0
        %v6617 = vshrl.u32 %v6616, 5
        %v6618 = vand.u32 %v6616, 31
        %v6619 = vsub.s32 32, %v6618
        %v6620 = vshrl.u32 683565275, %v6619
        %v6621 = vshll.u32 683565275, %v6618
        %v6622 = vshrl.u32 2475754826, %v6619
        %v6623 = vor.u32 %v6621, %v6622
        %v6624 = vshll.u32 2475754826, %v6618
        %v6625 = vshrl.u32 2131351028, %v6619
        %v6626 = vor.u32 %v6624, %v6625
        %v6627 = vshll.u32 2131351028, %v6618
        %v6628 = vshrl.u32 2102212464, %v6619
        %v6629 = vor.u32 %v6627, %v6628
        %v6630 = vshll.u32 2102212464, %v6618
        %v6631 = vshrl.u32 920167782, %v6619
        %v6632 = vor.u32 %v6630, %v6631
        %v6633 = vshll.u32 920167782, %v6618
        %v6634 = vshrl.u32 1326507024, %v6619
        %v6635 = vor.u32 %v6633, %v6634
        %vm6636 = vcmp.lt.s32.totalorder %v6617, 1
        %vm6637 = vcmp.lt.s32.totalorder %v6617, 2
        %vm6638 = vcmp.lt.s32.totalorder %v6617, 3
        %vm6639 = vcmp.lt.s32.totalorder %v6617, 4
        %v6640 = vsel %vm6636, %v6620, %v6623
        %v6641 = vsel %vm6639, %v6629, 2102212464
        %v6642 = vsel %vm6638, %v6626, %v6641
        %v6643 = vsel %vm6637, %v6640, %v6642
        %v6644 = vsel %vm6636, %v6623, %v6626
        %v6645 = vsel %vm6639, %v6632, 920167782
        %v6646 = vsel %vm6638, %v6629, %v6645
        %v6647 = vsel %vm6637, %v6644, %v6646
        %v6648 = vsel %vm6636, %v6626, %v6629
        %v6649 = vsel %vm6639, %v6635, 1326507024
        %v6650 = vsel %vm6638, %v6632, %v6649
        %v6651 = vsel %vm6637, %v6648, %v6650
        %v6652 = vshll.u32 %v6612, 8
        %v6653 = vmul.u32.u64.compose %v6652, %v6651
        %v6654 = vextract.low.u32 %v6653
        %v6655 = vextract.high.u32 %v6653
        %v6656 = vmul.u32.u64.compose %v6652, %v6647
        %v6657 = vextract.low.u32 %v6656
        %v6658 = vextract.high.u32 %v6656
        %v6659 = vmul.u32 %v6652, %v6643
        %v6660 = vadd.s32 %v6655, %v6657
        %vm6661 = vc.u32 %v6655, %v6657
        %v6662 = vadd.s32 %v6658, 1
        %v6663 = vsel %vm6661, %v6662, %v6658
        %v6664 = vadd.s32 %v6659, %v6663
        %v6665 = vadd.s32 %v6664, 536870912
        %v6666 = vshrl.u32 %v6665, 30
        %v6667 = vshll.u32 %v6666, 30
        %v6668 = vsub.s32 %v6664, %v6667
        %vm6669 = vcmp.lt.s32.totalorder %v6668, 0
        %v6670 = vsub.s32 0, %v6668
        %v6671 = vsel %vm6669, %v6670, %v6668
        %v6672 = vclz %v6671
        %v6673 = vsub.s32 %v6672, 2
        %vm6674 = vcmp.gt.s32.totalorder 0, %v6673
        %v6675 = vsel %vm6674, 0, %v6673
        %v6676 = vsub.s32 32, %v6675
        %v6677 = vshll.u32 %v6668, %v6675
        %v6678 = vshrl.u32 %v6660, %v6676
        %v6679 = vor.u32 %v6677, %v6678
        %v6680 = vsub.s32 4294967266, %v6675
        %v6681 = vadd.s32 %v6680, 127
        %v6682 = vshll.u32 %v6681, 23
        %v6683 = vor.u32 4788187, %v6682
        %v6684 = vand.u32 2147483647, %v6683
        %v6686 = vcvt.s32.f32 %v6679
        %v6687 = vmul.f32 %v6686, %v6684
        %v6688 = vxor.u32 %v6687, 2147483648
        %v6689 = vsel %vm6606, %v6688, %v6687
        %v6690 = vsub.s32 4, %v6666
        %v6691 = vsel %vm6606, %v6690, %v6666
        %v6692 = vsel %vm6605, %v6392, %v6689
        %v6693 = vsel %vm6605, 0, %v6691
        %v6694 = vcosq.f32.pop %v6692
        %v6695 = vsinq.f32.pop %v6692
        %vm6696 = vweird.f32 %v6392
        %v6697 = vadd.s32 %v6693, 3
        %v6698 = vand.u32 %v6697, 3
        %vm6699 = vcmp.lt.s32.totalorder %v6698, 2
        %vm6700 = vcmp.eq.s32.totalorder %v6698, 0
        %v6701 = vxor.u32 %v6695, 2147483648
        %v6702 = vsel %vm6700, %v6694, %v6701
        %vm6703 = vcmp.eq.s32.totalorder %v6698, 2
        %v6704 = vxor.u32 %v6694, 2147483648
        %v6705 = vsel %vm6703, %v6704, %v6695
        %v6706 = vsel %vm6699, %v6702, %v6705
        %v6707 = vsel %vm6696, nan, %v6706
        %v6708 = vand.u32 2147483647, %v6394
        %vm6709 = vcmp.le.f32.partialorder %v6708, 0.7853982
        %vm6710 = vcmp.lt.s32.totalorder %v6394, 0
        %v6711 = vand.u32 %v6394, 2139095040
        %v6712 = vshrl.u32 %v6711, 23
        %v6713 = vsub.s32 %v6712, 127
        %v6714 = vand.u32 2147483647, %v6394
        %v6715 = vand.u32 %v6714, 8388607
        %v6716 = vor.u32 %v6715, 8388608
        %v6717 = vsub.s32 0, %v6716
        %v6718 = vadd.s32 %v6713, 1
        %vm6719 = vcmp.gt.s32.totalorder %v6718, 0
        %v6720 = vsel %vm6719, %v6718, 0
        %v6721 = vshrl.u32 %v6720, 5
        %v6722 = vand.u32 %v6720, 31
        %v6723 = vsub.s32 32, %v6722
        %v6724 = vshrl.u32 683565275, %v6723
        %v6725 = vshll.u32 683565275, %v6722
        %v6726 = vshrl.u32 2475754826, %v6723
        %v6727 = vor.u32 %v6725, %v6726
        %v6728 = vshll.u32 2475754826, %v6722
        %v6729 = vshrl.u32 2131351028, %v6723
        %v6730 = vor.u32 %v6728, %v6729
        %v6731 = vshll.u32 2131351028, %v6722
        %v6732 = vshrl.u32 2102212464, %v6723
        %v6733 = vor.u32 %v6731, %v6732
        %v6734 = vshll.u32 2102212464, %v6722
        %v6735 = vshrl.u32 920167782, %v6723
        %v6736 = vor.u32 %v6734, %v6735
        %v6737 = vshll.u32 920167782, %v6722
        %v6738 = vshrl.u32 1326507024, %v6723
        %v6739 = vor.u32 %v6737, %v6738
        %vm6740 = vcmp.lt.s32.totalorder %v6721, 1
        %vm6741 = vcmp.lt.s32.totalorder %v6721, 2
        %vm6742 = vcmp.lt.s32.totalorder %v6721, 3
        %vm6743 = vcmp.lt.s32.totalorder %v6721, 4
        %v6744 = vsel %vm6740, %v6724, %v6727
        %v6745 = vsel %vm6743, %v6733, 2102212464
        %v6746 = vsel %vm6742, %v6730, %v6745
        %v6747 = vsel %vm6741, %v6744, %v6746
        %v6748 = vsel %vm6740, %v6727, %v6730
        %v6749 = vsel %vm6743, %v6736, 920167782
        %v6750 = vsel %vm6742, %v6733, %v6749
        %v6751 = vsel %vm6741, %v6748, %v6750
        %v6752 = vsel %vm6740, %v6730, %v6733
        %v6753 = vsel %vm6743, %v6739, 1326507024
        %v6754 = vsel %vm6742, %v6736, %v6753
        %v6755 = vsel %vm6741, %v6752, %v6754
        %v6756 = vshll.u32 %v6716, 8
        %v6757 = vmul.u32.u64.compose %v6756, %v6755
        %v6758 = vextract.low.u32 %v6757
        %v6759 = vextract.high.u32 %v6757
        %v6760 = vmul.u32.u64.compose %v6756, %v6751
        %v6761 = vextract.low.u32 %v6760
        %v6762 = vextract.high.u32 %v6760
        %v6763 = vmul.u32 %v6756, %v6747
        %v6764 = vadd.s32 %v6759, %v6761
        %vm6765 = vc.u32 %v6759, %v6761
        %v6766 = vadd.s32 %v6762, 1
        %v6767 = vsel %vm6765, %v6766, %v6762
        %v6768 = vadd.s32 %v6763, %v6767
        %v6769 = vadd.s32 %v6768, 536870912
        %v6770 = vshrl.u32 %v6769, 30
        %v6771 = vshll.u32 %v6770, 30
        %v6772 = vsub.s32 %v6768, %v6771
        %vm6773 = vcmp.lt.s32.totalorder %v6772, 0
        %v6774 = vsub.s32 0, %v6772
        %v6775 = vsel %vm6773, %v6774, %v6772
        %v6776 = vclz %v6775
        %v6777 = vsub.s32 %v6776, 2
        %vm6778 = vcmp.gt.s32.totalorder 0, %v6777
        %v6779 = vsel %vm6778, 0, %v6777
        %v6780 = vsub.s32 32, %v6779
        %v6781 = vshll.u32 %v6772, %v6779
        %v6782 = vshrl.u32 %v6764, %v6780
        %v6783 = vor.u32 %v6781, %v6782
        %v6784 = vsub.s32 4294967266, %v6779
        %v6785 = vadd.s32 %v6784, 127
        %v6786 = vshll.u32 %v6785, 23
        %v6787 = vor.u32 4788187, %v6786
        %v6788 = vand.u32 2147483647, %v6787
        %v6790 = vcvt.s32.f32 %v6783
        %v6791 = vmul.f32 %v6790, %v6788
        %v6792 = vxor.u32 %v6791, 2147483648
        %v6793 = vsel %vm6710, %v6792, %v6791
        %v6794 = vsub.s32 4, %v6770
        %v6795 = vsel %vm6710, %v6794, %v6770
        %v6796 = vsel %vm6709, %v6394, %v6793
        %v6797 = vsel %vm6709, 0, %v6795
        %v6798 = vcosq.f32.pop %v6796
        %v6799 = vsinq.f32.pop %v6796
        %vm6800 = vweird.f32 %v6394
        %v6801 = vadd.s32 %v6797, 3
        %v6802 = vand.u32 %v6801, 3
        %vm6803 = vcmp.lt.s32.totalorder %v6802, 2
        %vm6804 = vcmp.eq.s32.totalorder %v6802, 0
        %v6805 = vxor.u32 %v6799, 2147483648
        %v6806 = vsel %vm6804, %v6798, %v6805
        %vm6807 = vcmp.eq.s32.totalorder %v6802, 2
        %v6808 = vxor.u32 %v6798, 2147483648
        %v6809 = vsel %vm6807, %v6808, %v6799
        %v6810 = vsel %vm6803, %v6806, %v6809
        %v6811 = vsel %vm6800, nan, %v6810
        %v6816 = vcombine.low %v6499, %v6603
        %v6817 = vcombine.low %v6707, %v6811
        %v6819 = vunpack.c.l.s4 1966171168
        %v6820 = vunpack.c.0.s8 %v6819
        %v6821 = vlaneseq
        %v6822 = vshrl.u32 %v6821, 7
        %v6823 = vsub.s32 %v6820, %v6822
        %v6824 = vrot.slane %v6816, %v6823
        %v6826 = vunpack.c.l.s4 1966171168
        %v6827 = vunpack.c.0.s8 %v6826
        %v6828 = vlaneseq
        %v6829 = vshrl.u32 %v6828, 7
        %v6830 = vsub.s32 %v6827, %v6829
        %v6831 = vrot.slane %v6817, %v6830
        %v6832 = vcombine.low %v6824, %v6831
        %v6834 = vunpack.c.l.s4 1966171168
        %v6835 = vunpack.c.0.s8 %v6834
        %v6836 = vlaneseq
        %v6837 = vshrl.u32 %v6836, 7
        %v6838 = vsub.s32 %v6835, %v6837
        %v6839 = vrot.slane %v6832, %v6838
        %v6841 = vlaneseq
        %vm6842 = vcmp.ge.s32.totalorder %v6841, 0
        %vm6843 = vcmp.lt.s32.totalorder %v6841, 512
        %vm6844 = vmand %vm6842, %vm6843
        %6845 = vst.msk [vmem:[%s328] sm:$0xf] %vm6844, %v6839
        %s6846 = sand.u32 %s227, 1
        %s6847 = scalar_lea.sflag [#allocation4], %s6846
        %s6848 = sand.u32 %s227, 1
        %s6849 = smul.addr %s6848, 4
        %s6850 = scalar_lea.vmem [#allocation3], %s6849
        // Predicated region
        $region57: #{tpu_custom_call.1} parent=55 // pred_check
          %p6851 = pneg %p237
        $region58: #{tpu_custom_call.1} parent=55 // pred_check_branch
          %6853 = sbr.rel (%p6851) target = $region60
        $region59: #{tpu_custom_call.1} parent=55 // pred_region
          %s6854 = smul.u32 4, %s25
          %s6856 = ssub.s32 64, 64
          %6857 = vsyncadd %s6847, %s6856
          %s6858 = smul.addr %s6854, 16
          %s6859 = scalar_lea.hbm %s9, %s6858
          %s6861 = sshll.u32 %s6850, 4
          %s6862 = int_to_ptr.vmem [resolvable:$true] %s6861
          %6864 = dma.vmem_to_hbm [thread:$0]  %s6862, 64, %s6859, %s6847
        $region60: #{tpu_custom_call.1} parent=55 // pred_fallthru
          _
      $region56: #{tpu_custom_call.1} parent=5 // pred_fallthru
        _
      %p6865 = scmp.le.s32.totalorder 2, %s20
      // Predicated region
      $region61: #{tpu_custom_call.1} parent=5 // pred_check
        %p6866 = pneg %p6865
      $region62: #{tpu_custom_call.1} parent=5 // pred_check_branch
        %6868 = sbr.rel (%p6866) target = $region64
      $region63: #{tpu_custom_call.1} parent=5 // pred_region
        %s6869 = ssub.s32 %s20, 2
        // Predicated region
        $region65: #{tpu_custom_call.1} parent=63 // pred_check
          %p6870 = pneg %p243
        $region66: #{tpu_custom_call.1} parent=63 // pred_check_branch
          %6872 = sbr.rel (%p6870) target = $region68
        $region67: #{tpu_custom_call.1} parent=63 // pred_region
          %s6873 = sand.u32 %s228, 1
          %s6874 = scalar_lea.sflag [#allocation4], %s6873
          %s6875 = sand.u32 %s228, 1
          %s6876 = smul.addr %s6875, 4
          %s6877 = scalar_lea.vmem [#allocation3], %s6876
          %6878 = dma.done %s6874, 64
        $region68: #{tpu_custom_call.1} parent=63 // pred_fallthru
          _
      $region64: #{tpu_custom_call.1} parent=5 // pred_fallthru
        _
    $region6: #{tpu_custom_call.1} parent=1 // loop_footer
      %s24 = sadd.s32 1, %s20
    $region7: #{tpu_custom_call.1} parent=1 // loop_footer_branch
      %19 = sbr.rel target = $region3
    $region8: #{tpu_custom_call.1} parent=1 // loop_exit
      _
    %6879 = vsyncpa [#allocation4], 1
    %s6880 = scalar_lea.sflag [#allocation4], 1
    %6881 = vsyncpa %s6880, 1

</llo_original>
